<compile_context>
chip_gen: v7x
topology: tpu7x:2x2x1
jax: 0.10.0
libtpu: 0.0.40
codegen_flags: <defaults>
</compile_context>

<pallas_src>
import functools

import jax
import jax.numpy as jnp
from jax import lax
from jax.experimental import pallas as pl
from jax.experimental.pallas import tpu as pltpu


# --------------------------------------------------------------------------
# Fused BasicBlock kernels
# --------------------------------------------------------------------------
def _zero_halo(h1_ref, nb, H, W, Cout):
    # Zero only the 1-element halo ring of the padded scratch (interior is
    # fully overwritten every step).
    zrow = jnp.zeros((nb, 1, W + 2, Cout), h1_ref.dtype)
    zcol = jnp.zeros((nb, H + 2, 1, Cout), h1_ref.dtype)
    h1_ref[:, 0:1, :, :] = zrow
    h1_ref[:, H + 1:H + 2, :, :] = zrow
    h1_ref[:, :, 0:1, :] = zcol
    h1_ref[:, :, W + 1:W + 2, :] = zcol


def _conv3x3_from_padded_scratch(h1_ref, w_ref, nb, H, W, Cout):
    # 3x3 stride-1 conv as a 9-tap dot accumulation (f32 acc on the MXU).
    M = nb * H * W
    acc = None
    for k, (ky, kx) in enumerate((ky, kx) for ky in range(3) for kx in range(3)):
        tap = h1_ref[:, ky:ky + H, kx:kx + W, :].reshape(M, Cout)
        p = jnp.dot(tap, w_ref[k], preferred_element_type=jnp.float32)
        acc = p if acc is None else acc + p
    return acc


def _block_stride1_kernel(*refs, nb, H, W, Cin, Cout, has_proj):
    if has_proj:
        (x_ref, w1_ref, s1_ref, b1_ref, w2_ref, s2_ref, b2_ref,
         wsc_ref, ssc_ref, bsc_ref, out_ref, h1_ref) = refs
    else:
        (x_ref, w1_ref, s1_ref, b1_ref, w2_ref, s2_ref, b2_ref,
         out_ref, h1_ref) = refs

    M = nb * H * W

    # ---- conv1 (3x3, stride 1) + BN + ReLU: 9-tap accumulation, no concat
    h1 = None
    for k, (ky, kx) in enumerate((ky, kx) for ky in range(3) for kx in range(3)):
        tap = x_ref[:, ky:ky + H, kx:kx + W, :].reshape(M, Cin)
        p = jnp.dot(tap, w1_ref[k], preferred_element_type=jnp.float32)
        h1 = p if h1 is None else h1 + p
    h1 = jnp.maximum(h1 * s1_ref[...] + b1_ref[...], 0.0)

    # ---- keep padded conv1 activation in VMEM (halo-only zeroing)
    _zero_halo(h1_ref, nb, H, W, Cout)
    h1_ref[:, 1:H + 1, 1:W + 1, :] = h1.reshape(nb, H, W, Cout).astype(h1_ref.dtype)

    # ---- conv2 (3x3, stride 1) + BN
    h2 = _conv3x3_from_padded_scratch(h1_ref, w2_ref, nb, H, W, Cout)
    h2 = h2 * s2_ref[...] + b2_ref[...]

    # ---- shortcut
    xi = x_ref[:, 1:H + 1, 1:W + 1, :].reshape(M, Cin)
    if has_proj:
        sc = jnp.dot(xi, wsc_ref[...], preferred_element_type=jnp.float32)
        sc = sc * ssc_ref[...] + bsc_ref[...]
    else:
        sc = xi.astype(jnp.float32)          # identity: plain f32 add, no matmul

    y = jnp.maximum(h2 + sc, 0.0)
    out_ref[...] = y.reshape(nb, H, W, Cout).astype(out_ref.dtype)


def _block_downsample_kernel(xs_ref, w1_ref, s1_ref, b1_ref, w2_ref, s2_ref,
                             b2_ref, wsc_ref, ssc_ref, bsc_ref, out_ref, h1_ref,
                             *, nb, Ho, Wo, Cin, Cout):
    # xs_ref: (nb, Ho+1, Wo+1, 4*Cin) bf16 space-to-depth of the padded input
    # w1_ref: (4, 4*Cin, Cout) bf16 -- the stride-2 3x3 conv re-expressed as a
    #         stride-1 2x2 conv over the 4*Cin s2d channels (zero-filled taps)
    # wsc_ref:(Cin, Cout) bf16 -- 1x1 stride-2 conv acts only on the (odd,odd)
    #         parity channel group of the padded input
    M = nb * Ho * Wo
    C4 = 4 * Cin

    # ---- conv1 (3x3, stride 2 via s2d) + BN + ReLU: 4-tap accumulation
    h1 = None
    for d, (dy, dx) in enumerate((dy, dx) for dy in range(2) for dx in range(2)):
        tap = xs_ref[:, dy:dy + Ho, dx:dx + Wo, :].reshape(M, C4)
        p = jnp.dot(tap, w1_ref[d], preferred_element_type=jnp.float32)
        h1 = p if h1 is None else h1 + p
    h1 = jnp.maximum(h1 * s1_ref[...] + b1_ref[...], 0.0)

    _zero_halo(h1_ref, nb, Ho, Wo, Cout)
    h1_ref[:, 1:Ho + 1, 1:Wo + 1, :] = h1.reshape(nb, Ho, Wo, Cout).astype(h1_ref.dtype)

    # ---- conv2 (3x3, stride 1) + BN
    h2 = _conv3x3_from_padded_scratch(h1_ref, w2_ref, nb, Ho, Wo, Cout)
    h2 = h2 * s2_ref[...] + b2_ref[...]

    # ---- projection shortcut (1x1, stride 2): only (odd,odd) parity channels
    xodd = xs_ref[:, 0:Ho, 0:Wo, 3 * Cin:4 * Cin].reshape(M, Cin)
    sc = jnp.dot(xodd, wsc_ref[...], preferred_element_type=jnp.float32)
    sc = sc * ssc_ref[...] + bsc_ref[...]

    y = jnp.maximum(h2 + sc, 0.0)
    out_ref[...] = y.reshape(nb, Ho, Wo, Cout).astype(out_ref.dtype)


# --------------------------------------------------------------------------
# pallas_call wrapper
# --------------------------------------------------------------------------
def _const_spec(a):
    # Full-array block with a constant index map (fetched once per core).
    # TODO(synk): add pipeline_mode=pl.Buffered(1) (single-buffered constants)
    # once validated on the target jax build -- halves constant VMEM on v7x.
    nd = a.ndim
    return pl.BlockSpec(a.shape, lambda n, _nd=nd: (0,) * _nd)


def _run_block(kernel, x, param_list, nb, Ho, Wo, Cout):
    N, Hs, Ws, Cx = x.shape
    assert N % nb == 0
    return pl.pallas_call(
        kernel,
        out_shape=jax.ShapeDtypeStruct((N, Ho, Wo, Cout), jnp.bfloat16),
        grid=(N // nb,),
        in_specs=[pl.BlockSpec((nb, Hs, Ws, Cx), lambda n: (n, 0, 0, 0))]
                 + [_const_spec(a) for a in param_list],
        out_specs=pl.BlockSpec((nb, Ho, Wo, Cout), lambda n: (n, 0, 0, 0)),
        scratch_shapes=[pltpu.VMEM((nb, Ho + 2, Wo + 2, Cout), jnp.bfloat16)],
        compiler_params=pltpu.CompilerParams(
            dimension_semantics=("parallel",),
            vmem_limit_bytes=64 * 1024 * 1024),
    )(x, *param_list)


# --------------------------------------------------------------------------
# Weight packing for the space-to-depth downsample path (layout glue)
# --------------------------------------------------------------------------
def _pack_w1_s2d(w1):
    # 3x3/stride-2 conv -> stride-1 2x2 conv over space-to-depth channels.
    # w[dy, dx, py, px, c, o] = w1[2*dy+py, 2*dx+px, c, o]   (zero if ky/kx == 3)
    _, _, Cin, Cout = w1.shape
    w = jnp.zeros((2, 2, 2, 2, Cin, Cout), w1.dtype)
    for ky in range(3):
        for kx in range(3):
            w = w.at[ky // 2, kx // 2, ky % 2, kx % 2].set(w1[ky, kx])
    return w.reshape(4, 4 * Cin, Cout)          # tap index d = 2*dy + dx


# --------------------------------------------------------------------------
# BasicBlock forward (wrapper = layout glue only)
# --------------------------------------------------------------------------
def basic_block_forward(x_nchw, params, *, downsample, images_per_step=None):
    x = jnp.transpose(x_nchw, (0, 2, 3, 1)).astype(jnp.float32)     # NHWC
    N, H, W, Cin = x.shape
    Cout = params["w2"].shape[-1]

    if images_per_step is None:
        # Fold batch into the matmul M dimension, but keep >= 2 grid steps so
        # both v7x TensorCores stay busy.
        images_per_step = N // 2 if (N >= 4 and N % 2 == 0) else 1
    nb = images_per_step

    bf = lambda a: a.astype(jnp.bfloat16)
    x_pad = bf(jnp.pad(x, ((0, 0), (1, 1), (1, 1), (0, 0))))
    w2 = bf(params["w2"].reshape(9, Cout, Cout))
    s1, b1, s2, b2 = params["s1"], params["b1"], params["s2"], params["b2"]

    if downsample:
        assert H % 2 == 0 and W % 2 == 0, "downsample path requires even H, W"
        assert "w_sc" in params, "downsample requires the projection shortcut"
        # space-to-depth: (N, H+2, W+2, C) -> (N, (H+2)/2, (W+2)/2, 4C)
        Hp, Wp = H + 2, W + 2
        xs = x_pad.reshape(N, Hp // 2, 2, Wp // 2, 2, Cin)
        xs = xs.transpose(0, 1, 3, 2, 4, 5).reshape(N, Hp // 2, Wp // 2, 4 * Cin)
        Ho, Wo = H // 2, W // 2
        w1 = bf(_pack_w1_s2d(params["w1"]))                 # (4, 4*Cin, Cout)
        wsc = bf(params["w_sc"])                            # (Cin, Cout)
        kern = functools.partial(_block_downsample_kernel,
                                 nb=nb, Ho=Ho, Wo=Wo, Cin=Cin, Cout=Cout)
        y = _run_block(kern, xs,
                       [w1, s1, b1, w2, s2, b2,
                        wsc, params["s_sc"], params["b_sc"]],
                       nb, Ho, Wo, Cout)
    else:
        w1 = bf(params["w1"].reshape(9, Cin, Cout))
        has_proj = "w_sc" in params
        plist = [w1, s1, b1, w2, s2, b2]
        if has_proj:
            plist += [bf(params["w_sc"]), params["s_sc"], params["b_sc"]]
        else:
            assert Cin == Cout, "identity shortcut requires in_dim == out_dim"
        kern = functools.partial(_block_stride1_kernel,
                                 nb=nb, H=H, W=W, Cin=Cin, Cout=Cout,
                                 has_proj=has_proj)
        y = _run_block(kern, x_pad, plist, nb, H, W, Cout)

    # back to NCHW, f32 (matching the PyTorch module's dtype)
    return jnp.transpose(y, (0, 3, 1, 2)).astype(jnp.float32)


# --------------------------------------------------------------------------
# Deterministic parameter init (synthetic) + pure-JAX reference
# --------------------------------------------------------------------------
def _fold_bn(gamma, beta, mean, var, eps=1e-5):
    scale = gamma * lax.rsqrt(var + eps)
    bias = beta - mean * scale
    return (scale.reshape(1, -1).astype(jnp.float32),
            bias.reshape(1, -1).astype(jnp.float32))


def init_params(key, in_dim, out_dim):
    ks = jax.random.split(key, 16)

    def bn(i, c):
        gamma = 1.0 + 0.1 * jax.random.normal(ks[i], (c,), jnp.float32)
        beta = 0.1 * jax.random.normal(ks[i + 1], (c,), jnp.float32)
        mean = 0.05 * jax.random.normal(ks[i + 2], (c,), jnp.float32)
        var = 0.5 + jax.random.uniform(ks[i + 3], (c,), jnp.float32)
        return _fold_bn(gamma, beta, mean, var)

    p = {}
    p["w1"] = 0.2 * jax.random.normal(ks[12], (3, 3, in_dim, out_dim), jnp.float32)
    p["w2"] = 0.2 * jax.random.normal(ks[13], (3, 3, out_dim, out_dim), jnp.float32)
    p["s1"], p["b1"] = bn(0, out_dim)
    p["s2"], p["b2"] = bn(4, out_dim)
    if in_dim != out_dim:
        p["w_sc"] = 0.2 * jax.random.normal(ks[14], (in_dim, out_dim), jnp.float32)
        p["s_sc"], p["b_sc"] = bn(8, out_dim)
    return p


def reference_forward(x_nchw, params, *, downsample):
    stride = 2 if downsample else 1
    x = jnp.transpose(x_nchw, (0, 2, 3, 1)).astype(jnp.float32)
    conv = functools.partial(lax.conv_general_dilated,
                             dimension_numbers=("NHWC", "HWIO", "NHWC"),
                             precision=lax.Precision.HIGHEST)
    h = conv(x, params["w1"], (stride, stride), ((1, 1), (1, 1)))
    h = jnp.maximum(h * params["s1"] + params["b1"], 0.0)
    h = conv(h, params["w2"], (1, 1), ((1, 1), (1, 1)))
    h = h * params["s2"] + params["b2"]
    if "w_sc" in params:
        sc = conv(x, params["w_sc"][None, None], (stride, stride), ((0, 0), (0, 0)))
        sc = sc * params["s_sc"] + params["b_sc"]
    else:
        sc = x
    y = jnp.maximum(h + sc, 0.0)
    return jnp.transpose(y, (0, 3, 1, 2))


# --------------------------------------------------------------------------
if __name__ == "__main__":
    key = jax.random.PRNGKey(0)
    kx, kp1, kp2, kp3 = jax.random.split(key, 4)
    x = jax.random.normal(kx, (2, 4, 16, 16), jnp.float32)   # NCHW, like PyTorch

    fwd = jax.jit(basic_block_forward, static_argnames=("downsample",))

    # BasicBlock(4, 4, downsample=False): identity shortcut (no matmul).
    p_same = init_params(kp1, 4, 4)
    y_same = fwd(x, p_same, downsample=False)

    # BasicBlock(4, 8, downsample=False): stride-1 + projection shortcut.
    p_proj = init_params(kp3, 4, 8)
    y_proj = fwd(x, p_proj, downsample=False)

    # BasicBlock(4, 8, downsample=True): strided convs + projection shortcut.
    p_down = init_params(kp2, 4, 8)
    y_down = fwd(x, p_down, downsample=True)

    jax.block_until_ready((y_same, y_proj, y_down))

    assert y_same.shape == (2, 4, 16, 16)
    assert y_proj.shape == (2, 8, 16, 16)
    assert y_down.shape == (2, 8, 8, 8)

    r_same = reference_forward(x, p_same, downsample=False)
    r_proj = reference_forward(x, p_proj, downsample=False)
    r_down = reference_forward(x, p_down, downsample=True)
    # bf16 MXU operands + bf16 output vs f32 HIGHEST reference -> modest tol.
    assert jnp.allclose(y_same, r_same, atol=7e-2, rtol=7e-2)
    assert jnp.allclose(y_proj, r_proj, atol=7e-2, rtol=7e-2)
    assert jnp.allclose(y_down, r_down, atol=7e-2, rtol=7e-2)

    print("KERNEL_OK")
</pallas_src>

<mosaic_0001>
module attributes {stable_mosaic.version = 11 : i64} {
  func.func @_block_stride1_kernel(%arg0: i32, %arg1: memref<1x18x18x4xbf16, #tpu.memory_space<vmem>>, %arg2: memref<9x4x4xbf16, #tpu.memory_space<vmem>>, %arg3: memref<1x4xf32, #tpu.memory_space<vmem>>, %arg4: memref<1x4xf32, #tpu.memory_space<vmem>>, %arg5: memref<9x4x4xbf16, #tpu.memory_space<vmem>>, %arg6: memref<1x4xf32, #tpu.memory_space<vmem>>, %arg7: memref<1x4xf32, #tpu.memory_space<vmem>>, %arg8: memref<1x16x16x4xbf16, #tpu.memory_space<vmem>>, %arg9: memref<1x18x18x4xbf16, #tpu.memory_space<vmem>>) attributes {dimension_semantics = [#tpu.dimension_semantics<parallel>], iteration_bounds = array<i64: 2>, scalar_prefetch = 0 : i64, scratch_operands = 1 : i64, tpu.core_type = #tpu.core_type<tc>, window_params = [{transform_indices = @transform_0, window_bounds = array<i64: 1, 18, 18, 4>}, {pipeline_mode = #tpu.pipeline_mode<synchronous>, transform_indices = @transform_1, window_bounds = array<i64: 9, 4, 4>}, {pipeline_mode = #tpu.pipeline_mode<synchronous>, transform_indices = @transform_2, window_bounds = array<i64: 1, 4>}, {pipeline_mode = #tpu.pipeline_mode<synchronous>, transform_indices = @transform_3, window_bounds = array<i64: 1, 4>}, {pipeline_mode = #tpu.pipeline_mode<synchronous>, transform_indices = @transform_4, window_bounds = array<i64: 9, 4, 4>}, {pipeline_mode = #tpu.pipeline_mode<synchronous>, transform_indices = @transform_5, window_bounds = array<i64: 1, 4>}, {pipeline_mode = #tpu.pipeline_mode<synchronous>, transform_indices = @transform_6, window_bounds = array<i64: 1, 4>}, {transform_indices = @transform_7, window_bounds = array<i64: 1, 16, 16, 4>}]} {
    %c0 = arith.constant 0 : index
    %c0_0 = arith.constant 0 : index
    %c0_1 = arith.constant 0 : index
    %c0_2 = arith.constant 0 : index
    %0 = vector.load %arg1[%c0, %c0_0, %c0_1, %c0_2] : memref<1x18x18x4xbf16, #tpu.memory_space<vmem>>, vector<1x16x16x4xbf16>
    %1 = vector.shape_cast %0 : vector<1x16x16x4xbf16> to vector<256x4xbf16>
    %c0_3 = arith.constant 0 : index
    %c0_4 = arith.constant 0 : index
    %c0_5 = arith.constant 0 : index
    %2 = vector.load %arg2[%c0_3, %c0_4, %c0_5] : memref<9x4x4xbf16, #tpu.memory_space<vmem>>, vector<1x4x4xbf16>
    %3 = vector.shape_cast %2 : vector<1x4x4xbf16> to vector<4x4xbf16>
    %cst = arith.constant dense<0.000000e+00> : vector<256x4xf32>
    %4 = tpu.matmul %1, %3, %cst {dimension_numbers = #tpu.dot_dimension_numbers<[1], [0], [0], [1], [0, 0, 1, 1], [], []>} : vector<256x4xbf16>, vector<4x4xbf16>, vector<256x4xf32> -> vector<256x4xf32>
    %c0_6 = arith.constant 0 : index
    %c0_7 = arith.constant 0 : index
    %c1 = arith.constant 1 : index
    %c0_8 = arith.constant 0 : index
    %5 = vector.load %arg1[%c0_6, %c0_7, %c1, %c0_8] : memref<1x18x18x4xbf16, #tpu.memory_space<vmem>>, vector<1x16x16x4xbf16>
    %6 = vector.shape_cast %5 : vector<1x16x16x4xbf16> to vector<256x4xbf16>
    %c1_9 = arith.constant 1 : index
    %c0_10 = arith.constant 0 : index
    %c0_11 = arith.constant 0 : index
    %7 = vector.load %arg2[%c1_9, %c0_10, %c0_11] : memref<9x4x4xbf16, #tpu.memory_space<vmem>>, vector<1x4x4xbf16>
    %8 = vector.shape_cast %7 : vector<1x4x4xbf16> to vector<4x4xbf16>
    %cst_12 = arith.constant dense<0.000000e+00> : vector<256x4xf32>
    %9 = tpu.matmul %6, %8, %cst_12 {dimension_numbers = #tpu.dot_dimension_numbers<[1], [0], [0], [1], [0, 0, 1, 1], [], []>} : vector<256x4xbf16>, vector<4x4xbf16>, vector<256x4xf32> -> vector<256x4xf32>
    %10 = arith.addf %4, %9 : vector<256x4xf32>
    %c0_13 = arith.constant 0 : index
    %c0_14 = arith.constant 0 : index
    %c2 = arith.constant 2 : index
    %c0_15 = arith.constant 0 : index
    %11 = vector.load %arg1[%c0_13, %c0_14, %c2, %c0_15] : memref<1x18x18x4xbf16, #tpu.memory_space<vmem>>, vector<1x16x16x4xbf16>
    %12 = vector.shape_cast %11 : vector<1x16x16x4xbf16> to vector<256x4xbf16>
    %c2_16 = arith.constant 2 : index
    %c0_17 = arith.constant 0 : index
    %c0_18 = arith.constant 0 : index
    %13 = vector.load %arg2[%c2_16, %c0_17, %c0_18] : memref<9x4x4xbf16, #tpu.memory_space<vmem>>, vector<1x4x4xbf16>
    %14 = vector.shape_cast %13 : vector<1x4x4xbf16> to vector<4x4xbf16>
    %cst_19 = arith.constant dense<0.000000e+00> : vector<256x4xf32>
    %15 = tpu.matmul %12, %14, %cst_19 {dimension_numbers = #tpu.dot_dimension_numbers<[1], [0], [0], [1], [0, 0, 1, 1], [], []>} : vector<256x4xbf16>, vector<4x4xbf16>, vector<256x4xf32> -> vector<256x4xf32>
    %16 = arith.addf %10, %15 : vector<256x4xf32>
    %c0_20 = arith.constant 0 : index
    %c1_21 = arith.constant 1 : index
    %c0_22 = arith.constant 0 : index
    %c0_23 = arith.constant 0 : index
    %17 = vector.load %arg1[%c0_20, %c1_21, %c0_22, %c0_23] : memref<1x18x18x4xbf16, #tpu.memory_space<vmem>>, vector<1x16x16x4xbf16>
    %18 = vector.shape_cast %17 : vector<1x16x16x4xbf16> to vector<256x4xbf16>
    %c3 = arith.constant 3 : index
    %c0_24 = arith.constant 0 : index
    %c0_25 = arith.constant 0 : index
    %19 = vector.load %arg2[%c3, %c0_24, %c0_25] : memref<9x4x4xbf16, #tpu.memory_space<vmem>>, vector<1x4x4xbf16>
    %20 = vector.shape_cast %19 : vector<1x4x4xbf16> to vector<4x4xbf16>
    %cst_26 = arith.constant dense<0.000000e+00> : vector<256x4xf32>
    %21 = tpu.matmul %18, %20, %cst_26 {dimension_numbers = #tpu.dot_dimension_numbers<[1], [0], [0], [1], [0, 0, 1, 1], [], []>} : vector<256x4xbf16>, vector<4x4xbf16>, vector<256x4xf32> -> vector<256x4xf32>
    %22 = arith.addf %16, %21 : vector<256x4xf32>
    %c0_27 = arith.constant 0 : index
    %c1_28 = arith.constant 1 : index
    %c1_29 = arith.constant 1 : index
    %c0_30 = arith.constant 0 : index
    %23 = vector.load %arg1[%c0_27, %c1_28, %c1_29, %c0_30] : memref<1x18x18x4xbf16, #tpu.memory_space<vmem>>, vector<1x16x16x4xbf16>
    %24 = vector.shape_cast %23 : vector<1x16x16x4xbf16> to vector<256x4xbf16>
    %c4 = arith.constant 4 : index
    %c0_31 = arith.constant 0 : index
    %c0_32 = arith.constant 0 : index
    %25 = vector.load %arg2[%c4, %c0_31, %c0_32] : memref<9x4x4xbf16, #tpu.memory_space<vmem>>, vector<1x4x4xbf16>
    %26 = vector.shape_cast %25 : vector<1x4x4xbf16> to vector<4x4xbf16>
    %cst_33 = arith.constant dense<0.000000e+00> : vector<256x4xf32>
    %27 = tpu.matmul %24, %26, %cst_33 {dimension_numbers = #tpu.dot_dimension_numbers<[1], [0], [0], [1], [0, 0, 1, 1], [], []>} : vector<256x4xbf16>, vector<4x4xbf16>, vector<256x4xf32> -> vector<256x4xf32>
    %28 = arith.addf %22, %27 : vector<256x4xf32>
    %c0_34 = arith.constant 0 : index
    %c1_35 = arith.constant 1 : index
    %c2_36 = arith.constant 2 : index
    %c0_37 = arith.constant 0 : index
    %29 = vector.load %arg1[%c0_34, %c1_35, %c2_36, %c0_37] : memref<1x18x18x4xbf16, #tpu.memory_space<vmem>>, vector<1x16x16x4xbf16>
    %30 = vector.shape_cast %29 : vector<1x16x16x4xbf16> to vector<256x4xbf16>
    %c5 = arith.constant 5 : index
    %c0_38 = arith.constant 0 : index
    %c0_39 = arith.constant 0 : index
    %31 = vector.load %arg2[%c5, %c0_38, %c0_39] : memref<9x4x4xbf16, #tpu.memory_space<vmem>>, vector<1x4x4xbf16>
    %32 = vector.shape_cast %31 : vector<1x4x4xbf16> to vector<4x4xbf16>
    %cst_40 = arith.constant dense<0.000000e+00> : vector<256x4xf32>
    %33 = tpu.matmul %30, %32, %cst_40 {dimension_numbers = #tpu.dot_dimension_numbers<[1], [0], [0], [1], [0, 0, 1, 1], [], []>} : vector<256x4xbf16>, vector<4x4xbf16>, vector<256x4xf32> -> vector<256x4xf32>
    %34 = arith.addf %28, %33 : vector<256x4xf32>
    %c0_41 = arith.constant 0 : index
    %c2_42 = arith.constant 2 : index
    %c0_43 = arith.constant 0 : index
    %c0_44 = arith.constant 0 : index
    %35 = vector.load %arg1[%c0_41, %c2_42, %c0_43, %c0_44] : memref<1x18x18x4xbf16, #tpu.memory_space<vmem>>, vector<1x16x16x4xbf16>
    %36 = vector.shape_cast %35 : vector<1x16x16x4xbf16> to vector<256x4xbf16>
    %c6 = arith.constant 6 : index
    %c0_45 = arith.constant 0 : index
    %c0_46 = arith.constant 0 : index
    %37 = vector.load %arg2[%c6, %c0_45, %c0_46] : memref<9x4x4xbf16, #tpu.memory_space<vmem>>, vector<1x4x4xbf16>
    %38 = vector.shape_cast %37 : vector<1x4x4xbf16> to vector<4x4xbf16>
    %cst_47 = arith.constant dense<0.000000e+00> : vector<256x4xf32>
    %39 = tpu.matmul %36, %38, %cst_47 {dimension_numbers = #tpu.dot_dimension_numbers<[1], [0], [0], [1], [0, 0, 1, 1], [], []>} : vector<256x4xbf16>, vector<4x4xbf16>, vector<256x4xf32> -> vector<256x4xf32>
    %40 = arith.addf %34, %39 : vector<256x4xf32>
    %c0_48 = arith.constant 0 : index
    %c2_49 = arith.constant 2 : index
    %c1_50 = arith.constant 1 : index
    %c0_51 = arith.constant 0 : index
    %41 = vector.load %arg1[%c0_48, %c2_49, %c1_50, %c0_51] : memref<1x18x18x4xbf16, #tpu.memory_space<vmem>>, vector<1x16x16x4xbf16>
    %42 = vector.shape_cast %41 : vector<1x16x16x4xbf16> to vector<256x4xbf16>
    %c7 = arith.constant 7 : index
    %c0_52 = arith.constant 0 : index
    %c0_53 = arith.constant 0 : index
    %43 = vector.load %arg2[%c7, %c0_52, %c0_53] : memref<9x4x4xbf16, #tpu.memory_space<vmem>>, vector<1x4x4xbf16>
    %44 = vector.shape_cast %43 : vector<1x4x4xbf16> to vector<4x4xbf16>
    %cst_54 = arith.constant dense<0.000000e+00> : vector<256x4xf32>
    %45 = tpu.matmul %42, %44, %cst_54 {dimension_numbers = #tpu.dot_dimension_numbers<[1], [0], [0], [1], [0, 0, 1, 1], [], []>} : vector<256x4xbf16>, vector<4x4xbf16>, vector<256x4xf32> -> vector<256x4xf32>
    %46 = arith.addf %40, %45 : vector<256x4xf32>
    %c0_55 = arith.constant 0 : index
    %c2_56 = arith.constant 2 : index
    %c2_57 = arith.constant 2 : index
    %c0_58 = arith.constant 0 : index
    %47 = vector.load %arg1[%c0_55, %c2_56, %c2_57, %c0_58] : memref<1x18x18x4xbf16, #tpu.memory_space<vmem>>, vector<1x16x16x4xbf16>
    %48 = vector.shape_cast %47 : vector<1x16x16x4xbf16> to vector<256x4xbf16>
    %c8 = arith.constant 8 : index
    %c0_59 = arith.constant 0 : index
    %c0_60 = arith.constant 0 : index
    %49 = vector.load %arg2[%c8, %c0_59, %c0_60] : memref<9x4x4xbf16, #tpu.memory_space<vmem>>, vector<1x4x4xbf16>
    %50 = vector.shape_cast %49 : vector<1x4x4xbf16> to vector<4x4xbf16>
    %cst_61 = arith.constant dense<0.000000e+00> : vector<256x4xf32>
    %51 = tpu.matmul %48, %50, %cst_61 {dimension_numbers = #tpu.dot_dimension_numbers<[1], [0], [0], [1], [0, 0, 1, 1], [], []>} : vector<256x4xbf16>, vector<4x4xbf16>, vector<256x4xf32> -> vector<256x4xf32>
    %52 = arith.addf %46, %51 : vector<256x4xf32>
    %c0_62 = arith.constant 0 : index
    %c0_63 = arith.constant 0 : index
    %53 = vector.load %arg3[%c0_62, %c0_63] : memref<1x4xf32, #tpu.memory_space<vmem>>, vector<1x4xf32>
    %54 = vector.broadcast %53 : vector<1x4xf32> to vector<256x4xf32>
    %55 = arith.mulf %52, %54 : vector<256x4xf32>
    %c0_64 = arith.constant 0 : index
    %c0_65 = arith.constant 0 : index
    %56 = vector.load %arg4[%c0_64, %c0_65] : memref<1x4xf32, #tpu.memory_space<vmem>>, vector<1x4xf32>
    %57 = vector.broadcast %56 : vector<1x4xf32> to vector<256x4xf32>
    %58 = arith.addf %55, %57 : vector<256x4xf32>
    %cst_66 = arith.constant 0.000000e+00 : f32
    %59 = vector.broadcast %cst_66 : f32 to vector<256x4xf32>
    %60 = arith.maximumf %58, %59 : vector<256x4xf32>
    %cst_67 = arith.constant 0.000000e+00 : bf16
    %61 = vector.broadcast %cst_67 : bf16 to vector<1x1x18x4xbf16>
    %cst_68 = arith.constant 0.000000e+00 : bf16
    %62 = vector.broadcast %cst_68 : bf16 to vector<1x18x1x4xbf16>
    %c0_69 = arith.constant 0 : index
    %c0_70 = arith.constant 0 : index
    %c0_71 = arith.constant 0 : index
    %c0_72 = arith.constant 0 : index
    %63 = vector.load %arg9[%c0_69, %c0_70, %c0_71, %c0_72] : memref<1x18x18x4xbf16, #tpu.memory_space<vmem>>, vector<1x1x18x4xbf16>
    tpu.vector_store %arg9[%c0_69, %c0_70, %c0_71, %c0_72], %61 {strides = array<i32>} : memref<1x18x18x4xbf16, #tpu.memory_space<vmem>>, vector<1x1x18x4xbf16>,
    %c0_73 = arith.constant 0 : index
    %c17 = arith.constant 17 : index
    %c0_74 = arith.constant 0 : index
    %c0_75 = arith.constant 0 : index
    %64 = vector.load %arg9[%c0_73, %c17, %c0_74, %c0_75] : memref<1x18x18x4xbf16, #tpu.memory_space<vmem>>, vector<1x1x18x4xbf16>
    tpu.vector_store %arg9[%c0_73, %c17, %c0_74, %c0_75], %61 {strides = array<i32>} : memref<1x18x18x4xbf16, #tpu.memory_space<vmem>>, vector<1x1x18x4xbf16>,
    %c0_76 = arith.constant 0 : index
    %c0_77 = arith.constant 0 : index
    %c0_78 = arith.constant 0 : index
    %c0_79 = arith.constant 0 : index
    %65 = vector.load %arg9[%c0_76, %c0_77, %c0_78, %c0_79] : memref<1x18x18x4xbf16, #tpu.memory_space<vmem>>, vector<1x18x1x4xbf16>
    tpu.vector_store %arg9[%c0_76, %c0_77, %c0_78, %c0_79], %62 {strides = array<i32>} : memref<1x18x18x4xbf16, #tpu.memory_space<vmem>>, vector<1x18x1x4xbf16>,
    %c0_80 = arith.constant 0 : index
    %c0_81 = arith.constant 0 : index
    %c17_82 = arith.constant 17 : index
    %c0_83 = arith.constant 0 : index
    %66 = vector.load %arg9[%c0_80, %c0_81, %c17_82, %c0_83] : memref<1x18x18x4xbf16, #tpu.memory_space<vmem>>, vector<1x18x1x4xbf16>
    tpu.vector_store %arg9[%c0_80, %c0_81, %c17_82, %c0_83], %62 {strides = array<i32>} : memref<1x18x18x4xbf16, #tpu.memory_space<vmem>>, vector<1x18x1x4xbf16>,
    %67 = vector.shape_cast %60 : vector<256x4xf32> to vector<1x16x16x4xf32>
    %68 = arith.truncf %67 : vector<1x16x16x4xf32> to vector<1x16x16x4xbf16>
    %c0_84 = arith.constant 0 : index
    %c1_85 = arith.constant 1 : index
    %c1_86 = arith.constant 1 : index
    %c0_87 = arith.constant 0 : index
    %69 = vector.load %arg9[%c0_84, %c1_85, %c1_86, %c0_87] : memref<1x18x18x4xbf16, #tpu.memory_space<vmem>>, vector<1x16x16x4xbf16>
    tpu.vector_store %arg9[%c0_84, %c1_85, %c1_86, %c0_87], %68 {strides = array<i32>} : memref<1x18x18x4xbf16, #tpu.memory_space<vmem>>, vector<1x16x16x4xbf16>,
    %c0_88 = arith.constant 0 : index
    %c0_89 = arith.constant 0 : index
    %c0_90 = arith.constant 0 : index
    %c0_91 = arith.constant 0 : index
    %70 = vector.load %arg9[%c0_88, %c0_89, %c0_90, %c0_91] : memref<1x18x18x4xbf16, #tpu.memory_space<vmem>>, vector<1x16x16x4xbf16>
    %71 = vector.shape_cast %70 : vector<1x16x16x4xbf16> to vector<256x4xbf16>
    %c0_92 = arith.constant 0 : index
    %c0_93 = arith.constant 0 : index
    %c0_94 = arith.constant 0 : index
    %72 = vector.load %arg5[%c0_92, %c0_93, %c0_94] : memref<9x4x4xbf16, #tpu.memory_space<vmem>>, vector<1x4x4xbf16>
    %73 = vector.shape_cast %72 : vector<1x4x4xbf16> to vector<4x4xbf16>
    %cst_95 = arith.constant dense<0.000000e+00> : vector<256x4xf32>
    %74 = tpu.matmul %71, %73, %cst_95 {dimension_numbers = #tpu.dot_dimension_numbers<[1], [0], [0], [1], [0, 0, 1, 1], [], []>} : vector<256x4xbf16>, vector<4x4xbf16>, vector<256x4xf32> -> vector<256x4xf32>
    %c0_96 = arith.constant 0 : index
    %c0_97 = arith.constant 0 : index
    %c1_98 = arith.constant 1 : index
    %c0_99 = arith.constant 0 : index
    %75 = vector.load %arg9[%c0_96, %c0_97, %c1_98, %c0_99] : memref<1x18x18x4xbf16, #tpu.memory_space<vmem>>, vector<1x16x16x4xbf16>
    %76 = vector.shape_cast %75 : vector<1x16x16x4xbf16> to vector<256x4xbf16>
    %c1_100 = arith.constant 1 : index
    %c0_101 = arith.constant 0 : index
    %c0_102 = arith.constant 0 : index
    %77 = vector.load %arg5[%c1_100, %c0_101, %c0_102] : memref<9x4x4xbf16, #tpu.memory_space<vmem>>, vector<1x4x4xbf16>
    %78 = vector.shape_cast %77 : vector<1x4x4xbf16> to vector<4x4xbf16>
    %cst_103 = arith.constant dense<0.000000e+00> : vector<256x4xf32>
    %79 = tpu.matmul %76, %78, %cst_103 {dimension_numbers = #tpu.dot_dimension_numbers<[1], [0], [0], [1], [0, 0, 1, 1], [], []>} : vector<256x4xbf16>, vector<4x4xbf16>, vector<256x4xf32> -> vector<256x4xf32>
    %80 = arith.addf %74, %79 : vector<256x4xf32>
    %c0_104 = arith.constant 0 : index
    %c0_105 = arith.constant 0 : index
    %c2_106 = arith.constant 2 : index
    %c0_107 = arith.constant 0 : index
    %81 = vector.load %arg9[%c0_104, %c0_105, %c2_106, %c0_107] : memref<1x18x18x4xbf16, #tpu.memory_space<vmem>>, vector<1x16x16x4xbf16>
    %82 = vector.shape_cast %81 : vector<1x16x16x4xbf16> to vector<256x4xbf16>
    %c2_108 = arith.constant 2 : index
    %c0_109 = arith.constant 0 : index
    %c0_110 = arith.constant 0 : index
    %83 = vector.load %arg5[%c2_108, %c0_109, %c0_110] : memref<9x4x4xbf16, #tpu.memory_space<vmem>>, vector<1x4x4xbf16>
    %84 = vector.shape_cast %83 : vector<1x4x4xbf16> to vector<4x4xbf16>
    %cst_111 = arith.constant dense<0.000000e+00> : vector<256x4xf32>
    %85 = tpu.matmul %82, %84, %cst_111 {dimension_numbers = #tpu.dot_dimension_numbers<[1], [0], [0], [1], [0, 0, 1, 1], [], []>} : vector<256x4xbf16>, vector<4x4xbf16>, vector<256x4xf32> -> vector<256x4xf32>
    %86 = arith.addf %80, %85 : vector<256x4xf32>
    %c0_112 = arith.constant 0 : index
    %c1_113 = arith.constant 1 : index
    %c0_114 = arith.constant 0 : index
    %c0_115 = arith.constant 0 : index
    %87 = vector.load %arg9[%c0_112, %c1_113, %c0_114, %c0_115] : memref<1x18x18x4xbf16, #tpu.memory_space<vmem>>, vector<1x16x16x4xbf16>
    %88 = vector.shape_cast %87 : vector<1x16x16x4xbf16> to vector<256x4xbf16>
    %c3_116 = arith.constant 3 : index
    %c0_117 = arith.constant 0 : index
    %c0_118 = arith.constant 0 : index
    %89 = vector.load %arg5[%c3_116, %c0_117, %c0_118] : memref<9x4x4xbf16, #tpu.memory_space<vmem>>, vector<1x4x4xbf16>
    %90 = vector.shape_cast %89 : vector<1x4x4xbf16> to vector<4x4xbf16>
    %cst_119 = arith.constant dense<0.000000e+00> : vector<256x4xf32>
    %91 = tpu.matmul %88, %90, %cst_119 {dimension_numbers = #tpu.dot_dimension_numbers<[1], [0], [0], [1], [0, 0, 1, 1], [], []>} : vector<256x4xbf16>, vector<4x4xbf16>, vector<256x4xf32> -> vector<256x4xf32>
    %92 = arith.addf %86, %91 : vector<256x4xf32>
    %c0_120 = arith.constant 0 : index
    %c1_121 = arith.constant 1 : index
    %c1_122 = arith.constant 1 : index
    %c0_123 = arith.constant 0 : index
    %93 = vector.load %arg9[%c0_120, %c1_121, %c1_122, %c0_123] : memref<1x18x18x4xbf16, #tpu.memory_space<vmem>>, vector<1x16x16x4xbf16>
    %94 = vector.shape_cast %93 : vector<1x16x16x4xbf16> to vector<256x4xbf16>
    %c4_124 = arith.constant 4 : index
    %c0_125 = arith.constant 0 : index
    %c0_126 = arith.constant 0 : index
    %95 = vector.load %arg5[%c4_124, %c0_125, %c0_126] : memref<9x4x4xbf16, #tpu.memory_space<vmem>>, vector<1x4x4xbf16>
    %96 = vector.shape_cast %95 : vector<1x4x4xbf16> to vector<4x4xbf16>
    %cst_127 = arith.constant dense<0.000000e+00> : vector<256x4xf32>
    %97 = tpu.matmul %94, %96, %cst_127 {dimension_numbers = #tpu.dot_dimension_numbers<[1], [0], [0], [1], [0, 0, 1, 1], [], []>} : vector<256x4xbf16>, vector<4x4xbf16>, vector<256x4xf32> -> vector<256x4xf32>
    %98 = arith.addf %92, %97 : vector<256x4xf32>
    %c0_128 = arith.constant 0 : index
    %c1_129 = arith.constant 1 : index
    %c2_130 = arith.constant 2 : index
    %c0_131 = arith.constant 0 : index
    %99 = vector.load %arg9[%c0_128, %c1_129, %c2_130, %c0_131] : memref<1x18x18x4xbf16, #tpu.memory_space<vmem>>, vector<1x16x16x4xbf16>
    %100 = vector.shape_cast %99 : vector<1x16x16x4xbf16> to vector<256x4xbf16>
    %c5_132 = arith.constant 5 : index
    %c0_133 = arith.constant 0 : index
    %c0_134 = arith.constant 0 : index
    %101 = vector.load %arg5[%c5_132, %c0_133, %c0_134] : memref<9x4x4xbf16, #tpu.memory_space<vmem>>, vector<1x4x4xbf16>
    %102 = vector.shape_cast %101 : vector<1x4x4xbf16> to vector<4x4xbf16>
    %cst_135 = arith.constant dense<0.000000e+00> : vector<256x4xf32>
    %103 = tpu.matmul %100, %102, %cst_135 {dimension_numbers = #tpu.dot_dimension_numbers<[1], [0], [0], [1], [0, 0, 1, 1], [], []>} : vector<256x4xbf16>, vector<4x4xbf16>, vector<256x4xf32> -> vector<256x4xf32>
    %104 = arith.addf %98, %103 : vector<256x4xf32>
    %c0_136 = arith.constant 0 : index
    %c2_137 = arith.constant 2 : index
    %c0_138 = arith.constant 0 : index
    %c0_139 = arith.constant 0 : index
    %105 = vector.load %arg9[%c0_136, %c2_137, %c0_138, %c0_139] : memref<1x18x18x4xbf16, #tpu.memory_space<vmem>>, vector<1x16x16x4xbf16>
    %106 = vector.shape_cast %105 : vector<1x16x16x4xbf16> to vector<256x4xbf16>
    %c6_140 = arith.constant 6 : index
    %c0_141 = arith.constant 0 : index
    %c0_142 = arith.constant 0 : index
    %107 = vector.load %arg5[%c6_140, %c0_141, %c0_142] : memref<9x4x4xbf16, #tpu.memory_space<vmem>>, vector<1x4x4xbf16>
    %108 = vector.shape_cast %107 : vector<1x4x4xbf16> to vector<4x4xbf16>
    %cst_143 = arith.constant dense<0.000000e+00> : vector<256x4xf32>
    %109 = tpu.matmul %106, %108, %cst_143 {dimension_numbers = #tpu.dot_dimension_numbers<[1], [0], [0], [1], [0, 0, 1, 1], [], []>} : vector<256x4xbf16>, vector<4x4xbf16>, vector<256x4xf32> -> vector<256x4xf32>
    %110 = arith.addf %104, %109 : vector<256x4xf32>
    %c0_144 = arith.constant 0 : index
    %c2_145 = arith.constant 2 : index
    %c1_146 = arith.constant 1 : index
    %c0_147 = arith.constant 0 : index
    %111 = vector.load %arg9[%c0_144, %c2_145, %c1_146, %c0_147] : memref<1x18x18x4xbf16, #tpu.memory_space<vmem>>, vector<1x16x16x4xbf16>
    %112 = vector.shape_cast %111 : vector<1x16x16x4xbf16> to vector<256x4xbf16>
    %c7_148 = arith.constant 7 : index
    %c0_149 = arith.constant 0 : index
    %c0_150 = arith.constant 0 : index
    %113 = vector.load %arg5[%c7_148, %c0_149, %c0_150] : memref<9x4x4xbf16, #tpu.memory_space<vmem>>, vector<1x4x4xbf16>
    %114 = vector.shape_cast %113 : vector<1x4x4xbf16> to vector<4x4xbf16>
    %cst_151 = arith.constant dense<0.000000e+00> : vector<256x4xf32>
    %115 = tpu.matmul %112, %114, %cst_151 {dimension_numbers = #tpu.dot_dimension_numbers<[1], [0], [0], [1], [0, 0, 1, 1], [], []>} : vector<256x4xbf16>, vector<4x4xbf16>, vector<256x4xf32> -> vector<256x4xf32>
    %116 = arith.addf %110, %115 : vector<256x4xf32>
    %c0_152 = arith.constant 0 : index
    %c2_153 = arith.constant 2 : index
    %c2_154 = arith.constant 2 : index
    %c0_155 = arith.constant 0 : index
    %117 = vector.load %arg9[%c0_152, %c2_153, %c2_154, %c0_155] : memref<1x18x18x4xbf16, #tpu.memory_space<vmem>>, vector<1x16x16x4xbf16>
    %118 = vector.shape_cast %117 : vector<1x16x16x4xbf16> to vector<256x4xbf16>
    %c8_156 = arith.constant 8 : index
    %c0_157 = arith.constant 0 : index
    %c0_158 = arith.constant 0 : index
    %119 = vector.load %arg5[%c8_156, %c0_157, %c0_158] : memref<9x4x4xbf16, #tpu.memory_space<vmem>>, vector<1x4x4xbf16>
    %120 = vector.shape_cast %119 : vector<1x4x4xbf16> to vector<4x4xbf16>
    %cst_159 = arith.constant dense<0.000000e+00> : vector<256x4xf32>
    %121 = tpu.matmul %118, %120, %cst_159 {dimension_numbers = #tpu.dot_dimension_numbers<[1], [0], [0], [1], [0, 0, 1, 1], [], []>} : vector<256x4xbf16>, vector<4x4xbf16>, vector<256x4xf32> -> vector<256x4xf32>
    %122 = arith.addf %116, %121 : vector<256x4xf32>
    %c0_160 = arith.constant 0 : index
    %c0_161 = arith.constant 0 : index
    %123 = vector.load %arg6[%c0_160, %c0_161] : memref<1x4xf32, #tpu.memory_space<vmem>>, vector<1x4xf32>
    %124 = vector.broadcast %123 : vector<1x4xf32> to vector<256x4xf32>
    %125 = arith.mulf %122, %124 : vector<256x4xf32>
    %c0_162 = arith.constant 0 : index
    %c0_163 = arith.constant 0 : index
    %126 = vector.load %arg7[%c0_162, %c0_163] : memref<1x4xf32, #tpu.memory_space<vmem>>, vector<1x4xf32>
    %127 = vector.broadcast %126 : vector<1x4xf32> to vector<256x4xf32>
    %128 = arith.addf %125, %127 : vector<256x4xf32>
    %c0_164 = arith.constant 0 : index
    %c1_165 = arith.constant 1 : index
    %c1_166 = arith.constant 1 : index
    %c0_167 = arith.constant 0 : index
    %129 = vector.load %arg1[%c0_164, %c1_165, %c1_166, %c0_167] : memref<1x18x18x4xbf16, #tpu.memory_space<vmem>>, vector<1x16x16x4xbf16>
    %130 = vector.shape_cast %129 : vector<1x16x16x4xbf16> to vector<256x4xbf16>
    %131 = arith.extf %130 : vector<256x4xbf16> to vector<256x4xf32>
    %132 = arith.addf %128, %131 : vector<256x4xf32>
    %cst_168 = arith.constant 0.000000e+00 : f32
    %133 = vector.broadcast %cst_168 : f32 to vector<256x4xf32>
    %134 = arith.maximumf %132, %133 : vector<256x4xf32>
    %135 = vector.shape_cast %134 : vector<256x4xf32> to vector<1x16x16x4xf32>
    %136 = arith.truncf %135 : vector<1x16x16x4xf32> to vector<1x16x16x4xbf16>
    %c0_169 = arith.constant 0 : index
    %c0_170 = arith.constant 0 : index
    %c0_171 = arith.constant 0 : index
    %c0_172 = arith.constant 0 : index
    %137 = vector.load %arg8[%c0_169, %c0_170, %c0_171, %c0_172] : memref<1x16x16x4xbf16, #tpu.memory_space<vmem>>, vector<1x16x16x4xbf16>
    tpu.vector_store %arg8[%c0_169, %c0_170, %c0_171, %c0_172], %136 {strides = array<i32>} : memref<1x16x16x4xbf16, #tpu.memory_space<vmem>>, vector<1x16x16x4xbf16>,
    return
  }
  func.func @transform_0(%arg0: i32) -> (i32, i32, i32, i32) {
    %c0_i32 = arith.constant 0 : i32
    %c0_i32_0 = arith.constant 0 : i32
    %c0_i32_1 = arith.constant 0 : i32
    %c0_i32_2 = arith.constant 0 : i32
    return %arg0, %c0_i32, %c0_i32_0, %c0_i32_1 : i32, i32, i32, i32
  }
  func.func @transform_1(%arg0: i32) -> (i32, i32, i32) {
    %c0_i32 = arith.constant 0 : i32
    %c0_i32_0 = arith.constant 0 : i32
    %c0_i32_1 = arith.constant 0 : i32
    %c0_i32_2 = arith.constant 0 : i32
    return %c0_i32, %c0_i32_0, %c0_i32_1 : i32, i32, i32
  }
  func.func @transform_2(%arg0: i32) -> (i32, i32) {
    %c0_i32 = arith.constant 0 : i32
    %c0_i32_0 = arith.constant 0 : i32
    %c0_i32_1 = arith.constant 0 : i32
    return %c0_i32, %c0_i32_0 : i32, i32
  }
  func.func @transform_3(%arg0: i32) -> (i32, i32) {
    %c0_i32 = arith.constant 0 : i32
    %c0_i32_0 = arith.constant 0 : i32
    %c0_i32_1 = arith.constant 0 : i32
    return %c0_i32, %c0_i32_0 : i32, i32
  }
  func.func @transform_4(%arg0: i32) -> (i32, i32, i32) {
    %c0_i32 = arith.constant 0 : i32
    %c0_i32_0 = arith.constant 0 : i32
    %c0_i32_1 = arith.constant 0 : i32
    %c0_i32_2 = arith.constant 0 : i32
    return %c0_i32, %c0_i32_0, %c0_i32_1 : i32, i32, i32
  }
  func.func @transform_5(%arg0: i32) -> (i32, i32) {
    %c0_i32 = arith.constant 0 : i32
    %c0_i32_0 = arith.constant 0 : i32
    %c0_i32_1 = arith.constant 0 : i32
    return %c0_i32, %c0_i32_0 : i32, i32
  }
  func.func @transform_6(%arg0: i32) -> (i32, i32) {
    %c0_i32 = arith.constant 0 : i32
    %c0_i32_0 = arith.constant 0 : i32
    %c0_i32_1 = arith.constant 0 : i32
    return %c0_i32, %c0_i32_0 : i32, i32
  }
  func.func @transform_7(%arg0: i32) -> (i32, i32, i32, i32) {
    %c0_i32 = arith.constant 0 : i32
    %c0_i32_0 = arith.constant 0 : i32
    %c0_i32_1 = arith.constant 0 : i32
    %c0_i32_2 = arith.constant 0 : i32
    return %arg0, %c0_i32, %c0_i32_0, %c0_i32_1 : i32, i32, i32, i32
  }
}

</mosaic_0001>

<llo_original>
// kernel: basic_block_forward.1
$region0: #{basic_block_forward.1}
  #allocation0 [shape = 'u32[]', space=smem, size = 0x4, offset = 0x4, fixed_abs, tag = 'smem constant byte address 0x4 - core index']
  #allocation1 [shape = 'u32[144,128]{1,0:T(1,128)}', space=vmem, size = 0x12000, scoped, tag = 'internal scratch']
  #allocation2 [shape = 'bf16[1,18,18,4]{3,2,1,0:T(8,128)(2,1)}', space=vmem, size = 0x1b000, scoped, tag = 'scratch operand']
  %s0 = inlined_call_operand.hbm [shape: bf16[2,18,18,4], index: 0, kind: input, shape index: {}]
  %s1 = inlined_call_operand.hbm [shape: bf16[9,4,4], index: 1, kind: input, shape index: {}]
  %s2 = inlined_call_operand.hbm [shape: f32[1,4], index: 2, kind: input, shape index: {}]
  %s3 = inlined_call_operand.hbm [shape: f32[1,4], index: 3, kind: input, shape index: {}]
  %s4 = inlined_call_operand.hbm [shape: bf16[9,4,4], index: 4, kind: input, shape index: {}]
  %s5 = inlined_call_operand.hbm [shape: f32[1,4], index: 5, kind: input, shape index: {}]
  %s6 = inlined_call_operand.hbm [shape: f32[1,4], index: 6, kind: input, shape index: {}]
  %s7 = inlined_call_operand.hbm [shape: bf16[2,16,16,4], index: 7, kind: output, shape index: {}]
  %s8 = sld [smem:[#allocation0]]
  $region89: #{basic_block_forward.1} parent=0
    _
  %s10 = ssub.s32 1, %s8
  %s11 = scalar_select 0, %s10, %s8
  $region1: #{basic_block_forward.1} parent=0
    #allocation3 [shape = 'u8[221184]{0}', space=vmem, size = 0x36000, scoped, tag = 'input window, operand 0']
    #allocation4 [shape = 's32[2]{0}', space=sflag, size = 0x8, scoped, tag = 'scoped memory for basic_block_forward.1']
    #allocation5 [shape = 's32[2]{0}', space=sflag, size = 0x8, scoped, tag = 'scoped memory for basic_block_forward.1']
    #allocation6 [shape = 'u8[9216]{0}', space=vmem, size = 0x2400, scoped, tag = 'input window, operand 1, single buffered']
    #allocation7 [shape = 's32[1]{0}', space=sflag, size = 0x4, scoped, tag = 'scoped memory for basic_block_forward.1']
    #allocation8 [shape = 'u8[512]{0}', space=vmem, size = 0x400, scoped, tag = 'input window, operand 2, single buffered']
    #allocation9 [shape = 'u8[512]{0}', space=vmem, size = 0x400, scoped, tag = 'input window, operand 3, single buffered']
    #allocation10 [shape = 's32[1]{0}', space=sflag, size = 0x4, scoped, tag = 'scoped memory for basic_block_forward.1']
    #allocation11 [shape = 'u8[9216]{0}', space=vmem, size = 0x2400, scoped, tag = 'input window, operand 4, single buffered']
    #allocation12 [shape = 'u8[512]{0}', space=vmem, size = 0x400, scoped, tag = 'input window, operand 5, single buffered']
    #allocation13 [shape = 's32[1]{0}', space=sflag, size = 0x4, scoped, tag = 'scoped memory for basic_block_forward.1']
    #allocation14 [shape = 'u8[512]{0}', space=vmem, size = 0x400, scoped, tag = 'input window, operand 6, single buffered']
    #allocation15 [shape = 'u8[131072]{0}', space=vmem, size = 0x20000, scoped, tag = 'output window, operand 0']
    %12 = vsyncpa [#allocation4], 0
    %s13 = scalar_lea.sflag [#allocation4], 1
    %14 = vsyncpa %s13, 0
    %15 = vsyncpa [#allocation7], 0
    %16 = vsyncpa [#allocation10], 0
    %17 = vsyncpa [#allocation13], 0
    %18 = vsyncpa [#allocation5], 0
    %s19 = scalar_lea.sflag [#allocation5], 1
    %20 = vsyncpa %s19, 0
    loop: start=0, step=1, limit=4
    $region2: #{basic_block_forward.1} parent=1 // loop_pre_header
      _
    $region3: #{basic_block_forward.1} parent=1 // loop_header
      %s22 = sphi 0, %s26
      %p23 = scmp.ge.s32.totalorder %s22, 4
      %s32 = sphi 0, %s34
      %s35 = sphi 0, %s32
      %s36 = sphi 0, %s35
      %s52 = sphi 0, %s36
      %s56 = sphi 0, %s56
      %s58 = sphi 0, %s56
      %s59 = sphi 0, %s58
      %s73 = sphi 0, %s59
      %s77 = sphi 0, %s77
      %s79 = sphi 0, %s77
      %s80 = sphi 0, %s79
      %s94 = sphi 0, %s80
      %s98 = sphi 0, %s98
      %s100 = sphi 0, %s98
      %s101 = sphi 0, %s100
      %s115 = sphi 0, %s101
      %s119 = sphi 0, %s119
      %s121 = sphi 0, %s119
      %s122 = sphi 0, %s121
      %s136 = sphi 0, %s122
      %s140 = sphi 0, %s140
      %s142 = sphi 0, %s140
      %s143 = sphi 0, %s142
      %s157 = sphi 0, %s143
      %s161 = sphi 0, %s161
      %s163 = sphi 0, %s161
      %s164 = sphi 0, %s163
      %s178 = sphi 0, %s164
      %s184 = sphi 0, %s186
      %s187 = sphi 0, %s184
      %s188 = sphi 0, %s187
      %s204 = sphi 0, %s188
    $region4: #{basic_block_forward.1} parent=1 // loop_header_branch
      %25 = sbr.rel (%p23) target = $region8
    $region5: #{basic_block_forward.1} parent=1 // loop_body
      %s27 = ssub.s32 %s22, 1
      %s28 = ssub.s32 %s22, 2
      %s29 = sadd.s32 %s22, 1
      %s30 = ssub.s32 %s22, %s29
      %p31 = scmp.eq.s32.totalorder %s30, 0
      %s33 = sadd.s32 %s32, 1
      %s34 = scalar_select %p31, %s32, %s33
      %p37 = pneg %p31
      %p38 = scmp.eq.s32.totalorder %s22, 1
      %p39 = por %p37, %p38
      %p40 = scmp.ne.s32.totalorder %s32, %s35
      %p41 = scmp.eq.s32.totalorder %s22, 0
      %p42 = por %p40, %p41
      %p43 = scmp.ne.s32.totalorder %s32, %s35
      %p44 = scmp.eq.s32.totalorder %s27, 1
      %p45 = por %p43, %p44
      %p46 = scmp.ne.s32.totalorder %s35, %s36
      %p47 = scmp.eq.s32.totalorder %s27, 0
      %p48 = por %p46, %p47
      %p49 = scmp.ne.s32.totalorder %s35, %s36
      %p50 = scmp.eq.s32.totalorder %s28, 1
      %p51 = por %p49, %p50
      %p53 = scmp.ne.s32.totalorder %s36, %s52
      %p54 = scmp.eq.s32.totalorder %s28, 0
      %p55 = por %p53, %p54
      %s57 = sadd.s32 %s56, 1
      %p60 = scmp.eq.s32.totalorder %s22, 1
      %p61 = scmp.ne.s32.totalorder %s56, %s58
      %p62 = scmp.eq.s32.totalorder %s22, 0
      %p63 = por %p61, %p62
      %p64 = scmp.ne.s32.totalorder %s56, %s58
      %p65 = scmp.eq.s32.totalorder %s27, 1
      %p66 = por %p64, %p65
      %p67 = scmp.ne.s32.totalorder %s58, %s59
      %p68 = scmp.eq.s32.totalorder %s27, 0
      %p69 = por %p67, %p68
      %p70 = scmp.ne.s32.totalorder %s58, %s59
      %p71 = scmp.eq.s32.totalorder %s28, 1
      %p72 = por %p70, %p71
      %p74 = scmp.ne.s32.totalorder %s59, %s73
      %p75 = scmp.eq.s32.totalorder %s28, 0
      %p76 = por %p74, %p75
      %s78 = sadd.s32 %s77, 1
      %p81 = scmp.eq.s32.totalorder %s22, 1
      %p82 = scmp.ne.s32.totalorder %s77, %s79
      %p83 = scmp.eq.s32.totalorder %s22, 0
      %p84 = por %p82, %p83
      %p85 = scmp.ne.s32.totalorder %s77, %s79
      %p86 = scmp.eq.s32.totalorder %s27, 1
      %p87 = por %p85, %p86
      %p88 = scmp.ne.s32.totalorder %s79, %s80
      %p89 = scmp.eq.s32.totalorder %s27, 0
      %p90 = por %p88, %p89
      %p91 = scmp.ne.s32.totalorder %s79, %s80
      %p92 = scmp.eq.s32.totalorder %s28, 1
      %p93 = por %p91, %p92
      %p95 = scmp.ne.s32.totalorder %s80, %s94
      %p96 = scmp.eq.s32.totalorder %s28, 0
      %p97 = por %p95, %p96
      %s99 = sadd.s32 %s98, 1
      %p102 = scmp.eq.s32.totalorder %s22, 1
      %p103 = scmp.ne.s32.totalorder %s98, %s100
      %p104 = scmp.eq.s32.totalorder %s22, 0
      %p105 = por %p103, %p104
      %p106 = scmp.ne.s32.totalorder %s98, %s100
      %p107 = scmp.eq.s32.totalorder %s27, 1
      %p108 = por %p106, %p107
      %p109 = scmp.ne.s32.totalorder %s100, %s101
      %p110 = scmp.eq.s32.totalorder %s27, 0
      %p111 = por %p109, %p110
      %p112 = scmp.ne.s32.totalorder %s100, %s101
      %p113 = scmp.eq.s32.totalorder %s28, 1
      %p114 = por %p112, %p113
      %p116 = scmp.ne.s32.totalorder %s101, %s115
      %p117 = scmp.eq.s32.totalorder %s28, 0
      %p118 = por %p116, %p117
      %s120 = sadd.s32 %s119, 1
      %p123 = scmp.eq.s32.totalorder %s22, 1
      %p124 = scmp.ne.s32.totalorder %s119, %s121
      %p125 = scmp.eq.s32.totalorder %s22, 0
      %p126 = por %p124, %p125
      %p127 = scmp.ne.s32.totalorder %s119, %s121
      %p128 = scmp.eq.s32.totalorder %s27, 1
      %p129 = por %p127, %p128
      %p130 = scmp.ne.s32.totalorder %s121, %s122
      %p131 = scmp.eq.s32.totalorder %s27, 0
      %p132 = por %p130, %p131
      %p133 = scmp.ne.s32.totalorder %s121, %s122
      %p134 = scmp.eq.s32.totalorder %s28, 1
      %p135 = por %p133, %p134
      %p137 = scmp.ne.s32.totalorder %s122, %s136
      %p138 = scmp.eq.s32.totalorder %s28, 0
      %p139 = por %p137, %p138
      %s141 = sadd.s32 %s140, 1
      %p144 = scmp.eq.s32.totalorder %s22, 1
      %p145 = scmp.ne.s32.totalorder %s140, %s142
      %p146 = scmp.eq.s32.totalorder %s22, 0
      %p147 = por %p145, %p146
      %p148 = scmp.ne.s32.totalorder %s140, %s142
      %p149 = scmp.eq.s32.totalorder %s27, 1
      %p150 = por %p148, %p149
      %p151 = scmp.ne.s32.totalorder %s142, %s143
      %p152 = scmp.eq.s32.totalorder %s27, 0
      %p153 = por %p151, %p152
      %p154 = scmp.ne.s32.totalorder %s142, %s143
      %p155 = scmp.eq.s32.totalorder %s28, 1
      %p156 = por %p154, %p155
      %p158 = scmp.ne.s32.totalorder %s143, %s157
      %p159 = scmp.eq.s32.totalorder %s28, 0
      %p160 = por %p158, %p159
      %s162 = sadd.s32 %s161, 1
      %p165 = scmp.eq.s32.totalorder %s22, 1
      %p166 = scmp.ne.s32.totalorder %s161, %s163
      %p167 = scmp.eq.s32.totalorder %s22, 0
      %p168 = por %p166, %p167
      %p169 = scmp.ne.s32.totalorder %s161, %s163
      %p170 = scmp.eq.s32.totalorder %s27, 1
      %p171 = por %p169, %p170
      %p172 = scmp.ne.s32.totalorder %s163, %s164
      %p173 = scmp.eq.s32.totalorder %s27, 0
      %p174 = por %p172, %p173
      %p175 = scmp.ne.s32.totalorder %s163, %s164
      %p176 = scmp.eq.s32.totalorder %s28, 1
      %p177 = por %p175, %p176
      %p179 = scmp.ne.s32.totalorder %s164, %s178
      %p180 = scmp.eq.s32.totalorder %s28, 0
      %p181 = por %p179, %p180
      %s182 = ssub.s32 %s22, %s29
      %p183 = scmp.eq.s32.totalorder %s182, 0
      %s185 = sadd.s32 %s184, 1
      %s186 = scalar_select %p183, %s184, %s185
      %p189 = pneg %p183
      %p190 = scmp.eq.s32.totalorder %s22, 1
      %p191 = por %p189, %p190
      %p192 = scmp.ne.s32.totalorder %s184, %s187
      %p193 = scmp.eq.s32.totalorder %s22, 0
      %p194 = por %p192, %p193
      %p195 = scmp.ne.s32.totalorder %s184, %s187
      %p196 = scmp.eq.s32.totalorder %s27, 1
      %p197 = por %p195, %p196
      %p198 = scmp.ne.s32.totalorder %s187, %s188
      %p199 = scmp.eq.s32.totalorder %s27, 0
      %p200 = por %p198, %p199
      %p201 = scmp.ne.s32.totalorder %s187, %s188
      %p202 = scmp.eq.s32.totalorder %s28, 1
      %p203 = por %p201, %p202
      %p205 = scmp.ne.s32.totalorder %s188, %s204
      %p206 = scmp.eq.s32.totalorder %s28, 0
      %p207 = por %p205, %p206
      %p208 = scmp.le.s32.totalorder 1, %s22
      %p209 = scmp.lt.s32.totalorder %s22, 3
      %p210 = pnand %p208, %p209
      %p211 = pneg %p210
      // Predicated region
      $region9: #{basic_block_forward.1} parent=5 // pred_check
        _
      $region10: #{basic_block_forward.1} parent=5 // pred_check_branch
        %213 = sbr.rel (%p210) target = $region12
      $region11: #{basic_block_forward.1} parent=5 // pred_region
        %s214 = ssub.s32 %s22, 1
        // Predicated region
        $region13: #{basic_block_forward.1} parent=11 // pred_check
          %p215 = pneg %p69
        $region14: #{basic_block_forward.1} parent=11 // pred_check_branch
          %217 = sbr.rel (%p215) target = $region16
        $region15: #{basic_block_forward.1} parent=11 // pred_region
          %s219 = ssub.s32 288, 288
          %220 = vsyncadd [#allocation7], %s219
          %s221 = sshll.u32 [#allocation6], 4
          %s222 = int_to_ptr.vmem [resolvable:$true] %s221
          %227 = dma.hbm_to_vmem [thread:$0]  %s1, 288, %s222, [#allocation7], 32, 32, 2
        $region16: #{basic_block_forward.1} parent=11 // pred_fallthru
          _
        // Predicated region
        $region17: #{basic_block_forward.1} parent=11 // pred_check
          %p228 = pneg %p90
        $region18: #{basic_block_forward.1} parent=11 // pred_check_branch
          %230 = sbr.rel (%p228) target = $region20
        $region19: #{basic_block_forward.1} parent=11 // pred_region
          %s232 = ssub.s32 16, 16
          %233 = vsyncadd [#allocation7], %s232
          %s235 = sshll.u32 [#allocation8], 4
          %s236 = int_to_ptr.vmem [resolvable:$true] %s235
          %238 = dma.hbm_to_vmem [thread:$0]  %s2, 16, %s236, [#allocation7]
        $region20: #{basic_block_forward.1} parent=11 // pred_fallthru
          _
        // Predicated region
        $region21: #{basic_block_forward.1} parent=11 // pred_check
          %p239 = pneg %p111
        $region22: #{basic_block_forward.1} parent=11 // pred_check_branch
          %241 = sbr.rel (%p239) target = $region24
        $region23: #{basic_block_forward.1} parent=11 // pred_region
          %s243 = ssub.s32 16, 16
          %244 = vsyncadd [#allocation10], %s243
          %s246 = sshll.u32 [#allocation9], 4
          %s247 = int_to_ptr.vmem [resolvable:$true] %s246
          %249 = dma.hbm_to_vmem [thread:$0]  %s3, 16, %s247, [#allocation10]
        $region24: #{basic_block_forward.1} parent=11 // pred_fallthru
          _
        // Predicated region
        $region25: #{basic_block_forward.1} parent=11 // pred_check
          %p250 = pneg %p132
        $region26: #{basic_block_forward.1} parent=11 // pred_check_branch
          %252 = sbr.rel (%p250) target = $region28
        $region27: #{basic_block_forward.1} parent=11 // pred_region
          %s254 = ssub.s32 288, 288
          %255 = vsyncadd [#allocation10], %s254
          %s256 = sshll.u32 [#allocation11], 4
          %s257 = int_to_ptr.vmem [resolvable:$true] %s256
          %262 = dma.hbm_to_vmem [thread:$0]  %s4, 288, %s257, [#allocation10], 32, 32, 2
        $region28: #{basic_block_forward.1} parent=11 // pred_fallthru
          _
        // Predicated region
        $region29: #{basic_block_forward.1} parent=11 // pred_check
          %p263 = pneg %p153
        $region30: #{basic_block_forward.1} parent=11 // pred_check_branch
          %265 = sbr.rel (%p263) target = $region32
        $region31: #{basic_block_forward.1} parent=11 // pred_region
          %s267 = ssub.s32 16, 16
          %268 = vsyncadd [#allocation13], %s267
          %s270 = sshll.u32 [#allocation12], 4
          %s271 = int_to_ptr.vmem [resolvable:$true] %s270
          %273 = dma.hbm_to_vmem [thread:$0]  %s5, 16, %s271, [#allocation13]
        $region32: #{basic_block_forward.1} parent=11 // pred_fallthru
          _
        // Predicated region
        $region33: #{basic_block_forward.1} parent=11 // pred_check
          %p274 = pneg %p174
        $region34: #{basic_block_forward.1} parent=11 // pred_check_branch
          %276 = sbr.rel (%p274) target = $region36
        $region35: #{basic_block_forward.1} parent=11 // pred_region
          %s278 = ssub.s32 16, 16
          %279 = vsyncadd [#allocation13], %s278
          %s281 = sshll.u32 [#allocation14], 4
          %s282 = int_to_ptr.vmem [resolvable:$true] %s281
          %284 = dma.hbm_to_vmem [thread:$0]  %s6, 16, %s282, [#allocation13]
        $region36: #{basic_block_forward.1} parent=11 // pred_fallthru
          _
      $region12: #{basic_block_forward.1} parent=5 // pred_fallthru
        _
      %p285 = scmp.lt.s32.totalorder %s22, 2
      // Predicated region
      $region37: #{basic_block_forward.1} parent=5 // pred_check
        %p286 = pneg %p285
      $region38: #{basic_block_forward.1} parent=5 // pred_check_branch
        %288 = sbr.rel (%p286) target = $region40
      $region39: #{basic_block_forward.1} parent=5 // pred_region
        // Predicated region
        $region41: #{basic_block_forward.1} parent=39 // pred_check
          %p289 = pneg %p42
        $region42: #{basic_block_forward.1} parent=39 // pred_check_branch
          %291 = sbr.rel (%p289) target = $region44
        $region43: #{basic_block_forward.1} parent=39 // pred_region
          %s292 = sand.u32 %s32, 1
          %s293 = scalar_lea.sflag [#allocation4], %s292
          %s294 = sand.u32 %s32, 1
          %s295 = smul.addr %s294, 216
          %s296 = scalar_lea.vmem [#allocation3], %s295
          %s298 = ssub.s32 3456, 3456
          %299 = vsyncadd %s293, %s298
          %s300 = smul.addr %s22, 54
          %s301 = smul.addr %s300, 64
          %s302 = scalar_lea.hbm %s0, %s301
          %s303 = sshll.u32 %s296, 4
          %s304 = int_to_ptr.vmem [resolvable:$true] %s303
          %309 = dma.hbm_to_vmem [thread:$0]  %s302, 3456, %s304, %s293, 64, 64, 4
        $region44: #{basic_block_forward.1} parent=39 // pred_fallthru
          _
      $region40: #{basic_block_forward.1} parent=5 // pred_fallthru
        _
      %p310 = scmp.le.s32.totalorder 1, %s22
      %p311 = scmp.lt.s32.totalorder %s22, 3
      %p312 = pnand %p310, %p311
      %p313 = pneg %p312
      // Predicated region
      $region45: #{basic_block_forward.1} parent=5 // pred_check
        _
      $region46: #{basic_block_forward.1} parent=5 // pred_check_branch
        %315 = sbr.rel (%p312) target = $region48
      $region47: #{basic_block_forward.1} parent=5 // pred_region
        %s316 = ssub.s32 %s22, 1
        %s317 = sand.u32 %s35, 1
        %s318 = scalar_lea.sflag [#allocation4], %s317
        %s319 = sand.u32 %s35, 1
        %s320 = smul.addr %s319, 216
        %s321 = scalar_lea.vmem [#allocation3], %s320
        // Predicated region
        $region49: #{basic_block_forward.1} parent=47 // pred_check
          %p322 = pneg %p48
        $region50: #{basic_block_forward.1} parent=47 // pred_check_branch
          %324 = sbr.rel (%p322) target = $region52
        $region51: #{basic_block_forward.1} parent=47 // pred_region
          %325 = dma.done %s318, 3456
        $region52: #{basic_block_forward.1} parent=47 // pred_fallthru
          _
        // Predicated region
        $region53: #{basic_block_forward.1} parent=47 // pred_check
          %p326 = pneg %p69
        $region54: #{basic_block_forward.1} parent=47 // pred_check_branch
          %328 = sbr.rel (%p326) target = $region56
        $region55: #{basic_block_forward.1} parent=47 // pred_region
          %329 = dma.done [#allocation7], 288
        $region56: #{basic_block_forward.1} parent=47 // pred_fallthru
          _
        // Predicated region
        $region57: #{basic_block_forward.1} parent=47 // pred_check
          %p330 = pneg %p90
        $region58: #{basic_block_forward.1} parent=47 // pred_check_branch
          %332 = sbr.rel (%p330) target = $region60
        $region59: #{basic_block_forward.1} parent=47 // pred_region
          %333 = dma.done [#allocation7], 16
        $region60: #{basic_block_forward.1} parent=47 // pred_fallthru
          _
        // Predicated region
        $region61: #{basic_block_forward.1} parent=47 // pred_check
          %p334 = pneg %p111
        $region62: #{basic_block_forward.1} parent=47 // pred_check_branch
          %336 = sbr.rel (%p334) target = $region64
        $region63: #{basic_block_forward.1} parent=47 // pred_region
          %337 = dma.done [#allocation10], 16
        $region64: #{basic_block_forward.1} parent=47 // pred_fallthru
          _
        // Predicated region
        $region65: #{basic_block_forward.1} parent=47 // pred_check
          %p338 = pneg %p132
        $region66: #{basic_block_forward.1} parent=47 // pred_check_branch
          %340 = sbr.rel (%p338) target = $region68
        $region67: #{basic_block_forward.1} parent=47 // pred_region
          %341 = dma.done [#allocation10], 288
        $region68: #{basic_block_forward.1} parent=47 // pred_fallthru
          _
        // Predicated region
        $region69: #{basic_block_forward.1} parent=47 // pred_check
          %p342 = pneg %p153
        $region70: #{basic_block_forward.1} parent=47 // pred_check_branch
          %344 = sbr.rel (%p342) target = $region72
        $region71: #{basic_block_forward.1} parent=47 // pred_region
          %345 = dma.done [#allocation13], 16
        $region72: #{basic_block_forward.1} parent=47 // pred_fallthru
          _
        // Predicated region
        $region73: #{basic_block_forward.1} parent=47 // pred_check
          %p346 = pneg %p174
        $region74: #{basic_block_forward.1} parent=47 // pred_check_branch
          %348 = sbr.rel (%p346) target = $region76
        $region75: #{basic_block_forward.1} parent=47 // pred_region
          %349 = dma.done [#allocation13], 16
        $region76: #{basic_block_forward.1} parent=47 // pred_fallthru
          _
        %s350 = sand.u32 %s35, 1
        %s351 = scalar_lea.sflag [#allocation4], %s350
        %s352 = sand.u32 %s35, 1
        %s353 = smul.addr %s352, 216
        %s354 = scalar_lea.vmem [#allocation3], %s353
        %p355 = pneg %p48
        %p356 = pneg %p45
        %p357 = pneg %p69
        %p358 = pneg %p66
        %p359 = pneg %p90
        %p360 = pneg %p87
        %p361 = pneg %p111
        %p362 = pneg %p108
        %p363 = pneg %p132
        %p364 = pneg %p129
        %p365 = pneg %p153
        %p366 = pneg %p150
        %p367 = pneg %p174
        %p368 = pneg %p171
        %p369 = pneg %p200
        %p370 = pneg %p197
        %s371 = sand.u32 %s187, 1
        %s372 = scalar_lea.sflag [#allocation5], %s371
        %s373 = sand.u32 %s187, 1
        %s374 = smul.addr %s373, 128
        %s375 = scalar_lea.vmem [#allocation15], %s374
        %v377 = vld [vmem:[%s321] sm:$0xf]
        %v378 = vld [vmem:[%s321 + $0x4] sm:$0xf]
        %v379 = vld [vmem:[%s321 + $0xc] sm:$0xf]
        %v380 = vld [vmem:[%s321 + $0x10] sm:$0xf]
        %v381 = vld [vmem:[%s321 + $0x18] sm:$0xf]
        %v382 = vld [vmem:[%s321 + $0x1c] sm:$0xf]
        %v383 = vld [vmem:[%s321 + $0x24] sm:$0xf]
        %v384 = vld [vmem:[%s321 + $0x28] sm:$0xf]
        %v385 = vld [vmem:[%s321 + $0x30] sm:$0xf]
        %v386 = vld [vmem:[%s321 + $0x34] sm:$0xf]
        %v387 = vld [vmem:[%s321 + $0x3c] sm:$0xf]
        %v388 = vld [vmem:[%s321 + $0x40] sm:$0xf]
        %v389 = vld [vmem:[%s321 + $0x48] sm:$0xf]
        %v390 = vld [vmem:[%s321 + $0x4c] sm:$0xf]
        %v391 = vld [vmem:[%s321 + $0x54] sm:$0xf]
        %v392 = vld [vmem:[%s321 + $0x58] sm:$0xf]
        %v393 = vld [vmem:[%s321 + $0x60] sm:$0xf]
        %v394 = vld [vmem:[%s321 + $0x64] sm:$0xf]
        %v395 = vld [vmem:[%s321 + $0x6c] sm:$0xf]
        %v396 = vld [vmem:[%s321 + $0x70] sm:$0xf]
        %v397 = vld [vmem:[%s321 + $0x78] sm:$0xf]
        %v398 = vld [vmem:[%s321 + $0x7c] sm:$0xf]
        %v399 = vld [vmem:[%s321 + $0x84] sm:$0xf]
        %v400 = vld [vmem:[%s321 + $0x88] sm:$0xf]
        %v401 = vld [vmem:[%s321 + $0x90] sm:$0xf]
        %v402 = vld [vmem:[%s321 + $0x94] sm:$0xf]
        %v403 = vld [vmem:[%s321 + $0x9c] sm:$0xf]
        %v404 = vld [vmem:[%s321 + $0xa0] sm:$0xf]
        %v405 = vld [vmem:[%s321 + $0xa8] sm:$0xf]
        %v406 = vld [vmem:[%s321 + $0xac] sm:$0xf]
        %v407 = vld [vmem:[%s321 + $0xb4] sm:$0xf]
        %v408 = vld [vmem:[%s321 + $0xb8] sm:$0xf]
        %v409 = vld [vmem:[#allocation6] sm:$0x3]
        %v410 = vld [vmem:[%s321 + $0x8] sm:$0x1]
        %v411 = vld [vmem:[%s321 + $0x14] sm:$0x1]
        %v412 = vld [vmem:[%s321 + $0x20] sm:$0x1]
        %v413 = vld [vmem:[%s321 + $0x2c] sm:$0x1]
        %v414 = vld [vmem:[%s321 + $0x38] sm:$0x1]
        %v415 = vld [vmem:[%s321 + $0x44] sm:$0x1]
        %v416 = vld [vmem:[%s321 + $0x50] sm:$0x1]
        %v417 = vld [vmem:[%s321 + $0x5c] sm:$0x1]
        %v418 = vld [vmem:[%s321 + $0x68] sm:$0x1]
        %v419 = vld [vmem:[%s321 + $0x74] sm:$0x1]
        %v420 = vld [vmem:[%s321 + $0x80] sm:$0x1]
        %v421 = vld [vmem:[%s321 + $0x8c] sm:$0x1]
        %v422 = vld [vmem:[%s321 + $0x98] sm:$0x1]
        %v423 = vld [vmem:[%s321 + $0xa4] sm:$0x1]
        %v424 = vld [vmem:[%s321 + $0xb0] sm:$0x1]
        %v425 = vld [vmem:[%s321 + $0xbc] sm:$0x1]
        %vm426 = vsmask.f32 3328
        %vm427 = vsmask.f32 7440
        %vm428 = vmor %vm426, %vm427
        %v430 = vshrl.u32 %v377, 16
        %v432 = vrot.slane %v430, 4
        %v433 = vshll.u32 %v377, 16
        %v435 = vrot.slane %v433, 5
        %v436 = vor.u32 %v432, %v435
        %v437 = vrot.slane %v436, 4
        %v439 = vshll.u32 %v378, 16
        %v441 = vrot.slane %v439, 5
        %v442 = vsel %vm428, %v437, %v441
        %v443 = vshrl.u32 %v378, 16
        %v445 = vrot.slane %v443, 4
        %v446 = vor.u32 %v445, %v441
        %v447 = vrot.slane %v446, 4
        %v449 = vshll.u32 %v410, 16
        %v451 = vrot.slane %v449, 5
        %v452 = vsel %vm428, %v447, %v451
        %v454 = vshrl.u32 %v379, 16
        %v456 = vrot.slane %v454, 4
        %v457 = vshll.u32 %v379, 16
        %v459 = vrot.slane %v457, 5
        %v460 = vor.u32 %v456, %v459
        %v461 = vrot.slane %v460, 4
        %v463 = vshll.u32 %v380, 16
        %v465 = vrot.slane %v463, 5
        %v466 = vsel %vm428, %v461, %v465
        %v467 = vshrl.u32 %v380, 16
        %v469 = vrot.slane %v467, 4
        %v470 = vor.u32 %v469, %v465
        %v471 = vrot.slane %v470, 4
        %v473 = vshll.u32 %v411, 16
        %v475 = vrot.slane %v473, 5
        %v476 = vsel %vm428, %v471, %v475
        %v478 = vshrl.u32 %v381, 16
        %v480 = vrot.slane %v478, 4
        %v481 = vshll.u32 %v381, 16
        %v483 = vrot.slane %v481, 5
        %v484 = vor.u32 %v480, %v483
        %v485 = vrot.slane %v484, 4
        %v487 = vshll.u32 %v382, 16
        %v489 = vrot.slane %v487, 5
        %v490 = vsel %vm428, %v485, %v489
        %v491 = vshrl.u32 %v382, 16
        %v493 = vrot.slane %v491, 4
        %v494 = vor.u32 %v493, %v489
        %v495 = vrot.slane %v494, 4
        %v497 = vshll.u32 %v412, 16
        %v499 = vrot.slane %v497, 5
        %v500 = vsel %vm428, %v495, %v499
        %v502 = vshrl.u32 %v383, 16
        %v504 = vrot.slane %v502, 4
        %v505 = vshll.u32 %v383, 16
        %v507 = vrot.slane %v505, 5
        %v508 = vor.u32 %v504, %v507
        %v509 = vrot.slane %v508, 4
        %v511 = vshll.u32 %v384, 16
        %v513 = vrot.slane %v511, 5
        %v514 = vsel %vm428, %v509, %v513
        %v515 = vshrl.u32 %v384, 16
        %v517 = vrot.slane %v515, 4
        %v518 = vor.u32 %v517, %v513
        %v519 = vrot.slane %v518, 4
        %v521 = vshll.u32 %v413, 16
        %v523 = vrot.slane %v521, 5
        %v524 = vsel %vm428, %v519, %v523
        %v526 = vshrl.u32 %v385, 16
        %v528 = vrot.slane %v526, 4
        %v529 = vshll.u32 %v385, 16
        %v531 = vrot.slane %v529, 5
        %v532 = vor.u32 %v528, %v531
        %v533 = vrot.slane %v532, 4
        %v535 = vshll.u32 %v386, 16
        %v537 = vrot.slane %v535, 5
        %v538 = vsel %vm428, %v533, %v537
        %v539 = vshrl.u32 %v386, 16
        %v541 = vrot.slane %v539, 4
        %v542 = vor.u32 %v541, %v537
        %v543 = vrot.slane %v542, 4
        %v545 = vshll.u32 %v414, 16
        %v547 = vrot.slane %v545, 5
        %v548 = vsel %vm428, %v543, %v547
        %v550 = vshrl.u32 %v387, 16
        %v552 = vrot.slane %v550, 4
        %v553 = vshll.u32 %v387, 16
        %v555 = vrot.slane %v553, 5
        %v556 = vor.u32 %v552, %v555
        %v557 = vrot.slane %v556, 4
        %v559 = vshll.u32 %v388, 16
        %v561 = vrot.slane %v559, 5
        %v562 = vsel %vm428, %v557, %v561
        %v563 = vshrl.u32 %v388, 16
        %v565 = vrot.slane %v563, 4
        %v566 = vor.u32 %v565, %v561
        %v567 = vrot.slane %v566, 4
        %v569 = vshll.u32 %v415, 16
        %v571 = vrot.slane %v569, 5
        %v572 = vsel %vm428, %v567, %v571
        %v574 = vshrl.u32 %v389, 16
        %v576 = vrot.slane %v574, 4
        %v577 = vshll.u32 %v389, 16
        %v579 = vrot.slane %v577, 5
        %v580 = vor.u32 %v576, %v579
        %v581 = vrot.slane %v580, 4
        %v583 = vshll.u32 %v390, 16
        %v585 = vrot.slane %v583, 5
        %v586 = vsel %vm428, %v581, %v585
        %v587 = vshrl.u32 %v390, 16
        %v589 = vrot.slane %v587, 4
        %v590 = vor.u32 %v589, %v585
        %v591 = vrot.slane %v590, 4
        %v593 = vshll.u32 %v416, 16
        %v595 = vrot.slane %v593, 5
        %v596 = vsel %vm428, %v591, %v595
        %v598 = vshrl.u32 %v391, 16
        %v600 = vrot.slane %v598, 4
        %v601 = vshll.u32 %v391, 16
        %v603 = vrot.slane %v601, 5
        %v604 = vor.u32 %v600, %v603
        %v605 = vrot.slane %v604, 4
        %v607 = vshll.u32 %v392, 16
        %v609 = vrot.slane %v607, 5
        %v610 = vsel %vm428, %v605, %v609
        %v611 = vshrl.u32 %v392, 16
        %v613 = vrot.slane %v611, 4
        %v614 = vor.u32 %v613, %v609
        %v615 = vrot.slane %v614, 4
        %v617 = vshll.u32 %v417, 16
        %v619 = vrot.slane %v617, 5
        %v620 = vsel %vm428, %v615, %v619
        %v622 = vshrl.u32 %v393, 16
        %v624 = vrot.slane %v622, 4
        %v625 = vshll.u32 %v393, 16
        %v627 = vrot.slane %v625, 5
        %v628 = vor.u32 %v624, %v627
        %v629 = vrot.slane %v628, 4
        %v631 = vshll.u32 %v394, 16
        %v633 = vrot.slane %v631, 5
        %v634 = vsel %vm428, %v629, %v633
        %v635 = vshrl.u32 %v394, 16
        %v637 = vrot.slane %v635, 4
        %v638 = vor.u32 %v637, %v633
        %v639 = vrot.slane %v638, 4
        %v641 = vshll.u32 %v418, 16
        %v643 = vrot.slane %v641, 5
        %v644 = vsel %vm428, %v639, %v643
        %v646 = vshrl.u32 %v395, 16
        %v648 = vrot.slane %v646, 4
        %v649 = vshll.u32 %v395, 16
        %v651 = vrot.slane %v649, 5
        %v652 = vor.u32 %v648, %v651
        %v653 = vrot.slane %v652, 4
        %v655 = vshll.u32 %v396, 16
        %v657 = vrot.slane %v655, 5
        %v658 = vsel %vm428, %v653, %v657
        %v659 = vshrl.u32 %v396, 16
        %v661 = vrot.slane %v659, 4
        %v662 = vor.u32 %v661, %v657
        %v663 = vrot.slane %v662, 4
        %v665 = vshll.u32 %v419, 16
        %v667 = vrot.slane %v665, 5
        %v668 = vsel %vm428, %v663, %v667
        %v670 = vshrl.u32 %v397, 16
        %v672 = vrot.slane %v670, 4
        %v673 = vshll.u32 %v397, 16
        %v675 = vrot.slane %v673, 5
        %v676 = vor.u32 %v672, %v675
        %v677 = vrot.slane %v676, 4
        %v679 = vshll.u32 %v398, 16
        %v681 = vrot.slane %v679, 5
        %v682 = vsel %vm428, %v677, %v681
        %v683 = vshrl.u32 %v398, 16
        %v685 = vrot.slane %v683, 4
        %v686 = vor.u32 %v685, %v681
        %v687 = vrot.slane %v686, 4
        %v689 = vshll.u32 %v420, 16
        %v691 = vrot.slane %v689, 5
        %v692 = vsel %vm428, %v687, %v691
        %v694 = vshrl.u32 %v399, 16
        %v696 = vrot.slane %v694, 4
        %v697 = vshll.u32 %v399, 16
        %v699 = vrot.slane %v697, 5
        %v700 = vor.u32 %v696, %v699
        %v701 = vrot.slane %v700, 4
        %v703 = vshll.u32 %v400, 16
        %v705 = vrot.slane %v703, 5
        %v706 = vsel %vm428, %v701, %v705
        %v707 = vshrl.u32 %v400, 16
        %v709 = vrot.slane %v707, 4
        %v710 = vor.u32 %v709, %v705
        %v711 = vrot.slane %v710, 4
        %v713 = vshll.u32 %v421, 16
        %v715 = vrot.slane %v713, 5
        %v716 = vsel %vm428, %v711, %v715
        %v718 = vshrl.u32 %v401, 16
        %v720 = vrot.slane %v718, 4
        %v721 = vshll.u32 %v401, 16
        %v723 = vrot.slane %v721, 5
        %v724 = vor.u32 %v720, %v723
        %v725 = vrot.slane %v724, 4
        %v727 = vshll.u32 %v402, 16
        %v729 = vrot.slane %v727, 5
        %v730 = vsel %vm428, %v725, %v729
        %v731 = vshrl.u32 %v402, 16
        %v733 = vrot.slane %v731, 4
        %v734 = vor.u32 %v733, %v729
        %v735 = vrot.slane %v734, 4
        %v737 = vshll.u32 %v422, 16
        %v739 = vrot.slane %v737, 5
        %v740 = vsel %vm428, %v735, %v739
        %v742 = vshrl.u32 %v403, 16
        %v744 = vrot.slane %v742, 4
        %v745 = vshll.u32 %v403, 16
        %v747 = vrot.slane %v745, 5
        %v748 = vor.u32 %v744, %v747
        %v749 = vrot.slane %v748, 4
        %v751 = vshll.u32 %v404, 16
        %v753 = vrot.slane %v751, 5
        %v754 = vsel %vm428, %v749, %v753
        %v755 = vshrl.u32 %v404, 16
        %v757 = vrot.slane %v755, 4
        %v758 = vor.u32 %v757, %v753
        %v759 = vrot.slane %v758, 4
        %v761 = vshll.u32 %v423, 16
        %v763 = vrot.slane %v761, 5
        %v764 = vsel %vm428, %v759, %v763
        %v766 = vshrl.u32 %v405, 16
        %v768 = vrot.slane %v766, 4
        %v769 = vshll.u32 %v405, 16
        %v771 = vrot.slane %v769, 5
        %v772 = vor.u32 %v768, %v771
        %v773 = vrot.slane %v772, 4
        %v775 = vshll.u32 %v406, 16
        %v777 = vrot.slane %v775, 5
        %v778 = vsel %vm428, %v773, %v777
        %v779 = vshrl.u32 %v406, 16
        %v781 = vrot.slane %v779, 4
        %v782 = vor.u32 %v781, %v777
        %v783 = vrot.slane %v782, 4
        %v785 = vshll.u32 %v424, 16
        %v787 = vrot.slane %v785, 5
        %v788 = vsel %vm428, %v783, %v787
        %v790 = vshrl.u32 %v407, 16
        %v792 = vrot.slane %v790, 4
        %v793 = vshll.u32 %v407, 16
        %v795 = vrot.slane %v793, 5
        %v796 = vor.u32 %v792, %v795
        %v797 = vrot.slane %v796, 4
        %v799 = vshll.u32 %v408, 16
        %v801 = vrot.slane %v799, 5
        %v802 = vsel %vm428, %v797, %v801
        %v803 = vshrl.u32 %v408, 16
        %v805 = vrot.slane %v803, 4
        %v806 = vor.u32 %v805, %v801
        %v807 = vrot.slane %v806, 4
        %v809 = vshll.u32 %v425, 16
        %v811 = vrot.slane %v809, 5
        %v812 = vsel %vm428, %v807, %v811
        %s813 = scalar_lea.vmem [#allocation6], 2
        %v814 = vld [vmem:[%s813] sm:$0x3]
        %v815 = vunpack.c.l.b16 %v442
        %v816 = vunpack.c.l.b16 %v452
        %v817 = vunpack.c.l.b16 %v466
        %v818 = vunpack.c.l.b16 %v476
        %v819 = vunpack.c.l.b16 %v490
        %v820 = vunpack.c.l.b16 %v500
        %v821 = vunpack.c.l.b16 %v514
        %v822 = vunpack.c.l.b16 %v524
        %v823 = vunpack.c.l.b16 %v538
        %v824 = vunpack.c.l.b16 %v548
        %v825 = vunpack.c.l.b16 %v562
        %v826 = vunpack.c.l.b16 %v572
        %v827 = vunpack.c.l.b16 %v586
        %v828 = vunpack.c.l.b16 %v596
        %v829 = vunpack.c.l.b16 %v610
        %v830 = vunpack.c.l.b16 %v620
        %v831 = vunpack.c.l.b16 %v634
        %v832 = vunpack.c.l.b16 %v644
        %v833 = vunpack.c.l.b16 %v658
        %v834 = vunpack.c.l.b16 %v668
        %v835 = vunpack.c.l.b16 %v682
        %v836 = vunpack.c.l.b16 %v692
        %v837 = vunpack.c.l.b16 %v706
        %v838 = vunpack.c.l.b16 %v716
        %v839 = vunpack.c.l.b16 %v730
        %v840 = vunpack.c.l.b16 %v740
        %v841 = vunpack.c.l.b16 %v754
        %v842 = vunpack.c.l.b16 %v764
        %v843 = vunpack.c.l.b16 %v778
        %v844 = vunpack.c.l.b16 %v788
        %v845 = vunpack.c.l.b16 %v802
        %v846 = vunpack.c.l.b16 %v812
        %v847 = vpack.c.b16 %v816, %v815
        %v848 = vpack.c.b16 %v818, %v817
        %v849 = vpack.c.b16 %v820, %v819
        %v850 = vpack.c.b16 %v822, %v821
        %v851 = vpack.c.b16 %v824, %v823
        %v852 = vpack.c.b16 %v826, %v825
        %v853 = vpack.c.b16 %v828, %v827
        %v854 = vpack.c.b16 %v830, %v829
        %v855 = vpack.c.b16 %v832, %v831
        %v856 = vpack.c.b16 %v834, %v833
        %v857 = vpack.c.b16 %v836, %v835
        %v858 = vpack.c.b16 %v838, %v837
        %v859 = vpack.c.b16 %v840, %v839
        %v860 = vpack.c.b16 %v842, %v841
        %v861 = vpack.c.b16 %v844, %v843
        %v862 = vpack.c.b16 %v846, %v845
        %vm863 = vcmask 31744
        %v865 = vsel %vm863, %v847, 0
        %v868 = vsel %vm863, %v848, 0
        %v871 = vsel %vm863, %v849, 0
        %v874 = vsel %vm863, %v850, 0
        %v877 = vsel %vm863, %v851, 0
        %v880 = vsel %vm863, %v852, 0
        %v883 = vsel %vm863, %v853, 0
        %v886 = vsel %vm863, %v854, 0
        %v889 = vsel %vm863, %v855, 0
        %v892 = vsel %vm863, %v856, 0
        %v895 = vsel %vm863, %v857, 0
        %v898 = vsel %vm863, %v858, 0
        %v901 = vsel %vm863, %v859, 0
        %v904 = vsel %vm863, %v860, 0
        %v907 = vsel %vm863, %v861, 0
        %v910 = vsel %vm863, %v862, 0
        %vm912 = vcmask 1041408
        %v914 = vsel %vm912, %v814, 0
        %916 = vmatprep.subr.bf16.mxu0 0
        %917 = vmatpush1.bf16.msra.mxu0 %v914
        %918 = vmatprep.subr.bf16.mxu0 0
        %919 = vmatpush1.bf16.msra.mxu0 0
        %920 = vmatprep.subr.bf16.mxu0 0
        %921 = vmatpush1.bf16.msra.mxu0 0
        %922 = vmatprep.subr.bf16.mxu0 0
        %923 = vmatpush1.bf16.msra.mxu0 0
        %924 = vmatprep.subr.bf16.mxu0 0
        %925 = vmatpush1.bf16.msra.mxu0 0
        %926 = vmatprep.subr.bf16.mxu0 0
        %927 = vmatpush1.bf16.msra.mxu0 0
        %928 = vmatprep.subr.bf16.mxu0 0
        %929 = vmatpush1.bf16.msra.mxu0 0
        %930 = vmatprep.subr.bf16.mxu0 0
        %931 = vmatpush1.bf16.msra.mxu0 0
        %932 = vmatprep.subr.bf16.mxu0 0
        %933 = vmatpush1.bf16.msra.mxu0 0
        %934 = vmatprep.subr.bf16.mxu0 0
        %935 = vmatpush1.bf16.msra.mxu0 0
        %936 = vmatprep.subr.bf16.mxu0 0
        %937 = vmatpush1.bf16.msra.mxu0 0
        %938 = vmatprep.subr.bf16.mxu0 0
        %939 = vmatpush1.bf16.msra.mxu0 0
        %940 = vmatprep.subr.bf16.mxu0 0
        %941 = vmatpush1.bf16.msra.mxu0 0
        %942 = vmatprep.subr.bf16.mxu0 0
        %943 = vmatpush1.bf16.msra.mxu0 0
        %944 = vmatprep.subr.bf16.mxu0 0
        %945 = vmatpush1.bf16.msra.mxu0 0
        %946 = vmatprep.subr.bf16.mxu0 0
        %947 = vmatpush1.bf16.msra.mxu0 0
        %948 = vmatprep.mubr.bf16.mxu0 0
        %949 = vmatmul.mubr.bf16.gmra.mrb[0].mxu0 %v865
        %v950 = vpop.f32.mrb[0].mxu0
        %v951 = vadd.f32 0.0, %v950
        %v952 = vpop.f32.mrb[0].mxu0
        %v953 = vpop.f32.mrb[0].mxu0
        %v954 = vadd.f32 0.0, %v953
        %v955 = vpop.f32.mrb[0].mxu0
        %956 = vmatprep.mubr.bf16.mxu0 0
        %957 = vmatmul.mubr.bf16.gmra.mrb[0].mxu0 %v868
        %v958 = vpop.f32.mrb[0].mxu0
        %v959 = vadd.f32 0.0, %v958
        %v960 = vpop.f32.mrb[0].mxu0
        %v961 = vpop.f32.mrb[0].mxu0
        %v962 = vadd.f32 0.0, %v961
        %v963 = vpop.f32.mrb[0].mxu0
        %964 = vmatprep.mubr.bf16.mxu0 0
        %965 = vmatmul.mubr.bf16.gmra.mrb[0].mxu0 %v871
        %v966 = vpop.f32.mrb[0].mxu0
        %v967 = vadd.f32 0.0, %v966
        %v968 = vpop.f32.mrb[0].mxu0
        %v969 = vpop.f32.mrb[0].mxu0
        %v970 = vadd.f32 0.0, %v969
        %v971 = vpop.f32.mrb[0].mxu0
        %972 = vmatprep.mubr.bf16.mxu0 0
        %973 = vmatmul.mubr.bf16.gmra.mrb[0].mxu0 %v874
        %v974 = vpop.f32.mrb[0].mxu0
        %v975 = vadd.f32 0.0, %v974
        %v976 = vpop.f32.mrb[0].mxu0
        %v977 = vpop.f32.mrb[0].mxu0
        %v978 = vadd.f32 0.0, %v977
        %v979 = vpop.f32.mrb[0].mxu0
        %980 = vmatprep.mubr.bf16.mxu0 0
        %981 = vmatmul.mubr.bf16.gmra.mrb[0].mxu0 %v877
        %v982 = vpop.f32.mrb[0].mxu0
        %v983 = vadd.f32 0.0, %v982
        %v984 = vpop.f32.mrb[0].mxu0
        %v985 = vpop.f32.mrb[0].mxu0
        %v986 = vadd.f32 0.0, %v985
        %v987 = vpop.f32.mrb[0].mxu0
        %988 = vmatprep.mubr.bf16.mxu0 0
        %989 = vmatmul.mubr.bf16.gmra.mrb[0].mxu0 %v880
        %v990 = vpop.f32.mrb[0].mxu0
        %v991 = vadd.f32 0.0, %v990
        %v992 = vpop.f32.mrb[0].mxu0
        %v993 = vpop.f32.mrb[0].mxu0
        %v994 = vadd.f32 0.0, %v993
        %v995 = vpop.f32.mrb[0].mxu0
        %996 = vmatprep.mubr.bf16.mxu0 0
        %997 = vmatmul.mubr.bf16.gmra.mrb[0].mxu0 %v883
        %v998 = vpop.f32.mrb[0].mxu0
        %v999 = vadd.f32 0.0, %v998
        %v1000 = vpop.f32.mrb[0].mxu0
        %v1001 = vpop.f32.mrb[0].mxu0
        %v1002 = vadd.f32 0.0, %v1001
        %v1003 = vpop.f32.mrb[0].mxu0
        %1004 = vmatprep.mubr.bf16.mxu0 0
        %1005 = vmatmul.mubr.bf16.gmra.mrb[0].mxu0 %v886
        %v1006 = vpop.f32.mrb[0].mxu0
        %v1007 = vadd.f32 0.0, %v1006
        %v1008 = vpop.f32.mrb[0].mxu0
        %v1009 = vpop.f32.mrb[0].mxu0
        %v1010 = vadd.f32 0.0, %v1009
        %v1011 = vpop.f32.mrb[0].mxu0
        %1012 = vmatprep.mubr.bf16.mxu0 0
        %1013 = vmatmul.mubr.bf16.gmra.mrb[0].mxu0 %v889
        %v1014 = vpop.f32.mrb[0].mxu0
        %v1015 = vadd.f32 0.0, %v1014
        %v1016 = vpop.f32.mrb[0].mxu0
        %v1017 = vpop.f32.mrb[0].mxu0
        %v1018 = vadd.f32 0.0, %v1017
        %v1019 = vpop.f32.mrb[0].mxu0
        %1020 = vmatprep.mubr.bf16.mxu0 0
        %1021 = vmatmul.mubr.bf16.gmra.mrb[0].mxu0 %v892
        %v1022 = vpop.f32.mrb[0].mxu0
        %v1023 = vadd.f32 0.0, %v1022
        %v1024 = vpop.f32.mrb[0].mxu0
        %v1025 = vpop.f32.mrb[0].mxu0
        %v1026 = vadd.f32 0.0, %v1025
        %v1027 = vpop.f32.mrb[0].mxu0
        %1028 = vmatprep.mubr.bf16.mxu0 0
        %1029 = vmatmul.mubr.bf16.gmra.mrb[0].mxu0 %v895
        %v1030 = vpop.f32.mrb[0].mxu0
        %v1031 = vadd.f32 0.0, %v1030
        %v1032 = vpop.f32.mrb[0].mxu0
        %v1033 = vpop.f32.mrb[0].mxu0
        %v1034 = vadd.f32 0.0, %v1033
        %v1035 = vpop.f32.mrb[0].mxu0
        %1036 = vmatprep.mubr.bf16.mxu0 0
        %1037 = vmatmul.mubr.bf16.gmra.mrb[0].mxu0 %v898
        %v1038 = vpop.f32.mrb[0].mxu0
        %v1039 = vadd.f32 0.0, %v1038
        %v1040 = vpop.f32.mrb[0].mxu0
        %v1041 = vpop.f32.mrb[0].mxu0
        %v1042 = vadd.f32 0.0, %v1041
        %v1043 = vpop.f32.mrb[0].mxu0
        %1044 = vmatprep.mubr.bf16.mxu0 0
        %1045 = vmatmul.mubr.bf16.gmra.mrb[0].mxu0 %v901
        %v1046 = vpop.f32.mrb[0].mxu0
        %v1047 = vadd.f32 0.0, %v1046
        %v1048 = vpop.f32.mrb[0].mxu0
        %v1049 = vpop.f32.mrb[0].mxu0
        %v1050 = vadd.f32 0.0, %v1049
        %v1051 = vpop.f32.mrb[0].mxu0
        %1052 = vmatprep.mubr.bf16.mxu0 0
        %1053 = vmatmul.mubr.bf16.gmra.mrb[0].mxu0 %v904
        %v1054 = vpop.f32.mrb[0].mxu0
        %v1055 = vadd.f32 0.0, %v1054
        %v1056 = vpop.f32.mrb[0].mxu0
        %v1057 = vpop.f32.mrb[0].mxu0
        %v1058 = vadd.f32 0.0, %v1057
        %v1059 = vpop.f32.mrb[0].mxu0
        %1060 = vmatprep.mubr.bf16.mxu0 0
        %1061 = vmatmul.mubr.bf16.gmra.mrb[0].mxu0 %v907
        %v1062 = vpop.f32.mrb[0].mxu0
        %v1063 = vadd.f32 0.0, %v1062
        %v1064 = vpop.f32.mrb[0].mxu0
        %v1065 = vpop.f32.mrb[0].mxu0
        %v1066 = vadd.f32 0.0, %v1065
        %v1067 = vpop.f32.mrb[0].mxu0
        %1068 = vmatprep.mubr.bf16.mxu0 0
        %1069 = vmatmul.mubr.bf16.gmra.mrb[0].mxu0 %v910
        %v1070 = vpop.f32.mrb[0].mxu0
        %v1071 = vadd.f32 0.0, %v1070
        %v1072 = vpop.f32.mrb[0].mxu0
        %v1073 = vpop.f32.mrb[0].mxu0
        %v1074 = vadd.f32 0.0, %v1073
        %v1075 = vpop.f32.mrb[0].mxu0
        %1076 = vdwg.mxu0
        %v1109 = vunpack.c.l.b16 %v377
        %v1110 = vunpack.c.l.b16 %v378
        %v1111 = vunpack.c.l.b16 %v379
        %v1112 = vunpack.c.l.b16 %v380
        %v1113 = vunpack.c.l.b16 %v381
        %v1114 = vunpack.c.l.b16 %v382
        %v1115 = vunpack.c.l.b16 %v383
        %v1116 = vunpack.c.l.b16 %v384
        %v1117 = vunpack.c.l.b16 %v385
        %v1118 = vunpack.c.l.b16 %v386
        %v1119 = vunpack.c.l.b16 %v387
        %v1120 = vunpack.c.l.b16 %v388
        %v1121 = vunpack.c.l.b16 %v389
        %v1122 = vunpack.c.l.b16 %v390
        %v1123 = vunpack.c.l.b16 %v391
        %v1124 = vunpack.c.l.b16 %v392
        %v1125 = vunpack.c.l.b16 %v393
        %v1126 = vunpack.c.l.b16 %v394
        %v1127 = vunpack.c.l.b16 %v395
        %v1128 = vunpack.c.l.b16 %v396
        %v1129 = vunpack.c.l.b16 %v397
        %v1130 = vunpack.c.l.b16 %v398
        %v1131 = vunpack.c.l.b16 %v399
        %v1132 = vunpack.c.l.b16 %v400
        %v1133 = vunpack.c.l.b16 %v401
        %v1134 = vunpack.c.l.b16 %v402
        %v1135 = vunpack.c.l.b16 %v403
        %v1136 = vunpack.c.l.b16 %v404
        %v1137 = vunpack.c.l.b16 %v405
        %v1138 = vunpack.c.l.b16 %v406
        %v1139 = vunpack.c.l.b16 %v407
        %v1140 = vunpack.c.l.b16 %v408
        %v1141 = vpack.c.b16 %v1110, %v1109
        %v1142 = vpack.c.b16 %v1112, %v1111
        %v1143 = vpack.c.b16 %v1114, %v1113
        %v1144 = vpack.c.b16 %v1116, %v1115
        %v1145 = vpack.c.b16 %v1118, %v1117
        %v1146 = vpack.c.b16 %v1120, %v1119
        %v1147 = vpack.c.b16 %v1122, %v1121
        %v1148 = vpack.c.b16 %v1124, %v1123
        %v1149 = vpack.c.b16 %v1126, %v1125
        %v1150 = vpack.c.b16 %v1128, %v1127
        %v1151 = vpack.c.b16 %v1130, %v1129
        %v1152 = vpack.c.b16 %v1132, %v1131
        %v1153 = vpack.c.b16 %v1134, %v1133
        %v1154 = vpack.c.b16 %v1136, %v1135
        %v1155 = vpack.c.b16 %v1138, %v1137
        %v1156 = vpack.c.b16 %v1140, %v1139
        %v1158 = vsel %vm863, %v1141, 0
        %v1161 = vsel %vm863, %v1142, 0
        %v1164 = vsel %vm863, %v1143, 0
        %v1167 = vsel %vm863, %v1144, 0
        %v1170 = vsel %vm863, %v1145, 0
        %v1173 = vsel %vm863, %v1146, 0
        %v1176 = vsel %vm863, %v1147, 0
        %v1179 = vsel %vm863, %v1148, 0
        %v1182 = vsel %vm863, %v1149, 0
        %v1185 = vsel %vm863, %v1150, 0
        %v1188 = vsel %vm863, %v1151, 0
        %v1191 = vsel %vm863, %v1152, 0
        %v1194 = vsel %vm863, %v1153, 0
        %v1197 = vsel %vm863, %v1154, 0
        %v1200 = vsel %vm863, %v1155, 0
        %v1203 = vsel %vm863, %v1156, 0
        %v1206 = vsel %vm912, %v409, 0
        %1208 = vmatprep.subr.bf16.mxu0 0
        %1209 = vmatpush1.bf16.msra.mxu0 %v1206
        %1210 = vmatprep.subr.bf16.mxu0 0
        %1211 = vmatpush1.bf16.msra.mxu0 0
        %1212 = vmatprep.subr.bf16.mxu0 0
        %1213 = vmatpush1.bf16.msra.mxu0 0
        %1214 = vmatprep.subr.bf16.mxu0 0
        %1215 = vmatpush1.bf16.msra.mxu0 0
        %1216 = vmatprep.subr.bf16.mxu0 0
        %1217 = vmatpush1.bf16.msra.mxu0 0
        %1218 = vmatprep.subr.bf16.mxu0 0
        %1219 = vmatpush1.bf16.msra.mxu0 0
        %1220 = vmatprep.subr.bf16.mxu0 0
        %1221 = vmatpush1.bf16.msra.mxu0 0
        %1222 = vmatprep.subr.bf16.mxu0 0
        %1223 = vmatpush1.bf16.msra.mxu0 0
        %1224 = vmatprep.subr.bf16.mxu0 0
        %1225 = vmatpush1.bf16.msra.mxu0 0
        %1226 = vmatprep.subr.bf16.mxu0 0
        %1227 = vmatpush1.bf16.msra.mxu0 0
        %1228 = vmatprep.subr.bf16.mxu0 0
        %1229 = vmatpush1.bf16.msra.mxu0 0
        %1230 = vmatprep.subr.bf16.mxu0 0
        %1231 = vmatpush1.bf16.msra.mxu0 0
        %1232 = vmatprep.subr.bf16.mxu0 0
        %1233 = vmatpush1.bf16.msra.mxu0 0
        %1234 = vmatprep.subr.bf16.mxu0 0
        %1235 = vmatpush1.bf16.msra.mxu0 0
        %1236 = vmatprep.subr.bf16.mxu0 0
        %1237 = vmatpush1.bf16.msra.mxu0 0
        %1238 = vmatprep.subr.bf16.mxu0 0
        %1239 = vmatpush1.bf16.msra.mxu0 0
        %1240 = vmatprep.mubr.bf16.mxu0 0
        %1241 = vmatmul.mubr.bf16.gmra.mrb[0].mxu0 %v1158
        %v1242 = vpop.f32.mrb[0].mxu0
        %v1243 = vadd.f32 %v951, %v1242
        %v1244 = vpop.f32.mrb[0].mxu0
        %v1245 = vpop.f32.mrb[0].mxu0
        %v1246 = vadd.f32 %v954, %v1245
        %v1247 = vpop.f32.mrb[0].mxu0
        %1248 = vmatprep.mubr.bf16.mxu0 0
        %1249 = vmatmul.mubr.bf16.gmra.mrb[0].mxu0 %v1161
        %v1250 = vpop.f32.mrb[0].mxu0
        %v1251 = vadd.f32 %v959, %v1250
        %v1252 = vpop.f32.mrb[0].mxu0
        %v1253 = vpop.f32.mrb[0].mxu0
        %v1254 = vadd.f32 %v962, %v1253
        %v1255 = vpop.f32.mrb[0].mxu0
        %1256 = vmatprep.mubr.bf16.mxu0 0
        %1257 = vmatmul.mubr.bf16.gmra.mrb[0].mxu0 %v1164
        %v1258 = vpop.f32.mrb[0].mxu0
        %v1259 = vadd.f32 %v967, %v1258
        %v1260 = vpop.f32.mrb[0].mxu0
        %v1261 = vpop.f32.mrb[0].mxu0
        %v1262 = vadd.f32 %v970, %v1261
        %v1263 = vpop.f32.mrb[0].mxu0
        %1264 = vmatprep.mubr.bf16.mxu0 0
        %1265 = vmatmul.mubr.bf16.gmra.mrb[0].mxu0 %v1167
        %v1266 = vpop.f32.mrb[0].mxu0
        %v1267 = vadd.f32 %v975, %v1266
        %v1268 = vpop.f32.mrb[0].mxu0
        %v1269 = vpop.f32.mrb[0].mxu0
        %v1270 = vadd.f32 %v978, %v1269
        %v1271 = vpop.f32.mrb[0].mxu0
        %1272 = vmatprep.mubr.bf16.mxu0 0
        %1273 = vmatmul.mubr.bf16.gmra.mrb[0].mxu0 %v1170
        %v1274 = vpop.f32.mrb[0].mxu0
        %v1275 = vadd.f32 %v983, %v1274
        %v1276 = vpop.f32.mrb[0].mxu0
        %v1277 = vpop.f32.mrb[0].mxu0
        %v1278 = vadd.f32 %v986, %v1277
        %v1279 = vpop.f32.mrb[0].mxu0
        %1280 = vmatprep.mubr.bf16.mxu0 0
        %1281 = vmatmul.mubr.bf16.gmra.mrb[0].mxu0 %v1173
        %v1282 = vpop.f32.mrb[0].mxu0
        %v1283 = vadd.f32 %v991, %v1282
        %v1284 = vpop.f32.mrb[0].mxu0
        %v1285 = vpop.f32.mrb[0].mxu0
        %v1286 = vadd.f32 %v994, %v1285
        %v1287 = vpop.f32.mrb[0].mxu0
        %1288 = vmatprep.mubr.bf16.mxu0 0
        %1289 = vmatmul.mubr.bf16.gmra.mrb[0].mxu0 %v1176
        %v1290 = vpop.f32.mrb[0].mxu0
        %v1291 = vadd.f32 %v999, %v1290
        %v1292 = vpop.f32.mrb[0].mxu0
        %v1293 = vpop.f32.mrb[0].mxu0
        %v1294 = vadd.f32 %v1002, %v1293
        %v1295 = vpop.f32.mrb[0].mxu0
        %1296 = vmatprep.mubr.bf16.mxu0 0
        %1297 = vmatmul.mubr.bf16.gmra.mrb[0].mxu0 %v1179
        %v1298 = vpop.f32.mrb[0].mxu0
        %v1299 = vadd.f32 %v1007, %v1298
        %v1300 = vpop.f32.mrb[0].mxu0
        %v1301 = vpop.f32.mrb[0].mxu0
        %v1302 = vadd.f32 %v1010, %v1301
        %v1303 = vpop.f32.mrb[0].mxu0
        %1304 = vmatprep.mubr.bf16.mxu0 0
        %1305 = vmatmul.mubr.bf16.gmra.mrb[0].mxu0 %v1182
        %v1306 = vpop.f32.mrb[0].mxu0
        %v1307 = vadd.f32 %v1015, %v1306
        %v1308 = vpop.f32.mrb[0].mxu0
        %v1309 = vpop.f32.mrb[0].mxu0
        %v1310 = vadd.f32 %v1018, %v1309
        %v1311 = vpop.f32.mrb[0].mxu0
        %1312 = vmatprep.mubr.bf16.mxu0 0
        %1313 = vmatmul.mubr.bf16.gmra.mrb[0].mxu0 %v1185
        %v1314 = vpop.f32.mrb[0].mxu0
        %v1315 = vadd.f32 %v1023, %v1314
        %v1316 = vpop.f32.mrb[0].mxu0
        %v1317 = vpop.f32.mrb[0].mxu0
        %v1318 = vadd.f32 %v1026, %v1317
        %v1319 = vpop.f32.mrb[0].mxu0
        %1320 = vmatprep.mubr.bf16.mxu0 0
        %1321 = vmatmul.mubr.bf16.gmra.mrb[0].mxu0 %v1188
        %v1322 = vpop.f32.mrb[0].mxu0
        %v1323 = vadd.f32 %v1031, %v1322
        %v1324 = vpop.f32.mrb[0].mxu0
        %v1325 = vpop.f32.mrb[0].mxu0
        %v1326 = vadd.f32 %v1034, %v1325
        %v1327 = vpop.f32.mrb[0].mxu0
        %1328 = vmatprep.mubr.bf16.mxu0 0
        %1329 = vmatmul.mubr.bf16.gmra.mrb[0].mxu0 %v1191
        %v1330 = vpop.f32.mrb[0].mxu0
        %v1331 = vadd.f32 %v1039, %v1330
        %v1332 = vpop.f32.mrb[0].mxu0
        %v1333 = vpop.f32.mrb[0].mxu0
        %v1334 = vadd.f32 %v1042, %v1333
        %v1335 = vpop.f32.mrb[0].mxu0
        %1336 = vmatprep.mubr.bf16.mxu0 0
        %1337 = vmatmul.mubr.bf16.gmra.mrb[0].mxu0 %v1194
        %v1338 = vpop.f32.mrb[0].mxu0
        %v1339 = vadd.f32 %v1047, %v1338
        %v1340 = vpop.f32.mrb[0].mxu0
        %v1341 = vpop.f32.mrb[0].mxu0
        %v1342 = vadd.f32 %v1050, %v1341
        %v1343 = vpop.f32.mrb[0].mxu0
        %1344 = vmatprep.mubr.bf16.mxu0 0
        %1345 = vmatmul.mubr.bf16.gmra.mrb[0].mxu0 %v1197
        %v1346 = vpop.f32.mrb[0].mxu0
        %v1347 = vadd.f32 %v1055, %v1346
        %v1348 = vpop.f32.mrb[0].mxu0
        %v1349 = vpop.f32.mrb[0].mxu0
        %v1350 = vadd.f32 %v1058, %v1349
        %v1351 = vpop.f32.mrb[0].mxu0
        %1352 = vmatprep.mubr.bf16.mxu0 0
        %1353 = vmatmul.mubr.bf16.gmra.mrb[0].mxu0 %v1200
        %v1354 = vpop.f32.mrb[0].mxu0
        %v1355 = vadd.f32 %v1063, %v1354
        %v1356 = vpop.f32.mrb[0].mxu0
        %v1357 = vpop.f32.mrb[0].mxu0
        %v1358 = vadd.f32 %v1066, %v1357
        %v1359 = vpop.f32.mrb[0].mxu0
        %1360 = vmatprep.mubr.bf16.mxu0 0
        %1361 = vmatmul.mubr.bf16.gmra.mrb[0].mxu0 %v1203
        %v1362 = vpop.f32.mrb[0].mxu0
        %v1363 = vadd.f32 %v1071, %v1362
        %v1364 = vpop.f32.mrb[0].mxu0
        %v1365 = vpop.f32.mrb[0].mxu0
        %v1366 = vadd.f32 %v1074, %v1365
        %v1367 = vpop.f32.mrb[0].mxu0
        %1368 = vdwg.mxu0
        %v1369 = vld [vmem:[%s321] sm:$0xe]
        %v1370 = vld [vmem:[%s321 + $0xc] sm:$0xe]
        %v1371 = vld [vmem:[%s321 + $0x18] sm:$0xe]
        %v1372 = vld [vmem:[%s321 + $0x24] sm:$0xe]
        %v1373 = vld [vmem:[%s321 + $0x30] sm:$0xe]
        %v1374 = vld [vmem:[%s321 + $0x3c] sm:$0xe]
        %v1375 = vld [vmem:[%s321 + $0x48] sm:$0xe]
        %v1376 = vld [vmem:[%s321 + $0x54] sm:$0xe]
        %v1377 = vld [vmem:[%s321 + $0x60] sm:$0xe]
        %v1378 = vld [vmem:[%s321 + $0x6c] sm:$0xe]
        %v1379 = vld [vmem:[%s321 + $0x78] sm:$0xe]
        %v1380 = vld [vmem:[%s321 + $0x84] sm:$0xe]
        %v1381 = vld [vmem:[%s321 + $0x90] sm:$0xe]
        %v1382 = vld [vmem:[%s321 + $0x9c] sm:$0xe]
        %v1383 = vld [vmem:[%s321 + $0xa8] sm:$0xe]
        %v1384 = vld [vmem:[%s321 + $0xb4] sm:$0xe]
        %vm1417 = vcmask 1042432
        %vm1418 = vcmask 1046532
        %vm1419 = vmor %vm1417, %vm1418
        %v1420 = vrot.slane %v1369, 5
        %v1421 = vrot.slane %v1420, 4
        %v1422 = vrot.slane %v378, 5
        %v1423 = vsel %vm1419, %v1421, %v1422
        %v1424 = vrot.slane %v1422, 4
        %v1425 = vrot.slane %v410, 5
        %v1426 = vsel %vm1419, %v1424, %v1425
        %v1427 = vrot.slane %v1370, 5
        %v1428 = vrot.slane %v1427, 4
        %v1429 = vrot.slane %v380, 5
        %v1430 = vsel %vm1419, %v1428, %v1429
        %v1431 = vrot.slane %v1429, 4
        %v1432 = vrot.slane %v411, 5
        %v1433 = vsel %vm1419, %v1431, %v1432
        %v1434 = vrot.slane %v1371, 5
        %v1435 = vrot.slane %v1434, 4
        %v1436 = vrot.slane %v382, 5
        %v1437 = vsel %vm1419, %v1435, %v1436
        %v1438 = vrot.slane %v1436, 4
        %v1439 = vrot.slane %v412, 5
        %v1440 = vsel %vm1419, %v1438, %v1439
        %v1441 = vrot.slane %v1372, 5
        %v1442 = vrot.slane %v1441, 4
        %v1443 = vrot.slane %v384, 5
        %v1444 = vsel %vm1419, %v1442, %v1443
        %v1445 = vrot.slane %v1443, 4
        %v1446 = vrot.slane %v413, 5
        %v1447 = vsel %vm1419, %v1445, %v1446
        %v1448 = vrot.slane %v1373, 5
        %v1449 = vrot.slane %v1448, 4
        %v1450 = vrot.slane %v386, 5
        %v1451 = vsel %vm1419, %v1449, %v1450
        %v1452 = vrot.slane %v1450, 4
        %v1453 = vrot.slane %v414, 5
        %v1454 = vsel %vm1419, %v1452, %v1453
        %v1455 = vrot.slane %v1374, 5
        %v1456 = vrot.slane %v1455, 4
        %v1457 = vrot.slane %v388, 5
        %v1458 = vsel %vm1419, %v1456, %v1457
        %v1459 = vrot.slane %v1457, 4
        %v1460 = vrot.slane %v415, 5
        %v1461 = vsel %vm1419, %v1459, %v1460
        %v1462 = vrot.slane %v1375, 5
        %v1463 = vrot.slane %v1462, 4
        %v1464 = vrot.slane %v390, 5
        %v1465 = vsel %vm1419, %v1463, %v1464
        %v1466 = vrot.slane %v1464, 4
        %v1467 = vrot.slane %v416, 5
        %v1468 = vsel %vm1419, %v1466, %v1467
        %v1469 = vrot.slane %v1376, 5
        %v1470 = vrot.slane %v1469, 4
        %v1471 = vrot.slane %v392, 5
        %v1472 = vsel %vm1419, %v1470, %v1471
        %v1473 = vrot.slane %v1471, 4
        %v1474 = vrot.slane %v417, 5
        %v1475 = vsel %vm1419, %v1473, %v1474
        %v1476 = vrot.slane %v1377, 5
        %v1477 = vrot.slane %v1476, 4
        %v1478 = vrot.slane %v394, 5
        %v1479 = vsel %vm1419, %v1477, %v1478
        %v1480 = vrot.slane %v1478, 4
        %v1481 = vrot.slane %v418, 5
        %v1482 = vsel %vm1419, %v1480, %v1481
        %v1483 = vrot.slane %v1378, 5
        %v1484 = vrot.slane %v1483, 4
        %v1485 = vrot.slane %v396, 5
        %v1486 = vsel %vm1419, %v1484, %v1485
        %v1487 = vrot.slane %v1485, 4
        %v1488 = vrot.slane %v419, 5
        %v1489 = vsel %vm1419, %v1487, %v1488
        %v1490 = vrot.slane %v1379, 5
        %v1491 = vrot.slane %v1490, 4
        %v1492 = vrot.slane %v398, 5
        %v1493 = vsel %vm1419, %v1491, %v1492
        %v1494 = vrot.slane %v1492, 4
        %v1495 = vrot.slane %v420, 5
        %v1496 = vsel %vm1419, %v1494, %v1495
        %v1497 = vrot.slane %v1380, 5
        %v1498 = vrot.slane %v1497, 4
        %v1499 = vrot.slane %v400, 5
        %v1500 = vsel %vm1419, %v1498, %v1499
        %v1501 = vrot.slane %v1499, 4
        %v1502 = vrot.slane %v421, 5
        %v1503 = vsel %vm1419, %v1501, %v1502
        %v1504 = vrot.slane %v1381, 5
        %v1505 = vrot.slane %v1504, 4
        %v1506 = vrot.slane %v402, 5
        %v1507 = vsel %vm1419, %v1505, %v1506
        %v1508 = vrot.slane %v1506, 4
        %v1509 = vrot.slane %v422, 5
        %v1510 = vsel %vm1419, %v1508, %v1509
        %v1511 = vrot.slane %v1382, 5
        %v1512 = vrot.slane %v1511, 4
        %v1513 = vrot.slane %v404, 5
        %v1514 = vsel %vm1419, %v1512, %v1513
        %v1515 = vrot.slane %v1513, 4
        %v1516 = vrot.slane %v423, 5
        %v1517 = vsel %vm1419, %v1515, %v1516
        %v1518 = vrot.slane %v1383, 5
        %v1519 = vrot.slane %v1518, 4
        %v1520 = vrot.slane %v406, 5
        %v1521 = vsel %vm1419, %v1519, %v1520
        %v1522 = vrot.slane %v1520, 4
        %v1523 = vrot.slane %v424, 5
        %v1524 = vsel %vm1419, %v1522, %v1523
        %v1525 = vrot.slane %v1384, 5
        %v1526 = vrot.slane %v1525, 4
        %v1527 = vrot.slane %v408, 5
        %v1528 = vsel %vm1419, %v1526, %v1527
        %v1529 = vrot.slane %v1527, 4
        %v1530 = vrot.slane %v425, 5
        %v1531 = vsel %vm1419, %v1529, %v1530
        %s1532 = scalar_lea.vmem [#allocation6], 4
        %v1533 = vld [vmem:[%s1532] sm:$0x3]
        %v1534 = vunpack.c.l.b16 %v1423
        %v1535 = vunpack.c.l.b16 %v1426
        %v1536 = vunpack.c.l.b16 %v1430
        %v1537 = vunpack.c.l.b16 %v1433
        %v1538 = vunpack.c.l.b16 %v1437
        %v1539 = vunpack.c.l.b16 %v1440
        %v1540 = vunpack.c.l.b16 %v1444
        %v1541 = vunpack.c.l.b16 %v1447
        %v1542 = vunpack.c.l.b16 %v1451
        %v1543 = vunpack.c.l.b16 %v1454
        %v1544 = vunpack.c.l.b16 %v1458
        %v1545 = vunpack.c.l.b16 %v1461
        %v1546 = vunpack.c.l.b16 %v1465
        %v1547 = vunpack.c.l.b16 %v1468
        %v1548 = vunpack.c.l.b16 %v1472
        %v1549 = vunpack.c.l.b16 %v1475
        %v1550 = vunpack.c.l.b16 %v1479
        %v1551 = vunpack.c.l.b16 %v1482
        %v1552 = vunpack.c.l.b16 %v1486
        %v1553 = vunpack.c.l.b16 %v1489
        %v1554 = vunpack.c.l.b16 %v1493
        %v1555 = vunpack.c.l.b16 %v1496
        %v1556 = vunpack.c.l.b16 %v1500
        %v1557 = vunpack.c.l.b16 %v1503
        %v1558 = vunpack.c.l.b16 %v1507
        %v1559 = vunpack.c.l.b16 %v1510
        %v1560 = vunpack.c.l.b16 %v1514
        %v1561 = vunpack.c.l.b16 %v1517
        %v1562 = vunpack.c.l.b16 %v1521
        %v1563 = vunpack.c.l.b16 %v1524
        %v1564 = vunpack.c.l.b16 %v1528
        %v1565 = vunpack.c.l.b16 %v1531
        %v1566 = vpack.c.b16 %v1535, %v1534
        %v1567 = vpack.c.b16 %v1537, %v1536
        %v1568 = vpack.c.b16 %v1539, %v1538
        %v1569 = vpack.c.b16 %v1541, %v1540
        %v1570 = vpack.c.b16 %v1543, %v1542
        %v1571 = vpack.c.b16 %v1545, %v1544
        %v1572 = vpack.c.b16 %v1547, %v1546
        %v1573 = vpack.c.b16 %v1549, %v1548
        %v1574 = vpack.c.b16 %v1551, %v1550
        %v1575 = vpack.c.b16 %v1553, %v1552
        %v1576 = vpack.c.b16 %v1555, %v1554
        %v1577 = vpack.c.b16 %v1557, %v1556
        %v1578 = vpack.c.b16 %v1559, %v1558
        %v1579 = vpack.c.b16 %v1561, %v1560
        %v1580 = vpack.c.b16 %v1563, %v1562
        %v1581 = vpack.c.b16 %v1565, %v1564
        %v1583 = vsel %vm863, %v1566, 0
        %v1586 = vsel %vm863, %v1567, 0
        %v1589 = vsel %vm863, %v1568, 0
        %v1592 = vsel %vm863, %v1569, 0
        %v1595 = vsel %vm863, %v1570, 0
        %v1598 = vsel %vm863, %v1571, 0
        %v1601 = vsel %vm863, %v1572, 0
        %v1604 = vsel %vm863, %v1573, 0
        %v1607 = vsel %vm863, %v1574, 0
        %v1610 = vsel %vm863, %v1575, 0
        %v1613 = vsel %vm863, %v1576, 0
        %v1616 = vsel %vm863, %v1577, 0
        %v1619 = vsel %vm863, %v1578, 0
        %v1622 = vsel %vm863, %v1579, 0
        %v1625 = vsel %vm863, %v1580, 0
        %v1628 = vsel %vm863, %v1581, 0
        %v1631 = vsel %vm912, %v1533, 0
        %1633 = vmatprep.subr.bf16.mxu0 0
        %1634 = vmatpush1.bf16.msra.mxu0 %v1631
        %1635 = vmatprep.subr.bf16.mxu0 0
        %1636 = vmatpush1.bf16.msra.mxu0 0
        %1637 = vmatprep.subr.bf16.mxu0 0
        %1638 = vmatpush1.bf16.msra.mxu0 0
        %1639 = vmatprep.subr.bf16.mxu0 0
        %1640 = vmatpush1.bf16.msra.mxu0 0
        %1641 = vmatprep.subr.bf16.mxu0 0
        %1642 = vmatpush1.bf16.msra.mxu0 0
        %1643 = vmatprep.subr.bf16.mxu0 0
        %1644 = vmatpush1.bf16.msra.mxu0 0
        %1645 = vmatprep.subr.bf16.mxu0 0
        %1646 = vmatpush1.bf16.msra.mxu0 0
        %1647 = vmatprep.subr.bf16.mxu0 0
        %1648 = vmatpush1.bf16.msra.mxu0 0
        %1649 = vmatprep.subr.bf16.mxu0 0
        %1650 = vmatpush1.bf16.msra.mxu0 0
        %1651 = vmatprep.subr.bf16.mxu0 0
        %1652 = vmatpush1.bf16.msra.mxu0 0
        %1653 = vmatprep.subr.bf16.mxu0 0
        %1654 = vmatpush1.bf16.msra.mxu0 0
        %1655 = vmatprep.subr.bf16.mxu0 0
        %1656 = vmatpush1.bf16.msra.mxu0 0
        %1657 = vmatprep.subr.bf16.mxu0 0
        %1658 = vmatpush1.bf16.msra.mxu0 0
        %1659 = vmatprep.subr.bf16.mxu0 0
        %1660 = vmatpush1.bf16.msra.mxu0 0
        %1661 = vmatprep.subr.bf16.mxu0 0
        %1662 = vmatpush1.bf16.msra.mxu0 0
        %1663 = vmatprep.subr.bf16.mxu0 0
        %1664 = vmatpush1.bf16.msra.mxu0 0
        %1665 = vmatprep.mubr.bf16.mxu0 0
        %1666 = vmatmul.mubr.bf16.gmra.mrb[0].mxu0 %v1583
        %v1667 = vpop.f32.mrb[0].mxu0
        %v1668 = vadd.f32 0.0, %v1667
        %v1669 = vpop.f32.mrb[0].mxu0
        %v1670 = vpop.f32.mrb[0].mxu0
        %v1671 = vadd.f32 0.0, %v1670
        %v1672 = vpop.f32.mrb[0].mxu0
        %1673 = vmatprep.mubr.bf16.mxu0 0
        %1674 = vmatmul.mubr.bf16.gmra.mrb[0].mxu0 %v1586
        %v1675 = vpop.f32.mrb[0].mxu0
        %v1676 = vadd.f32 0.0, %v1675
        %v1677 = vpop.f32.mrb[0].mxu0
        %v1678 = vpop.f32.mrb[0].mxu0
        %v1679 = vadd.f32 0.0, %v1678
        %v1680 = vpop.f32.mrb[0].mxu0
        %1681 = vmatprep.mubr.bf16.mxu0 0
        %1682 = vmatmul.mubr.bf16.gmra.mrb[0].mxu0 %v1589
        %v1683 = vpop.f32.mrb[0].mxu0
        %v1684 = vadd.f32 0.0, %v1683
        %v1685 = vpop.f32.mrb[0].mxu0
        %v1686 = vpop.f32.mrb[0].mxu0
        %v1687 = vadd.f32 0.0, %v1686
        %v1688 = vpop.f32.mrb[0].mxu0
        %1689 = vmatprep.mubr.bf16.mxu0 0
        %1690 = vmatmul.mubr.bf16.gmra.mrb[0].mxu0 %v1592
        %v1691 = vpop.f32.mrb[0].mxu0
        %v1692 = vadd.f32 0.0, %v1691
        %v1693 = vpop.f32.mrb[0].mxu0
        %v1694 = vpop.f32.mrb[0].mxu0
        %v1695 = vadd.f32 0.0, %v1694
        %v1696 = vpop.f32.mrb[0].mxu0
        %1697 = vmatprep.mubr.bf16.mxu0 0
        %1698 = vmatmul.mubr.bf16.gmra.mrb[0].mxu0 %v1595
        %v1699 = vpop.f32.mrb[0].mxu0
        %v1700 = vadd.f32 0.0, %v1699
        %v1701 = vpop.f32.mrb[0].mxu0
        %v1702 = vpop.f32.mrb[0].mxu0
        %v1703 = vadd.f32 0.0, %v1702
        %v1704 = vpop.f32.mrb[0].mxu0
        %1705 = vmatprep.mubr.bf16.mxu0 0
        %1706 = vmatmul.mubr.bf16.gmra.mrb[0].mxu0 %v1598
        %v1707 = vpop.f32.mrb[0].mxu0
        %v1708 = vadd.f32 0.0, %v1707
        %v1709 = vpop.f32.mrb[0].mxu0
        %v1710 = vpop.f32.mrb[0].mxu0
        %v1711 = vadd.f32 0.0, %v1710
        %v1712 = vpop.f32.mrb[0].mxu0
        %1713 = vmatprep.mubr.bf16.mxu0 0
        %1714 = vmatmul.mubr.bf16.gmra.mrb[0].mxu0 %v1601
        %v1715 = vpop.f32.mrb[0].mxu0
        %v1716 = vadd.f32 0.0, %v1715
        %v1717 = vpop.f32.mrb[0].mxu0
        %v1718 = vpop.f32.mrb[0].mxu0
        %v1719 = vadd.f32 0.0, %v1718
        %v1720 = vpop.f32.mrb[0].mxu0
        %1721 = vmatprep.mubr.bf16.mxu0 0
        %1722 = vmatmul.mubr.bf16.gmra.mrb[0].mxu0 %v1604
        %v1723 = vpop.f32.mrb[0].mxu0
        %v1724 = vadd.f32 0.0, %v1723
        %v1725 = vpop.f32.mrb[0].mxu0
        %v1726 = vpop.f32.mrb[0].mxu0
        %v1727 = vadd.f32 0.0, %v1726
        %v1728 = vpop.f32.mrb[0].mxu0
        %1729 = vmatprep.mubr.bf16.mxu0 0
        %1730 = vmatmul.mubr.bf16.gmra.mrb[0].mxu0 %v1607
        %v1731 = vpop.f32.mrb[0].mxu0
        %v1732 = vadd.f32 0.0, %v1731
        %v1733 = vpop.f32.mrb[0].mxu0
        %v1734 = vpop.f32.mrb[0].mxu0
        %v1735 = vadd.f32 0.0, %v1734
        %v1736 = vpop.f32.mrb[0].mxu0
        %1737 = vmatprep.mubr.bf16.mxu0 0
        %1738 = vmatmul.mubr.bf16.gmra.mrb[0].mxu0 %v1610
        %v1739 = vpop.f32.mrb[0].mxu0
        %v1740 = vadd.f32 0.0, %v1739
        %v1741 = vpop.f32.mrb[0].mxu0
        %v1742 = vpop.f32.mrb[0].mxu0
        %v1743 = vadd.f32 0.0, %v1742
        %v1744 = vpop.f32.mrb[0].mxu0
        %1745 = vmatprep.mubr.bf16.mxu0 0
        %1746 = vmatmul.mubr.bf16.gmra.mrb[0].mxu0 %v1613
        %v1747 = vpop.f32.mrb[0].mxu0
        %v1748 = vadd.f32 0.0, %v1747
        %v1749 = vpop.f32.mrb[0].mxu0
        %v1750 = vpop.f32.mrb[0].mxu0
        %v1751 = vadd.f32 0.0, %v1750
        %v1752 = vpop.f32.mrb[0].mxu0
        %1753 = vmatprep.mubr.bf16.mxu0 0
        %1754 = vmatmul.mubr.bf16.gmra.mrb[0].mxu0 %v1616
        %v1755 = vpop.f32.mrb[0].mxu0
        %v1756 = vadd.f32 0.0, %v1755
        %v1757 = vpop.f32.mrb[0].mxu0
        %v1758 = vpop.f32.mrb[0].mxu0
        %v1759 = vadd.f32 0.0, %v1758
        %v1760 = vpop.f32.mrb[0].mxu0
        %1761 = vmatprep.mubr.bf16.mxu0 0
        %1762 = vmatmul.mubr.bf16.gmra.mrb[0].mxu0 %v1619
        %v1763 = vpop.f32.mrb[0].mxu0
        %v1764 = vadd.f32 0.0, %v1763
        %v1765 = vpop.f32.mrb[0].mxu0
        %v1766 = vpop.f32.mrb[0].mxu0
        %v1767 = vadd.f32 0.0, %v1766
        %v1768 = vpop.f32.mrb[0].mxu0
        %1769 = vmatprep.mubr.bf16.mxu0 0
        %1770 = vmatmul.mubr.bf16.gmra.mrb[0].mxu0 %v1622
        %v1771 = vpop.f32.mrb[0].mxu0
        %v1772 = vadd.f32 0.0, %v1771
        %v1773 = vpop.f32.mrb[0].mxu0
        %v1774 = vpop.f32.mrb[0].mxu0
        %v1775 = vadd.f32 0.0, %v1774
        %v1776 = vpop.f32.mrb[0].mxu0
        %1777 = vmatprep.mubr.bf16.mxu0 0
        %1778 = vmatmul.mubr.bf16.gmra.mrb[0].mxu0 %v1625
        %v1779 = vpop.f32.mrb[0].mxu0
        %v1780 = vadd.f32 0.0, %v1779
        %v1781 = vpop.f32.mrb[0].mxu0
        %v1782 = vpop.f32.mrb[0].mxu0
        %v1783 = vadd.f32 0.0, %v1782
        %v1784 = vpop.f32.mrb[0].mxu0
        %1785 = vmatprep.mubr.bf16.mxu0 0
        %1786 = vmatmul.mubr.bf16.gmra.mrb[0].mxu0 %v1628
        %v1787 = vpop.f32.mrb[0].mxu0
        %v1788 = vadd.f32 0.0, %v1787
        %v1789 = vpop.f32.mrb[0].mxu0
        %v1790 = vpop.f32.mrb[0].mxu0
        %v1791 = vadd.f32 0.0, %v1790
        %v1792 = vpop.f32.mrb[0].mxu0
        %1793 = vdwg.mxu0
        %v1794 = vadd.f32 %v1243, %v1668
        %v1795 = vadd.f32 %v1246, %v1671
        %v1796 = vadd.f32 %v1251, %v1676
        %v1797 = vadd.f32 %v1254, %v1679
        %v1798 = vadd.f32 %v1259, %v1684
        %v1799 = vadd.f32 %v1262, %v1687
        %v1800 = vadd.f32 %v1267, %v1692
        %v1801 = vadd.f32 %v1270, %v1695
        %v1802 = vadd.f32 %v1275, %v1700
        %v1803 = vadd.f32 %v1278, %v1703
        %v1804 = vadd.f32 %v1283, %v1708
        %v1805 = vadd.f32 %v1286, %v1711
        %v1806 = vadd.f32 %v1291, %v1716
        %v1807 = vadd.f32 %v1294, %v1719
        %v1808 = vadd.f32 %v1299, %v1724
        %v1809 = vadd.f32 %v1302, %v1727
        %v1810 = vadd.f32 %v1307, %v1732
        %v1811 = vadd.f32 %v1310, %v1735
        %v1812 = vadd.f32 %v1315, %v1740
        %v1813 = vadd.f32 %v1318, %v1743
        %v1814 = vadd.f32 %v1323, %v1748
        %v1815 = vadd.f32 %v1326, %v1751
        %v1816 = vadd.f32 %v1331, %v1756
        %v1817 = vadd.f32 %v1334, %v1759
        %v1818 = vadd.f32 %v1339, %v1764
        %v1819 = vadd.f32 %v1342, %v1767
        %v1820 = vadd.f32 %v1347, %v1772
        %v1821 = vadd.f32 %v1350, %v1775
        %v1822 = vadd.f32 %v1355, %v1780
        %v1823 = vadd.f32 %v1358, %v1783
        %v1824 = vadd.f32 %v1363, %v1788
        %v1825 = vadd.f32 %v1366, %v1791
        %s1826 = scalar_lea.vmem %s321, 12 [#allocation3]
        %v1827 = vld [vmem:[%s1826] sm:$0xf]
        %v1828 = vld [vmem:[%s1826 + $0x4] sm:$0xf]
        %v1829 = vld [vmem:[%s1826 + $0xc] sm:$0xf]
        %v1830 = vld [vmem:[%s1826 + $0x10] sm:$0xf]
        %v1831 = vld [vmem:[%s1826 + $0x18] sm:$0xf]
        %v1832 = vld [vmem:[%s1826 + $0x1c] sm:$0xf]
        %v1833 = vld [vmem:[%s1826 + $0x24] sm:$0xf]
        %v1834 = vld [vmem:[%s1826 + $0x28] sm:$0xf]
        %v1835 = vld [vmem:[%s1826 + $0x30] sm:$0xf]
        %v1836 = vld [vmem:[%s1826 + $0x34] sm:$0xf]
        %v1837 = vld [vmem:[%s1826 + $0x3c] sm:$0xf]
        %v1838 = vld [vmem:[%s1826 + $0x40] sm:$0xf]
        %v1839 = vld [vmem:[%s1826 + $0x48] sm:$0xf]
        %v1840 = vld [vmem:[%s1826 + $0x4c] sm:$0xf]
        %v1841 = vld [vmem:[%s1826 + $0x54] sm:$0xf]
        %v1842 = vld [vmem:[%s1826 + $0x58] sm:$0xf]
        %v1843 = vld [vmem:[%s1826 + $0x60] sm:$0xf]
        %v1844 = vld [vmem:[%s1826 + $0x64] sm:$0xf]
        %v1845 = vld [vmem:[%s1826 + $0x6c] sm:$0xf]
        %v1846 = vld [vmem:[%s1826 + $0x70] sm:$0xf]
        %v1847 = vld [vmem:[%s1826 + $0x78] sm:$0xf]
        %v1848 = vld [vmem:[%s1826 + $0x7c] sm:$0xf]
        %v1849 = vld [vmem:[%s1826 + $0x84] sm:$0xf]
        %v1850 = vld [vmem:[%s1826 + $0x88] sm:$0xf]
        %v1851 = vld [vmem:[%s1826 + $0x90] sm:$0xf]
        %v1852 = vld [vmem:[%s1826 + $0x94] sm:$0xf]
        %v1853 = vld [vmem:[%s1826 + $0x9c] sm:$0xf]
        %v1854 = vld [vmem:[%s1826 + $0xa0] sm:$0xf]
        %v1855 = vld [vmem:[%s1826 + $0xa8] sm:$0xf]
        %v1856 = vld [vmem:[%s1826 + $0xac] sm:$0xf]
        %v1857 = vld [vmem:[%s1826 + $0xb4] sm:$0xf]
        %v1858 = vld [vmem:[%s1826 + $0xb8] sm:$0xf]
        %s1859 = scalar_lea.vmem [#allocation6], 6
        %v1860 = vld [vmem:[%s1859] sm:$0x3]
        %v1893 = vunpack.c.l.b16 %v1827
        %v1894 = vunpack.c.l.b16 %v1828
        %v1895 = vunpack.c.l.b16 %v1829
        %v1896 = vunpack.c.l.b16 %v1830
        %v1897 = vunpack.c.l.b16 %v1831
        %v1898 = vunpack.c.l.b16 %v1832
        %v1899 = vunpack.c.l.b16 %v1833
        %v1900 = vunpack.c.l.b16 %v1834
        %v1901 = vunpack.c.l.b16 %v1835
        %v1902 = vunpack.c.l.b16 %v1836
        %v1903 = vunpack.c.l.b16 %v1837
        %v1904 = vunpack.c.l.b16 %v1838
        %v1905 = vunpack.c.l.b16 %v1839
        %v1906 = vunpack.c.l.b16 %v1840
        %v1907 = vunpack.c.l.b16 %v1841
        %v1908 = vunpack.c.l.b16 %v1842
        %v1909 = vunpack.c.l.b16 %v1843
        %v1910 = vunpack.c.l.b16 %v1844
        %v1911 = vunpack.c.l.b16 %v1845
        %v1912 = vunpack.c.l.b16 %v1846
        %v1913 = vunpack.c.l.b16 %v1847
        %v1914 = vunpack.c.l.b16 %v1848
        %v1915 = vunpack.c.l.b16 %v1849
        %v1916 = vunpack.c.l.b16 %v1850
        %v1917 = vunpack.c.l.b16 %v1851
        %v1918 = vunpack.c.l.b16 %v1852
        %v1919 = vunpack.c.l.b16 %v1853
        %v1920 = vunpack.c.l.b16 %v1854
        %v1921 = vunpack.c.l.b16 %v1855
        %v1922 = vunpack.c.l.b16 %v1856
        %v1923 = vunpack.c.l.b16 %v1857
        %v1924 = vunpack.c.l.b16 %v1858
        %v1925 = vpack.c.b16 %v1894, %v1893
        %v1926 = vpack.c.b16 %v1896, %v1895
        %v1927 = vpack.c.b16 %v1898, %v1897
        %v1928 = vpack.c.b16 %v1900, %v1899
        %v1929 = vpack.c.b16 %v1902, %v1901
        %v1930 = vpack.c.b16 %v1904, %v1903
        %v1931 = vpack.c.b16 %v1906, %v1905
        %v1932 = vpack.c.b16 %v1908, %v1907
        %v1933 = vpack.c.b16 %v1910, %v1909
        %v1934 = vpack.c.b16 %v1912, %v1911
        %v1935 = vpack.c.b16 %v1914, %v1913
        %v1936 = vpack.c.b16 %v1916, %v1915
        %v1937 = vpack.c.b16 %v1918, %v1917
        %v1938 = vpack.c.b16 %v1920, %v1919
        %v1939 = vpack.c.b16 %v1922, %v1921
        %v1940 = vpack.c.b16 %v1924, %v1923
        %v1942 = vsel %vm863, %v1925, 0
        %v1945 = vsel %vm863, %v1926, 0
        %v1948 = vsel %vm863, %v1927, 0
        %v1951 = vsel %vm863, %v1928, 0
        %v1954 = vsel %vm863, %v1929, 0
        %v1957 = vsel %vm863, %v1930, 0
        %v1960 = vsel %vm863, %v1931, 0
        %v1963 = vsel %vm863, %v1932, 0
        %v1966 = vsel %vm863, %v1933, 0
        %v1969 = vsel %vm863, %v1934, 0
        %v1972 = vsel %vm863, %v1935, 0
        %v1975 = vsel %vm863, %v1936, 0
        %v1978 = vsel %vm863, %v1937, 0
        %v1981 = vsel %vm863, %v1938, 0
        %v1984 = vsel %vm863, %v1939, 0
        %v1987 = vsel %vm863, %v1940, 0
        %v1990 = vsel %vm912, %v1860, 0
        %1992 = vmatprep.subr.bf16.mxu0 0
        %1993 = vmatpush1.bf16.msra.mxu0 %v1990
        %1994 = vmatprep.subr.bf16.mxu0 0
        %1995 = vmatpush1.bf16.msra.mxu0 0
        %1996 = vmatprep.subr.bf16.mxu0 0
        %1997 = vmatpush1.bf16.msra.mxu0 0
        %1998 = vmatprep.subr.bf16.mxu0 0
        %1999 = vmatpush1.bf16.msra.mxu0 0
        %2000 = vmatprep.subr.bf16.mxu0 0
        %2001 = vmatpush1.bf16.msra.mxu0 0
        %2002 = vmatprep.subr.bf16.mxu0 0
        %2003 = vmatpush1.bf16.msra.mxu0 0
        %2004 = vmatprep.subr.bf16.mxu0 0
        %2005 = vmatpush1.bf16.msra.mxu0 0
        %2006 = vmatprep.subr.bf16.mxu0 0
        %2007 = vmatpush1.bf16.msra.mxu0 0
        %2008 = vmatprep.subr.bf16.mxu0 0
        %2009 = vmatpush1.bf16.msra.mxu0 0
        %2010 = vmatprep.subr.bf16.mxu0 0
        %2011 = vmatpush1.bf16.msra.mxu0 0
        %2012 = vmatprep.subr.bf16.mxu0 0
        %2013 = vmatpush1.bf16.msra.mxu0 0
        %2014 = vmatprep.subr.bf16.mxu0 0
        %2015 = vmatpush1.bf16.msra.mxu0 0
        %2016 = vmatprep.subr.bf16.mxu0 0
        %2017 = vmatpush1.bf16.msra.mxu0 0
        %2018 = vmatprep.subr.bf16.mxu0 0
        %2019 = vmatpush1.bf16.msra.mxu0 0
        %2020 = vmatprep.subr.bf16.mxu0 0
        %2021 = vmatpush1.bf16.msra.mxu0 0
        %2022 = vmatprep.subr.bf16.mxu0 0
        %2023 = vmatpush1.bf16.msra.mxu0 0
        %2024 = vmatprep.mubr.bf16.mxu0 0
        %2025 = vmatmul.mubr.bf16.gmra.mrb[0].mxu0 %v1942
        %v2026 = vpop.f32.mrb[0].mxu0
        %v2027 = vadd.f32 0.0, %v2026
        %v2028 = vpop.f32.mrb[0].mxu0
        %v2029 = vpop.f32.mrb[0].mxu0
        %v2030 = vadd.f32 0.0, %v2029
        %v2031 = vpop.f32.mrb[0].mxu0
        %2032 = vmatprep.mubr.bf16.mxu0 0
        %2033 = vmatmul.mubr.bf16.gmra.mrb[0].mxu0 %v1945
        %v2034 = vpop.f32.mrb[0].mxu0
        %v2035 = vadd.f32 0.0, %v2034
        %v2036 = vpop.f32.mrb[0].mxu0
        %v2037 = vpop.f32.mrb[0].mxu0
        %v2038 = vadd.f32 0.0, %v2037
        %v2039 = vpop.f32.mrb[0].mxu0
        %2040 = vmatprep.mubr.bf16.mxu0 0
        %2041 = vmatmul.mubr.bf16.gmra.mrb[0].mxu0 %v1948
        %v2042 = vpop.f32.mrb[0].mxu0
        %v2043 = vadd.f32 0.0, %v2042
        %v2044 = vpop.f32.mrb[0].mxu0
        %v2045 = vpop.f32.mrb[0].mxu0
        %v2046 = vadd.f32 0.0, %v2045
        %v2047 = vpop.f32.mrb[0].mxu0
        %2048 = vmatprep.mubr.bf16.mxu0 0
        %2049 = vmatmul.mubr.bf16.gmra.mrb[0].mxu0 %v1951
        %v2050 = vpop.f32.mrb[0].mxu0
        %v2051 = vadd.f32 0.0, %v2050
        %v2052 = vpop.f32.mrb[0].mxu0
        %v2053 = vpop.f32.mrb[0].mxu0
        %v2054 = vadd.f32 0.0, %v2053
        %v2055 = vpop.f32.mrb[0].mxu0
        %2056 = vmatprep.mubr.bf16.mxu0 0
        %2057 = vmatmul.mubr.bf16.gmra.mrb[0].mxu0 %v1954
        %v2058 = vpop.f32.mrb[0].mxu0
        %v2059 = vadd.f32 0.0, %v2058
        %v2060 = vpop.f32.mrb[0].mxu0
        %v2061 = vpop.f32.mrb[0].mxu0
        %v2062 = vadd.f32 0.0, %v2061
        %v2063 = vpop.f32.mrb[0].mxu0
        %2064 = vmatprep.mubr.bf16.mxu0 0
        %2065 = vmatmul.mubr.bf16.gmra.mrb[0].mxu0 %v1957
        %v2066 = vpop.f32.mrb[0].mxu0
        %v2067 = vadd.f32 0.0, %v2066
        %v2068 = vpop.f32.mrb[0].mxu0
        %v2069 = vpop.f32.mrb[0].mxu0
        %v2070 = vadd.f32 0.0, %v2069
        %v2071 = vpop.f32.mrb[0].mxu0
        %2072 = vmatprep.mubr.bf16.mxu0 0
        %2073 = vmatmul.mubr.bf16.gmra.mrb[0].mxu0 %v1960
        %v2074 = vpop.f32.mrb[0].mxu0
        %v2075 = vadd.f32 0.0, %v2074
        %v2076 = vpop.f32.mrb[0].mxu0
        %v2077 = vpop.f32.mrb[0].mxu0
        %v2078 = vadd.f32 0.0, %v2077
        %v2079 = vpop.f32.mrb[0].mxu0
        %2080 = vmatprep.mubr.bf16.mxu0 0
        %2081 = vmatmul.mubr.bf16.gmra.mrb[0].mxu0 %v1963
        %v2082 = vpop.f32.mrb[0].mxu0
        %v2083 = vadd.f32 0.0, %v2082
        %v2084 = vpop.f32.mrb[0].mxu0
        %v2085 = vpop.f32.mrb[0].mxu0
        %v2086 = vadd.f32 0.0, %v2085
        %v2087 = vpop.f32.mrb[0].mxu0
        %2088 = vmatprep.mubr.bf16.mxu0 0
        %2089 = vmatmul.mubr.bf16.gmra.mrb[0].mxu0 %v1966
        %v2090 = vpop.f32.mrb[0].mxu0
        %v2091 = vadd.f32 0.0, %v2090
        %v2092 = vpop.f32.mrb[0].mxu0
        %v2093 = vpop.f32.mrb[0].mxu0
        %v2094 = vadd.f32 0.0, %v2093
        %v2095 = vpop.f32.mrb[0].mxu0
        %2096 = vmatprep.mubr.bf16.mxu0 0
        %2097 = vmatmul.mubr.bf16.gmra.mrb[0].mxu0 %v1969
        %v2098 = vpop.f32.mrb[0].mxu0
        %v2099 = vadd.f32 0.0, %v2098
        %v2100 = vpop.f32.mrb[0].mxu0
        %v2101 = vpop.f32.mrb[0].mxu0
        %v2102 = vadd.f32 0.0, %v2101
        %v2103 = vpop.f32.mrb[0].mxu0
        %2104 = vmatprep.mubr.bf16.mxu0 0
        %2105 = vmatmul.mubr.bf16.gmra.mrb[0].mxu0 %v1972
        %v2106 = vpop.f32.mrb[0].mxu0
        %v2107 = vadd.f32 0.0, %v2106
        %v2108 = vpop.f32.mrb[0].mxu0
        %v2109 = vpop.f32.mrb[0].mxu0
        %v2110 = vadd.f32 0.0, %v2109
        %v2111 = vpop.f32.mrb[0].mxu0
        %2112 = vmatprep.mubr.bf16.mxu0 0
        %2113 = vmatmul.mubr.bf16.gmra.mrb[0].mxu0 %v1975
        %v2114 = vpop.f32.mrb[0].mxu0
        %v2115 = vadd.f32 0.0, %v2114
        %v2116 = vpop.f32.mrb[0].mxu0
        %v2117 = vpop.f32.mrb[0].mxu0
        %v2118 = vadd.f32 0.0, %v2117
        %v2119 = vpop.f32.mrb[0].mxu0
        %2120 = vmatprep.mubr.bf16.mxu0 0
        %2121 = vmatmul.mubr.bf16.gmra.mrb[0].mxu0 %v1978
        %v2122 = vpop.f32.mrb[0].mxu0
        %v2123 = vadd.f32 0.0, %v2122
        %v2124 = vpop.f32.mrb[0].mxu0
        %v2125 = vpop.f32.mrb[0].mxu0
        %v2126 = vadd.f32 0.0, %v2125
        %v2127 = vpop.f32.mrb[0].mxu0
        %2128 = vmatprep.mubr.bf16.mxu0 0
        %2129 = vmatmul.mubr.bf16.gmra.mrb[0].mxu0 %v1981
        %v2130 = vpop.f32.mrb[0].mxu0
        %v2131 = vadd.f32 0.0, %v2130
        %v2132 = vpop.f32.mrb[0].mxu0
        %v2133 = vpop.f32.mrb[0].mxu0
        %v2134 = vadd.f32 0.0, %v2133
        %v2135 = vpop.f32.mrb[0].mxu0
        %2136 = vmatprep.mubr.bf16.mxu0 0
        %2137 = vmatmul.mubr.bf16.gmra.mrb[0].mxu0 %v1984
        %v2138 = vpop.f32.mrb[0].mxu0
        %v2139 = vadd.f32 0.0, %v2138
        %v2140 = vpop.f32.mrb[0].mxu0
        %v2141 = vpop.f32.mrb[0].mxu0
        %v2142 = vadd.f32 0.0, %v2141
        %v2143 = vpop.f32.mrb[0].mxu0
        %2144 = vmatprep.mubr.bf16.mxu0 0
        %2145 = vmatmul.mubr.bf16.gmra.mrb[0].mxu0 %v1987
        %v2146 = vpop.f32.mrb[0].mxu0
        %v2147 = vadd.f32 0.0, %v2146
        %v2148 = vpop.f32.mrb[0].mxu0
        %v2149 = vpop.f32.mrb[0].mxu0
        %v2150 = vadd.f32 0.0, %v2149
        %v2151 = vpop.f32.mrb[0].mxu0
        %2152 = vdwg.mxu0
        %v2153 = vadd.f32 %v1794, %v2027
        %v2154 = vadd.f32 %v1795, %v2030
        %v2155 = vadd.f32 %v1796, %v2035
        %v2156 = vadd.f32 %v1797, %v2038
        %v2157 = vadd.f32 %v1798, %v2043
        %v2158 = vadd.f32 %v1799, %v2046
        %v2159 = vadd.f32 %v1800, %v2051
        %v2160 = vadd.f32 %v1801, %v2054
        %v2161 = vadd.f32 %v1802, %v2059
        %v2162 = vadd.f32 %v1803, %v2062
        %v2163 = vadd.f32 %v1804, %v2067
        %v2164 = vadd.f32 %v1805, %v2070
        %v2165 = vadd.f32 %v1806, %v2075
        %v2166 = vadd.f32 %v1807, %v2078
        %v2167 = vadd.f32 %v1808, %v2083
        %v2168 = vadd.f32 %v1809, %v2086
        %v2169 = vadd.f32 %v1810, %v2091
        %v2170 = vadd.f32 %v1811, %v2094
        %v2171 = vadd.f32 %v1812, %v2099
        %v2172 = vadd.f32 %v1813, %v2102
        %v2173 = vadd.f32 %v1814, %v2107
        %v2174 = vadd.f32 %v1815, %v2110
        %v2175 = vadd.f32 %v1816, %v2115
        %v2176 = vadd.f32 %v1817, %v2118
        %v2177 = vadd.f32 %v1818, %v2123
        %v2178 = vadd.f32 %v1819, %v2126
        %v2179 = vadd.f32 %v1820, %v2131
        %v2180 = vadd.f32 %v1821, %v2134
        %v2181 = vadd.f32 %v1822, %v2139
        %v2182 = vadd.f32 %v1823, %v2142
        %v2183 = vadd.f32 %v1824, %v2147
        %v2184 = vadd.f32 %v1825, %v2150
        %v2185 = vld [vmem:[%s1826] sm:$0xf]
        %v2186 = vld [vmem:[%s1826 + $0x4] sm:$0xf]
        %v2187 = vld [vmem:[%s1826 + $0x8] sm:$0x1]
        %v2188 = vld [vmem:[%s1826 + $0xc] sm:$0xf]
        %v2189 = vld [vmem:[%s1826 + $0x10] sm:$0xf]
        %v2190 = vld [vmem:[%s1826 + $0x14] sm:$0x1]
        %v2191 = vld [vmem:[%s1826 + $0x18] sm:$0xf]
        %v2192 = vld [vmem:[%s1826 + $0x1c] sm:$0xf]
        %v2193 = vld [vmem:[%s1826 + $0x20] sm:$0x1]
        %v2194 = vld [vmem:[%s1826 + $0x24] sm:$0xf]
        %v2195 = vld [vmem:[%s1826 + $0x28] sm:$0xf]
        %v2196 = vld [vmem:[%s1826 + $0x2c] sm:$0x1]
        %v2197 = vld [vmem:[%s1826 + $0x30] sm:$0xf]
        %v2198 = vld [vmem:[%s1826 + $0x34] sm:$0xf]
        %v2199 = vld [vmem:[%s1826 + $0x38] sm:$0x1]
        %v2200 = vld [vmem:[%s1826 + $0x3c] sm:$0xf]
        %v2201 = vld [vmem:[%s1826 + $0x40] sm:$0xf]
        %v2202 = vld [vmem:[%s1826 + $0x44] sm:$0x1]
        %v2203 = vld [vmem:[%s1826 + $0x48] sm:$0xf]
        %v2204 = vld [vmem:[%s1826 + $0x4c] sm:$0xf]
        %v2205 = vld [vmem:[%s1826 + $0x50] sm:$0x1]
        %v2206 = vld [vmem:[%s1826 + $0x54] sm:$0xf]
        %v2207 = vld [vmem:[%s1826 + $0x58] sm:$0xf]
        %v2208 = vld [vmem:[%s1826 + $0x5c] sm:$0x1]
        %v2209 = vld [vmem:[%s1826 + $0x60] sm:$0xf]
        %v2210 = vld [vmem:[%s1826 + $0x64] sm:$0xf]
        %v2211 = vld [vmem:[%s1826 + $0x68] sm:$0x1]
        %v2212 = vld [vmem:[%s1826 + $0x6c] sm:$0xf]
        %v2213 = vld [vmem:[%s1826 + $0x70] sm:$0xf]
        %v2214 = vld [vmem:[%s1826 + $0x74] sm:$0x1]
        %v2215 = vld [vmem:[%s1826 + $0x78] sm:$0xf]
        %v2216 = vld [vmem:[%s1826 + $0x7c] sm:$0xf]
        %v2217 = vld [vmem:[%s1826 + $0x80] sm:$0x1]
        %v2218 = vld [vmem:[%s1826 + $0x84] sm:$0xf]
        %v2219 = vld [vmem:[%s1826 + $0x88] sm:$0xf]
        %v2220 = vld [vmem:[%s1826 + $0x8c] sm:$0x1]
        %v2221 = vld [vmem:[%s1826 + $0x90] sm:$0xf]
        %v2222 = vld [vmem:[%s1826 + $0x94] sm:$0xf]
        %v2223 = vld [vmem:[%s1826 + $0x98] sm:$0x1]
        %v2224 = vld [vmem:[%s1826 + $0x9c] sm:$0xf]
        %v2225 = vld [vmem:[%s1826 + $0xa0] sm:$0xf]
        %v2226 = vld [vmem:[%s1826 + $0xa4] sm:$0x1]
        %v2227 = vld [vmem:[%s1826 + $0xa8] sm:$0xf]
        %v2228 = vld [vmem:[%s1826 + $0xac] sm:$0xf]
        %v2229 = vld [vmem:[%s1826 + $0xb0] sm:$0x1]
        %v2230 = vld [vmem:[%s1826 + $0xb4] sm:$0xf]
        %v2231 = vld [vmem:[%s1826 + $0xb8] sm:$0xf]
        %v2232 = vld [vmem:[%s1826 + $0xbc] sm:$0x1]
        %v2234 = vshrl.u32 %v2185, 16
        %v2236 = vrot.slane %v2234, 4
        %v2237 = vshll.u32 %v2185, 16
        %v2239 = vrot.slane %v2237, 5
        %v2240 = vor.u32 %v2236, %v2239
        %v2241 = vrot.slane %v2240, 4
        %v2243 = vshll.u32 %v2186, 16
        %v2245 = vrot.slane %v2243, 5
        %v2246 = vsel %vm428, %v2241, %v2245
        %v2247 = vshrl.u32 %v2186, 16
        %v2249 = vrot.slane %v2247, 4
        %v2250 = vor.u32 %v2249, %v2245
        %v2251 = vrot.slane %v2250, 4
        %v2253 = vshll.u32 %v2187, 16
        %v2255 = vrot.slane %v2253, 5
        %v2256 = vsel %vm428, %v2251, %v2255
        %v2258 = vshrl.u32 %v2188, 16
        %v2260 = vrot.slane %v2258, 4
        %v2261 = vshll.u32 %v2188, 16
        %v2263 = vrot.slane %v2261, 5
        %v2264 = vor.u32 %v2260, %v2263
        %v2265 = vrot.slane %v2264, 4
        %v2267 = vshll.u32 %v2189, 16
        %v2269 = vrot.slane %v2267, 5
        %v2270 = vsel %vm428, %v2265, %v2269
        %v2271 = vshrl.u32 %v2189, 16
        %v2273 = vrot.slane %v2271, 4
        %v2274 = vor.u32 %v2273, %v2269
        %v2275 = vrot.slane %v2274, 4
        %v2277 = vshll.u32 %v2190, 16
        %v2279 = vrot.slane %v2277, 5
        %v2280 = vsel %vm428, %v2275, %v2279
        %v2282 = vshrl.u32 %v2191, 16
        %v2284 = vrot.slane %v2282, 4
        %v2285 = vshll.u32 %v2191, 16
        %v2287 = vrot.slane %v2285, 5
        %v2288 = vor.u32 %v2284, %v2287
        %v2289 = vrot.slane %v2288, 4
        %v2291 = vshll.u32 %v2192, 16
        %v2293 = vrot.slane %v2291, 5
        %v2294 = vsel %vm428, %v2289, %v2293
        %v2295 = vshrl.u32 %v2192, 16
        %v2297 = vrot.slane %v2295, 4
        %v2298 = vor.u32 %v2297, %v2293
        %v2299 = vrot.slane %v2298, 4
        %v2301 = vshll.u32 %v2193, 16
        %v2303 = vrot.slane %v2301, 5
        %v2304 = vsel %vm428, %v2299, %v2303
        %v2306 = vshrl.u32 %v2194, 16
        %v2308 = vrot.slane %v2306, 4
        %v2309 = vshll.u32 %v2194, 16
        %v2311 = vrot.slane %v2309, 5
        %v2312 = vor.u32 %v2308, %v2311
        %v2313 = vrot.slane %v2312, 4
        %v2315 = vshll.u32 %v2195, 16
        %v2317 = vrot.slane %v2315, 5
        %v2318 = vsel %vm428, %v2313, %v2317
        %v2319 = vshrl.u32 %v2195, 16
        %v2321 = vrot.slane %v2319, 4
        %v2322 = vor.u32 %v2321, %v2317
        %v2323 = vrot.slane %v2322, 4
        %v2325 = vshll.u32 %v2196, 16
        %v2327 = vrot.slane %v2325, 5
        %v2328 = vsel %vm428, %v2323, %v2327
        %v2330 = vshrl.u32 %v2197, 16
        %v2332 = vrot.slane %v2330, 4
        %v2333 = vshll.u32 %v2197, 16
        %v2335 = vrot.slane %v2333, 5
        %v2336 = vor.u32 %v2332, %v2335
        %v2337 = vrot.slane %v2336, 4
        %v2339 = vshll.u32 %v2198, 16
        %v2341 = vrot.slane %v2339, 5
        %v2342 = vsel %vm428, %v2337, %v2341
        %v2343 = vshrl.u32 %v2198, 16
        %v2345 = vrot.slane %v2343, 4
        %v2346 = vor.u32 %v2345, %v2341
        %v2347 = vrot.slane %v2346, 4
        %v2349 = vshll.u32 %v2199, 16
        %v2351 = vrot.slane %v2349, 5
        %v2352 = vsel %vm428, %v2347, %v2351
        %v2354 = vshrl.u32 %v2200, 16
        %v2356 = vrot.slane %v2354, 4
        %v2357 = vshll.u32 %v2200, 16
        %v2359 = vrot.slane %v2357, 5
        %v2360 = vor.u32 %v2356, %v2359
        %v2361 = vrot.slane %v2360, 4
        %v2363 = vshll.u32 %v2201, 16
        %v2365 = vrot.slane %v2363, 5
        %v2366 = vsel %vm428, %v2361, %v2365
        %v2367 = vshrl.u32 %v2201, 16
        %v2369 = vrot.slane %v2367, 4
        %v2370 = vor.u32 %v2369, %v2365
        %v2371 = vrot.slane %v2370, 4
        %v2373 = vshll.u32 %v2202, 16
        %v2375 = vrot.slane %v2373, 5
        %v2376 = vsel %vm428, %v2371, %v2375
        %v2378 = vshrl.u32 %v2203, 16
        %v2380 = vrot.slane %v2378, 4
        %v2381 = vshll.u32 %v2203, 16
        %v2383 = vrot.slane %v2381, 5
        %v2384 = vor.u32 %v2380, %v2383
        %v2385 = vrot.slane %v2384, 4
        %v2387 = vshll.u32 %v2204, 16
        %v2389 = vrot.slane %v2387, 5
        %v2390 = vsel %vm428, %v2385, %v2389
        %v2391 = vshrl.u32 %v2204, 16
        %v2393 = vrot.slane %v2391, 4
        %v2394 = vor.u32 %v2393, %v2389
        %v2395 = vrot.slane %v2394, 4
        %v2397 = vshll.u32 %v2205, 16
        %v2399 = vrot.slane %v2397, 5
        %v2400 = vsel %vm428, %v2395, %v2399
        %v2402 = vshrl.u32 %v2206, 16
        %v2404 = vrot.slane %v2402, 4
        %v2405 = vshll.u32 %v2206, 16
        %v2407 = vrot.slane %v2405, 5
        %v2408 = vor.u32 %v2404, %v2407
        %v2409 = vrot.slane %v2408, 4
        %v2411 = vshll.u32 %v2207, 16
        %v2413 = vrot.slane %v2411, 5
        %v2414 = vsel %vm428, %v2409, %v2413
        %v2415 = vshrl.u32 %v2207, 16
        %v2417 = vrot.slane %v2415, 4
        %v2418 = vor.u32 %v2417, %v2413
        %v2419 = vrot.slane %v2418, 4
        %v2421 = vshll.u32 %v2208, 16
        %v2423 = vrot.slane %v2421, 5
        %v2424 = vsel %vm428, %v2419, %v2423
        %v2426 = vshrl.u32 %v2209, 16
        %v2428 = vrot.slane %v2426, 4
        %v2429 = vshll.u32 %v2209, 16
        %v2431 = vrot.slane %v2429, 5
        %v2432 = vor.u32 %v2428, %v2431
        %v2433 = vrot.slane %v2432, 4
        %v2435 = vshll.u32 %v2210, 16
        %v2437 = vrot.slane %v2435, 5
        %v2438 = vsel %vm428, %v2433, %v2437
        %v2439 = vshrl.u32 %v2210, 16
        %v2441 = vrot.slane %v2439, 4
        %v2442 = vor.u32 %v2441, %v2437
        %v2443 = vrot.slane %v2442, 4
        %v2445 = vshll.u32 %v2211, 16
        %v2447 = vrot.slane %v2445, 5
        %v2448 = vsel %vm428, %v2443, %v2447
        %v2450 = vshrl.u32 %v2212, 16
        %v2452 = vrot.slane %v2450, 4
        %v2453 = vshll.u32 %v2212, 16
        %v2455 = vrot.slane %v2453, 5
        %v2456 = vor.u32 %v2452, %v2455
        %v2457 = vrot.slane %v2456, 4
        %v2459 = vshll.u32 %v2213, 16
        %v2461 = vrot.slane %v2459, 5
        %v2462 = vsel %vm428, %v2457, %v2461
        %v2463 = vshrl.u32 %v2213, 16
        %v2465 = vrot.slane %v2463, 4
        %v2466 = vor.u32 %v2465, %v2461
        %v2467 = vrot.slane %v2466, 4
        %v2469 = vshll.u32 %v2214, 16
        %v2471 = vrot.slane %v2469, 5
        %v2472 = vsel %vm428, %v2467, %v2471
        %v2474 = vshrl.u32 %v2215, 16
        %v2476 = vrot.slane %v2474, 4
        %v2477 = vshll.u32 %v2215, 16
        %v2479 = vrot.slane %v2477, 5
        %v2480 = vor.u32 %v2476, %v2479
        %v2481 = vrot.slane %v2480, 4
        %v2483 = vshll.u32 %v2216, 16
        %v2485 = vrot.slane %v2483, 5
        %v2486 = vsel %vm428, %v2481, %v2485
        %v2487 = vshrl.u32 %v2216, 16
        %v2489 = vrot.slane %v2487, 4
        %v2490 = vor.u32 %v2489, %v2485
        %v2491 = vrot.slane %v2490, 4
        %v2493 = vshll.u32 %v2217, 16
        %v2495 = vrot.slane %v2493, 5
        %v2496 = vsel %vm428, %v2491, %v2495
        %v2498 = vshrl.u32 %v2218, 16
        %v2500 = vrot.slane %v2498, 4
        %v2501 = vshll.u32 %v2218, 16
        %v2503 = vrot.slane %v2501, 5
        %v2504 = vor.u32 %v2500, %v2503
        %v2505 = vrot.slane %v2504, 4
        %v2507 = vshll.u32 %v2219, 16
        %v2509 = vrot.slane %v2507, 5
        %v2510 = vsel %vm428, %v2505, %v2509
        %v2511 = vshrl.u32 %v2219, 16
        %v2513 = vrot.slane %v2511, 4
        %v2514 = vor.u32 %v2513, %v2509
        %v2515 = vrot.slane %v2514, 4
        %v2517 = vshll.u32 %v2220, 16
        %v2519 = vrot.slane %v2517, 5
        %v2520 = vsel %vm428, %v2515, %v2519
        %v2522 = vshrl.u32 %v2221, 16
        %v2524 = vrot.slane %v2522, 4
        %v2525 = vshll.u32 %v2221, 16
        %v2527 = vrot.slane %v2525, 5
        %v2528 = vor.u32 %v2524, %v2527
        %v2529 = vrot.slane %v2528, 4
        %v2531 = vshll.u32 %v2222, 16
        %v2533 = vrot.slane %v2531, 5
        %v2534 = vsel %vm428, %v2529, %v2533
        %v2535 = vshrl.u32 %v2222, 16
        %v2537 = vrot.slane %v2535, 4
        %v2538 = vor.u32 %v2537, %v2533
        %v2539 = vrot.slane %v2538, 4
        %v2541 = vshll.u32 %v2223, 16
        %v2543 = vrot.slane %v2541, 5
        %v2544 = vsel %vm428, %v2539, %v2543
        %v2546 = vshrl.u32 %v2224, 16
        %v2548 = vrot.slane %v2546, 4
        %v2549 = vshll.u32 %v2224, 16
        %v2551 = vrot.slane %v2549, 5
        %v2552 = vor.u32 %v2548, %v2551
        %v2553 = vrot.slane %v2552, 4
        %v2555 = vshll.u32 %v2225, 16
        %v2557 = vrot.slane %v2555, 5
        %v2558 = vsel %vm428, %v2553, %v2557
        %v2559 = vshrl.u32 %v2225, 16
        %v2561 = vrot.slane %v2559, 4
        %v2562 = vor.u32 %v2561, %v2557
        %v2563 = vrot.slane %v2562, 4
        %v2565 = vshll.u32 %v2226, 16
        %v2567 = vrot.slane %v2565, 5
        %v2568 = vsel %vm428, %v2563, %v2567
        %v2570 = vshrl.u32 %v2227, 16
        %v2572 = vrot.slane %v2570, 4
        %v2573 = vshll.u32 %v2227, 16
        %v2575 = vrot.slane %v2573, 5
        %v2576 = vor.u32 %v2572, %v2575
        %v2577 = vrot.slane %v2576, 4
        %v2579 = vshll.u32 %v2228, 16
        %v2581 = vrot.slane %v2579, 5
        %v2582 = vsel %vm428, %v2577, %v2581
        %v2583 = vshrl.u32 %v2228, 16
        %v2585 = vrot.slane %v2583, 4
        %v2586 = vor.u32 %v2585, %v2581
        %v2587 = vrot.slane %v2586, 4
        %v2589 = vshll.u32 %v2229, 16
        %v2591 = vrot.slane %v2589, 5
        %v2592 = vsel %vm428, %v2587, %v2591
        %v2594 = vshrl.u32 %v2230, 16
        %v2596 = vrot.slane %v2594, 4
        %v2597 = vshll.u32 %v2230, 16
        %v2599 = vrot.slane %v2597, 5
        %v2600 = vor.u32 %v2596, %v2599
        %v2601 = vrot.slane %v2600, 4
        %v2603 = vshll.u32 %v2231, 16
        %v2605 = vrot.slane %v2603, 5
        %v2606 = vsel %vm428, %v2601, %v2605
        %v2607 = vshrl.u32 %v2231, 16
        %v2609 = vrot.slane %v2607, 4
        %v2610 = vor.u32 %v2609, %v2605
        %v2611 = vrot.slane %v2610, 4
        %v2613 = vshll.u32 %v2232, 16
        %v2615 = vrot.slane %v2613, 5
        %v2616 = vsel %vm428, %v2611, %v2615
        %s2617 = scalar_lea.vmem [#allocation6], 8
        %v2618 = vld [vmem:[%s2617] sm:$0x3]
        %v2619 = vunpack.c.l.b16 %v2246
        %v2620 = vunpack.c.l.b16 %v2256
        %v2621 = vunpack.c.l.b16 %v2270
        %v2622 = vunpack.c.l.b16 %v2280
        %v2623 = vunpack.c.l.b16 %v2294
        %v2624 = vunpack.c.l.b16 %v2304
        %v2625 = vunpack.c.l.b16 %v2318
        %v2626 = vunpack.c.l.b16 %v2328
        %v2627 = vunpack.c.l.b16 %v2342
        %v2628 = vunpack.c.l.b16 %v2352
        %v2629 = vunpack.c.l.b16 %v2366
        %v2630 = vunpack.c.l.b16 %v2376
        %v2631 = vunpack.c.l.b16 %v2390
        %v2632 = vunpack.c.l.b16 %v2400
        %v2633 = vunpack.c.l.b16 %v2414
        %v2634 = vunpack.c.l.b16 %v2424
        %v2635 = vunpack.c.l.b16 %v2438
        %v2636 = vunpack.c.l.b16 %v2448
        %v2637 = vunpack.c.l.b16 %v2462
        %v2638 = vunpack.c.l.b16 %v2472
        %v2639 = vunpack.c.l.b16 %v2486
        %v2640 = vunpack.c.l.b16 %v2496
        %v2641 = vunpack.c.l.b16 %v2510
        %v2642 = vunpack.c.l.b16 %v2520
        %v2643 = vunpack.c.l.b16 %v2534
        %v2644 = vunpack.c.l.b16 %v2544
        %v2645 = vunpack.c.l.b16 %v2558
        %v2646 = vunpack.c.l.b16 %v2568
        %v2647 = vunpack.c.l.b16 %v2582
        %v2648 = vunpack.c.l.b16 %v2592
        %v2649 = vunpack.c.l.b16 %v2606
        %v2650 = vunpack.c.l.b16 %v2616
        %v2651 = vpack.c.b16 %v2620, %v2619
        %v2652 = vpack.c.b16 %v2622, %v2621
        %v2653 = vpack.c.b16 %v2624, %v2623
        %v2654 = vpack.c.b16 %v2626, %v2625
        %v2655 = vpack.c.b16 %v2628, %v2627
        %v2656 = vpack.c.b16 %v2630, %v2629
        %v2657 = vpack.c.b16 %v2632, %v2631
        %v2658 = vpack.c.b16 %v2634, %v2633
        %v2659 = vpack.c.b16 %v2636, %v2635
        %v2660 = vpack.c.b16 %v2638, %v2637
        %v2661 = vpack.c.b16 %v2640, %v2639
        %v2662 = vpack.c.b16 %v2642, %v2641
        %v2663 = vpack.c.b16 %v2644, %v2643
        %v2664 = vpack.c.b16 %v2646, %v2645
        %v2665 = vpack.c.b16 %v2648, %v2647
        %v2666 = vpack.c.b16 %v2650, %v2649
        %v2668 = vsel %vm863, %v2651, 0
        %v2671 = vsel %vm863, %v2652, 0
        %v2674 = vsel %vm863, %v2653, 0
        %v2677 = vsel %vm863, %v2654, 0
        %v2680 = vsel %vm863, %v2655, 0
        %v2683 = vsel %vm863, %v2656, 0
        %v2686 = vsel %vm863, %v2657, 0
        %v2689 = vsel %vm863, %v2658, 0
        %v2692 = vsel %vm863, %v2659, 0
        %v2695 = vsel %vm863, %v2660, 0
        %v2698 = vsel %vm863, %v2661, 0
        %v2701 = vsel %vm863, %v2662, 0
        %v2704 = vsel %vm863, %v2663, 0
        %v2707 = vsel %vm863, %v2664, 0
        %v2710 = vsel %vm863, %v2665, 0
        %v2713 = vsel %vm863, %v2666, 0
        %v2716 = vsel %vm912, %v2618, 0
        %2718 = vmatprep.subr.bf16.mxu0 0
        %2719 = vmatpush1.bf16.msra.mxu0 %v2716
        %2720 = vmatprep.subr.bf16.mxu0 0
        %2721 = vmatpush1.bf16.msra.mxu0 0
        %2722 = vmatprep.subr.bf16.mxu0 0
        %2723 = vmatpush1.bf16.msra.mxu0 0
        %2724 = vmatprep.subr.bf16.mxu0 0
        %2725 = vmatpush1.bf16.msra.mxu0 0
        %2726 = vmatprep.subr.bf16.mxu0 0
        %2727 = vmatpush1.bf16.msra.mxu0 0
        %2728 = vmatprep.subr.bf16.mxu0 0
        %2729 = vmatpush1.bf16.msra.mxu0 0
        %2730 = vmatprep.subr.bf16.mxu0 0
        %2731 = vmatpush1.bf16.msra.mxu0 0
        %2732 = vmatprep.subr.bf16.mxu0 0
        %2733 = vmatpush1.bf16.msra.mxu0 0
        %2734 = vmatprep.subr.bf16.mxu0 0
        %2735 = vmatpush1.bf16.msra.mxu0 0
        %2736 = vmatprep.subr.bf16.mxu0 0
        %2737 = vmatpush1.bf16.msra.mxu0 0
        %2738 = vmatprep.subr.bf16.mxu0 0
        %2739 = vmatpush1.bf16.msra.mxu0 0
        %2740 = vmatprep.subr.bf16.mxu0 0
        %2741 = vmatpush1.bf16.msra.mxu0 0
        %2742 = vmatprep.subr.bf16.mxu0 0
        %2743 = vmatpush1.bf16.msra.mxu0 0
        %2744 = vmatprep.subr.bf16.mxu0 0
        %2745 = vmatpush1.bf16.msra.mxu0 0
        %2746 = vmatprep.subr.bf16.mxu0 0
        %2747 = vmatpush1.bf16.msra.mxu0 0
        %2748 = vmatprep.subr.bf16.mxu0 0
        %2749 = vmatpush1.bf16.msra.mxu0 0
        %2750 = vmatprep.mubr.bf16.mxu0 0
        %2751 = vmatmul.mubr.bf16.gmra.mrb[0].mxu0 %v2668
        %v2752 = vpop.f32.mrb[0].mxu0
        %v2753 = vadd.f32 0.0, %v2752
        %v2754 = vpop.f32.mrb[0].mxu0
        %v2755 = vpop.f32.mrb[0].mxu0
        %v2756 = vadd.f32 0.0, %v2755
        %v2757 = vpop.f32.mrb[0].mxu0
        %2758 = vmatprep.mubr.bf16.mxu0 0
        %2759 = vmatmul.mubr.bf16.gmra.mrb[0].mxu0 %v2671
        %v2760 = vpop.f32.mrb[0].mxu0
        %v2761 = vadd.f32 0.0, %v2760
        %v2762 = vpop.f32.mrb[0].mxu0
        %v2763 = vpop.f32.mrb[0].mxu0
        %v2764 = vadd.f32 0.0, %v2763
        %v2765 = vpop.f32.mrb[0].mxu0
        %2766 = vmatprep.mubr.bf16.mxu0 0
        %2767 = vmatmul.mubr.bf16.gmra.mrb[0].mxu0 %v2674
        %v2768 = vpop.f32.mrb[0].mxu0
        %v2769 = vadd.f32 0.0, %v2768
        %v2770 = vpop.f32.mrb[0].mxu0
        %v2771 = vpop.f32.mrb[0].mxu0
        %v2772 = vadd.f32 0.0, %v2771
        %v2773 = vpop.f32.mrb[0].mxu0
        %2774 = vmatprep.mubr.bf16.mxu0 0
        %2775 = vmatmul.mubr.bf16.gmra.mrb[0].mxu0 %v2677
        %v2776 = vpop.f32.mrb[0].mxu0
        %v2777 = vadd.f32 0.0, %v2776
        %v2778 = vpop.f32.mrb[0].mxu0
        %v2779 = vpop.f32.mrb[0].mxu0
        %v2780 = vadd.f32 0.0, %v2779
        %v2781 = vpop.f32.mrb[0].mxu0
        %2782 = vmatprep.mubr.bf16.mxu0 0
        %2783 = vmatmul.mubr.bf16.gmra.mrb[0].mxu0 %v2680
        %v2784 = vpop.f32.mrb[0].mxu0
        %v2785 = vadd.f32 0.0, %v2784
        %v2786 = vpop.f32.mrb[0].mxu0
        %v2787 = vpop.f32.mrb[0].mxu0
        %v2788 = vadd.f32 0.0, %v2787
        %v2789 = vpop.f32.mrb[0].mxu0
        %2790 = vmatprep.mubr.bf16.mxu0 0
        %2791 = vmatmul.mubr.bf16.gmra.mrb[0].mxu0 %v2683
        %v2792 = vpop.f32.mrb[0].mxu0
        %v2793 = vadd.f32 0.0, %v2792
        %v2794 = vpop.f32.mrb[0].mxu0
        %v2795 = vpop.f32.mrb[0].mxu0
        %v2796 = vadd.f32 0.0, %v2795
        %v2797 = vpop.f32.mrb[0].mxu0
        %2798 = vmatprep.mubr.bf16.mxu0 0
        %2799 = vmatmul.mubr.bf16.gmra.mrb[0].mxu0 %v2686
        %v2800 = vpop.f32.mrb[0].mxu0
        %v2801 = vadd.f32 0.0, %v2800
        %v2802 = vpop.f32.mrb[0].mxu0
        %v2803 = vpop.f32.mrb[0].mxu0
        %v2804 = vadd.f32 0.0, %v2803
        %v2805 = vpop.f32.mrb[0].mxu0
        %2806 = vmatprep.mubr.bf16.mxu0 0
        %2807 = vmatmul.mubr.bf16.gmra.mrb[0].mxu0 %v2689
        %v2808 = vpop.f32.mrb[0].mxu0
        %v2809 = vadd.f32 0.0, %v2808
        %v2810 = vpop.f32.mrb[0].mxu0
        %v2811 = vpop.f32.mrb[0].mxu0
        %v2812 = vadd.f32 0.0, %v2811
        %v2813 = vpop.f32.mrb[0].mxu0
        %2814 = vmatprep.mubr.bf16.mxu0 0
        %2815 = vmatmul.mubr.bf16.gmra.mrb[0].mxu0 %v2692
        %v2816 = vpop.f32.mrb[0].mxu0
        %v2817 = vadd.f32 0.0, %v2816
        %v2818 = vpop.f32.mrb[0].mxu0
        %v2819 = vpop.f32.mrb[0].mxu0
        %v2820 = vadd.f32 0.0, %v2819
        %v2821 = vpop.f32.mrb[0].mxu0
        %2822 = vmatprep.mubr.bf16.mxu0 0
        %2823 = vmatmul.mubr.bf16.gmra.mrb[0].mxu0 %v2695
        %v2824 = vpop.f32.mrb[0].mxu0
        %v2825 = vadd.f32 0.0, %v2824
        %v2826 = vpop.f32.mrb[0].mxu0
        %v2827 = vpop.f32.mrb[0].mxu0
        %v2828 = vadd.f32 0.0, %v2827
        %v2829 = vpop.f32.mrb[0].mxu0
        %2830 = vmatprep.mubr.bf16.mxu0 0
        %2831 = vmatmul.mubr.bf16.gmra.mrb[0].mxu0 %v2698
        %v2832 = vpop.f32.mrb[0].mxu0
        %v2833 = vadd.f32 0.0, %v2832
        %v2834 = vpop.f32.mrb[0].mxu0
        %v2835 = vpop.f32.mrb[0].mxu0
        %v2836 = vadd.f32 0.0, %v2835
        %v2837 = vpop.f32.mrb[0].mxu0
        %2838 = vmatprep.mubr.bf16.mxu0 0
        %2839 = vmatmul.mubr.bf16.gmra.mrb[0].mxu0 %v2701
        %v2840 = vpop.f32.mrb[0].mxu0
        %v2841 = vadd.f32 0.0, %v2840
        %v2842 = vpop.f32.mrb[0].mxu0
        %v2843 = vpop.f32.mrb[0].mxu0
        %v2844 = vadd.f32 0.0, %v2843
        %v2845 = vpop.f32.mrb[0].mxu0
        %2846 = vmatprep.mubr.bf16.mxu0 0
        %2847 = vmatmul.mubr.bf16.gmra.mrb[0].mxu0 %v2704
        %v2848 = vpop.f32.mrb[0].mxu0
        %v2849 = vadd.f32 0.0, %v2848
        %v2850 = vpop.f32.mrb[0].mxu0
        %v2851 = vpop.f32.mrb[0].mxu0
        %v2852 = vadd.f32 0.0, %v2851
        %v2853 = vpop.f32.mrb[0].mxu0
        %2854 = vmatprep.mubr.bf16.mxu0 0
        %2855 = vmatmul.mubr.bf16.gmra.mrb[0].mxu0 %v2707
        %v2856 = vpop.f32.mrb[0].mxu0
        %v2857 = vadd.f32 0.0, %v2856
        %v2858 = vpop.f32.mrb[0].mxu0
        %v2859 = vpop.f32.mrb[0].mxu0
        %v2860 = vadd.f32 0.0, %v2859
        %v2861 = vpop.f32.mrb[0].mxu0
        %2862 = vmatprep.mubr.bf16.mxu0 0
        %2863 = vmatmul.mubr.bf16.gmra.mrb[0].mxu0 %v2710
        %v2864 = vpop.f32.mrb[0].mxu0
        %v2865 = vadd.f32 0.0, %v2864
        %v2866 = vpop.f32.mrb[0].mxu0
        %v2867 = vpop.f32.mrb[0].mxu0
        %v2868 = vadd.f32 0.0, %v2867
        %v2869 = vpop.f32.mrb[0].mxu0
        %2870 = vmatprep.mubr.bf16.mxu0 0
        %2871 = vmatmul.mubr.bf16.gmra.mrb[0].mxu0 %v2713
        %v2872 = vpop.f32.mrb[0].mxu0
        %v2873 = vadd.f32 0.0, %v2872
        %v2874 = vpop.f32.mrb[0].mxu0
        %v2875 = vpop.f32.mrb[0].mxu0
        %v2876 = vadd.f32 0.0, %v2875
        %v2877 = vpop.f32.mrb[0].mxu0
        %2878 = vdwg.mxu0
        %v2879 = vadd.f32 %v2153, %v2753
        %v2880 = vadd.f32 %v2154, %v2756
        %v2881 = vadd.f32 %v2155, %v2761
        %v2882 = vadd.f32 %v2156, %v2764
        %v2883 = vadd.f32 %v2157, %v2769
        %v2884 = vadd.f32 %v2158, %v2772
        %v2885 = vadd.f32 %v2159, %v2777
        %v2886 = vadd.f32 %v2160, %v2780
        %v2887 = vadd.f32 %v2161, %v2785
        %v2888 = vadd.f32 %v2162, %v2788
        %v2889 = vadd.f32 %v2163, %v2793
        %v2890 = vadd.f32 %v2164, %v2796
        %v2891 = vadd.f32 %v2165, %v2801
        %v2892 = vadd.f32 %v2166, %v2804
        %v2893 = vadd.f32 %v2167, %v2809
        %v2894 = vadd.f32 %v2168, %v2812
        %v2895 = vadd.f32 %v2169, %v2817
        %v2896 = vadd.f32 %v2170, %v2820
        %v2897 = vadd.f32 %v2171, %v2825
        %v2898 = vadd.f32 %v2172, %v2828
        %v2899 = vadd.f32 %v2173, %v2833
        %v2900 = vadd.f32 %v2174, %v2836
        %v2901 = vadd.f32 %v2175, %v2841
        %v2902 = vadd.f32 %v2176, %v2844
        %v2903 = vadd.f32 %v2177, %v2849
        %v2904 = vadd.f32 %v2178, %v2852
        %v2905 = vadd.f32 %v2179, %v2857
        %v2906 = vadd.f32 %v2180, %v2860
        %v2907 = vadd.f32 %v2181, %v2865
        %v2908 = vadd.f32 %v2182, %v2868
        %v2909 = vadd.f32 %v2183, %v2873
        %v2910 = vadd.f32 %v2184, %v2876
        %v2911 = vld [vmem:[%s1826] sm:$0xe]
        %v2912 = vld [vmem:[%s1826 + $0xc] sm:$0xe]
        %v2913 = vld [vmem:[%s1826 + $0x18] sm:$0xe]
        %v2914 = vld [vmem:[%s1826 + $0x24] sm:$0xe]
        %v2915 = vld [vmem:[%s1826 + $0x30] sm:$0xe]
        %v2916 = vld [vmem:[%s1826 + $0x3c] sm:$0xe]
        %v2917 = vld [vmem:[%s1826 + $0x48] sm:$0xe]
        %v2918 = vld [vmem:[%s1826 + $0x54] sm:$0xe]
        %v2919 = vld [vmem:[%s1826 + $0x60] sm:$0xe]
        %v2920 = vld [vmem:[%s1826 + $0x6c] sm:$0xe]
        %v2921 = vld [vmem:[%s1826 + $0x78] sm:$0xe]
        %v2922 = vld [vmem:[%s1826 + $0x84] sm:$0xe]
        %v2923 = vld [vmem:[%s1826 + $0x90] sm:$0xe]
        %v2924 = vld [vmem:[%s1826 + $0x9c] sm:$0xe]
        %v2925 = vld [vmem:[%s1826 + $0xa8] sm:$0xe]
        %v2926 = vld [vmem:[%s1826 + $0xb4] sm:$0xe]
        %v2975 = vrot.slane %v2911, 5
        %v2976 = vrot.slane %v2975, 4
        %v2977 = vrot.slane %v2186, 5
        %v2978 = vsel %vm1419, %v2976, %v2977
        %v2979 = vrot.slane %v2977, 4
        %v2980 = vrot.slane %v2187, 5
        %v2981 = vsel %vm1419, %v2979, %v2980
        %v2982 = vrot.slane %v2912, 5
        %v2983 = vrot.slane %v2982, 4
        %v2984 = vrot.slane %v2189, 5
        %v2985 = vsel %vm1419, %v2983, %v2984
        %v2986 = vrot.slane %v2984, 4
        %v2987 = vrot.slane %v2190, 5
        %v2988 = vsel %vm1419, %v2986, %v2987
        %v2989 = vrot.slane %v2913, 5
        %v2990 = vrot.slane %v2989, 4
        %v2991 = vrot.slane %v2192, 5
        %v2992 = vsel %vm1419, %v2990, %v2991
        %v2993 = vrot.slane %v2991, 4
        %v2994 = vrot.slane %v2193, 5
        %v2995 = vsel %vm1419, %v2993, %v2994
        %v2996 = vrot.slane %v2914, 5
        %v2997 = vrot.slane %v2996, 4
        %v2998 = vrot.slane %v2195, 5
        %v2999 = vsel %vm1419, %v2997, %v2998
        %v3000 = vrot.slane %v2998, 4
        %v3001 = vrot.slane %v2196, 5
        %v3002 = vsel %vm1419, %v3000, %v3001
        %v3003 = vrot.slane %v2915, 5
        %v3004 = vrot.slane %v3003, 4
        %v3005 = vrot.slane %v2198, 5
        %v3006 = vsel %vm1419, %v3004, %v3005
        %v3007 = vrot.slane %v3005, 4
        %v3008 = vrot.slane %v2199, 5
        %v3009 = vsel %vm1419, %v3007, %v3008
        %v3010 = vrot.slane %v2916, 5
        %v3011 = vrot.slane %v3010, 4
        %v3012 = vrot.slane %v2201, 5
        %v3013 = vsel %vm1419, %v3011, %v3012
        %v3014 = vrot.slane %v3012, 4
        %v3015 = vrot.slane %v2202, 5
        %v3016 = vsel %vm1419, %v3014, %v3015
        %v3017 = vrot.slane %v2917, 5
        %v3018 = vrot.slane %v3017, 4
        %v3019 = vrot.slane %v2204, 5
        %v3020 = vsel %vm1419, %v3018, %v3019
        %v3021 = vrot.slane %v3019, 4
        %v3022 = vrot.slane %v2205, 5
        %v3023 = vsel %vm1419, %v3021, %v3022
        %v3024 = vrot.slane %v2918, 5
        %v3025 = vrot.slane %v3024, 4
        %v3026 = vrot.slane %v2207, 5
        %v3027 = vsel %vm1419, %v3025, %v3026
        %v3028 = vrot.slane %v3026, 4
        %v3029 = vrot.slane %v2208, 5
        %v3030 = vsel %vm1419, %v3028, %v3029
        %v3031 = vrot.slane %v2919, 5
        %v3032 = vrot.slane %v3031, 4
        %v3033 = vrot.slane %v2210, 5
        %v3034 = vsel %vm1419, %v3032, %v3033
        %v3035 = vrot.slane %v3033, 4
        %v3036 = vrot.slane %v2211, 5
        %v3037 = vsel %vm1419, %v3035, %v3036
        %v3038 = vrot.slane %v2920, 5
        %v3039 = vrot.slane %v3038, 4
        %v3040 = vrot.slane %v2213, 5
        %v3041 = vsel %vm1419, %v3039, %v3040
        %v3042 = vrot.slane %v3040, 4
        %v3043 = vrot.slane %v2214, 5
        %v3044 = vsel %vm1419, %v3042, %v3043
        %v3045 = vrot.slane %v2921, 5
        %v3046 = vrot.slane %v3045, 4
        %v3047 = vrot.slane %v2216, 5
        %v3048 = vsel %vm1419, %v3046, %v3047
        %v3049 = vrot.slane %v3047, 4
        %v3050 = vrot.slane %v2217, 5
        %v3051 = vsel %vm1419, %v3049, %v3050
        %v3052 = vrot.slane %v2922, 5
        %v3053 = vrot.slane %v3052, 4
        %v3054 = vrot.slane %v2219, 5
        %v3055 = vsel %vm1419, %v3053, %v3054
        %v3056 = vrot.slane %v3054, 4
        %v3057 = vrot.slane %v2220, 5
        %v3058 = vsel %vm1419, %v3056, %v3057
        %v3059 = vrot.slane %v2923, 5
        %v3060 = vrot.slane %v3059, 4
        %v3061 = vrot.slane %v2222, 5
        %v3062 = vsel %vm1419, %v3060, %v3061
        %v3063 = vrot.slane %v3061, 4
        %v3064 = vrot.slane %v2223, 5
        %v3065 = vsel %vm1419, %v3063, %v3064
        %v3066 = vrot.slane %v2924, 5
        %v3067 = vrot.slane %v3066, 4
        %v3068 = vrot.slane %v2225, 5
        %v3069 = vsel %vm1419, %v3067, %v3068
        %v3070 = vrot.slane %v3068, 4
        %v3071 = vrot.slane %v2226, 5
        %v3072 = vsel %vm1419, %v3070, %v3071
        %v3073 = vrot.slane %v2925, 5
        %v3074 = vrot.slane %v3073, 4
        %v3075 = vrot.slane %v2228, 5
        %v3076 = vsel %vm1419, %v3074, %v3075
        %v3077 = vrot.slane %v3075, 4
        %v3078 = vrot.slane %v2229, 5
        %v3079 = vsel %vm1419, %v3077, %v3078
        %v3080 = vrot.slane %v2926, 5
        %v3081 = vrot.slane %v3080, 4
        %v3082 = vrot.slane %v2231, 5
        %v3083 = vsel %vm1419, %v3081, %v3082
        %v3084 = vrot.slane %v3082, 4
        %v3085 = vrot.slane %v2232, 5
        %v3086 = vsel %vm1419, %v3084, %v3085
        %s3087 = scalar_lea.vmem [#allocation6], 10
        %v3088 = vld [vmem:[%s3087] sm:$0x3]
        %v3089 = vunpack.c.l.b16 %v2978
        %v3090 = vunpack.c.l.b16 %v2981
        %v3091 = vunpack.c.l.b16 %v2985
        %v3092 = vunpack.c.l.b16 %v2988
        %v3093 = vunpack.c.l.b16 %v2992
        %v3094 = vunpack.c.l.b16 %v2995
        %v3095 = vunpack.c.l.b16 %v2999
        %v3096 = vunpack.c.l.b16 %v3002
        %v3097 = vunpack.c.l.b16 %v3006
        %v3098 = vunpack.c.l.b16 %v3009
        %v3099 = vunpack.c.l.b16 %v3013
        %v3100 = vunpack.c.l.b16 %v3016
        %v3101 = vunpack.c.l.b16 %v3020
        %v3102 = vunpack.c.l.b16 %v3023
        %v3103 = vunpack.c.l.b16 %v3027
        %v3104 = vunpack.c.l.b16 %v3030
        %v3105 = vunpack.c.l.b16 %v3034
        %v3106 = vunpack.c.l.b16 %v3037
        %v3107 = vunpack.c.l.b16 %v3041
        %v3108 = vunpack.c.l.b16 %v3044
        %v3109 = vunpack.c.l.b16 %v3048
        %v3110 = vunpack.c.l.b16 %v3051
        %v3111 = vunpack.c.l.b16 %v3055
        %v3112 = vunpack.c.l.b16 %v3058
        %v3113 = vunpack.c.l.b16 %v3062
        %v3114 = vunpack.c.l.b16 %v3065
        %v3115 = vunpack.c.l.b16 %v3069
        %v3116 = vunpack.c.l.b16 %v3072
        %v3117 = vunpack.c.l.b16 %v3076
        %v3118 = vunpack.c.l.b16 %v3079
        %v3119 = vunpack.c.l.b16 %v3083
        %v3120 = vunpack.c.l.b16 %v3086
        %v3121 = vpack.c.b16 %v3090, %v3089
        %v3122 = vpack.c.b16 %v3092, %v3091
        %v3123 = vpack.c.b16 %v3094, %v3093
        %v3124 = vpack.c.b16 %v3096, %v3095
        %v3125 = vpack.c.b16 %v3098, %v3097
        %v3126 = vpack.c.b16 %v3100, %v3099
        %v3127 = vpack.c.b16 %v3102, %v3101
        %v3128 = vpack.c.b16 %v3104, %v3103
        %v3129 = vpack.c.b16 %v3106, %v3105
        %v3130 = vpack.c.b16 %v3108, %v3107
        %v3131 = vpack.c.b16 %v3110, %v3109
        %v3132 = vpack.c.b16 %v3112, %v3111
        %v3133 = vpack.c.b16 %v3114, %v3113
        %v3134 = vpack.c.b16 %v3116, %v3115
        %v3135 = vpack.c.b16 %v3118, %v3117
        %v3136 = vpack.c.b16 %v3120, %v3119
        %v3138 = vsel %vm863, %v3121, 0
        %v3141 = vsel %vm863, %v3122, 0
        %v3144 = vsel %vm863, %v3123, 0
        %v3147 = vsel %vm863, %v3124, 0
        %v3150 = vsel %vm863, %v3125, 0
        %v3153 = vsel %vm863, %v3126, 0
        %v3156 = vsel %vm863, %v3127, 0
        %v3159 = vsel %vm863, %v3128, 0
        %v3162 = vsel %vm863, %v3129, 0
        %v3165 = vsel %vm863, %v3130, 0
        %v3168 = vsel %vm863, %v3131, 0
        %v3171 = vsel %vm863, %v3132, 0
        %v3174 = vsel %vm863, %v3133, 0
        %v3177 = vsel %vm863, %v3134, 0
        %v3180 = vsel %vm863, %v3135, 0
        %v3183 = vsel %vm863, %v3136, 0
        %v3186 = vsel %vm912, %v3088, 0
        %3188 = vmatprep.subr.bf16.mxu0 0
        %3189 = vmatpush1.bf16.msra.mxu0 %v3186
        %3190 = vmatprep.subr.bf16.mxu0 0
        %3191 = vmatpush1.bf16.msra.mxu0 0
        %3192 = vmatprep.subr.bf16.mxu0 0
        %3193 = vmatpush1.bf16.msra.mxu0 0
        %3194 = vmatprep.subr.bf16.mxu0 0
        %3195 = vmatpush1.bf16.msra.mxu0 0
        %3196 = vmatprep.subr.bf16.mxu0 0
        %3197 = vmatpush1.bf16.msra.mxu0 0
        %3198 = vmatprep.subr.bf16.mxu0 0
        %3199 = vmatpush1.bf16.msra.mxu0 0
        %3200 = vmatprep.subr.bf16.mxu0 0
        %3201 = vmatpush1.bf16.msra.mxu0 0
        %3202 = vmatprep.subr.bf16.mxu0 0
        %3203 = vmatpush1.bf16.msra.mxu0 0
        %3204 = vmatprep.subr.bf16.mxu0 0
        %3205 = vmatpush1.bf16.msra.mxu0 0
        %3206 = vmatprep.subr.bf16.mxu0 0
        %3207 = vmatpush1.bf16.msra.mxu0 0
        %3208 = vmatprep.subr.bf16.mxu0 0
        %3209 = vmatpush1.bf16.msra.mxu0 0
        %3210 = vmatprep.subr.bf16.mxu0 0
        %3211 = vmatpush1.bf16.msra.mxu0 0
        %3212 = vmatprep.subr.bf16.mxu0 0
        %3213 = vmatpush1.bf16.msra.mxu0 0
        %3214 = vmatprep.subr.bf16.mxu0 0
        %3215 = vmatpush1.bf16.msra.mxu0 0
        %3216 = vmatprep.subr.bf16.mxu0 0
        %3217 = vmatpush1.bf16.msra.mxu0 0
        %3218 = vmatprep.subr.bf16.mxu0 0
        %3219 = vmatpush1.bf16.msra.mxu0 0
        %3220 = vmatprep.mubr.bf16.mxu0 0
        %3221 = vmatmul.mubr.bf16.gmra.mrb[0].mxu0 %v3138
        %v3222 = vpop.f32.mrb[0].mxu0
        %v3223 = vadd.f32 0.0, %v3222
        %v3224 = vpop.f32.mrb[0].mxu0
        %v3225 = vpop.f32.mrb[0].mxu0
        %v3226 = vadd.f32 0.0, %v3225
        %v3227 = vpop.f32.mrb[0].mxu0
        %3228 = vmatprep.mubr.bf16.mxu0 0
        %3229 = vmatmul.mubr.bf16.gmra.mrb[0].mxu0 %v3141
        %v3230 = vpop.f32.mrb[0].mxu0
        %v3231 = vadd.f32 0.0, %v3230
        %v3232 = vpop.f32.mrb[0].mxu0
        %v3233 = vpop.f32.mrb[0].mxu0
        %v3234 = vadd.f32 0.0, %v3233
        %v3235 = vpop.f32.mrb[0].mxu0
        %3236 = vmatprep.mubr.bf16.mxu0 0
        %3237 = vmatmul.mubr.bf16.gmra.mrb[0].mxu0 %v3144
        %v3238 = vpop.f32.mrb[0].mxu0
        %v3239 = vadd.f32 0.0, %v3238
        %v3240 = vpop.f32.mrb[0].mxu0
        %v3241 = vpop.f32.mrb[0].mxu0
        %v3242 = vadd.f32 0.0, %v3241
        %v3243 = vpop.f32.mrb[0].mxu0
        %3244 = vmatprep.mubr.bf16.mxu0 0
        %3245 = vmatmul.mubr.bf16.gmra.mrb[0].mxu0 %v3147
        %v3246 = vpop.f32.mrb[0].mxu0
        %v3247 = vadd.f32 0.0, %v3246
        %v3248 = vpop.f32.mrb[0].mxu0
        %v3249 = vpop.f32.mrb[0].mxu0
        %v3250 = vadd.f32 0.0, %v3249
        %v3251 = vpop.f32.mrb[0].mxu0
        %3252 = vmatprep.mubr.bf16.mxu0 0
        %3253 = vmatmul.mubr.bf16.gmra.mrb[0].mxu0 %v3150
        %v3254 = vpop.f32.mrb[0].mxu0
        %v3255 = vadd.f32 0.0, %v3254
        %v3256 = vpop.f32.mrb[0].mxu0
        %v3257 = vpop.f32.mrb[0].mxu0
        %v3258 = vadd.f32 0.0, %v3257
        %v3259 = vpop.f32.mrb[0].mxu0
        %3260 = vmatprep.mubr.bf16.mxu0 0
        %3261 = vmatmul.mubr.bf16.gmra.mrb[0].mxu0 %v3153
        %v3262 = vpop.f32.mrb[0].mxu0
        %v3263 = vadd.f32 0.0, %v3262
        %v3264 = vpop.f32.mrb[0].mxu0
        %v3265 = vpop.f32.mrb[0].mxu0
        %v3266 = vadd.f32 0.0, %v3265
        %v3267 = vpop.f32.mrb[0].mxu0
        %3268 = vmatprep.mubr.bf16.mxu0 0
        %3269 = vmatmul.mubr.bf16.gmra.mrb[0].mxu0 %v3156
        %v3270 = vpop.f32.mrb[0].mxu0
        %v3271 = vadd.f32 0.0, %v3270
        %v3272 = vpop.f32.mrb[0].mxu0
        %v3273 = vpop.f32.mrb[0].mxu0
        %v3274 = vadd.f32 0.0, %v3273
        %v3275 = vpop.f32.mrb[0].mxu0
        %3276 = vmatprep.mubr.bf16.mxu0 0
        %3277 = vmatmul.mubr.bf16.gmra.mrb[0].mxu0 %v3159
        %v3278 = vpop.f32.mrb[0].mxu0
        %v3279 = vadd.f32 0.0, %v3278
        %v3280 = vpop.f32.mrb[0].mxu0
        %v3281 = vpop.f32.mrb[0].mxu0
        %v3282 = vadd.f32 0.0, %v3281
        %v3283 = vpop.f32.mrb[0].mxu0
        %3284 = vmatprep.mubr.bf16.mxu0 0
        %3285 = vmatmul.mubr.bf16.gmra.mrb[0].mxu0 %v3162
        %v3286 = vpop.f32.mrb[0].mxu0
        %v3287 = vadd.f32 0.0, %v3286
        %v3288 = vpop.f32.mrb[0].mxu0
        %v3289 = vpop.f32.mrb[0].mxu0
        %v3290 = vadd.f32 0.0, %v3289
        %v3291 = vpop.f32.mrb[0].mxu0
        %3292 = vmatprep.mubr.bf16.mxu0 0
        %3293 = vmatmul.mubr.bf16.gmra.mrb[0].mxu0 %v3165
        %v3294 = vpop.f32.mrb[0].mxu0
        %v3295 = vadd.f32 0.0, %v3294
        %v3296 = vpop.f32.mrb[0].mxu0
        %v3297 = vpop.f32.mrb[0].mxu0
        %v3298 = vadd.f32 0.0, %v3297
        %v3299 = vpop.f32.mrb[0].mxu0
        %3300 = vmatprep.mubr.bf16.mxu0 0
        %3301 = vmatmul.mubr.bf16.gmra.mrb[0].mxu0 %v3168
        %v3302 = vpop.f32.mrb[0].mxu0
        %v3303 = vadd.f32 0.0, %v3302
        %v3304 = vpop.f32.mrb[0].mxu0
        %v3305 = vpop.f32.mrb[0].mxu0
        %v3306 = vadd.f32 0.0, %v3305
        %v3307 = vpop.f32.mrb[0].mxu0
        %3308 = vmatprep.mubr.bf16.mxu0 0
        %3309 = vmatmul.mubr.bf16.gmra.mrb[0].mxu0 %v3171
        %v3310 = vpop.f32.mrb[0].mxu0
        %v3311 = vadd.f32 0.0, %v3310
        %v3312 = vpop.f32.mrb[0].mxu0
        %v3313 = vpop.f32.mrb[0].mxu0
        %v3314 = vadd.f32 0.0, %v3313
        %v3315 = vpop.f32.mrb[0].mxu0
        %3316 = vmatprep.mubr.bf16.mxu0 0
        %3317 = vmatmul.mubr.bf16.gmra.mrb[0].mxu0 %v3174
        %v3318 = vpop.f32.mrb[0].mxu0
        %v3319 = vadd.f32 0.0, %v3318
        %v3320 = vpop.f32.mrb[0].mxu0
        %v3321 = vpop.f32.mrb[0].mxu0
        %v3322 = vadd.f32 0.0, %v3321
        %v3323 = vpop.f32.mrb[0].mxu0
        %3324 = vmatprep.mubr.bf16.mxu0 0
        %3325 = vmatmul.mubr.bf16.gmra.mrb[0].mxu0 %v3177
        %v3326 = vpop.f32.mrb[0].mxu0
        %v3327 = vadd.f32 0.0, %v3326
        %v3328 = vpop.f32.mrb[0].mxu0
        %v3329 = vpop.f32.mrb[0].mxu0
        %v3330 = vadd.f32 0.0, %v3329
        %v3331 = vpop.f32.mrb[0].mxu0
        %3332 = vmatprep.mubr.bf16.mxu0 0
        %3333 = vmatmul.mubr.bf16.gmra.mrb[0].mxu0 %v3180
        %v3334 = vpop.f32.mrb[0].mxu0
        %v3335 = vadd.f32 0.0, %v3334
        %v3336 = vpop.f32.mrb[0].mxu0
        %v3337 = vpop.f32.mrb[0].mxu0
        %v3338 = vadd.f32 0.0, %v3337
        %v3339 = vpop.f32.mrb[0].mxu0
        %3340 = vmatprep.mubr.bf16.mxu0 0
        %3341 = vmatmul.mubr.bf16.gmra.mrb[0].mxu0 %v3183
        %v3342 = vpop.f32.mrb[0].mxu0
        %v3343 = vadd.f32 0.0, %v3342
        %v3344 = vpop.f32.mrb[0].mxu0
        %v3345 = vpop.f32.mrb[0].mxu0
        %v3346 = vadd.f32 0.0, %v3345
        %v3347 = vpop.f32.mrb[0].mxu0
        %3348 = vdwg.mxu0
        %v3349 = vadd.f32 %v2879, %v3223
        %v3350 = vadd.f32 %v2880, %v3226
        %v3351 = vadd.f32 %v2881, %v3231
        %v3352 = vadd.f32 %v2882, %v3234
        %v3353 = vadd.f32 %v2883, %v3239
        %v3354 = vadd.f32 %v2884, %v3242
        %v3355 = vadd.f32 %v2885, %v3247
        %v3356 = vadd.f32 %v2886, %v3250
        %v3357 = vadd.f32 %v2887, %v3255
        %v3358 = vadd.f32 %v2888, %v3258
        %v3359 = vadd.f32 %v2889, %v3263
        %v3360 = vadd.f32 %v2890, %v3266
        %v3361 = vadd.f32 %v2891, %v3271
        %v3362 = vadd.f32 %v2892, %v3274
        %v3363 = vadd.f32 %v2893, %v3279
        %v3364 = vadd.f32 %v2894, %v3282
        %v3365 = vadd.f32 %v2895, %v3287
        %v3366 = vadd.f32 %v2896, %v3290
        %v3367 = vadd.f32 %v2897, %v3295
        %v3368 = vadd.f32 %v2898, %v3298
        %v3369 = vadd.f32 %v2899, %v3303
        %v3370 = vadd.f32 %v2900, %v3306
        %v3371 = vadd.f32 %v2901, %v3311
        %v3372 = vadd.f32 %v2902, %v3314
        %v3373 = vadd.f32 %v2903, %v3319
        %v3374 = vadd.f32 %v2904, %v3322
        %v3375 = vadd.f32 %v2905, %v3327
        %v3376 = vadd.f32 %v2906, %v3330
        %v3377 = vadd.f32 %v2907, %v3335
        %v3378 = vadd.f32 %v2908, %v3338
        %v3379 = vadd.f32 %v2909, %v3343
        %v3380 = vadd.f32 %v2910, %v3346
        %s3381 = scalar_lea.vmem %s321, 24 [#allocation3]
        %v3382 = vld [vmem:[%s3381] sm:$0xf]
        %v3383 = vld [vmem:[%s3381 + $0x4] sm:$0xf]
        %v3384 = vld [vmem:[%s3381 + $0xc] sm:$0xf]
        %v3385 = vld [vmem:[%s3381 + $0x10] sm:$0xf]
        %v3386 = vld [vmem:[%s3381 + $0x18] sm:$0xf]
        %v3387 = vld [vmem:[%s3381 + $0x1c] sm:$0xf]
        %v3388 = vld [vmem:[%s3381 + $0x24] sm:$0xf]
        %v3389 = vld [vmem:[%s3381 + $0x28] sm:$0xf]
        %v3390 = vld [vmem:[%s3381 + $0x30] sm:$0xf]
        %v3391 = vld [vmem:[%s3381 + $0x34] sm:$0xf]
        %v3392 = vld [vmem:[%s3381 + $0x3c] sm:$0xf]
        %v3393 = vld [vmem:[%s3381 + $0x40] sm:$0xf]
        %v3394 = vld [vmem:[%s3381 + $0x48] sm:$0xf]
        %v3395 = vld [vmem:[%s3381 + $0x4c] sm:$0xf]
        %v3396 = vld [vmem:[%s3381 + $0x54] sm:$0xf]
        %v3397 = vld [vmem:[%s3381 + $0x58] sm:$0xf]
        %v3398 = vld [vmem:[%s3381 + $0x60] sm:$0xf]
        %v3399 = vld [vmem:[%s3381 + $0x64] sm:$0xf]
        %v3400 = vld [vmem:[%s3381 + $0x6c] sm:$0xf]
        %v3401 = vld [vmem:[%s3381 + $0x70] sm:$0xf]
        %v3402 = vld [vmem:[%s3381 + $0x78] sm:$0xf]
        %v3403 = vld [vmem:[%s3381 + $0x7c] sm:$0xf]
        %v3404 = vld [vmem:[%s3381 + $0x84] sm:$0xf]
        %v3405 = vld [vmem:[%s3381 + $0x88] sm:$0xf]
        %v3406 = vld [vmem:[%s3381 + $0x90] sm:$0xf]
        %v3407 = vld [vmem:[%s3381 + $0x94] sm:$0xf]
        %v3408 = vld [vmem:[%s3381 + $0x9c] sm:$0xf]
        %v3409 = vld [vmem:[%s3381 + $0xa0] sm:$0xf]
        %v3410 = vld [vmem:[%s3381 + $0xa8] sm:$0xf]
        %v3411 = vld [vmem:[%s3381 + $0xac] sm:$0xf]
        %v3412 = vld [vmem:[%s3381 + $0xb4] sm:$0xf]
        %v3413 = vld [vmem:[%s3381 + $0xb8] sm:$0xf]
        %s3414 = scalar_lea.vmem [#allocation6], 12
        %v3415 = vld [vmem:[%s3414] sm:$0x3]
        %v3448 = vunpack.c.l.b16 %v3382
        %v3449 = vunpack.c.l.b16 %v3383
        %v3450 = vunpack.c.l.b16 %v3384
        %v3451 = vunpack.c.l.b16 %v3385
        %v3452 = vunpack.c.l.b16 %v3386
        %v3453 = vunpack.c.l.b16 %v3387
        %v3454 = vunpack.c.l.b16 %v3388
        %v3455 = vunpack.c.l.b16 %v3389
        %v3456 = vunpack.c.l.b16 %v3390
        %v3457 = vunpack.c.l.b16 %v3391
        %v3458 = vunpack.c.l.b16 %v3392
        %v3459 = vunpack.c.l.b16 %v3393
        %v3460 = vunpack.c.l.b16 %v3394
        %v3461 = vunpack.c.l.b16 %v3395
        %v3462 = vunpack.c.l.b16 %v3396
        %v3463 = vunpack.c.l.b16 %v3397
        %v3464 = vunpack.c.l.b16 %v3398
        %v3465 = vunpack.c.l.b16 %v3399
        %v3466 = vunpack.c.l.b16 %v3400
        %v3467 = vunpack.c.l.b16 %v3401
        %v3468 = vunpack.c.l.b16 %v3402
        %v3469 = vunpack.c.l.b16 %v3403
        %v3470 = vunpack.c.l.b16 %v3404
        %v3471 = vunpack.c.l.b16 %v3405
        %v3472 = vunpack.c.l.b16 %v3406
        %v3473 = vunpack.c.l.b16 %v3407
        %v3474 = vunpack.c.l.b16 %v3408
        %v3475 = vunpack.c.l.b16 %v3409
        %v3476 = vunpack.c.l.b16 %v3410
        %v3477 = vunpack.c.l.b16 %v3411
        %v3478 = vunpack.c.l.b16 %v3412
        %v3479 = vunpack.c.l.b16 %v3413
        %v3480 = vpack.c.b16 %v3449, %v3448
        %v3481 = vpack.c.b16 %v3451, %v3450
        %v3482 = vpack.c.b16 %v3453, %v3452
        %v3483 = vpack.c.b16 %v3455, %v3454
        %v3484 = vpack.c.b16 %v3457, %v3456
        %v3485 = vpack.c.b16 %v3459, %v3458
        %v3486 = vpack.c.b16 %v3461, %v3460
        %v3487 = vpack.c.b16 %v3463, %v3462
        %v3488 = vpack.c.b16 %v3465, %v3464
        %v3489 = vpack.c.b16 %v3467, %v3466
        %v3490 = vpack.c.b16 %v3469, %v3468
        %v3491 = vpack.c.b16 %v3471, %v3470
        %v3492 = vpack.c.b16 %v3473, %v3472
        %v3493 = vpack.c.b16 %v3475, %v3474
        %v3494 = vpack.c.b16 %v3477, %v3476
        %v3495 = vpack.c.b16 %v3479, %v3478
        %v3497 = vsel %vm863, %v3480, 0
        %v3500 = vsel %vm863, %v3481, 0
        %v3503 = vsel %vm863, %v3482, 0
        %v3506 = vsel %vm863, %v3483, 0
        %v3509 = vsel %vm863, %v3484, 0
        %v3512 = vsel %vm863, %v3485, 0
        %v3515 = vsel %vm863, %v3486, 0
        %v3518 = vsel %vm863, %v3487, 0
        %v3521 = vsel %vm863, %v3488, 0
        %v3524 = vsel %vm863, %v3489, 0
        %v3527 = vsel %vm863, %v3490, 0
        %v3530 = vsel %vm863, %v3491, 0
        %v3533 = vsel %vm863, %v3492, 0
        %v3536 = vsel %vm863, %v3493, 0
        %v3539 = vsel %vm863, %v3494, 0
        %v3542 = vsel %vm863, %v3495, 0
        %v3545 = vsel %vm912, %v3415, 0
        %3547 = vmatprep.subr.bf16.mxu0 0
        %3548 = vmatpush1.bf16.msra.mxu0 %v3545
        %3549 = vmatprep.subr.bf16.mxu0 0
        %3550 = vmatpush1.bf16.msra.mxu0 0
        %3551 = vmatprep.subr.bf16.mxu0 0
        %3552 = vmatpush1.bf16.msra.mxu0 0
        %3553 = vmatprep.subr.bf16.mxu0 0
        %3554 = vmatpush1.bf16.msra.mxu0 0
        %3555 = vmatprep.subr.bf16.mxu0 0
        %3556 = vmatpush1.bf16.msra.mxu0 0
        %3557 = vmatprep.subr.bf16.mxu0 0
        %3558 = vmatpush1.bf16.msra.mxu0 0
        %3559 = vmatprep.subr.bf16.mxu0 0
        %3560 = vmatpush1.bf16.msra.mxu0 0
        %3561 = vmatprep.subr.bf16.mxu0 0
        %3562 = vmatpush1.bf16.msra.mxu0 0
        %3563 = vmatprep.subr.bf16.mxu0 0
        %3564 = vmatpush1.bf16.msra.mxu0 0
        %3565 = vmatprep.subr.bf16.mxu0 0
        %3566 = vmatpush1.bf16.msra.mxu0 0
        %3567 = vmatprep.subr.bf16.mxu0 0
        %3568 = vmatpush1.bf16.msra.mxu0 0
        %3569 = vmatprep.subr.bf16.mxu0 0
        %3570 = vmatpush1.bf16.msra.mxu0 0
        %3571 = vmatprep.subr.bf16.mxu0 0
        %3572 = vmatpush1.bf16.msra.mxu0 0
        %3573 = vmatprep.subr.bf16.mxu0 0
        %3574 = vmatpush1.bf16.msra.mxu0 0
        %3575 = vmatprep.subr.bf16.mxu0 0
        %3576 = vmatpush1.bf16.msra.mxu0 0
        %3577 = vmatprep.subr.bf16.mxu0 0
        %3578 = vmatpush1.bf16.msra.mxu0 0
        %3579 = vmatprep.mubr.bf16.mxu0 0
        %3580 = vmatmul.mubr.bf16.gmra.mrb[0].mxu0 %v3497
        %v3581 = vpop.f32.mrb[0].mxu0
        %v3582 = vadd.f32 0.0, %v3581
        %v3583 = vpop.f32.mrb[0].mxu0
        %v3584 = vpop.f32.mrb[0].mxu0
        %v3585 = vadd.f32 0.0, %v3584
        %v3586 = vpop.f32.mrb[0].mxu0
        %3587 = vmatprep.mubr.bf16.mxu0 0
        %3588 = vmatmul.mubr.bf16.gmra.mrb[0].mxu0 %v3500
        %v3589 = vpop.f32.mrb[0].mxu0
        %v3590 = vadd.f32 0.0, %v3589
        %v3591 = vpop.f32.mrb[0].mxu0
        %v3592 = vpop.f32.mrb[0].mxu0
        %v3593 = vadd.f32 0.0, %v3592
        %v3594 = vpop.f32.mrb[0].mxu0
        %3595 = vmatprep.mubr.bf16.mxu0 0
        %3596 = vmatmul.mubr.bf16.gmra.mrb[0].mxu0 %v3503
        %v3597 = vpop.f32.mrb[0].mxu0
        %v3598 = vadd.f32 0.0, %v3597
        %v3599 = vpop.f32.mrb[0].mxu0
        %v3600 = vpop.f32.mrb[0].mxu0
        %v3601 = vadd.f32 0.0, %v3600
        %v3602 = vpop.f32.mrb[0].mxu0
        %3603 = vmatprep.mubr.bf16.mxu0 0
        %3604 = vmatmul.mubr.bf16.gmra.mrb[0].mxu0 %v3506
        %v3605 = vpop.f32.mrb[0].mxu0
        %v3606 = vadd.f32 0.0, %v3605
        %v3607 = vpop.f32.mrb[0].mxu0
        %v3608 = vpop.f32.mrb[0].mxu0
        %v3609 = vadd.f32 0.0, %v3608
        %v3610 = vpop.f32.mrb[0].mxu0
        %3611 = vmatprep.mubr.bf16.mxu0 0
        %3612 = vmatmul.mubr.bf16.gmra.mrb[0].mxu0 %v3509
        %v3613 = vpop.f32.mrb[0].mxu0
        %v3614 = vadd.f32 0.0, %v3613
        %v3615 = vpop.f32.mrb[0].mxu0
        %v3616 = vpop.f32.mrb[0].mxu0
        %v3617 = vadd.f32 0.0, %v3616
        %v3618 = vpop.f32.mrb[0].mxu0
        %3619 = vmatprep.mubr.bf16.mxu0 0
        %3620 = vmatmul.mubr.bf16.gmra.mrb[0].mxu0 %v3512
        %v3621 = vpop.f32.mrb[0].mxu0
        %v3622 = vadd.f32 0.0, %v3621
        %v3623 = vpop.f32.mrb[0].mxu0
        %v3624 = vpop.f32.mrb[0].mxu0
        %v3625 = vadd.f32 0.0, %v3624
        %v3626 = vpop.f32.mrb[0].mxu0
        %3627 = vmatprep.mubr.bf16.mxu0 0
        %3628 = vmatmul.mubr.bf16.gmra.mrb[0].mxu0 %v3515
        %v3629 = vpop.f32.mrb[0].mxu0
        %v3630 = vadd.f32 0.0, %v3629
        %v3631 = vpop.f32.mrb[0].mxu0
        %v3632 = vpop.f32.mrb[0].mxu0
        %v3633 = vadd.f32 0.0, %v3632
        %v3634 = vpop.f32.mrb[0].mxu0
        %3635 = vmatprep.mubr.bf16.mxu0 0
        %3636 = vmatmul.mubr.bf16.gmra.mrb[0].mxu0 %v3518
        %v3637 = vpop.f32.mrb[0].mxu0
        %v3638 = vadd.f32 0.0, %v3637
        %v3639 = vpop.f32.mrb[0].mxu0
        %v3640 = vpop.f32.mrb[0].mxu0
        %v3641 = vadd.f32 0.0, %v3640
        %v3642 = vpop.f32.mrb[0].mxu0
        %3643 = vmatprep.mubr.bf16.mxu0 0
        %3644 = vmatmul.mubr.bf16.gmra.mrb[0].mxu0 %v3521
        %v3645 = vpop.f32.mrb[0].mxu0
        %v3646 = vadd.f32 0.0, %v3645
        %v3647 = vpop.f32.mrb[0].mxu0
        %v3648 = vpop.f32.mrb[0].mxu0
        %v3649 = vadd.f32 0.0, %v3648
        %v3650 = vpop.f32.mrb[0].mxu0
        %3651 = vmatprep.mubr.bf16.mxu0 0
        %3652 = vmatmul.mubr.bf16.gmra.mrb[0].mxu0 %v3524
        %v3653 = vpop.f32.mrb[0].mxu0
        %v3654 = vadd.f32 0.0, %v3653
        %v3655 = vpop.f32.mrb[0].mxu0
        %v3656 = vpop.f32.mrb[0].mxu0
        %v3657 = vadd.f32 0.0, %v3656
        %v3658 = vpop.f32.mrb[0].mxu0
        %3659 = vmatprep.mubr.bf16.mxu0 0
        %3660 = vmatmul.mubr.bf16.gmra.mrb[0].mxu0 %v3527
        %v3661 = vpop.f32.mrb[0].mxu0
        %v3662 = vadd.f32 0.0, %v3661
        %v3663 = vpop.f32.mrb[0].mxu0
        %v3664 = vpop.f32.mrb[0].mxu0
        %v3665 = vadd.f32 0.0, %v3664
        %v3666 = vpop.f32.mrb[0].mxu0
        %3667 = vmatprep.mubr.bf16.mxu0 0
        %3668 = vmatmul.mubr.bf16.gmra.mrb[0].mxu0 %v3530
        %v3669 = vpop.f32.mrb[0].mxu0
        %v3670 = vadd.f32 0.0, %v3669
        %v3671 = vpop.f32.mrb[0].mxu0
        %v3672 = vpop.f32.mrb[0].mxu0
        %v3673 = vadd.f32 0.0, %v3672
        %v3674 = vpop.f32.mrb[0].mxu0
        %3675 = vmatprep.mubr.bf16.mxu0 0
        %3676 = vmatmul.mubr.bf16.gmra.mrb[0].mxu0 %v3533
        %v3677 = vpop.f32.mrb[0].mxu0
        %v3678 = vadd.f32 0.0, %v3677
        %v3679 = vpop.f32.mrb[0].mxu0
        %v3680 = vpop.f32.mrb[0].mxu0
        %v3681 = vadd.f32 0.0, %v3680
        %v3682 = vpop.f32.mrb[0].mxu0
        %3683 = vmatprep.mubr.bf16.mxu0 0
        %3684 = vmatmul.mubr.bf16.gmra.mrb[0].mxu0 %v3536
        %v3685 = vpop.f32.mrb[0].mxu0
        %v3686 = vadd.f32 0.0, %v3685
        %v3687 = vpop.f32.mrb[0].mxu0
        %v3688 = vpop.f32.mrb[0].mxu0
        %v3689 = vadd.f32 0.0, %v3688
        %v3690 = vpop.f32.mrb[0].mxu0
        %3691 = vmatprep.mubr.bf16.mxu0 0
        %3692 = vmatmul.mubr.bf16.gmra.mrb[0].mxu0 %v3539
        %v3693 = vpop.f32.mrb[0].mxu0
        %v3694 = vadd.f32 0.0, %v3693
        %v3695 = vpop.f32.mrb[0].mxu0
        %v3696 = vpop.f32.mrb[0].mxu0
        %v3697 = vadd.f32 0.0, %v3696
        %v3698 = vpop.f32.mrb[0].mxu0
        %3699 = vmatprep.mubr.bf16.mxu0 0
        %3700 = vmatmul.mubr.bf16.gmra.mrb[0].mxu0 %v3542
        %v3701 = vpop.f32.mrb[0].mxu0
        %v3702 = vadd.f32 0.0, %v3701
        %v3703 = vpop.f32.mrb[0].mxu0
        %v3704 = vpop.f32.mrb[0].mxu0
        %v3705 = vadd.f32 0.0, %v3704
        %v3706 = vpop.f32.mrb[0].mxu0
        %3707 = vdwg.mxu0
        %v3708 = vadd.f32 %v3349, %v3582
        %v3709 = vadd.f32 %v3350, %v3585
        %v3710 = vadd.f32 %v3351, %v3590
        %v3711 = vadd.f32 %v3352, %v3593
        %v3712 = vadd.f32 %v3353, %v3598
        %v3713 = vadd.f32 %v3354, %v3601
        %v3714 = vadd.f32 %v3355, %v3606
        %v3715 = vadd.f32 %v3356, %v3609
        %v3716 = vadd.f32 %v3357, %v3614
        %v3717 = vadd.f32 %v3358, %v3617
        %v3718 = vadd.f32 %v3359, %v3622
        %v3719 = vadd.f32 %v3360, %v3625
        %v3720 = vadd.f32 %v3361, %v3630
        %v3721 = vadd.f32 %v3362, %v3633
        %v3722 = vadd.f32 %v3363, %v3638
        %v3723 = vadd.f32 %v3364, %v3641
        %v3724 = vadd.f32 %v3365, %v3646
        %v3725 = vadd.f32 %v3366, %v3649
        %v3726 = vadd.f32 %v3367, %v3654
        %v3727 = vadd.f32 %v3368, %v3657
        %v3728 = vadd.f32 %v3369, %v3662
        %v3729 = vadd.f32 %v3370, %v3665
        %v3730 = vadd.f32 %v3371, %v3670
        %v3731 = vadd.f32 %v3372, %v3673
        %v3732 = vadd.f32 %v3373, %v3678
        %v3733 = vadd.f32 %v3374, %v3681
        %v3734 = vadd.f32 %v3375, %v3686
        %v3735 = vadd.f32 %v3376, %v3689
        %v3736 = vadd.f32 %v3377, %v3694
        %v3737 = vadd.f32 %v3378, %v3697
        %v3738 = vadd.f32 %v3379, %v3702
        %v3739 = vadd.f32 %v3380, %v3705
        %v3740 = vld [vmem:[%s3381] sm:$0xf]
        %v3741 = vld [vmem:[%s3381 + $0x4] sm:$0xf]
        %v3742 = vld [vmem:[%s3381 + $0x8] sm:$0x1]
        %v3743 = vld [vmem:[%s3381 + $0xc] sm:$0xf]
        %v3744 = vld [vmem:[%s3381 + $0x10] sm:$0xf]
        %v3745 = vld [vmem:[%s3381 + $0x14] sm:$0x1]
        %v3746 = vld [vmem:[%s3381 + $0x18] sm:$0xf]
        %v3747 = vld [vmem:[%s3381 + $0x1c] sm:$0xf]
        %v3748 = vld [vmem:[%s3381 + $0x20] sm:$0x1]
        %v3749 = vld [vmem:[%s3381 + $0x24] sm:$0xf]
        %v3750 = vld [vmem:[%s3381 + $0x28] sm:$0xf]
        %v3751 = vld [vmem:[%s3381 + $0x2c] sm:$0x1]
        %v3752 = vld [vmem:[%s3381 + $0x30] sm:$0xf]
        %v3753 = vld [vmem:[%s3381 + $0x34] sm:$0xf]
        %v3754 = vld [vmem:[%s3381 + $0x38] sm:$0x1]
        %v3755 = vld [vmem:[%s3381 + $0x3c] sm:$0xf]
        %v3756 = vld [vmem:[%s3381 + $0x40] sm:$0xf]
        %v3757 = vld [vmem:[%s3381 + $0x44] sm:$0x1]
        %v3758 = vld [vmem:[%s3381 + $0x48] sm:$0xf]
        %v3759 = vld [vmem:[%s3381 + $0x4c] sm:$0xf]
        %v3760 = vld [vmem:[%s3381 + $0x50] sm:$0x1]
        %v3761 = vld [vmem:[%s3381 + $0x54] sm:$0xf]
        %v3762 = vld [vmem:[%s3381 + $0x58] sm:$0xf]
        %v3763 = vld [vmem:[%s3381 + $0x5c] sm:$0x1]
        %v3764 = vld [vmem:[%s3381 + $0x60] sm:$0xf]
        %v3765 = vld [vmem:[%s3381 + $0x64] sm:$0xf]
        %v3766 = vld [vmem:[%s3381 + $0x68] sm:$0x1]
        %v3767 = vld [vmem:[%s3381 + $0x6c] sm:$0xf]
        %v3768 = vld [vmem:[%s3381 + $0x70] sm:$0xf]
        %v3769 = vld [vmem:[%s3381 + $0x74] sm:$0x1]
        %v3770 = vld [vmem:[%s3381 + $0x78] sm:$0xf]
        %v3771 = vld [vmem:[%s3381 + $0x7c] sm:$0xf]
        %v3772 = vld [vmem:[%s3381 + $0x80] sm:$0x1]
        %v3773 = vld [vmem:[%s3381 + $0x84] sm:$0xf]
        %v3774 = vld [vmem:[%s3381 + $0x88] sm:$0xf]
        %v3775 = vld [vmem:[%s3381 + $0x8c] sm:$0x1]
        %v3776 = vld [vmem:[%s3381 + $0x90] sm:$0xf]
        %v3777 = vld [vmem:[%s3381 + $0x94] sm:$0xf]
        %v3778 = vld [vmem:[%s3381 + $0x98] sm:$0x1]
        %v3779 = vld [vmem:[%s3381 + $0x9c] sm:$0xf]
        %v3780 = vld [vmem:[%s3381 + $0xa0] sm:$0xf]
        %v3781 = vld [vmem:[%s3381 + $0xa4] sm:$0x1]
        %v3782 = vld [vmem:[%s3381 + $0xa8] sm:$0xf]
        %v3783 = vld [vmem:[%s3381 + $0xac] sm:$0xf]
        %v3784 = vld [vmem:[%s3381 + $0xb0] sm:$0x1]
        %v3785 = vld [vmem:[%s3381 + $0xb4] sm:$0xf]
        %v3786 = vld [vmem:[%s3381 + $0xb8] sm:$0xf]
        %v3787 = vld [vmem:[%s3381 + $0xbc] sm:$0x1]
        %v3789 = vshrl.u32 %v3740, 16
        %v3791 = vrot.slane %v3789, 4
        %v3792 = vshll.u32 %v3740, 16
        %v3794 = vrot.slane %v3792, 5
        %v3795 = vor.u32 %v3791, %v3794
        %v3796 = vrot.slane %v3795, 4
        %v3798 = vshll.u32 %v3741, 16
        %v3800 = vrot.slane %v3798, 5
        %v3801 = vsel %vm428, %v3796, %v3800
        %v3802 = vshrl.u32 %v3741, 16
        %v3804 = vrot.slane %v3802, 4
        %v3805 = vor.u32 %v3804, %v3800
        %v3806 = vrot.slane %v3805, 4
        %v3808 = vshll.u32 %v3742, 16
        %v3810 = vrot.slane %v3808, 5
        %v3811 = vsel %vm428, %v3806, %v3810
        %v3813 = vshrl.u32 %v3743, 16
        %v3815 = vrot.slane %v3813, 4
        %v3816 = vshll.u32 %v3743, 16
        %v3818 = vrot.slane %v3816, 5
        %v3819 = vor.u32 %v3815, %v3818
        %v3820 = vrot.slane %v3819, 4
        %v3822 = vshll.u32 %v3744, 16
        %v3824 = vrot.slane %v3822, 5
        %v3825 = vsel %vm428, %v3820, %v3824
        %v3826 = vshrl.u32 %v3744, 16
        %v3828 = vrot.slane %v3826, 4
        %v3829 = vor.u32 %v3828, %v3824
        %v3830 = vrot.slane %v3829, 4
        %v3832 = vshll.u32 %v3745, 16
        %v3834 = vrot.slane %v3832, 5
        %v3835 = vsel %vm428, %v3830, %v3834
        %v3837 = vshrl.u32 %v3746, 16
        %v3839 = vrot.slane %v3837, 4
        %v3840 = vshll.u32 %v3746, 16
        %v3842 = vrot.slane %v3840, 5
        %v3843 = vor.u32 %v3839, %v3842
        %v3844 = vrot.slane %v3843, 4
        %v3846 = vshll.u32 %v3747, 16
        %v3848 = vrot.slane %v3846, 5
        %v3849 = vsel %vm428, %v3844, %v3848
        %v3850 = vshrl.u32 %v3747, 16
        %v3852 = vrot.slane %v3850, 4
        %v3853 = vor.u32 %v3852, %v3848
        %v3854 = vrot.slane %v3853, 4
        %v3856 = vshll.u32 %v3748, 16
        %v3858 = vrot.slane %v3856, 5
        %v3859 = vsel %vm428, %v3854, %v3858
        %v3861 = vshrl.u32 %v3749, 16
        %v3863 = vrot.slane %v3861, 4
        %v3864 = vshll.u32 %v3749, 16
        %v3866 = vrot.slane %v3864, 5
        %v3867 = vor.u32 %v3863, %v3866
        %v3868 = vrot.slane %v3867, 4
        %v3870 = vshll.u32 %v3750, 16
        %v3872 = vrot.slane %v3870, 5
        %v3873 = vsel %vm428, %v3868, %v3872
        %v3874 = vshrl.u32 %v3750, 16
        %v3876 = vrot.slane %v3874, 4
        %v3877 = vor.u32 %v3876, %v3872
        %v3878 = vrot.slane %v3877, 4
        %v3880 = vshll.u32 %v3751, 16
        %v3882 = vrot.slane %v3880, 5
        %v3883 = vsel %vm428, %v3878, %v3882
        %v3885 = vshrl.u32 %v3752, 16
        %v3887 = vrot.slane %v3885, 4
        %v3888 = vshll.u32 %v3752, 16
        %v3890 = vrot.slane %v3888, 5
        %v3891 = vor.u32 %v3887, %v3890
        %v3892 = vrot.slane %v3891, 4
        %v3894 = vshll.u32 %v3753, 16
        %v3896 = vrot.slane %v3894, 5
        %v3897 = vsel %vm428, %v3892, %v3896
        %v3898 = vshrl.u32 %v3753, 16
        %v3900 = vrot.slane %v3898, 4
        %v3901 = vor.u32 %v3900, %v3896
        %v3902 = vrot.slane %v3901, 4
        %v3904 = vshll.u32 %v3754, 16
        %v3906 = vrot.slane %v3904, 5
        %v3907 = vsel %vm428, %v3902, %v3906
        %v3909 = vshrl.u32 %v3755, 16
        %v3911 = vrot.slane %v3909, 4
        %v3912 = vshll.u32 %v3755, 16
        %v3914 = vrot.slane %v3912, 5
        %v3915 = vor.u32 %v3911, %v3914
        %v3916 = vrot.slane %v3915, 4
        %v3918 = vshll.u32 %v3756, 16
        %v3920 = vrot.slane %v3918, 5
        %v3921 = vsel %vm428, %v3916, %v3920
        %v3922 = vshrl.u32 %v3756, 16
        %v3924 = vrot.slane %v3922, 4
        %v3925 = vor.u32 %v3924, %v3920
        %v3926 = vrot.slane %v3925, 4
        %v3928 = vshll.u32 %v3757, 16
        %v3930 = vrot.slane %v3928, 5
        %v3931 = vsel %vm428, %v3926, %v3930
        %v3933 = vshrl.u32 %v3758, 16
        %v3935 = vrot.slane %v3933, 4
        %v3936 = vshll.u32 %v3758, 16
        %v3938 = vrot.slane %v3936, 5
        %v3939 = vor.u32 %v3935, %v3938
        %v3940 = vrot.slane %v3939, 4
        %v3942 = vshll.u32 %v3759, 16
        %v3944 = vrot.slane %v3942, 5
        %v3945 = vsel %vm428, %v3940, %v3944
        %v3946 = vshrl.u32 %v3759, 16
        %v3948 = vrot.slane %v3946, 4
        %v3949 = vor.u32 %v3948, %v3944
        %v3950 = vrot.slane %v3949, 4
        %v3952 = vshll.u32 %v3760, 16
        %v3954 = vrot.slane %v3952, 5
        %v3955 = vsel %vm428, %v3950, %v3954
        %v3957 = vshrl.u32 %v3761, 16
        %v3959 = vrot.slane %v3957, 4
        %v3960 = vshll.u32 %v3761, 16
        %v3962 = vrot.slane %v3960, 5
        %v3963 = vor.u32 %v3959, %v3962
        %v3964 = vrot.slane %v3963, 4
        %v3966 = vshll.u32 %v3762, 16
        %v3968 = vrot.slane %v3966, 5
        %v3969 = vsel %vm428, %v3964, %v3968
        %v3970 = vshrl.u32 %v3762, 16
        %v3972 = vrot.slane %v3970, 4
        %v3973 = vor.u32 %v3972, %v3968
        %v3974 = vrot.slane %v3973, 4
        %v3976 = vshll.u32 %v3763, 16
        %v3978 = vrot.slane %v3976, 5
        %v3979 = vsel %vm428, %v3974, %v3978
        %v3981 = vshrl.u32 %v3764, 16
        %v3983 = vrot.slane %v3981, 4
        %v3984 = vshll.u32 %v3764, 16
        %v3986 = vrot.slane %v3984, 5
        %v3987 = vor.u32 %v3983, %v3986
        %v3988 = vrot.slane %v3987, 4
        %v3990 = vshll.u32 %v3765, 16
        %v3992 = vrot.slane %v3990, 5
        %v3993 = vsel %vm428, %v3988, %v3992
        %v3994 = vshrl.u32 %v3765, 16
        %v3996 = vrot.slane %v3994, 4
        %v3997 = vor.u32 %v3996, %v3992
        %v3998 = vrot.slane %v3997, 4
        %v4000 = vshll.u32 %v3766, 16
        %v4002 = vrot.slane %v4000, 5
        %v4003 = vsel %vm428, %v3998, %v4002
        %v4005 = vshrl.u32 %v3767, 16
        %v4007 = vrot.slane %v4005, 4
        %v4008 = vshll.u32 %v3767, 16
        %v4010 = vrot.slane %v4008, 5
        %v4011 = vor.u32 %v4007, %v4010
        %v4012 = vrot.slane %v4011, 4
        %v4014 = vshll.u32 %v3768, 16
        %v4016 = vrot.slane %v4014, 5
        %v4017 = vsel %vm428, %v4012, %v4016
        %v4018 = vshrl.u32 %v3768, 16
        %v4020 = vrot.slane %v4018, 4
        %v4021 = vor.u32 %v4020, %v4016
        %v4022 = vrot.slane %v4021, 4
        %v4024 = vshll.u32 %v3769, 16
        %v4026 = vrot.slane %v4024, 5
        %v4027 = vsel %vm428, %v4022, %v4026
        %v4029 = vshrl.u32 %v3770, 16
        %v4031 = vrot.slane %v4029, 4
        %v4032 = vshll.u32 %v3770, 16
        %v4034 = vrot.slane %v4032, 5
        %v4035 = vor.u32 %v4031, %v4034
        %v4036 = vrot.slane %v4035, 4
        %v4038 = vshll.u32 %v3771, 16
        %v4040 = vrot.slane %v4038, 5
        %v4041 = vsel %vm428, %v4036, %v4040
        %v4042 = vshrl.u32 %v3771, 16
        %v4044 = vrot.slane %v4042, 4
        %v4045 = vor.u32 %v4044, %v4040
        %v4046 = vrot.slane %v4045, 4
        %v4048 = vshll.u32 %v3772, 16
        %v4050 = vrot.slane %v4048, 5
        %v4051 = vsel %vm428, %v4046, %v4050
        %v4053 = vshrl.u32 %v3773, 16
        %v4055 = vrot.slane %v4053, 4
        %v4056 = vshll.u32 %v3773, 16
        %v4058 = vrot.slane %v4056, 5
        %v4059 = vor.u32 %v4055, %v4058
        %v4060 = vrot.slane %v4059, 4
        %v4062 = vshll.u32 %v3774, 16
        %v4064 = vrot.slane %v4062, 5
        %v4065 = vsel %vm428, %v4060, %v4064
        %v4066 = vshrl.u32 %v3774, 16
        %v4068 = vrot.slane %v4066, 4
        %v4069 = vor.u32 %v4068, %v4064
        %v4070 = vrot.slane %v4069, 4
        %v4072 = vshll.u32 %v3775, 16
        %v4074 = vrot.slane %v4072, 5
        %v4075 = vsel %vm428, %v4070, %v4074
        %v4077 = vshrl.u32 %v3776, 16
        %v4079 = vrot.slane %v4077, 4
        %v4080 = vshll.u32 %v3776, 16
        %v4082 = vrot.slane %v4080, 5
        %v4083 = vor.u32 %v4079, %v4082
        %v4084 = vrot.slane %v4083, 4
        %v4086 = vshll.u32 %v3777, 16
        %v4088 = vrot.slane %v4086, 5
        %v4089 = vsel %vm428, %v4084, %v4088
        %v4090 = vshrl.u32 %v3777, 16
        %v4092 = vrot.slane %v4090, 4
        %v4093 = vor.u32 %v4092, %v4088
        %v4094 = vrot.slane %v4093, 4
        %v4096 = vshll.u32 %v3778, 16
        %v4098 = vrot.slane %v4096, 5
        %v4099 = vsel %vm428, %v4094, %v4098
        %v4101 = vshrl.u32 %v3779, 16
        %v4103 = vrot.slane %v4101, 4
        %v4104 = vshll.u32 %v3779, 16
        %v4106 = vrot.slane %v4104, 5
        %v4107 = vor.u32 %v4103, %v4106
        %v4108 = vrot.slane %v4107, 4
        %v4110 = vshll.u32 %v3780, 16
        %v4112 = vrot.slane %v4110, 5
        %v4113 = vsel %vm428, %v4108, %v4112
        %v4114 = vshrl.u32 %v3780, 16
        %v4116 = vrot.slane %v4114, 4
        %v4117 = vor.u32 %v4116, %v4112
        %v4118 = vrot.slane %v4117, 4
        %v4120 = vshll.u32 %v3781, 16
        %v4122 = vrot.slane %v4120, 5
        %v4123 = vsel %vm428, %v4118, %v4122
        %v4125 = vshrl.u32 %v3782, 16
        %v4127 = vrot.slane %v4125, 4
        %v4128 = vshll.u32 %v3782, 16
        %v4130 = vrot.slane %v4128, 5
        %v4131 = vor.u32 %v4127, %v4130
        %v4132 = vrot.slane %v4131, 4
        %v4134 = vshll.u32 %v3783, 16
        %v4136 = vrot.slane %v4134, 5
        %v4137 = vsel %vm428, %v4132, %v4136
        %v4138 = vshrl.u32 %v3783, 16
        %v4140 = vrot.slane %v4138, 4
        %v4141 = vor.u32 %v4140, %v4136
        %v4142 = vrot.slane %v4141, 4
        %v4144 = vshll.u32 %v3784, 16
        %v4146 = vrot.slane %v4144, 5
        %v4147 = vsel %vm428, %v4142, %v4146
        %v4149 = vshrl.u32 %v3785, 16
        %v4151 = vrot.slane %v4149, 4
        %v4152 = vshll.u32 %v3785, 16
        %v4154 = vrot.slane %v4152, 5
        %v4155 = vor.u32 %v4151, %v4154
        %v4156 = vrot.slane %v4155, 4
        %v4158 = vshll.u32 %v3786, 16
        %v4160 = vrot.slane %v4158, 5
        %v4161 = vsel %vm428, %v4156, %v4160
        %v4162 = vshrl.u32 %v3786, 16
        %v4164 = vrot.slane %v4162, 4
        %v4165 = vor.u32 %v4164, %v4160
        %v4166 = vrot.slane %v4165, 4
        %v4168 = vshll.u32 %v3787, 16
        %v4170 = vrot.slane %v4168, 5
        %v4171 = vsel %vm428, %v4166, %v4170
        %s4172 = scalar_lea.vmem [#allocation6], 14
        %v4173 = vld [vmem:[%s4172] sm:$0x3]
        %v4174 = vunpack.c.l.b16 %v3801
        %v4175 = vunpack.c.l.b16 %v3811
        %v4176 = vunpack.c.l.b16 %v3825
        %v4177 = vunpack.c.l.b16 %v3835
        %v4178 = vunpack.c.l.b16 %v3849
        %v4179 = vunpack.c.l.b16 %v3859
        %v4180 = vunpack.c.l.b16 %v3873
        %v4181 = vunpack.c.l.b16 %v3883
        %v4182 = vunpack.c.l.b16 %v3897
        %v4183 = vunpack.c.l.b16 %v3907
        %v4184 = vunpack.c.l.b16 %v3921
        %v4185 = vunpack.c.l.b16 %v3931
        %v4186 = vunpack.c.l.b16 %v3945
        %v4187 = vunpack.c.l.b16 %v3955
        %v4188 = vunpack.c.l.b16 %v3969
        %v4189 = vunpack.c.l.b16 %v3979
        %v4190 = vunpack.c.l.b16 %v3993
        %v4191 = vunpack.c.l.b16 %v4003
        %v4192 = vunpack.c.l.b16 %v4017
        %v4193 = vunpack.c.l.b16 %v4027
        %v4194 = vunpack.c.l.b16 %v4041
        %v4195 = vunpack.c.l.b16 %v4051
        %v4196 = vunpack.c.l.b16 %v4065
        %v4197 = vunpack.c.l.b16 %v4075
        %v4198 = vunpack.c.l.b16 %v4089
        %v4199 = vunpack.c.l.b16 %v4099
        %v4200 = vunpack.c.l.b16 %v4113
        %v4201 = vunpack.c.l.b16 %v4123
        %v4202 = vunpack.c.l.b16 %v4137
        %v4203 = vunpack.c.l.b16 %v4147
        %v4204 = vunpack.c.l.b16 %v4161
        %v4205 = vunpack.c.l.b16 %v4171
        %v4206 = vpack.c.b16 %v4175, %v4174
        %v4207 = vpack.c.b16 %v4177, %v4176
        %v4208 = vpack.c.b16 %v4179, %v4178
        %v4209 = vpack.c.b16 %v4181, %v4180
        %v4210 = vpack.c.b16 %v4183, %v4182
        %v4211 = vpack.c.b16 %v4185, %v4184
        %v4212 = vpack.c.b16 %v4187, %v4186
        %v4213 = vpack.c.b16 %v4189, %v4188
        %v4214 = vpack.c.b16 %v4191, %v4190
        %v4215 = vpack.c.b16 %v4193, %v4192
        %v4216 = vpack.c.b16 %v4195, %v4194
        %v4217 = vpack.c.b16 %v4197, %v4196
        %v4218 = vpack.c.b16 %v4199, %v4198
        %v4219 = vpack.c.b16 %v4201, %v4200
        %v4220 = vpack.c.b16 %v4203, %v4202
        %v4221 = vpack.c.b16 %v4205, %v4204
        %v4223 = vsel %vm863, %v4206, 0
        %v4226 = vsel %vm863, %v4207, 0
        %v4229 = vsel %vm863, %v4208, 0
        %v4232 = vsel %vm863, %v4209, 0
        %v4235 = vsel %vm863, %v4210, 0
        %v4238 = vsel %vm863, %v4211, 0
        %v4241 = vsel %vm863, %v4212, 0
        %v4244 = vsel %vm863, %v4213, 0
        %v4247 = vsel %vm863, %v4214, 0
        %v4250 = vsel %vm863, %v4215, 0
        %v4253 = vsel %vm863, %v4216, 0
        %v4256 = vsel %vm863, %v4217, 0
        %v4259 = vsel %vm863, %v4218, 0
        %v4262 = vsel %vm863, %v4219, 0
        %v4265 = vsel %vm863, %v4220, 0
        %v4268 = vsel %vm863, %v4221, 0
        %v4271 = vsel %vm912, %v4173, 0
        %4273 = vmatprep.subr.bf16.mxu0 0
        %4274 = vmatpush1.bf16.msra.mxu0 %v4271
        %4275 = vmatprep.subr.bf16.mxu0 0
        %4276 = vmatpush1.bf16.msra.mxu0 0
        %4277 = vmatprep.subr.bf16.mxu0 0
        %4278 = vmatpush1.bf16.msra.mxu0 0
        %4279 = vmatprep.subr.bf16.mxu0 0
        %4280 = vmatpush1.bf16.msra.mxu0 0
        %4281 = vmatprep.subr.bf16.mxu0 0
        %4282 = vmatpush1.bf16.msra.mxu0 0
        %4283 = vmatprep.subr.bf16.mxu0 0
        %4284 = vmatpush1.bf16.msra.mxu0 0
        %4285 = vmatprep.subr.bf16.mxu0 0
        %4286 = vmatpush1.bf16.msra.mxu0 0
        %4287 = vmatprep.subr.bf16.mxu0 0
        %4288 = vmatpush1.bf16.msra.mxu0 0
        %4289 = vmatprep.subr.bf16.mxu0 0
        %4290 = vmatpush1.bf16.msra.mxu0 0
        %4291 = vmatprep.subr.bf16.mxu0 0
        %4292 = vmatpush1.bf16.msra.mxu0 0
        %4293 = vmatprep.subr.bf16.mxu0 0
        %4294 = vmatpush1.bf16.msra.mxu0 0
        %4295 = vmatprep.subr.bf16.mxu0 0
        %4296 = vmatpush1.bf16.msra.mxu0 0
        %4297 = vmatprep.subr.bf16.mxu0 0
        %4298 = vmatpush1.bf16.msra.mxu0 0
        %4299 = vmatprep.subr.bf16.mxu0 0
        %4300 = vmatpush1.bf16.msra.mxu0 0
        %4301 = vmatprep.subr.bf16.mxu0 0
        %4302 = vmatpush1.bf16.msra.mxu0 0
        %4303 = vmatprep.subr.bf16.mxu0 0
        %4304 = vmatpush1.bf16.msra.mxu0 0
        %4305 = vmatprep.mubr.bf16.mxu0 0
        %4306 = vmatmul.mubr.bf16.gmra.mrb[0].mxu0 %v4223
        %v4307 = vpop.f32.mrb[0].mxu0
        %v4308 = vadd.f32 0.0, %v4307
        %v4309 = vpop.f32.mrb[0].mxu0
        %v4310 = vpop.f32.mrb[0].mxu0
        %v4311 = vadd.f32 0.0, %v4310
        %v4312 = vpop.f32.mrb[0].mxu0
        %4313 = vmatprep.mubr.bf16.mxu0 0
        %4314 = vmatmul.mubr.bf16.gmra.mrb[0].mxu0 %v4226
        %v4315 = vpop.f32.mrb[0].mxu0
        %v4316 = vadd.f32 0.0, %v4315
        %v4317 = vpop.f32.mrb[0].mxu0
        %v4318 = vpop.f32.mrb[0].mxu0
        %v4319 = vadd.f32 0.0, %v4318
        %v4320 = vpop.f32.mrb[0].mxu0
        %4321 = vmatprep.mubr.bf16.mxu0 0
        %4322 = vmatmul.mubr.bf16.gmra.mrb[0].mxu0 %v4229
        %v4323 = vpop.f32.mrb[0].mxu0
        %v4324 = vadd.f32 0.0, %v4323
        %v4325 = vpop.f32.mrb[0].mxu0
        %v4326 = vpop.f32.mrb[0].mxu0
        %v4327 = vadd.f32 0.0, %v4326
        %v4328 = vpop.f32.mrb[0].mxu0
        %4329 = vmatprep.mubr.bf16.mxu0 0
        %4330 = vmatmul.mubr.bf16.gmra.mrb[0].mxu0 %v4232
        %v4331 = vpop.f32.mrb[0].mxu0
        %v4332 = vadd.f32 0.0, %v4331
        %v4333 = vpop.f32.mrb[0].mxu0
        %v4334 = vpop.f32.mrb[0].mxu0
        %v4335 = vadd.f32 0.0, %v4334
        %v4336 = vpop.f32.mrb[0].mxu0
        %4337 = vmatprep.mubr.bf16.mxu0 0
        %4338 = vmatmul.mubr.bf16.gmra.mrb[0].mxu0 %v4235
        %v4339 = vpop.f32.mrb[0].mxu0
        %v4340 = vadd.f32 0.0, %v4339
        %v4341 = vpop.f32.mrb[0].mxu0
        %v4342 = vpop.f32.mrb[0].mxu0
        %v4343 = vadd.f32 0.0, %v4342
        %v4344 = vpop.f32.mrb[0].mxu0
        %4345 = vmatprep.mubr.bf16.mxu0 0
        %4346 = vmatmul.mubr.bf16.gmra.mrb[0].mxu0 %v4238
        %v4347 = vpop.f32.mrb[0].mxu0
        %v4348 = vadd.f32 0.0, %v4347
        %v4349 = vpop.f32.mrb[0].mxu0
        %v4350 = vpop.f32.mrb[0].mxu0
        %v4351 = vadd.f32 0.0, %v4350
        %v4352 = vpop.f32.mrb[0].mxu0
        %4353 = vmatprep.mubr.bf16.mxu0 0
        %4354 = vmatmul.mubr.bf16.gmra.mrb[0].mxu0 %v4241
        %v4355 = vpop.f32.mrb[0].mxu0
        %v4356 = vadd.f32 0.0, %v4355
        %v4357 = vpop.f32.mrb[0].mxu0
        %v4358 = vpop.f32.mrb[0].mxu0
        %v4359 = vadd.f32 0.0, %v4358
        %v4360 = vpop.f32.mrb[0].mxu0
        %4361 = vmatprep.mubr.bf16.mxu0 0
        %4362 = vmatmul.mubr.bf16.gmra.mrb[0].mxu0 %v4244
        %v4363 = vpop.f32.mrb[0].mxu0
        %v4364 = vadd.f32 0.0, %v4363
        %v4365 = vpop.f32.mrb[0].mxu0
        %v4366 = vpop.f32.mrb[0].mxu0
        %v4367 = vadd.f32 0.0, %v4366
        %v4368 = vpop.f32.mrb[0].mxu0
        %4369 = vmatprep.mubr.bf16.mxu0 0
        %4370 = vmatmul.mubr.bf16.gmra.mrb[0].mxu0 %v4247
        %v4371 = vpop.f32.mrb[0].mxu0
        %v4372 = vadd.f32 0.0, %v4371
        %v4373 = vpop.f32.mrb[0].mxu0
        %v4374 = vpop.f32.mrb[0].mxu0
        %v4375 = vadd.f32 0.0, %v4374
        %v4376 = vpop.f32.mrb[0].mxu0
        %4377 = vmatprep.mubr.bf16.mxu0 0
        %4378 = vmatmul.mubr.bf16.gmra.mrb[0].mxu0 %v4250
        %v4379 = vpop.f32.mrb[0].mxu0
        %v4380 = vadd.f32 0.0, %v4379
        %v4381 = vpop.f32.mrb[0].mxu0
        %v4382 = vpop.f32.mrb[0].mxu0
        %v4383 = vadd.f32 0.0, %v4382
        %v4384 = vpop.f32.mrb[0].mxu0
        %4385 = vmatprep.mubr.bf16.mxu0 0
        %4386 = vmatmul.mubr.bf16.gmra.mrb[0].mxu0 %v4253
        %v4387 = vpop.f32.mrb[0].mxu0
        %v4388 = vadd.f32 0.0, %v4387
        %v4389 = vpop.f32.mrb[0].mxu0
        %v4390 = vpop.f32.mrb[0].mxu0
        %v4391 = vadd.f32 0.0, %v4390
        %v4392 = vpop.f32.mrb[0].mxu0
        %4393 = vmatprep.mubr.bf16.mxu0 0
        %4394 = vmatmul.mubr.bf16.gmra.mrb[0].mxu0 %v4256
        %v4395 = vpop.f32.mrb[0].mxu0
        %v4396 = vadd.f32 0.0, %v4395
        %v4397 = vpop.f32.mrb[0].mxu0
        %v4398 = vpop.f32.mrb[0].mxu0
        %v4399 = vadd.f32 0.0, %v4398
        %v4400 = vpop.f32.mrb[0].mxu0
        %4401 = vmatprep.mubr.bf16.mxu0 0
        %4402 = vmatmul.mubr.bf16.gmra.mrb[0].mxu0 %v4259
        %v4403 = vpop.f32.mrb[0].mxu0
        %v4404 = vadd.f32 0.0, %v4403
        %v4405 = vpop.f32.mrb[0].mxu0
        %v4406 = vpop.f32.mrb[0].mxu0
        %v4407 = vadd.f32 0.0, %v4406
        %v4408 = vpop.f32.mrb[0].mxu0
        %4409 = vmatprep.mubr.bf16.mxu0 0
        %4410 = vmatmul.mubr.bf16.gmra.mrb[0].mxu0 %v4262
        %v4411 = vpop.f32.mrb[0].mxu0
        %v4412 = vadd.f32 0.0, %v4411
        %v4413 = vpop.f32.mrb[0].mxu0
        %v4414 = vpop.f32.mrb[0].mxu0
        %v4415 = vadd.f32 0.0, %v4414
        %v4416 = vpop.f32.mrb[0].mxu0
        %4417 = vmatprep.mubr.bf16.mxu0 0
        %4418 = vmatmul.mubr.bf16.gmra.mrb[0].mxu0 %v4265
        %v4419 = vpop.f32.mrb[0].mxu0
        %v4420 = vadd.f32 0.0, %v4419
        %v4421 = vpop.f32.mrb[0].mxu0
        %v4422 = vpop.f32.mrb[0].mxu0
        %v4423 = vadd.f32 0.0, %v4422
        %v4424 = vpop.f32.mrb[0].mxu0
        %4425 = vmatprep.mubr.bf16.mxu0 0
        %4426 = vmatmul.mubr.bf16.gmra.mrb[0].mxu0 %v4268
        %v4427 = vpop.f32.mrb[0].mxu0
        %v4428 = vadd.f32 0.0, %v4427
        %v4429 = vpop.f32.mrb[0].mxu0
        %v4430 = vpop.f32.mrb[0].mxu0
        %v4431 = vadd.f32 0.0, %v4430
        %v4432 = vpop.f32.mrb[0].mxu0
        %4433 = vdwg.mxu0
        %v4434 = vadd.f32 %v3708, %v4308
        %v4435 = vadd.f32 %v3709, %v4311
        %v4436 = vadd.f32 %v3710, %v4316
        %v4437 = vadd.f32 %v3711, %v4319
        %v4438 = vadd.f32 %v3712, %v4324
        %v4439 = vadd.f32 %v3713, %v4327
        %v4440 = vadd.f32 %v3714, %v4332
        %v4441 = vadd.f32 %v3715, %v4335
        %v4442 = vadd.f32 %v3716, %v4340
        %v4443 = vadd.f32 %v3717, %v4343
        %v4444 = vadd.f32 %v3718, %v4348
        %v4445 = vadd.f32 %v3719, %v4351
        %v4446 = vadd.f32 %v3720, %v4356
        %v4447 = vadd.f32 %v3721, %v4359
        %v4448 = vadd.f32 %v3722, %v4364
        %v4449 = vadd.f32 %v3723, %v4367
        %v4450 = vadd.f32 %v3724, %v4372
        %v4451 = vadd.f32 %v3725, %v4375
        %v4452 = vadd.f32 %v3726, %v4380
        %v4453 = vadd.f32 %v3727, %v4383
        %v4454 = vadd.f32 %v3728, %v4388
        %v4455 = vadd.f32 %v3729, %v4391
        %v4456 = vadd.f32 %v3730, %v4396
        %v4457 = vadd.f32 %v3731, %v4399
        %v4458 = vadd.f32 %v3732, %v4404
        %v4459 = vadd.f32 %v3733, %v4407
        %v4460 = vadd.f32 %v3734, %v4412
        %v4461 = vadd.f32 %v3735, %v4415
        %v4462 = vadd.f32 %v3736, %v4420
        %v4463 = vadd.f32 %v3737, %v4423
        %v4464 = vadd.f32 %v3738, %v4428
        %v4465 = vadd.f32 %v3739, %v4431
        %v4466 = vld [vmem:[%s3381] sm:$0xe]
        %v4467 = vld [vmem:[%s3381 + $0xc] sm:$0xe]
        %v4468 = vld [vmem:[%s3381 + $0x18] sm:$0xe]
        %v4469 = vld [vmem:[%s3381 + $0x24] sm:$0xe]
        %v4470 = vld [vmem:[%s3381 + $0x30] sm:$0xe]
        %v4471 = vld [vmem:[%s3381 + $0x3c] sm:$0xe]
        %v4472 = vld [vmem:[%s3381 + $0x48] sm:$0xe]
        %v4473 = vld [vmem:[%s3381 + $0x54] sm:$0xe]
        %v4474 = vld [vmem:[%s3381 + $0x60] sm:$0xe]
        %v4475 = vld [vmem:[%s3381 + $0x6c] sm:$0xe]
        %v4476 = vld [vmem:[%s3381 + $0x78] sm:$0xe]
        %v4477 = vld [vmem:[%s3381 + $0x84] sm:$0xe]
        %v4478 = vld [vmem:[%s3381 + $0x90] sm:$0xe]
        %v4479 = vld [vmem:[%s3381 + $0x9c] sm:$0xe]
        %v4480 = vld [vmem:[%s3381 + $0xa8] sm:$0xe]
        %v4481 = vld [vmem:[%s3381 + $0xb4] sm:$0xe]
        %v4530 = vrot.slane %v4466, 5
        %v4531 = vrot.slane %v4530, 4
        %v4532 = vrot.slane %v3741, 5
        %v4533 = vsel %vm1419, %v4531, %v4532
        %v4534 = vrot.slane %v4532, 4
        %v4535 = vrot.slane %v3742, 5
        %v4536 = vsel %vm1419, %v4534, %v4535
        %v4537 = vrot.slane %v4467, 5
        %v4538 = vrot.slane %v4537, 4
        %v4539 = vrot.slane %v3744, 5
        %v4540 = vsel %vm1419, %v4538, %v4539
        %v4541 = vrot.slane %v4539, 4
        %v4542 = vrot.slane %v3745, 5
        %v4543 = vsel %vm1419, %v4541, %v4542
        %v4544 = vrot.slane %v4468, 5
        %v4545 = vrot.slane %v4544, 4
        %v4546 = vrot.slane %v3747, 5
        %v4547 = vsel %vm1419, %v4545, %v4546
        %v4548 = vrot.slane %v4546, 4
        %v4549 = vrot.slane %v3748, 5
        %v4550 = vsel %vm1419, %v4548, %v4549
        %v4551 = vrot.slane %v4469, 5
        %v4552 = vrot.slane %v4551, 4
        %v4553 = vrot.slane %v3750, 5
        %v4554 = vsel %vm1419, %v4552, %v4553
        %v4555 = vrot.slane %v4553, 4
        %v4556 = vrot.slane %v3751, 5
        %v4557 = vsel %vm1419, %v4555, %v4556
        %v4558 = vrot.slane %v4470, 5
        %v4559 = vrot.slane %v4558, 4
        %v4560 = vrot.slane %v3753, 5
        %v4561 = vsel %vm1419, %v4559, %v4560
        %v4562 = vrot.slane %v4560, 4
        %v4563 = vrot.slane %v3754, 5
        %v4564 = vsel %vm1419, %v4562, %v4563
        %v4565 = vrot.slane %v4471, 5
        %v4566 = vrot.slane %v4565, 4
        %v4567 = vrot.slane %v3756, 5
        %v4568 = vsel %vm1419, %v4566, %v4567
        %v4569 = vrot.slane %v4567, 4
        %v4570 = vrot.slane %v3757, 5
        %v4571 = vsel %vm1419, %v4569, %v4570
        %v4572 = vrot.slane %v4472, 5
        %v4573 = vrot.slane %v4572, 4
        %v4574 = vrot.slane %v3759, 5
        %v4575 = vsel %vm1419, %v4573, %v4574
        %v4576 = vrot.slane %v4574, 4
        %v4577 = vrot.slane %v3760, 5
        %v4578 = vsel %vm1419, %v4576, %v4577
        %v4579 = vrot.slane %v4473, 5
        %v4580 = vrot.slane %v4579, 4
        %v4581 = vrot.slane %v3762, 5
        %v4582 = vsel %vm1419, %v4580, %v4581
        %v4583 = vrot.slane %v4581, 4
        %v4584 = vrot.slane %v3763, 5
        %v4585 = vsel %vm1419, %v4583, %v4584
        %v4586 = vrot.slane %v4474, 5
        %v4587 = vrot.slane %v4586, 4
        %v4588 = vrot.slane %v3765, 5
        %v4589 = vsel %vm1419, %v4587, %v4588
        %v4590 = vrot.slane %v4588, 4
        %v4591 = vrot.slane %v3766, 5
        %v4592 = vsel %vm1419, %v4590, %v4591
        %v4593 = vrot.slane %v4475, 5
        %v4594 = vrot.slane %v4593, 4
        %v4595 = vrot.slane %v3768, 5
        %v4596 = vsel %vm1419, %v4594, %v4595
        %v4597 = vrot.slane %v4595, 4
        %v4598 = vrot.slane %v3769, 5
        %v4599 = vsel %vm1419, %v4597, %v4598
        %v4600 = vrot.slane %v4476, 5
        %v4601 = vrot.slane %v4600, 4
        %v4602 = vrot.slane %v3771, 5
        %v4603 = vsel %vm1419, %v4601, %v4602
        %v4604 = vrot.slane %v4602, 4
        %v4605 = vrot.slane %v3772, 5
        %v4606 = vsel %vm1419, %v4604, %v4605
        %v4607 = vrot.slane %v4477, 5
        %v4608 = vrot.slane %v4607, 4
        %v4609 = vrot.slane %v3774, 5
        %v4610 = vsel %vm1419, %v4608, %v4609
        %v4611 = vrot.slane %v4609, 4
        %v4612 = vrot.slane %v3775, 5
        %v4613 = vsel %vm1419, %v4611, %v4612
        %v4614 = vrot.slane %v4478, 5
        %v4615 = vrot.slane %v4614, 4
        %v4616 = vrot.slane %v3777, 5
        %v4617 = vsel %vm1419, %v4615, %v4616
        %v4618 = vrot.slane %v4616, 4
        %v4619 = vrot.slane %v3778, 5
        %v4620 = vsel %vm1419, %v4618, %v4619
        %v4621 = vrot.slane %v4479, 5
        %v4622 = vrot.slane %v4621, 4
        %v4623 = vrot.slane %v3780, 5
        %v4624 = vsel %vm1419, %v4622, %v4623
        %v4625 = vrot.slane %v4623, 4
        %v4626 = vrot.slane %v3781, 5
        %v4627 = vsel %vm1419, %v4625, %v4626
        %v4628 = vrot.slane %v4480, 5
        %v4629 = vrot.slane %v4628, 4
        %v4630 = vrot.slane %v3783, 5
        %v4631 = vsel %vm1419, %v4629, %v4630
        %v4632 = vrot.slane %v4630, 4
        %v4633 = vrot.slane %v3784, 5
        %v4634 = vsel %vm1419, %v4632, %v4633
        %v4635 = vrot.slane %v4481, 5
        %v4636 = vrot.slane %v4635, 4
        %v4637 = vrot.slane %v3786, 5
        %v4638 = vsel %vm1419, %v4636, %v4637
        %v4639 = vrot.slane %v4637, 4
        %v4640 = vrot.slane %v3787, 5
        %v4641 = vsel %vm1419, %v4639, %v4640
        %s4642 = scalar_lea.vmem [#allocation6], 16
        %v4643 = vld [vmem:[%s4642] sm:$0x3]
        %v4644 = vunpack.c.l.b16 %v4533
        %v4645 = vunpack.c.l.b16 %v4536
        %v4646 = vunpack.c.l.b16 %v4540
        %v4647 = vunpack.c.l.b16 %v4543
        %v4648 = vunpack.c.l.b16 %v4547
        %v4649 = vunpack.c.l.b16 %v4550
        %v4650 = vunpack.c.l.b16 %v4554
        %v4651 = vunpack.c.l.b16 %v4557
        %v4652 = vunpack.c.l.b16 %v4561
        %v4653 = vunpack.c.l.b16 %v4564
        %v4654 = vunpack.c.l.b16 %v4568
        %v4655 = vunpack.c.l.b16 %v4571
        %v4656 = vunpack.c.l.b16 %v4575
        %v4657 = vunpack.c.l.b16 %v4578
        %v4658 = vunpack.c.l.b16 %v4582
        %v4659 = vunpack.c.l.b16 %v4585
        %v4660 = vunpack.c.l.b16 %v4589
        %v4661 = vunpack.c.l.b16 %v4592
        %v4662 = vunpack.c.l.b16 %v4596
        %v4663 = vunpack.c.l.b16 %v4599
        %v4664 = vunpack.c.l.b16 %v4603
        %v4665 = vunpack.c.l.b16 %v4606
        %v4666 = vunpack.c.l.b16 %v4610
        %v4667 = vunpack.c.l.b16 %v4613
        %v4668 = vunpack.c.l.b16 %v4617
        %v4669 = vunpack.c.l.b16 %v4620
        %v4670 = vunpack.c.l.b16 %v4624
        %v4671 = vunpack.c.l.b16 %v4627
        %v4672 = vunpack.c.l.b16 %v4631
        %v4673 = vunpack.c.l.b16 %v4634
        %v4674 = vunpack.c.l.b16 %v4638
        %v4675 = vunpack.c.l.b16 %v4641
        %v4676 = vpack.c.b16 %v4645, %v4644
        %v4677 = vpack.c.b16 %v4647, %v4646
        %v4678 = vpack.c.b16 %v4649, %v4648
        %v4679 = vpack.c.b16 %v4651, %v4650
        %v4680 = vpack.c.b16 %v4653, %v4652
        %v4681 = vpack.c.b16 %v4655, %v4654
        %v4682 = vpack.c.b16 %v4657, %v4656
        %v4683 = vpack.c.b16 %v4659, %v4658
        %v4684 = vpack.c.b16 %v4661, %v4660
        %v4685 = vpack.c.b16 %v4663, %v4662
        %v4686 = vpack.c.b16 %v4665, %v4664
        %v4687 = vpack.c.b16 %v4667, %v4666
        %v4688 = vpack.c.b16 %v4669, %v4668
        %v4689 = vpack.c.b16 %v4671, %v4670
        %v4690 = vpack.c.b16 %v4673, %v4672
        %v4691 = vpack.c.b16 %v4675, %v4674
        %v4693 = vsel %vm863, %v4676, 0
        %v4696 = vsel %vm863, %v4677, 0
        %v4699 = vsel %vm863, %v4678, 0
        %v4702 = vsel %vm863, %v4679, 0
        %v4705 = vsel %vm863, %v4680, 0
        %v4708 = vsel %vm863, %v4681, 0
        %v4711 = vsel %vm863, %v4682, 0
        %v4714 = vsel %vm863, %v4683, 0
        %v4717 = vsel %vm863, %v4684, 0
        %v4720 = vsel %vm863, %v4685, 0
        %v4723 = vsel %vm863, %v4686, 0
        %v4726 = vsel %vm863, %v4687, 0
        %v4729 = vsel %vm863, %v4688, 0
        %v4732 = vsel %vm863, %v4689, 0
        %v4735 = vsel %vm863, %v4690, 0
        %v4738 = vsel %vm863, %v4691, 0
        %v4741 = vsel %vm912, %v4643, 0
        %4743 = vmatprep.subr.bf16.mxu0 0
        %4744 = vmatpush1.bf16.msra.mxu0 %v4741
        %4745 = vmatprep.subr.bf16.mxu0 0
        %4746 = vmatpush1.bf16.msra.mxu0 0
        %4747 = vmatprep.subr.bf16.mxu0 0
        %4748 = vmatpush1.bf16.msra.mxu0 0
        %4749 = vmatprep.subr.bf16.mxu0 0
        %4750 = vmatpush1.bf16.msra.mxu0 0
        %4751 = vmatprep.subr.bf16.mxu0 0
        %4752 = vmatpush1.bf16.msra.mxu0 0
        %4753 = vmatprep.subr.bf16.mxu0 0
        %4754 = vmatpush1.bf16.msra.mxu0 0
        %4755 = vmatprep.subr.bf16.mxu0 0
        %4756 = vmatpush1.bf16.msra.mxu0 0
        %4757 = vmatprep.subr.bf16.mxu0 0
        %4758 = vmatpush1.bf16.msra.mxu0 0
        %4759 = vmatprep.subr.bf16.mxu0 0
        %4760 = vmatpush1.bf16.msra.mxu0 0
        %4761 = vmatprep.subr.bf16.mxu0 0
        %4762 = vmatpush1.bf16.msra.mxu0 0
        %4763 = vmatprep.subr.bf16.mxu0 0
        %4764 = vmatpush1.bf16.msra.mxu0 0
        %4765 = vmatprep.subr.bf16.mxu0 0
        %4766 = vmatpush1.bf16.msra.mxu0 0
        %4767 = vmatprep.subr.bf16.mxu0 0
        %4768 = vmatpush1.bf16.msra.mxu0 0
        %4769 = vmatprep.subr.bf16.mxu0 0
        %4770 = vmatpush1.bf16.msra.mxu0 0
        %4771 = vmatprep.subr.bf16.mxu0 0
        %4772 = vmatpush1.bf16.msra.mxu0 0
        %4773 = vmatprep.subr.bf16.mxu0 0
        %4774 = vmatpush1.bf16.msra.mxu0 0
        %4775 = vmatprep.mubr.bf16.mxu0 0
        %4776 = vmatmul.mubr.bf16.gmra.mrb[0].mxu0 %v4693
        %v4777 = vpop.f32.mrb[0].mxu0
        %v4778 = vadd.f32 0.0, %v4777
        %v4779 = vpop.f32.mrb[0].mxu0
        %v4780 = vpop.f32.mrb[0].mxu0
        %v4781 = vadd.f32 0.0, %v4780
        %v4782 = vpop.f32.mrb[0].mxu0
        %4783 = vmatprep.mubr.bf16.mxu0 0
        %4784 = vmatmul.mubr.bf16.gmra.mrb[0].mxu0 %v4696
        %v4785 = vpop.f32.mrb[0].mxu0
        %v4786 = vadd.f32 0.0, %v4785
        %v4787 = vpop.f32.mrb[0].mxu0
        %v4788 = vpop.f32.mrb[0].mxu0
        %v4789 = vadd.f32 0.0, %v4788
        %v4790 = vpop.f32.mrb[0].mxu0
        %4791 = vmatprep.mubr.bf16.mxu0 0
        %4792 = vmatmul.mubr.bf16.gmra.mrb[0].mxu0 %v4699
        %v4793 = vpop.f32.mrb[0].mxu0
        %v4794 = vadd.f32 0.0, %v4793
        %v4795 = vpop.f32.mrb[0].mxu0
        %v4796 = vpop.f32.mrb[0].mxu0
        %v4797 = vadd.f32 0.0, %v4796
        %v4798 = vpop.f32.mrb[0].mxu0
        %4799 = vmatprep.mubr.bf16.mxu0 0
        %4800 = vmatmul.mubr.bf16.gmra.mrb[0].mxu0 %v4702
        %v4801 = vpop.f32.mrb[0].mxu0
        %v4802 = vadd.f32 0.0, %v4801
        %v4803 = vpop.f32.mrb[0].mxu0
        %v4804 = vpop.f32.mrb[0].mxu0
        %v4805 = vadd.f32 0.0, %v4804
        %v4806 = vpop.f32.mrb[0].mxu0
        %4807 = vmatprep.mubr.bf16.mxu0 0
        %4808 = vmatmul.mubr.bf16.gmra.mrb[0].mxu0 %v4705
        %v4809 = vpop.f32.mrb[0].mxu0
        %v4810 = vadd.f32 0.0, %v4809
        %v4811 = vpop.f32.mrb[0].mxu0
        %v4812 = vpop.f32.mrb[0].mxu0
        %v4813 = vadd.f32 0.0, %v4812
        %v4814 = vpop.f32.mrb[0].mxu0
        %4815 = vmatprep.mubr.bf16.mxu0 0
        %4816 = vmatmul.mubr.bf16.gmra.mrb[0].mxu0 %v4708
        %v4817 = vpop.f32.mrb[0].mxu0
        %v4818 = vadd.f32 0.0, %v4817
        %v4819 = vpop.f32.mrb[0].mxu0
        %v4820 = vpop.f32.mrb[0].mxu0
        %v4821 = vadd.f32 0.0, %v4820
        %v4822 = vpop.f32.mrb[0].mxu0
        %4823 = vmatprep.mubr.bf16.mxu0 0
        %4824 = vmatmul.mubr.bf16.gmra.mrb[0].mxu0 %v4711
        %v4825 = vpop.f32.mrb[0].mxu0
        %v4826 = vadd.f32 0.0, %v4825
        %v4827 = vpop.f32.mrb[0].mxu0
        %v4828 = vpop.f32.mrb[0].mxu0
        %v4829 = vadd.f32 0.0, %v4828
        %v4830 = vpop.f32.mrb[0].mxu0
        %4831 = vmatprep.mubr.bf16.mxu0 0
        %4832 = vmatmul.mubr.bf16.gmra.mrb[0].mxu0 %v4714
        %v4833 = vpop.f32.mrb[0].mxu0
        %v4834 = vadd.f32 0.0, %v4833
        %v4835 = vpop.f32.mrb[0].mxu0
        %v4836 = vpop.f32.mrb[0].mxu0
        %v4837 = vadd.f32 0.0, %v4836
        %v4838 = vpop.f32.mrb[0].mxu0
        %4839 = vmatprep.mubr.bf16.mxu0 0
        %4840 = vmatmul.mubr.bf16.gmra.mrb[0].mxu0 %v4717
        %v4841 = vpop.f32.mrb[0].mxu0
        %v4842 = vadd.f32 0.0, %v4841
        %v4843 = vpop.f32.mrb[0].mxu0
        %v4844 = vpop.f32.mrb[0].mxu0
        %v4845 = vadd.f32 0.0, %v4844
        %v4846 = vpop.f32.mrb[0].mxu0
        %4847 = vmatprep.mubr.bf16.mxu0 0
        %4848 = vmatmul.mubr.bf16.gmra.mrb[0].mxu0 %v4720
        %v4849 = vpop.f32.mrb[0].mxu0
        %v4850 = vadd.f32 0.0, %v4849
        %v4851 = vpop.f32.mrb[0].mxu0
        %v4852 = vpop.f32.mrb[0].mxu0
        %v4853 = vadd.f32 0.0, %v4852
        %v4854 = vpop.f32.mrb[0].mxu0
        %4855 = vmatprep.mubr.bf16.mxu0 0
        %4856 = vmatmul.mubr.bf16.gmra.mrb[0].mxu0 %v4723
        %v4857 = vpop.f32.mrb[0].mxu0
        %v4858 = vadd.f32 0.0, %v4857
        %v4859 = vpop.f32.mrb[0].mxu0
        %v4860 = vpop.f32.mrb[0].mxu0
        %v4861 = vadd.f32 0.0, %v4860
        %v4862 = vpop.f32.mrb[0].mxu0
        %4863 = vmatprep.mubr.bf16.mxu0 0
        %4864 = vmatmul.mubr.bf16.gmra.mrb[0].mxu0 %v4726
        %v4865 = vpop.f32.mrb[0].mxu0
        %v4866 = vadd.f32 0.0, %v4865
        %v4867 = vpop.f32.mrb[0].mxu0
        %v4868 = vpop.f32.mrb[0].mxu0
        %v4869 = vadd.f32 0.0, %v4868
        %v4870 = vpop.f32.mrb[0].mxu0
        %4871 = vmatprep.mubr.bf16.mxu0 0
        %4872 = vmatmul.mubr.bf16.gmra.mrb[0].mxu0 %v4729
        %v4873 = vpop.f32.mrb[0].mxu0
        %v4874 = vadd.f32 0.0, %v4873
        %v4875 = vpop.f32.mrb[0].mxu0
        %v4876 = vpop.f32.mrb[0].mxu0
        %v4877 = vadd.f32 0.0, %v4876
        %v4878 = vpop.f32.mrb[0].mxu0
        %4879 = vmatprep.mubr.bf16.mxu0 0
        %4880 = vmatmul.mubr.bf16.gmra.mrb[0].mxu0 %v4732
        %v4881 = vpop.f32.mrb[0].mxu0
        %v4882 = vadd.f32 0.0, %v4881
        %v4883 = vpop.f32.mrb[0].mxu0
        %v4884 = vpop.f32.mrb[0].mxu0
        %v4885 = vadd.f32 0.0, %v4884
        %v4886 = vpop.f32.mrb[0].mxu0
        %4887 = vmatprep.mubr.bf16.mxu0 0
        %4888 = vmatmul.mubr.bf16.gmra.mrb[0].mxu0 %v4735
        %v4889 = vpop.f32.mrb[0].mxu0
        %v4890 = vadd.f32 0.0, %v4889
        %v4891 = vpop.f32.mrb[0].mxu0
        %v4892 = vpop.f32.mrb[0].mxu0
        %v4893 = vadd.f32 0.0, %v4892
        %v4894 = vpop.f32.mrb[0].mxu0
        %4895 = vmatprep.mubr.bf16.mxu0 0
        %4896 = vmatmul.mubr.bf16.gmra.mrb[0].mxu0 %v4738
        %v4897 = vpop.f32.mrb[0].mxu0
        %v4898 = vadd.f32 0.0, %v4897
        %v4899 = vpop.f32.mrb[0].mxu0
        %v4900 = vpop.f32.mrb[0].mxu0
        %v4901 = vadd.f32 0.0, %v4900
        %v4902 = vpop.f32.mrb[0].mxu0
        %4903 = vdwg.mxu0
        %v4904 = vadd.f32 %v4434, %v4778
        %v4905 = vadd.f32 %v4435, %v4781
        %v4906 = vadd.f32 %v4436, %v4786
        %v4907 = vadd.f32 %v4437, %v4789
        %v4908 = vadd.f32 %v4438, %v4794
        %v4909 = vadd.f32 %v4439, %v4797
        %v4910 = vadd.f32 %v4440, %v4802
        %v4911 = vadd.f32 %v4441, %v4805
        %v4912 = vadd.f32 %v4442, %v4810
        %v4913 = vadd.f32 %v4443, %v4813
        %v4914 = vadd.f32 %v4444, %v4818
        %v4915 = vadd.f32 %v4445, %v4821
        %v4916 = vadd.f32 %v4446, %v4826
        %v4917 = vadd.f32 %v4447, %v4829
        %v4918 = vadd.f32 %v4448, %v4834
        %v4919 = vadd.f32 %v4449, %v4837
        %v4920 = vadd.f32 %v4450, %v4842
        %v4921 = vadd.f32 %v4451, %v4845
        %v4922 = vadd.f32 %v4452, %v4850
        %v4923 = vadd.f32 %v4453, %v4853
        %v4924 = vadd.f32 %v4454, %v4858
        %v4925 = vadd.f32 %v4455, %v4861
        %v4926 = vadd.f32 %v4456, %v4866
        %v4927 = vadd.f32 %v4457, %v4869
        %v4928 = vadd.f32 %v4458, %v4874
        %v4929 = vadd.f32 %v4459, %v4877
        %v4930 = vadd.f32 %v4460, %v4882
        %v4931 = vadd.f32 %v4461, %v4885
        %v4932 = vadd.f32 %v4462, %v4890
        %v4933 = vadd.f32 %v4463, %v4893
        %v4934 = vadd.f32 %v4464, %v4898
        %v4935 = vadd.f32 %v4465, %v4901
        %v4936 = vld [vmem:[#allocation8] sm:$0x1]
        %v4938 = vlaneseq
        %v4939 = vshrl.u32 %v4938, 7
        %v4940 = vsub.s32 0, %v4939
        %v4941 = vrot.slane %v4936, %v4940
        %v4943 = vmul.f32 %v4904, %v4941
        %v4944 = vmul.f32 %v4905, %v4941
        %v4945 = vmul.f32 %v4906, %v4941
        %v4946 = vmul.f32 %v4907, %v4941
        %v4947 = vmul.f32 %v4908, %v4941
        %v4948 = vmul.f32 %v4909, %v4941
        %v4949 = vmul.f32 %v4910, %v4941
        %v4950 = vmul.f32 %v4911, %v4941
        %v4951 = vmul.f32 %v4912, %v4941
        %v4952 = vmul.f32 %v4913, %v4941
        %v4953 = vmul.f32 %v4914, %v4941
        %v4954 = vmul.f32 %v4915, %v4941
        %v4955 = vmul.f32 %v4916, %v4941
        %v4956 = vmul.f32 %v4917, %v4941
        %v4957 = vmul.f32 %v4918, %v4941
        %v4958 = vmul.f32 %v4919, %v4941
        %v4959 = vmul.f32 %v4920, %v4941
        %v4960 = vmul.f32 %v4921, %v4941
        %v4961 = vmul.f32 %v4922, %v4941
        %v4962 = vmul.f32 %v4923, %v4941
        %v4963 = vmul.f32 %v4924, %v4941
        %v4964 = vmul.f32 %v4925, %v4941
        %v4965 = vmul.f32 %v4926, %v4941
        %v4966 = vmul.f32 %v4927, %v4941
        %v4967 = vmul.f32 %v4928, %v4941
        %v4968 = vmul.f32 %v4929, %v4941
        %v4969 = vmul.f32 %v4930, %v4941
        %v4970 = vmul.f32 %v4931, %v4941
        %v4971 = vmul.f32 %v4932, %v4941
        %v4972 = vmul.f32 %v4933, %v4941
        %v4973 = vmul.f32 %v4934, %v4941
        %v4974 = vmul.f32 %v4935, %v4941
        %v4975 = vld [vmem:[#allocation9] sm:$0x1]
        %v4977 = vlaneseq
        %v4978 = vshrl.u32 %v4977, 7
        %v4979 = vsub.s32 0, %v4978
        %v4980 = vrot.slane %v4975, %v4979
        %v4982 = vadd.f32 %v4943, %v4980
        %v4983 = vadd.f32 %v4944, %v4980
        %v4984 = vadd.f32 %v4945, %v4980
        %v4985 = vadd.f32 %v4946, %v4980
        %v4986 = vadd.f32 %v4947, %v4980
        %v4987 = vadd.f32 %v4948, %v4980
        %v4988 = vadd.f32 %v4949, %v4980
        %v4989 = vadd.f32 %v4950, %v4980
        %v4990 = vadd.f32 %v4951, %v4980
        %v4991 = vadd.f32 %v4952, %v4980
        %v4992 = vadd.f32 %v4953, %v4980
        %v4993 = vadd.f32 %v4954, %v4980
        %v4994 = vadd.f32 %v4955, %v4980
        %v4995 = vadd.f32 %v4956, %v4980
        %v4996 = vadd.f32 %v4957, %v4980
        %v4997 = vadd.f32 %v4958, %v4980
        %v4998 = vadd.f32 %v4959, %v4980
        %v4999 = vadd.f32 %v4960, %v4980
        %v5000 = vadd.f32 %v4961, %v4980
        %v5001 = vadd.f32 %v4962, %v4980
        %v5002 = vadd.f32 %v4963, %v4980
        %v5003 = vadd.f32 %v4964, %v4980
        %v5004 = vadd.f32 %v4965, %v4980
        %v5005 = vadd.f32 %v4966, %v4980
        %v5006 = vadd.f32 %v4967, %v4980
        %v5007 = vadd.f32 %v4968, %v4980
        %v5008 = vadd.f32 %v4969, %v4980
        %v5009 = vadd.f32 %v4970, %v4980
        %v5010 = vadd.f32 %v4971, %v4980
        %v5011 = vadd.f32 %v4972, %v4980
        %v5012 = vadd.f32 %v4973, %v4980
        %v5013 = vadd.f32 %v4974, %v4980
        %v5014 = vmax.f32 %v4982, 0.0
        %v5015 = vmax.f32 %v4983, 0.0
        %v5016 = vmax.f32 %v4984, 0.0
        %v5017 = vmax.f32 %v4985, 0.0
        %v5018 = vmax.f32 %v4986, 0.0
        %v5019 = vmax.f32 %v4987, 0.0
        %v5020 = vmax.f32 %v4988, 0.0
        %v5021 = vmax.f32 %v4989, 0.0
        %v5022 = vmax.f32 %v4990, 0.0
        %v5023 = vmax.f32 %v4991, 0.0
        %v5024 = vmax.f32 %v4992, 0.0
        %v5025 = vmax.f32 %v4993, 0.0
        %v5026 = vmax.f32 %v4994, 0.0
        %v5027 = vmax.f32 %v4995, 0.0
        %v5028 = vmax.f32 %v4996, 0.0
        %v5029 = vmax.f32 %v4997, 0.0
        %v5030 = vmax.f32 %v4998, 0.0
        %v5031 = vmax.f32 %v4999, 0.0
        %v5032 = vmax.f32 %v5000, 0.0
        %v5033 = vmax.f32 %v5001, 0.0
        %v5034 = vmax.f32 %v5002, 0.0
        %v5035 = vmax.f32 %v5003, 0.0
        %v5036 = vmax.f32 %v5004, 0.0
        %v5037 = vmax.f32 %v5005, 0.0
        %v5038 = vmax.f32 %v5006, 0.0
        %v5039 = vmax.f32 %v5007, 0.0
        %v5040 = vmax.f32 %v5008, 0.0
        %v5041 = vmax.f32 %v5009, 0.0
        %v5042 = vmax.f32 %v5010, 0.0
        %v5043 = vmax.f32 %v5011, 0.0
        %v5044 = vmax.f32 %v5012, 0.0
        %v5045 = vmax.f32 %v5013, 0.0
        %vm5046 = vcmask 27648
        %5047 = vst.msk [vmem:[#allocation2] sm:$0xf] %vm5046, 0
        %5048 = vst.msk [vmem:[#allocation2 + $0x4] sm:$0xf] %vm5046, 0
        %vm5049 = vcmask 24576
        %5050 = vst.msk [vmem:[#allocation2 + $0x8] sm:$0x1] %vm5049, 0
        %s5051 = scalar_lea.vmem [#allocation2], 204
        %5052 = vst.msk [vmem:[%s5051] sm:$0xf] %vm5046, 0
        %5053 = vst.msk [vmem:[%s5051 + $0x4] sm:$0xf] %vm5046, 0
        %5054 = vst.msk [vmem:[%s5051 + $0x8] sm:$0x1] %vm5049, 0
        %vm5055 = vcmask 24576
        %vm5056 = vsmask.f32 256
        %vm5057 = vmand %vm5055, %vm5056
        %v5058 = vld [vmem:[#allocation2] sm:$0x1]
        %v5059 = vsel %vm5057, 0, %v5058
        %5060 = vst [vmem:[#allocation2] sm:$0x1] %v5059
        %v5061 = vld [vmem:[#allocation2 + $0xc] sm:$0x1]
        %v5062 = vsel %vm5057, 0, %v5061
        %5063 = vst [vmem:[#allocation2 + $0xc] sm:$0x1] %v5062
        %v5064 = vld [vmem:[#allocation2 + $0x18] sm:$0x1]
        %v5065 = vsel %vm5057, 0, %v5064
        %5066 = vst [vmem:[#allocation2 + $0x18] sm:$0x1] %v5065
        %v5067 = vld [vmem:[#allocation2 + $0x24] sm:$0x1]
        %v5068 = vsel %vm5057, 0, %v5067
        %5069 = vst [vmem:[#allocation2 + $0x24] sm:$0x1] %v5068
        %v5070 = vld [vmem:[#allocation2 + $0x30] sm:$0x1]
        %v5071 = vsel %vm5057, 0, %v5070
        %5072 = vst [vmem:[#allocation2 + $0x30] sm:$0x1] %v5071
        %v5073 = vld [vmem:[#allocation2 + $0x3c] sm:$0x1]
        %v5074 = vsel %vm5057, 0, %v5073
        %5075 = vst [vmem:[#allocation2 + $0x3c] sm:$0x1] %v5074
        %v5076 = vld [vmem:[#allocation2 + $0x48] sm:$0x1]
        %v5077 = vsel %vm5057, 0, %v5076
        %5078 = vst [vmem:[#allocation2 + $0x48] sm:$0x1] %v5077
        %v5079 = vld [vmem:[#allocation2 + $0x54] sm:$0x1]
        %v5080 = vsel %vm5057, 0, %v5079
        %5081 = vst [vmem:[#allocation2 + $0x54] sm:$0x1] %v5080
        %v5082 = vld [vmem:[#allocation2 + $0x60] sm:$0x1]
        %v5083 = vsel %vm5057, 0, %v5082
        %5084 = vst [vmem:[#allocation2 + $0x60] sm:$0x1] %v5083
        %v5085 = vld [vmem:[#allocation2 + $0x6c] sm:$0x1]
        %v5086 = vsel %vm5057, 0, %v5085
        %5087 = vst [vmem:[#allocation2 + $0x6c] sm:$0x1] %v5086
        %v5088 = vld [vmem:[#allocation2 + $0x78] sm:$0x1]
        %v5089 = vsel %vm5057, 0, %v5088
        %5090 = vst [vmem:[#allocation2 + $0x78] sm:$0x1] %v5089
        %v5091 = vld [vmem:[#allocation2 + $0x84] sm:$0x1]
        %v5092 = vsel %vm5057, 0, %v5091
        %5093 = vst [vmem:[#allocation2 + $0x84] sm:$0x1] %v5092
        %v5094 = vld [vmem:[#allocation2 + $0x90] sm:$0x1]
        %v5095 = vsel %vm5057, 0, %v5094
        %5096 = vst [vmem:[#allocation2 + $0x90] sm:$0x1] %v5095
        %v5097 = vld [vmem:[#allocation2 + $0x9c] sm:$0x1]
        %v5098 = vsel %vm5057, 0, %v5097
        %5099 = vst [vmem:[#allocation2 + $0x9c] sm:$0x1] %v5098
        %v5100 = vld [vmem:[#allocation2 + $0xa8] sm:$0x1]
        %v5101 = vsel %vm5057, 0, %v5100
        %5102 = vst [vmem:[#allocation2 + $0xa8] sm:$0x1] %v5101
        %v5103 = vld [vmem:[#allocation2 + $0xb4] sm:$0x1]
        %v5104 = vsel %vm5057, 0, %v5103
        %5105 = vst [vmem:[#allocation2 + $0xb4] sm:$0x1] %v5104
        %v5106 = vld [vmem:[#allocation2 + $0xc0] sm:$0x1]
        %v5107 = vsel %vm5057, 0, %v5106
        %5108 = vst [vmem:[#allocation2 + $0xc0] sm:$0x1] %v5107
        %v5109 = vld [vmem:[#allocation2 + $0xcc] sm:$0x1]
        %v5110 = vsel %vm5057, 0, %v5109
        %5111 = vst [vmem:[#allocation2 + $0xcc] sm:$0x1] %v5110
        %vm5112 = vsmask.f32 7938
        %vm5113 = vmand %vm5055, %vm5112
        %v5114 = vld [vmem:[#allocation2 + $0x8] sm:$0x1]
        %v5115 = vsel %vm5113, 0, %v5114
        %5116 = vst [vmem:[#allocation2 + $0x8] sm:$0x1] %v5115
        %v5117 = vld [vmem:[#allocation2 + $0x14] sm:$0x1]
        %v5118 = vsel %vm5113, 0, %v5117
        %5119 = vst [vmem:[#allocation2 + $0x14] sm:$0x1] %v5118
        %v5120 = vld [vmem:[#allocation2 + $0x20] sm:$0x1]
        %v5121 = vsel %vm5113, 0, %v5120
        %5122 = vst [vmem:[#allocation2 + $0x20] sm:$0x1] %v5121
        %v5123 = vld [vmem:[#allocation2 + $0x2c] sm:$0x1]
        %v5124 = vsel %vm5113, 0, %v5123
        %5125 = vst [vmem:[#allocation2 + $0x2c] sm:$0x1] %v5124
        %v5126 = vld [vmem:[#allocation2 + $0x38] sm:$0x1]
        %v5127 = vsel %vm5113, 0, %v5126
        %5128 = vst [vmem:[#allocation2 + $0x38] sm:$0x1] %v5127
        %v5129 = vld [vmem:[#allocation2 + $0x44] sm:$0x1]
        %v5130 = vsel %vm5113, 0, %v5129
        %5131 = vst [vmem:[#allocation2 + $0x44] sm:$0x1] %v5130
        %v5132 = vld [vmem:[#allocation2 + $0x50] sm:$0x1]
        %v5133 = vsel %vm5113, 0, %v5132
        %5134 = vst [vmem:[#allocation2 + $0x50] sm:$0x1] %v5133
        %v5135 = vld [vmem:[#allocation2 + $0x5c] sm:$0x1]
        %v5136 = vsel %vm5113, 0, %v5135
        %5137 = vst [vmem:[#allocation2 + $0x5c] sm:$0x1] %v5136
        %v5138 = vld [vmem:[#allocation2 + $0x68] sm:$0x1]
        %v5139 = vsel %vm5113, 0, %v5138
        %5140 = vst [vmem:[#allocation2 + $0x68] sm:$0x1] %v5139
        %v5141 = vld [vmem:[#allocation2 + $0x74] sm:$0x1]
        %v5142 = vsel %vm5113, 0, %v5141
        %5143 = vst [vmem:[#allocation2 + $0x74] sm:$0x1] %v5142
        %v5144 = vld [vmem:[#allocation2 + $0x80] sm:$0x1]
        %v5145 = vsel %vm5113, 0, %v5144
        %5146 = vst [vmem:[#allocation2 + $0x80] sm:$0x1] %v5145
        %v5147 = vld [vmem:[#allocation2 + $0x8c] sm:$0x1]
        %v5148 = vsel %vm5113, 0, %v5147
        %5149 = vst [vmem:[#allocation2 + $0x8c] sm:$0x1] %v5148
        %v5150 = vld [vmem:[#allocation2 + $0x98] sm:$0x1]
        %v5151 = vsel %vm5113, 0, %v5150
        %5152 = vst [vmem:[#allocation2 + $0x98] sm:$0x1] %v5151
        %v5153 = vld [vmem:[#allocation2 + $0xa4] sm:$0x1]
        %v5154 = vsel %vm5113, 0, %v5153
        %5155 = vst [vmem:[#allocation2 + $0xa4] sm:$0x1] %v5154
        %v5156 = vld [vmem:[#allocation2 + $0xb0] sm:$0x1]
        %v5157 = vsel %vm5113, 0, %v5156
        %5158 = vst [vmem:[#allocation2 + $0xb0] sm:$0x1] %v5157
        %v5159 = vld [vmem:[#allocation2 + $0xbc] sm:$0x1]
        %v5160 = vsel %vm5113, 0, %v5159
        %5161 = vst [vmem:[#allocation2 + $0xbc] sm:$0x1] %v5160
        %v5162 = vld [vmem:[#allocation2 + $0xc8] sm:$0x1]
        %v5163 = vsel %vm5113, 0, %v5162
        %5164 = vst [vmem:[#allocation2 + $0xc8] sm:$0x1] %v5163
        %v5165 = vld [vmem:[#allocation2 + $0xd4] sm:$0x1]
        %v5166 = vsel %vm5113, 0, %v5165
        %5167 = vst [vmem:[#allocation2 + $0xd4] sm:$0x1] %v5166
        %v5168 = vpack.c.bf16 %v5015, %v5014
        %v5169 = vpack.c.bf16 %v5017, %v5016
        %v5170 = vpack.c.bf16 %v5019, %v5018
        %v5171 = vpack.c.bf16 %v5021, %v5020
        %v5172 = vpack.c.bf16 %v5023, %v5022
        %v5173 = vpack.c.bf16 %v5025, %v5024
        %v5174 = vpack.c.bf16 %v5027, %v5026
        %v5175 = vpack.c.bf16 %v5029, %v5028
        %v5176 = vpack.c.bf16 %v5031, %v5030
        %v5177 = vpack.c.bf16 %v5033, %v5032
        %v5178 = vpack.c.bf16 %v5035, %v5034
        %v5179 = vpack.c.bf16 %v5037, %v5036
        %v5180 = vpack.c.bf16 %v5039, %v5038
        %v5181 = vpack.c.bf16 %v5041, %v5040
        %v5182 = vpack.c.bf16 %v5043, %v5042
        %v5183 = vpack.c.bf16 %v5045, %v5044
        %v5200 = vunpack.c.l.b16 %v5168
        %v5201 = vunpack.c.h.b16 %v5168
        %v5202 = vunpack.c.l.b16 %v5169
        %v5203 = vunpack.c.h.b16 %v5169
        %v5204 = vunpack.c.l.b16 %v5170
        %v5205 = vunpack.c.h.b16 %v5170
        %v5206 = vunpack.c.l.b16 %v5171
        %v5207 = vunpack.c.h.b16 %v5171
        %v5208 = vunpack.c.l.b16 %v5172
        %v5209 = vunpack.c.h.b16 %v5172
        %v5210 = vunpack.c.l.b16 %v5173
        %v5211 = vunpack.c.h.b16 %v5173
        %v5212 = vunpack.c.l.b16 %v5174
        %v5213 = vunpack.c.h.b16 %v5174
        %v5214 = vunpack.c.l.b16 %v5175
        %v5215 = vunpack.c.h.b16 %v5175
        %v5216 = vunpack.c.l.b16 %v5176
        %v5217 = vunpack.c.h.b16 %v5176
        %v5218 = vunpack.c.l.b16 %v5177
        %v5219 = vunpack.c.h.b16 %v5177
        %v5220 = vunpack.c.l.b16 %v5178
        %v5221 = vunpack.c.h.b16 %v5178
        %v5222 = vunpack.c.l.b16 %v5179
        %v5223 = vunpack.c.h.b16 %v5179
        %v5224 = vunpack.c.l.b16 %v5180
        %v5225 = vunpack.c.h.b16 %v5180
        %v5226 = vunpack.c.l.b16 %v5181
        %v5227 = vunpack.c.h.b16 %v5181
        %v5228 = vunpack.c.l.b16 %v5182
        %v5229 = vunpack.c.h.b16 %v5182
        %v5230 = vunpack.c.l.b16 %v5183
        %v5231 = vunpack.c.h.b16 %v5183
        %v5232 = vpack.c.b16 %v5200, %v5200
        %v5233 = vpack.c.b16 %v5201, %v5201
        %v5234 = vpack.c.b16 %v5202, %v5202
        %v5235 = vpack.c.b16 %v5203, %v5203
        %v5236 = vpack.c.b16 %v5204, %v5204
        %v5237 = vpack.c.b16 %v5205, %v5205
        %v5238 = vpack.c.b16 %v5206, %v5206
        %v5239 = vpack.c.b16 %v5207, %v5207
        %v5240 = vpack.c.b16 %v5208, %v5208
        %v5241 = vpack.c.b16 %v5209, %v5209
        %v5242 = vpack.c.b16 %v5210, %v5210
        %v5243 = vpack.c.b16 %v5211, %v5211
        %v5244 = vpack.c.b16 %v5212, %v5212
        %v5245 = vpack.c.b16 %v5213, %v5213
        %v5246 = vpack.c.b16 %v5214, %v5214
        %v5247 = vpack.c.b16 %v5215, %v5215
        %v5248 = vpack.c.b16 %v5216, %v5216
        %v5249 = vpack.c.b16 %v5217, %v5217
        %v5250 = vpack.c.b16 %v5218, %v5218
        %v5251 = vpack.c.b16 %v5219, %v5219
        %v5252 = vpack.c.b16 %v5220, %v5220
        %v5253 = vpack.c.b16 %v5221, %v5221
        %v5254 = vpack.c.b16 %v5222, %v5222
        %v5255 = vpack.c.b16 %v5223, %v5223
        %v5256 = vpack.c.b16 %v5224, %v5224
        %v5257 = vpack.c.b16 %v5225, %v5225
        %v5258 = vpack.c.b16 %v5226, %v5226
        %v5259 = vpack.c.b16 %v5227, %v5227
        %v5260 = vpack.c.b16 %v5228, %v5228
        %v5261 = vpack.c.b16 %v5229, %v5229
        %v5262 = vpack.c.b16 %v5230, %v5230
        %v5263 = vpack.c.b16 %v5231, %v5231
        %vm5264 = vsmask.f32 4368
        %vm5265 = vmor %vm5056, %vm5264
        %v5267 = vshrl.u32 %v5232, 16
        %v5269 = vrot.slane %v5267, 7
        %v5270 = vshll.u32 %v5232, 16
        %v5272 = vor.u32 %v5269, %v5270
        %v5273 = vrot.slane %v5269, 4
        %v5275 = vshrl.u32 %v5233, 16
        %v5277 = vrot.slane %v5275, 7
        %v5278 = vshll.u32 %v5233, 16
        %v5280 = vor.u32 %v5277, %v5278
        %v5281 = vsel %vm5265, %v5273, %v5280
        %v5282 = vrot.slane %v5277, 4
        %v5284 = vshrl.u32 %v5234, 16
        %v5286 = vrot.slane %v5284, 7
        %v5287 = vshll.u32 %v5234, 16
        %v5289 = vor.u32 %v5286, %v5287
        %v5290 = vrot.slane %v5286, 4
        %v5292 = vshrl.u32 %v5235, 16
        %v5294 = vrot.slane %v5292, 7
        %v5295 = vshll.u32 %v5235, 16
        %v5297 = vor.u32 %v5294, %v5295
        %v5298 = vsel %vm5265, %v5290, %v5297
        %v5299 = vrot.slane %v5294, 4
        %v5301 = vshrl.u32 %v5236, 16
        %v5303 = vrot.slane %v5301, 7
        %v5304 = vshll.u32 %v5236, 16
        %v5306 = vor.u32 %v5303, %v5304
        %v5307 = vrot.slane %v5303, 4
        %v5309 = vshrl.u32 %v5237, 16
        %v5311 = vrot.slane %v5309, 7
        %v5312 = vshll.u32 %v5237, 16
        %v5314 = vor.u32 %v5311, %v5312
        %v5315 = vsel %vm5265, %v5307, %v5314
        %v5316 = vrot.slane %v5311, 4
        %v5318 = vshrl.u32 %v5238, 16
        %v5320 = vrot.slane %v5318, 7
        %v5321 = vshll.u32 %v5238, 16
        %v5323 = vor.u32 %v5320, %v5321
        %v5324 = vrot.slane %v5320, 4
        %v5326 = vshrl.u32 %v5239, 16
        %v5328 = vrot.slane %v5326, 7
        %v5329 = vshll.u32 %v5239, 16
        %v5331 = vor.u32 %v5328, %v5329
        %v5332 = vsel %vm5265, %v5324, %v5331
        %v5333 = vrot.slane %v5328, 4
        %v5335 = vshrl.u32 %v5240, 16
        %v5337 = vrot.slane %v5335, 7
        %v5338 = vshll.u32 %v5240, 16
        %v5340 = vor.u32 %v5337, %v5338
        %v5341 = vrot.slane %v5337, 4
        %v5343 = vshrl.u32 %v5241, 16
        %v5345 = vrot.slane %v5343, 7
        %v5346 = vshll.u32 %v5241, 16
        %v5348 = vor.u32 %v5345, %v5346
        %v5349 = vsel %vm5265, %v5341, %v5348
        %v5350 = vrot.slane %v5345, 4
        %v5352 = vshrl.u32 %v5242, 16
        %v5354 = vrot.slane %v5352, 7
        %v5355 = vshll.u32 %v5242, 16
        %v5357 = vor.u32 %v5354, %v5355
        %v5358 = vrot.slane %v5354, 4
        %v5360 = vshrl.u32 %v5243, 16
        %v5362 = vrot.slane %v5360, 7
        %v5363 = vshll.u32 %v5243, 16
        %v5365 = vor.u32 %v5362, %v5363
        %v5366 = vsel %vm5265, %v5358, %v5365
        %v5367 = vrot.slane %v5362, 4
        %v5369 = vshrl.u32 %v5244, 16
        %v5371 = vrot.slane %v5369, 7
        %v5372 = vshll.u32 %v5244, 16
        %v5374 = vor.u32 %v5371, %v5372
        %v5375 = vrot.slane %v5371, 4
        %v5377 = vshrl.u32 %v5245, 16
        %v5379 = vrot.slane %v5377, 7
        %v5380 = vshll.u32 %v5245, 16
        %v5382 = vor.u32 %v5379, %v5380
        %v5383 = vsel %vm5265, %v5375, %v5382
        %v5384 = vrot.slane %v5379, 4
        %v5386 = vshrl.u32 %v5246, 16
        %v5388 = vrot.slane %v5386, 7
        %v5389 = vshll.u32 %v5246, 16
        %v5391 = vor.u32 %v5388, %v5389
        %v5392 = vrot.slane %v5388, 4
        %v5394 = vshrl.u32 %v5247, 16
        %v5396 = vrot.slane %v5394, 7
        %v5397 = vshll.u32 %v5247, 16
        %v5399 = vor.u32 %v5396, %v5397
        %v5400 = vsel %vm5265, %v5392, %v5399
        %v5401 = vrot.slane %v5396, 4
        %v5403 = vshrl.u32 %v5248, 16
        %v5405 = vrot.slane %v5403, 7
        %v5406 = vshll.u32 %v5248, 16
        %v5408 = vor.u32 %v5405, %v5406
        %v5409 = vrot.slane %v5405, 4
        %v5411 = vshrl.u32 %v5249, 16
        %v5413 = vrot.slane %v5411, 7
        %v5414 = vshll.u32 %v5249, 16
        %v5416 = vor.u32 %v5413, %v5414
        %v5417 = vsel %vm5265, %v5409, %v5416
        %v5418 = vrot.slane %v5413, 4
        %v5420 = vshrl.u32 %v5250, 16
        %v5422 = vrot.slane %v5420, 7
        %v5423 = vshll.u32 %v5250, 16
        %v5425 = vor.u32 %v5422, %v5423
        %v5426 = vrot.slane %v5422, 4
        %v5428 = vshrl.u32 %v5251, 16
        %v5430 = vrot.slane %v5428, 7
        %v5431 = vshll.u32 %v5251, 16
        %v5433 = vor.u32 %v5430, %v5431
        %v5434 = vsel %vm5265, %v5426, %v5433
        %v5435 = vrot.slane %v5430, 4
        %v5437 = vshrl.u32 %v5252, 16
        %v5439 = vrot.slane %v5437, 7
        %v5440 = vshll.u32 %v5252, 16
        %v5442 = vor.u32 %v5439, %v5440
        %v5443 = vrot.slane %v5439, 4
        %v5445 = vshrl.u32 %v5253, 16
        %v5447 = vrot.slane %v5445, 7
        %v5448 = vshll.u32 %v5253, 16
        %v5450 = vor.u32 %v5447, %v5448
        %v5451 = vsel %vm5265, %v5443, %v5450
        %v5452 = vrot.slane %v5447, 4
        %v5454 = vshrl.u32 %v5254, 16
        %v5456 = vrot.slane %v5454, 7
        %v5457 = vshll.u32 %v5254, 16
        %v5459 = vor.u32 %v5456, %v5457
        %v5460 = vrot.slane %v5456, 4
        %v5462 = vshrl.u32 %v5255, 16
        %v5464 = vrot.slane %v5462, 7
        %v5465 = vshll.u32 %v5255, 16
        %v5467 = vor.u32 %v5464, %v5465
        %v5468 = vsel %vm5265, %v5460, %v5467
        %v5469 = vrot.slane %v5464, 4
        %v5471 = vshrl.u32 %v5256, 16
        %v5473 = vrot.slane %v5471, 7
        %v5474 = vshll.u32 %v5256, 16
        %v5476 = vor.u32 %v5473, %v5474
        %v5477 = vrot.slane %v5473, 4
        %v5479 = vshrl.u32 %v5257, 16
        %v5481 = vrot.slane %v5479, 7
        %v5482 = vshll.u32 %v5257, 16
        %v5484 = vor.u32 %v5481, %v5482
        %v5485 = vsel %vm5265, %v5477, %v5484
        %v5486 = vrot.slane %v5481, 4
        %v5488 = vshrl.u32 %v5258, 16
        %v5490 = vrot.slane %v5488, 7
        %v5491 = vshll.u32 %v5258, 16
        %v5493 = vor.u32 %v5490, %v5491
        %v5494 = vrot.slane %v5490, 4
        %v5496 = vshrl.u32 %v5259, 16
        %v5498 = vrot.slane %v5496, 7
        %v5499 = vshll.u32 %v5259, 16
        %v5501 = vor.u32 %v5498, %v5499
        %v5502 = vsel %vm5265, %v5494, %v5501
        %v5503 = vrot.slane %v5498, 4
        %v5505 = vshrl.u32 %v5260, 16
        %v5507 = vrot.slane %v5505, 7
        %v5508 = vshll.u32 %v5260, 16
        %v5510 = vor.u32 %v5507, %v5508
        %v5511 = vrot.slane %v5507, 4
        %v5513 = vshrl.u32 %v5261, 16
        %v5515 = vrot.slane %v5513, 7
        %v5516 = vshll.u32 %v5261, 16
        %v5518 = vor.u32 %v5515, %v5516
        %v5519 = vsel %vm5265, %v5511, %v5518
        %v5520 = vrot.slane %v5515, 4
        %v5522 = vshrl.u32 %v5262, 16
        %v5524 = vrot.slane %v5522, 7
        %v5525 = vshll.u32 %v5262, 16
        %v5527 = vor.u32 %v5524, %v5525
        %v5528 = vrot.slane %v5524, 4
        %v5530 = vshrl.u32 %v5263, 16
        %v5532 = vrot.slane %v5530, 7
        %v5533 = vshll.u32 %v5263, 16
        %v5535 = vor.u32 %v5532, %v5533
        %v5536 = vsel %vm5265, %v5528, %v5535
        %v5537 = vrot.slane %v5532, 4
        %s5586 = scalar_lea.vmem [#allocation2], 12
        %vm5587 = vcmask 27648
        %vm5588 = vmand %vm5587, %vm5112
        %v5589 = vld [vmem:[%s5586] sm:$0xf]
        %v5590 = vsel %vm5588, %v5272, %v5589
        %5591 = vst [vmem:[%s5586] sm:$0xf] %v5590
        %5592 = vst.msk [vmem:[%s5586 + $0x4] sm:$0xf] %vm5046, %v5281
        %v5593 = vld [vmem:[%s5586 + $0x8] sm:$0x1]
        %v5594 = vsel %vm5057, %v5282, %v5593
        %5595 = vst [vmem:[%s5586 + $0x8] sm:$0x1] %v5594
        %v5596 = vld [vmem:[%s5586 + $0xc] sm:$0xf]
        %v5597 = vsel %vm5588, %v5289, %v5596
        %5598 = vst [vmem:[%s5586 + $0xc] sm:$0xf] %v5597
        %5599 = vst.msk [vmem:[%s5586 + $0x10] sm:$0xf] %vm5046, %v5298
        %v5600 = vld [vmem:[%s5586 + $0x14] sm:$0x1]
        %v5601 = vsel %vm5057, %v5299, %v5600
        %5602 = vst [vmem:[%s5586 + $0x14] sm:$0x1] %v5601
        %v5603 = vld [vmem:[%s5586 + $0x18] sm:$0xf]
        %v5604 = vsel %vm5588, %v5306, %v5603
        %5605 = vst [vmem:[%s5586 + $0x18] sm:$0xf] %v5604
        %5606 = vst.msk [vmem:[%s5586 + $0x1c] sm:$0xf] %vm5046, %v5315
        %v5607 = vld [vmem:[%s5586 + $0x20] sm:$0x1]
        %v5608 = vsel %vm5057, %v5316, %v5607
        %5609 = vst [vmem:[%s5586 + $0x20] sm:$0x1] %v5608
        %v5610 = vld [vmem:[%s5586 + $0x24] sm:$0xf]
        %v5611 = vsel %vm5588, %v5323, %v5610
        %5612 = vst [vmem:[%s5586 + $0x24] sm:$0xf] %v5611
        %5613 = vst.msk [vmem:[%s5586 + $0x28] sm:$0xf] %vm5046, %v5332
        %v5614 = vld [vmem:[%s5586 + $0x2c] sm:$0x1]
        %v5615 = vsel %vm5057, %v5333, %v5614
        %5616 = vst [vmem:[%s5586 + $0x2c] sm:$0x1] %v5615
        %v5617 = vld [vmem:[%s5586 + $0x30] sm:$0xf]
        %v5618 = vsel %vm5588, %v5340, %v5617
        %5619 = vst [vmem:[%s5586 + $0x30] sm:$0xf] %v5618
        %5620 = vst.msk [vmem:[%s5586 + $0x34] sm:$0xf] %vm5046, %v5349
        %v5621 = vld [vmem:[%s5586 + $0x38] sm:$0x1]
        %v5622 = vsel %vm5057, %v5350, %v5621
        %5623 = vst [vmem:[%s5586 + $0x38] sm:$0x1] %v5622
        %v5624 = vld [vmem:[%s5586 + $0x3c] sm:$0xf]
        %v5625 = vsel %vm5588, %v5357, %v5624
        %5626 = vst [vmem:[%s5586 + $0x3c] sm:$0xf] %v5625
        %5627 = vst.msk [vmem:[%s5586 + $0x40] sm:$0xf] %vm5046, %v5366
        %v5628 = vld [vmem:[%s5586 + $0x44] sm:$0x1]
        %v5629 = vsel %vm5057, %v5367, %v5628
        %5630 = vst [vmem:[%s5586 + $0x44] sm:$0x1] %v5629
        %v5631 = vld [vmem:[%s5586 + $0x48] sm:$0xf]
        %v5632 = vsel %vm5588, %v5374, %v5631
        %5633 = vst [vmem:[%s5586 + $0x48] sm:$0xf] %v5632
        %5634 = vst.msk [vmem:[%s5586 + $0x4c] sm:$0xf] %vm5046, %v5383
        %v5635 = vld [vmem:[%s5586 + $0x50] sm:$0x1]
        %v5636 = vsel %vm5057, %v5384, %v5635
        %5637 = vst [vmem:[%s5586 + $0x50] sm:$0x1] %v5636
        %v5638 = vld [vmem:[%s5586 + $0x54] sm:$0xf]
        %v5639 = vsel %vm5588, %v5391, %v5638
        %5640 = vst [vmem:[%s5586 + $0x54] sm:$0xf] %v5639
        %5641 = vst.msk [vmem:[%s5586 + $0x58] sm:$0xf] %vm5046, %v5400
        %v5642 = vld [vmem:[%s5586 + $0x5c] sm:$0x1]
        %v5643 = vsel %vm5057, %v5401, %v5642
        %5644 = vst [vmem:[%s5586 + $0x5c] sm:$0x1] %v5643
        %v5645 = vld [vmem:[%s5586 + $0x60] sm:$0xf]
        %v5646 = vsel %vm5588, %v5408, %v5645
        %5647 = vst [vmem:[%s5586 + $0x60] sm:$0xf] %v5646
        %5648 = vst.msk [vmem:[%s5586 + $0x64] sm:$0xf] %vm5046, %v5417
        %v5649 = vld [vmem:[%s5586 + $0x68] sm:$0x1]
        %v5650 = vsel %vm5057, %v5418, %v5649
        %5651 = vst [vmem:[%s5586 + $0x68] sm:$0x1] %v5650
        %v5652 = vld [vmem:[%s5586 + $0x6c] sm:$0xf]
        %v5653 = vsel %vm5588, %v5425, %v5652
        %5654 = vst [vmem:[%s5586 + $0x6c] sm:$0xf] %v5653
        %5655 = vst.msk [vmem:[%s5586 + $0x70] sm:$0xf] %vm5046, %v5434
        %v5656 = vld [vmem:[%s5586 + $0x74] sm:$0x1]
        %v5657 = vsel %vm5057, %v5435, %v5656
        %5658 = vst [vmem:[%s5586 + $0x74] sm:$0x1] %v5657
        %v5659 = vld [vmem:[%s5586 + $0x78] sm:$0xf]
        %v5660 = vsel %vm5588, %v5442, %v5659
        %5661 = vst [vmem:[%s5586 + $0x78] sm:$0xf] %v5660
        %5662 = vst.msk [vmem:[%s5586 + $0x7c] sm:$0xf] %vm5046, %v5451
        %v5663 = vld [vmem:[%s5586 + $0x80] sm:$0x1]
        %v5664 = vsel %vm5057, %v5452, %v5663
        %5665 = vst [vmem:[%s5586 + $0x80] sm:$0x1] %v5664
        %v5666 = vld [vmem:[%s5586 + $0x84] sm:$0xf]
        %v5667 = vsel %vm5588, %v5459, %v5666
        %5668 = vst [vmem:[%s5586 + $0x84] sm:$0xf] %v5667
        %5669 = vst.msk [vmem:[%s5586 + $0x88] sm:$0xf] %vm5046, %v5468
        %v5670 = vld [vmem:[%s5586 + $0x8c] sm:$0x1]
        %v5671 = vsel %vm5057, %v5469, %v5670
        %5672 = vst [vmem:[%s5586 + $0x8c] sm:$0x1] %v5671
        %v5673 = vld [vmem:[%s5586 + $0x90] sm:$0xf]
        %v5674 = vsel %vm5588, %v5476, %v5673
        %5675 = vst [vmem:[%s5586 + $0x90] sm:$0xf] %v5674
        %5676 = vst.msk [vmem:[%s5586 + $0x94] sm:$0xf] %vm5046, %v5485
        %v5677 = vld [vmem:[%s5586 + $0x98] sm:$0x1]
        %v5678 = vsel %vm5057, %v5486, %v5677
        %5679 = vst [vmem:[%s5586 + $0x98] sm:$0x1] %v5678
        %v5680 = vld [vmem:[%s5586 + $0x9c] sm:$0xf]
        %v5681 = vsel %vm5588, %v5493, %v5680
        %5682 = vst [vmem:[%s5586 + $0x9c] sm:$0xf] %v5681
        %5683 = vst.msk [vmem:[%s5586 + $0xa0] sm:$0xf] %vm5046, %v5502
        %v5684 = vld [vmem:[%s5586 + $0xa4] sm:$0x1]
        %v5685 = vsel %vm5057, %v5503, %v5684
        %5686 = vst [vmem:[%s5586 + $0xa4] sm:$0x1] %v5685
        %v5687 = vld [vmem:[%s5586 + $0xa8] sm:$0xf]
        %v5688 = vsel %vm5588, %v5510, %v5687
        %5689 = vst [vmem:[%s5586 + $0xa8] sm:$0xf] %v5688
        %5690 = vst.msk [vmem:[%s5586 + $0xac] sm:$0xf] %vm5046, %v5519
        %v5691 = vld [vmem:[%s5586 + $0xb0] sm:$0x1]
        %v5692 = vsel %vm5057, %v5520, %v5691
        %5693 = vst [vmem:[%s5586 + $0xb0] sm:$0x1] %v5692
        %v5694 = vld [vmem:[%s5586 + $0xb4] sm:$0xf]
        %v5695 = vsel %vm5588, %v5527, %v5694
        %5696 = vst [vmem:[%s5586 + $0xb4] sm:$0xf] %v5695
        %5697 = vst.msk [vmem:[%s5586 + $0xb8] sm:$0xf] %vm5046, %v5536
        %v5698 = vld [vmem:[%s5586 + $0xbc] sm:$0x1]
        %v5699 = vsel %vm5057, %v5537, %v5698
        %5700 = vst [vmem:[%s5586 + $0xbc] sm:$0x1] %v5699
        %v5701 = vld [vmem:[#allocation2] sm:$0xf]
        %v5702 = vld [vmem:[#allocation2 + $0x4] sm:$0xf]
        %v5703 = vld [vmem:[#allocation2 + $0xc] sm:$0xf]
        %v5704 = vld [vmem:[#allocation2 + $0x10] sm:$0xf]
        %v5705 = vld [vmem:[#allocation2 + $0x18] sm:$0xf]
        %v5706 = vld [vmem:[#allocation2 + $0x1c] sm:$0xf]
        %v5707 = vld [vmem:[#allocation2 + $0x24] sm:$0xf]
        %v5708 = vld [vmem:[#allocation2 + $0x28] sm:$0xf]
        %v5709 = vld [vmem:[#allocation2 + $0x30] sm:$0xf]
        %v5710 = vld [vmem:[#allocation2 + $0x34] sm:$0xf]
        %v5711 = vld [vmem:[#allocation2 + $0x3c] sm:$0xf]
        %v5712 = vld [vmem:[#allocation2 + $0x40] sm:$0xf]
        %v5713 = vld [vmem:[#allocation2 + $0x48] sm:$0xf]
        %v5714 = vld [vmem:[#allocation2 + $0x4c] sm:$0xf]
        %v5715 = vld [vmem:[#allocation2 + $0x54] sm:$0xf]
        %v5716 = vld [vmem:[#allocation2 + $0x58] sm:$0xf]
        %v5717 = vld [vmem:[#allocation2 + $0x60] sm:$0xf]
        %v5718 = vld [vmem:[#allocation2 + $0x64] sm:$0xf]
        %v5719 = vld [vmem:[#allocation2 + $0x6c] sm:$0xf]
        %v5720 = vld [vmem:[#allocation2 + $0x70] sm:$0xf]
        %v5721 = vld [vmem:[#allocation2 + $0x78] sm:$0xf]
        %v5722 = vld [vmem:[#allocation2 + $0x7c] sm:$0xf]
        %v5723 = vld [vmem:[#allocation2 + $0x84] sm:$0xf]
        %v5724 = vld [vmem:[#allocation2 + $0x88] sm:$0xf]
        %v5725 = vld [vmem:[#allocation2 + $0x90] sm:$0xf]
        %v5726 = vld [vmem:[#allocation2 + $0x94] sm:$0xf]
        %v5727 = vld [vmem:[#allocation2 + $0x9c] sm:$0xf]
        %v5728 = vld [vmem:[#allocation2 + $0xa0] sm:$0xf]
        %v5729 = vld [vmem:[#allocation2 + $0xa8] sm:$0xf]
        %v5730 = vld [vmem:[#allocation2 + $0xac] sm:$0xf]
        %v5731 = vld [vmem:[#allocation2 + $0xb4] sm:$0xf]
        %v5732 = vld [vmem:[#allocation2 + $0xb8] sm:$0xf]
        %v5733 = vld [vmem:[#allocation11] sm:$0x3]
        %v5734 = vld [vmem:[#allocation2 + $0x8] sm:$0x1]
        %v5735 = vld [vmem:[#allocation2 + $0x14] sm:$0x1]
        %v5736 = vld [vmem:[#allocation2 + $0x20] sm:$0x1]
        %v5737 = vld [vmem:[#allocation2 + $0x2c] sm:$0x1]
        %v5738 = vld [vmem:[#allocation2 + $0x38] sm:$0x1]
        %v5739 = vld [vmem:[#allocation2 + $0x44] sm:$0x1]
        %v5740 = vld [vmem:[#allocation2 + $0x50] sm:$0x1]
        %v5741 = vld [vmem:[#allocation2 + $0x5c] sm:$0x1]
        %v5742 = vld [vmem:[#allocation2 + $0x68] sm:$0x1]
        %v5743 = vld [vmem:[#allocation2 + $0x74] sm:$0x1]
        %v5744 = vld [vmem:[#allocation2 + $0x80] sm:$0x1]
        %v5745 = vld [vmem:[#allocation2 + $0x8c] sm:$0x1]
        %v5746 = vld [vmem:[#allocation2 + $0x98] sm:$0x1]
        %v5747 = vld [vmem:[#allocation2 + $0xa4] sm:$0x1]
        %v5748 = vld [vmem:[#allocation2 + $0xb0] sm:$0x1]
        %v5749 = vld [vmem:[#allocation2 + $0xbc] sm:$0x1]
        %v5751 = vshrl.u32 %v5701, 16
        %v5753 = vrot.slane %v5751, 4
        %v5754 = vshll.u32 %v5701, 16
        %v5756 = vrot.slane %v5754, 5
        %v5757 = vor.u32 %v5753, %v5756
        %v5758 = vrot.slane %v5757, 4
        %v5760 = vshll.u32 %v5702, 16
        %v5762 = vrot.slane %v5760, 5
        %v5763 = vsel %vm428, %v5758, %v5762
        %v5764 = vshrl.u32 %v5702, 16
        %v5766 = vrot.slane %v5764, 4
        %v5767 = vor.u32 %v5766, %v5762
        %v5768 = vrot.slane %v5767, 4
        %v5770 = vshll.u32 %v5734, 16
        %v5772 = vrot.slane %v5770, 5
        %v5773 = vsel %vm428, %v5768, %v5772
        %v5775 = vshrl.u32 %v5703, 16
        %v5777 = vrot.slane %v5775, 4
        %v5778 = vshll.u32 %v5703, 16
        %v5780 = vrot.slane %v5778, 5
        %v5781 = vor.u32 %v5777, %v5780
        %v5782 = vrot.slane %v5781, 4
        %v5784 = vshll.u32 %v5704, 16
        %v5786 = vrot.slane %v5784, 5
        %v5787 = vsel %vm428, %v5782, %v5786
        %v5788 = vshrl.u32 %v5704, 16
        %v5790 = vrot.slane %v5788, 4
        %v5791 = vor.u32 %v5790, %v5786
        %v5792 = vrot.slane %v5791, 4
        %v5794 = vshll.u32 %v5735, 16
        %v5796 = vrot.slane %v5794, 5
        %v5797 = vsel %vm428, %v5792, %v5796
        %v5799 = vshrl.u32 %v5705, 16
        %v5801 = vrot.slane %v5799, 4
        %v5802 = vshll.u32 %v5705, 16
        %v5804 = vrot.slane %v5802, 5
        %v5805 = vor.u32 %v5801, %v5804
        %v5806 = vrot.slane %v5805, 4
        %v5808 = vshll.u32 %v5706, 16
        %v5810 = vrot.slane %v5808, 5
        %v5811 = vsel %vm428, %v5806, %v5810
        %v5812 = vshrl.u32 %v5706, 16
        %v5814 = vrot.slane %v5812, 4
        %v5815 = vor.u32 %v5814, %v5810
        %v5816 = vrot.slane %v5815, 4
        %v5818 = vshll.u32 %v5736, 16
        %v5820 = vrot.slane %v5818, 5
        %v5821 = vsel %vm428, %v5816, %v5820
        %v5823 = vshrl.u32 %v5707, 16
        %v5825 = vrot.slane %v5823, 4
        %v5826 = vshll.u32 %v5707, 16
        %v5828 = vrot.slane %v5826, 5
        %v5829 = vor.u32 %v5825, %v5828
        %v5830 = vrot.slane %v5829, 4
        %v5832 = vshll.u32 %v5708, 16
        %v5834 = vrot.slane %v5832, 5
        %v5835 = vsel %vm428, %v5830, %v5834
        %v5836 = vshrl.u32 %v5708, 16
        %v5838 = vrot.slane %v5836, 4
        %v5839 = vor.u32 %v5838, %v5834
        %v5840 = vrot.slane %v5839, 4
        %v5842 = vshll.u32 %v5737, 16
        %v5844 = vrot.slane %v5842, 5
        %v5845 = vsel %vm428, %v5840, %v5844
        %v5847 = vshrl.u32 %v5709, 16
        %v5849 = vrot.slane %v5847, 4
        %v5850 = vshll.u32 %v5709, 16
        %v5852 = vrot.slane %v5850, 5
        %v5853 = vor.u32 %v5849, %v5852
        %v5854 = vrot.slane %v5853, 4
        %v5856 = vshll.u32 %v5710, 16
        %v5858 = vrot.slane %v5856, 5
        %v5859 = vsel %vm428, %v5854, %v5858
        %v5860 = vshrl.u32 %v5710, 16
        %v5862 = vrot.slane %v5860, 4
        %v5863 = vor.u32 %v5862, %v5858
        %v5864 = vrot.slane %v5863, 4
        %v5866 = vshll.u32 %v5738, 16
        %v5868 = vrot.slane %v5866, 5
        %v5869 = vsel %vm428, %v5864, %v5868
        %v5871 = vshrl.u32 %v5711, 16
        %v5873 = vrot.slane %v5871, 4
        %v5874 = vshll.u32 %v5711, 16
        %v5876 = vrot.slane %v5874, 5
        %v5877 = vor.u32 %v5873, %v5876
        %v5878 = vrot.slane %v5877, 4
        %v5880 = vshll.u32 %v5712, 16
        %v5882 = vrot.slane %v5880, 5
        %v5883 = vsel %vm428, %v5878, %v5882
        %v5884 = vshrl.u32 %v5712, 16
        %v5886 = vrot.slane %v5884, 4
        %v5887 = vor.u32 %v5886, %v5882
        %v5888 = vrot.slane %v5887, 4
        %v5890 = vshll.u32 %v5739, 16
        %v5892 = vrot.slane %v5890, 5
        %v5893 = vsel %vm428, %v5888, %v5892
        %v5895 = vshrl.u32 %v5713, 16
        %v5897 = vrot.slane %v5895, 4
        %v5898 = vshll.u32 %v5713, 16
        %v5900 = vrot.slane %v5898, 5
        %v5901 = vor.u32 %v5897, %v5900
        %v5902 = vrot.slane %v5901, 4
        %v5904 = vshll.u32 %v5714, 16
        %v5906 = vrot.slane %v5904, 5
        %v5907 = vsel %vm428, %v5902, %v5906
        %v5908 = vshrl.u32 %v5714, 16
        %v5910 = vrot.slane %v5908, 4
        %v5911 = vor.u32 %v5910, %v5906
        %v5912 = vrot.slane %v5911, 4
        %v5914 = vshll.u32 %v5740, 16
        %v5916 = vrot.slane %v5914, 5
        %v5917 = vsel %vm428, %v5912, %v5916
        %v5919 = vshrl.u32 %v5715, 16
        %v5921 = vrot.slane %v5919, 4
        %v5922 = vshll.u32 %v5715, 16
        %v5924 = vrot.slane %v5922, 5
        %v5925 = vor.u32 %v5921, %v5924
        %v5926 = vrot.slane %v5925, 4
        %v5928 = vshll.u32 %v5716, 16
        %v5930 = vrot.slane %v5928, 5
        %v5931 = vsel %vm428, %v5926, %v5930
        %v5932 = vshrl.u32 %v5716, 16
        %v5934 = vrot.slane %v5932, 4
        %v5935 = vor.u32 %v5934, %v5930
        %v5936 = vrot.slane %v5935, 4
        %v5938 = vshll.u32 %v5741, 16
        %v5940 = vrot.slane %v5938, 5
        %v5941 = vsel %vm428, %v5936, %v5940
        %v5943 = vshrl.u32 %v5717, 16
        %v5945 = vrot.slane %v5943, 4
        %v5946 = vshll.u32 %v5717, 16
        %v5948 = vrot.slane %v5946, 5
        %v5949 = vor.u32 %v5945, %v5948
        %v5950 = vrot.slane %v5949, 4
        %v5952 = vshll.u32 %v5718, 16
        %v5954 = vrot.slane %v5952, 5
        %v5955 = vsel %vm428, %v5950, %v5954
        %v5956 = vshrl.u32 %v5718, 16
        %v5958 = vrot.slane %v5956, 4
        %v5959 = vor.u32 %v5958, %v5954
        %v5960 = vrot.slane %v5959, 4
        %v5962 = vshll.u32 %v5742, 16
        %v5964 = vrot.slane %v5962, 5
        %v5965 = vsel %vm428, %v5960, %v5964
        %v5967 = vshrl.u32 %v5719, 16
        %v5969 = vrot.slane %v5967, 4
        %v5970 = vshll.u32 %v5719, 16
        %v5972 = vrot.slane %v5970, 5
        %v5973 = vor.u32 %v5969, %v5972
        %v5974 = vrot.slane %v5973, 4
        %v5976 = vshll.u32 %v5720, 16
        %v5978 = vrot.slane %v5976, 5
        %v5979 = vsel %vm428, %v5974, %v5978
        %v5980 = vshrl.u32 %v5720, 16
        %v5982 = vrot.slane %v5980, 4
        %v5983 = vor.u32 %v5982, %v5978
        %v5984 = vrot.slane %v5983, 4
        %v5986 = vshll.u32 %v5743, 16
        %v5988 = vrot.slane %v5986, 5
        %v5989 = vsel %vm428, %v5984, %v5988
        %v5991 = vshrl.u32 %v5721, 16
        %v5993 = vrot.slane %v5991, 4
        %v5994 = vshll.u32 %v5721, 16
        %v5996 = vrot.slane %v5994, 5
        %v5997 = vor.u32 %v5993, %v5996
        %v5998 = vrot.slane %v5997, 4
        %v6000 = vshll.u32 %v5722, 16
        %v6002 = vrot.slane %v6000, 5
        %v6003 = vsel %vm428, %v5998, %v6002
        %v6004 = vshrl.u32 %v5722, 16
        %v6006 = vrot.slane %v6004, 4
        %v6007 = vor.u32 %v6006, %v6002
        %v6008 = vrot.slane %v6007, 4
        %v6010 = vshll.u32 %v5744, 16
        %v6012 = vrot.slane %v6010, 5
        %v6013 = vsel %vm428, %v6008, %v6012
        %v6015 = vshrl.u32 %v5723, 16
        %v6017 = vrot.slane %v6015, 4
        %v6018 = vshll.u32 %v5723, 16
        %v6020 = vrot.slane %v6018, 5
        %v6021 = vor.u32 %v6017, %v6020
        %v6022 = vrot.slane %v6021, 4
        %v6024 = vshll.u32 %v5724, 16
        %v6026 = vrot.slane %v6024, 5
        %v6027 = vsel %vm428, %v6022, %v6026
        %v6028 = vshrl.u32 %v5724, 16
        %v6030 = vrot.slane %v6028, 4
        %v6031 = vor.u32 %v6030, %v6026
        %v6032 = vrot.slane %v6031, 4
        %v6034 = vshll.u32 %v5745, 16
        %v6036 = vrot.slane %v6034, 5
        %v6037 = vsel %vm428, %v6032, %v6036
        %v6039 = vshrl.u32 %v5725, 16
        %v6041 = vrot.slane %v6039, 4
        %v6042 = vshll.u32 %v5725, 16
        %v6044 = vrot.slane %v6042, 5
        %v6045 = vor.u32 %v6041, %v6044
        %v6046 = vrot.slane %v6045, 4
        %v6048 = vshll.u32 %v5726, 16
        %v6050 = vrot.slane %v6048, 5
        %v6051 = vsel %vm428, %v6046, %v6050
        %v6052 = vshrl.u32 %v5726, 16
        %v6054 = vrot.slane %v6052, 4
        %v6055 = vor.u32 %v6054, %v6050
        %v6056 = vrot.slane %v6055, 4
        %v6058 = vshll.u32 %v5746, 16
        %v6060 = vrot.slane %v6058, 5
        %v6061 = vsel %vm428, %v6056, %v6060
        %v6063 = vshrl.u32 %v5727, 16
        %v6065 = vrot.slane %v6063, 4
        %v6066 = vshll.u32 %v5727, 16
        %v6068 = vrot.slane %v6066, 5
        %v6069 = vor.u32 %v6065, %v6068
        %v6070 = vrot.slane %v6069, 4
        %v6072 = vshll.u32 %v5728, 16
        %v6074 = vrot.slane %v6072, 5
        %v6075 = vsel %vm428, %v6070, %v6074
        %v6076 = vshrl.u32 %v5728, 16
        %v6078 = vrot.slane %v6076, 4
        %v6079 = vor.u32 %v6078, %v6074
        %v6080 = vrot.slane %v6079, 4
        %v6082 = vshll.u32 %v5747, 16
        %v6084 = vrot.slane %v6082, 5
        %v6085 = vsel %vm428, %v6080, %v6084
        %v6087 = vshrl.u32 %v5729, 16
        %v6089 = vrot.slane %v6087, 4
        %v6090 = vshll.u32 %v5729, 16
        %v6092 = vrot.slane %v6090, 5
        %v6093 = vor.u32 %v6089, %v6092
        %v6094 = vrot.slane %v6093, 4
        %v6096 = vshll.u32 %v5730, 16
        %v6098 = vrot.slane %v6096, 5
        %v6099 = vsel %vm428, %v6094, %v6098
        %v6100 = vshrl.u32 %v5730, 16
        %v6102 = vrot.slane %v6100, 4
        %v6103 = vor.u32 %v6102, %v6098
        %v6104 = vrot.slane %v6103, 4
        %v6106 = vshll.u32 %v5748, 16
        %v6108 = vrot.slane %v6106, 5
        %v6109 = vsel %vm428, %v6104, %v6108
        %v6111 = vshrl.u32 %v5731, 16
        %v6113 = vrot.slane %v6111, 4
        %v6114 = vshll.u32 %v5731, 16
        %v6116 = vrot.slane %v6114, 5
        %v6117 = vor.u32 %v6113, %v6116
        %v6118 = vrot.slane %v6117, 4
        %v6120 = vshll.u32 %v5732, 16
        %v6122 = vrot.slane %v6120, 5
        %v6123 = vsel %vm428, %v6118, %v6122
        %v6124 = vshrl.u32 %v5732, 16
        %v6126 = vrot.slane %v6124, 4
        %v6127 = vor.u32 %v6126, %v6122
        %v6128 = vrot.slane %v6127, 4
        %v6130 = vshll.u32 %v5749, 16
        %v6132 = vrot.slane %v6130, 5
        %v6133 = vsel %vm428, %v6128, %v6132
        %s6134 = scalar_lea.vmem [#allocation11], 2
        %v6135 = vld [vmem:[%s6134] sm:$0x3]
        %v6136 = vunpack.c.l.b16 %v5763
        %v6137 = vunpack.c.l.b16 %v5773
        %v6138 = vunpack.c.l.b16 %v5787
        %v6139 = vunpack.c.l.b16 %v5797
        %v6140 = vunpack.c.l.b16 %v5811
        %v6141 = vunpack.c.l.b16 %v5821
        %v6142 = vunpack.c.l.b16 %v5835
        %v6143 = vunpack.c.l.b16 %v5845
        %v6144 = vunpack.c.l.b16 %v5859
        %v6145 = vunpack.c.l.b16 %v5869
        %v6146 = vunpack.c.l.b16 %v5883
        %v6147 = vunpack.c.l.b16 %v5893
        %v6148 = vunpack.c.l.b16 %v5907
        %v6149 = vunpack.c.l.b16 %v5917
        %v6150 = vunpack.c.l.b16 %v5931
        %v6151 = vunpack.c.l.b16 %v5941
        %v6152 = vunpack.c.l.b16 %v5955
        %v6153 = vunpack.c.l.b16 %v5965
        %v6154 = vunpack.c.l.b16 %v5979
        %v6155 = vunpack.c.l.b16 %v5989
        %v6156 = vunpack.c.l.b16 %v6003
        %v6157 = vunpack.c.l.b16 %v6013
        %v6158 = vunpack.c.l.b16 %v6027
        %v6159 = vunpack.c.l.b16 %v6037
        %v6160 = vunpack.c.l.b16 %v6051
        %v6161 = vunpack.c.l.b16 %v6061
        %v6162 = vunpack.c.l.b16 %v6075
        %v6163 = vunpack.c.l.b16 %v6085
        %v6164 = vunpack.c.l.b16 %v6099
        %v6165 = vunpack.c.l.b16 %v6109
        %v6166 = vunpack.c.l.b16 %v6123
        %v6167 = vunpack.c.l.b16 %v6133
        %v6168 = vpack.c.b16 %v6137, %v6136
        %v6169 = vpack.c.b16 %v6139, %v6138
        %v6170 = vpack.c.b16 %v6141, %v6140
        %v6171 = vpack.c.b16 %v6143, %v6142
        %v6172 = vpack.c.b16 %v6145, %v6144
        %v6173 = vpack.c.b16 %v6147, %v6146
        %v6174 = vpack.c.b16 %v6149, %v6148
        %v6175 = vpack.c.b16 %v6151, %v6150
        %v6176 = vpack.c.b16 %v6153, %v6152
        %v6177 = vpack.c.b16 %v6155, %v6154
        %v6178 = vpack.c.b16 %v6157, %v6156
        %v6179 = vpack.c.b16 %v6159, %v6158
        %v6180 = vpack.c.b16 %v6161, %v6160
        %v6181 = vpack.c.b16 %v6163, %v6162
        %v6182 = vpack.c.b16 %v6165, %v6164
        %v6183 = vpack.c.b16 %v6167, %v6166
        %v6185 = vsel %vm863, %v6168, 0
        %v6188 = vsel %vm863, %v6169, 0
        %v6191 = vsel %vm863, %v6170, 0
        %v6194 = vsel %vm863, %v6171, 0
        %v6197 = vsel %vm863, %v6172, 0
        %v6200 = vsel %vm863, %v6173, 0
        %v6203 = vsel %vm863, %v6174, 0
        %v6206 = vsel %vm863, %v6175, 0
        %v6209 = vsel %vm863, %v6176, 0
        %v6212 = vsel %vm863, %v6177, 0
        %v6215 = vsel %vm863, %v6178, 0
        %v6218 = vsel %vm863, %v6179, 0
        %v6221 = vsel %vm863, %v6180, 0
        %v6224 = vsel %vm863, %v6181, 0
        %v6227 = vsel %vm863, %v6182, 0
        %v6230 = vsel %vm863, %v6183, 0
        %v6233 = vsel %vm912, %v6135, 0
        %6235 = vmatprep.subr.bf16.mxu0 0
        %6236 = vmatpush1.bf16.msra.mxu0 %v6233
        %6237 = vmatprep.subr.bf16.mxu0 0
        %6238 = vmatpush1.bf16.msra.mxu0 0
        %6239 = vmatprep.subr.bf16.mxu0 0
        %6240 = vmatpush1.bf16.msra.mxu0 0
        %6241 = vmatprep.subr.bf16.mxu0 0
        %6242 = vmatpush1.bf16.msra.mxu0 0
        %6243 = vmatprep.subr.bf16.mxu0 0
        %6244 = vmatpush1.bf16.msra.mxu0 0
        %6245 = vmatprep.subr.bf16.mxu0 0
        %6246 = vmatpush1.bf16.msra.mxu0 0
        %6247 = vmatprep.subr.bf16.mxu0 0
        %6248 = vmatpush1.bf16.msra.mxu0 0
        %6249 = vmatprep.subr.bf16.mxu0 0
        %6250 = vmatpush1.bf16.msra.mxu0 0
        %6251 = vmatprep.subr.bf16.mxu0 0
        %6252 = vmatpush1.bf16.msra.mxu0 0
        %6253 = vmatprep.subr.bf16.mxu0 0
        %6254 = vmatpush1.bf16.msra.mxu0 0
        %6255 = vmatprep.subr.bf16.mxu0 0
        %6256 = vmatpush1.bf16.msra.mxu0 0
        %6257 = vmatprep.subr.bf16.mxu0 0
        %6258 = vmatpush1.bf16.msra.mxu0 0
        %6259 = vmatprep.subr.bf16.mxu0 0
        %6260 = vmatpush1.bf16.msra.mxu0 0
        %6261 = vmatprep.subr.bf16.mxu0 0
        %6262 = vmatpush1.bf16.msra.mxu0 0
        %6263 = vmatprep.subr.bf16.mxu0 0
        %6264 = vmatpush1.bf16.msra.mxu0 0
        %6265 = vmatprep.subr.bf16.mxu0 0
        %6266 = vmatpush1.bf16.msra.mxu0 0
        %6267 = vmatprep.mubr.bf16.mxu0 0
        %6268 = vmatmul.mubr.bf16.gmra.mrb[0].mxu0 %v6185
        %v6269 = vpop.f32.mrb[0].mxu0
        %v6270 = vadd.f32 0.0, %v6269
        %v6271 = vpop.f32.mrb[0].mxu0
        %v6272 = vpop.f32.mrb[0].mxu0
        %v6273 = vadd.f32 0.0, %v6272
        %v6274 = vpop.f32.mrb[0].mxu0
        %6275 = vmatprep.mubr.bf16.mxu0 0
        %6276 = vmatmul.mubr.bf16.gmra.mrb[0].mxu0 %v6188
        %v6277 = vpop.f32.mrb[0].mxu0
        %v6278 = vadd.f32 0.0, %v6277
        %v6279 = vpop.f32.mrb[0].mxu0
        %v6280 = vpop.f32.mrb[0].mxu0
        %v6281 = vadd.f32 0.0, %v6280
        %v6282 = vpop.f32.mrb[0].mxu0
        %6283 = vmatprep.mubr.bf16.mxu0 0
        %6284 = vmatmul.mubr.bf16.gmra.mrb[0].mxu0 %v6191
        %v6285 = vpop.f32.mrb[0].mxu0
        %v6286 = vadd.f32 0.0, %v6285
        %v6287 = vpop.f32.mrb[0].mxu0
        %v6288 = vpop.f32.mrb[0].mxu0
        %v6289 = vadd.f32 0.0, %v6288
        %v6290 = vpop.f32.mrb[0].mxu0
        %6291 = vmatprep.mubr.bf16.mxu0 0
        %6292 = vmatmul.mubr.bf16.gmra.mrb[0].mxu0 %v6194
        %v6293 = vpop.f32.mrb[0].mxu0
        %v6294 = vadd.f32 0.0, %v6293
        %v6295 = vpop.f32.mrb[0].mxu0
        %v6296 = vpop.f32.mrb[0].mxu0
        %v6297 = vadd.f32 0.0, %v6296
        %v6298 = vpop.f32.mrb[0].mxu0
        %6299 = vmatprep.mubr.bf16.mxu0 0
        %6300 = vmatmul.mubr.bf16.gmra.mrb[0].mxu0 %v6197
        %v6301 = vpop.f32.mrb[0].mxu0
        %v6302 = vadd.f32 0.0, %v6301
        %v6303 = vpop.f32.mrb[0].mxu0
        %v6304 = vpop.f32.mrb[0].mxu0
        %v6305 = vadd.f32 0.0, %v6304
        %v6306 = vpop.f32.mrb[0].mxu0
        %6307 = vmatprep.mubr.bf16.mxu0 0
        %6308 = vmatmul.mubr.bf16.gmra.mrb[0].mxu0 %v6200
        %v6309 = vpop.f32.mrb[0].mxu0
        %v6310 = vadd.f32 0.0, %v6309
        %v6311 = vpop.f32.mrb[0].mxu0
        %v6312 = vpop.f32.mrb[0].mxu0
        %v6313 = vadd.f32 0.0, %v6312
        %v6314 = vpop.f32.mrb[0].mxu0
        %6315 = vmatprep.mubr.bf16.mxu0 0
        %6316 = vmatmul.mubr.bf16.gmra.mrb[0].mxu0 %v6203
        %v6317 = vpop.f32.mrb[0].mxu0
        %v6318 = vadd.f32 0.0, %v6317
        %v6319 = vpop.f32.mrb[0].mxu0
        %v6320 = vpop.f32.mrb[0].mxu0
        %v6321 = vadd.f32 0.0, %v6320
        %v6322 = vpop.f32.mrb[0].mxu0
        %6323 = vmatprep.mubr.bf16.mxu0 0
        %6324 = vmatmul.mubr.bf16.gmra.mrb[0].mxu0 %v6206
        %v6325 = vpop.f32.mrb[0].mxu0
        %v6326 = vadd.f32 0.0, %v6325
        %v6327 = vpop.f32.mrb[0].mxu0
        %v6328 = vpop.f32.mrb[0].mxu0
        %v6329 = vadd.f32 0.0, %v6328
        %v6330 = vpop.f32.mrb[0].mxu0
        %6331 = vmatprep.mubr.bf16.mxu0 0
        %6332 = vmatmul.mubr.bf16.gmra.mrb[0].mxu0 %v6209
        %v6333 = vpop.f32.mrb[0].mxu0
        %v6334 = vadd.f32 0.0, %v6333
        %v6335 = vpop.f32.mrb[0].mxu0
        %v6336 = vpop.f32.mrb[0].mxu0
        %v6337 = vadd.f32 0.0, %v6336
        %v6338 = vpop.f32.mrb[0].mxu0
        %6339 = vmatprep.mubr.bf16.mxu0 0
        %6340 = vmatmul.mubr.bf16.gmra.mrb[0].mxu0 %v6212
        %v6341 = vpop.f32.mrb[0].mxu0
        %v6342 = vadd.f32 0.0, %v6341
        %v6343 = vpop.f32.mrb[0].mxu0
        %v6344 = vpop.f32.mrb[0].mxu0
        %v6345 = vadd.f32 0.0, %v6344
        %v6346 = vpop.f32.mrb[0].mxu0
        %6347 = vmatprep.mubr.bf16.mxu0 0
        %6348 = vmatmul.mubr.bf16.gmra.mrb[0].mxu0 %v6215
        %v6349 = vpop.f32.mrb[0].mxu0
        %v6350 = vadd.f32 0.0, %v6349
        %v6351 = vpop.f32.mrb[0].mxu0
        %v6352 = vpop.f32.mrb[0].mxu0
        %v6353 = vadd.f32 0.0, %v6352
        %v6354 = vpop.f32.mrb[0].mxu0
        %6355 = vmatprep.mubr.bf16.mxu0 0
        %6356 = vmatmul.mubr.bf16.gmra.mrb[0].mxu0 %v6218
        %v6357 = vpop.f32.mrb[0].mxu0
        %v6358 = vadd.f32 0.0, %v6357
        %v6359 = vpop.f32.mrb[0].mxu0
        %v6360 = vpop.f32.mrb[0].mxu0
        %v6361 = vadd.f32 0.0, %v6360
        %v6362 = vpop.f32.mrb[0].mxu0
        %6363 = vmatprep.mubr.bf16.mxu0 0
        %6364 = vmatmul.mubr.bf16.gmra.mrb[0].mxu0 %v6221
        %v6365 = vpop.f32.mrb[0].mxu0
        %v6366 = vadd.f32 0.0, %v6365
        %v6367 = vpop.f32.mrb[0].mxu0
        %v6368 = vpop.f32.mrb[0].mxu0
        %v6369 = vadd.f32 0.0, %v6368
        %v6370 = vpop.f32.mrb[0].mxu0
        %6371 = vmatprep.mubr.bf16.mxu0 0
        %6372 = vmatmul.mubr.bf16.gmra.mrb[0].mxu0 %v6224
        %v6373 = vpop.f32.mrb[0].mxu0
        %v6374 = vadd.f32 0.0, %v6373
        %v6375 = vpop.f32.mrb[0].mxu0
        %v6376 = vpop.f32.mrb[0].mxu0
        %v6377 = vadd.f32 0.0, %v6376
        %v6378 = vpop.f32.mrb[0].mxu0
        %6379 = vmatprep.mubr.bf16.mxu0 0
        %6380 = vmatmul.mubr.bf16.gmra.mrb[0].mxu0 %v6227
        %v6381 = vpop.f32.mrb[0].mxu0
        %v6382 = vadd.f32 0.0, %v6381
        %v6383 = vpop.f32.mrb[0].mxu0
        %v6384 = vpop.f32.mrb[0].mxu0
        %v6385 = vadd.f32 0.0, %v6384
        %v6386 = vpop.f32.mrb[0].mxu0
        %6387 = vmatprep.mubr.bf16.mxu0 0
        %6388 = vmatmul.mubr.bf16.gmra.mrb[0].mxu0 %v6230
        %v6389 = vpop.f32.mrb[0].mxu0
        %v6390 = vadd.f32 0.0, %v6389
        %v6391 = vpop.f32.mrb[0].mxu0
        %v6392 = vpop.f32.mrb[0].mxu0
        %v6393 = vadd.f32 0.0, %v6392
        %v6394 = vpop.f32.mrb[0].mxu0
        %6395 = vdwg.mxu0
        %v6428 = vunpack.c.l.b16 %v5701
        %v6429 = vunpack.c.l.b16 %v5702
        %v6430 = vunpack.c.l.b16 %v5703
        %v6431 = vunpack.c.l.b16 %v5704
        %v6432 = vunpack.c.l.b16 %v5705
        %v6433 = vunpack.c.l.b16 %v5706
        %v6434 = vunpack.c.l.b16 %v5707
        %v6435 = vunpack.c.l.b16 %v5708
        %v6436 = vunpack.c.l.b16 %v5709
        %v6437 = vunpack.c.l.b16 %v5710
        %v6438 = vunpack.c.l.b16 %v5711
        %v6439 = vunpack.c.l.b16 %v5712
        %v6440 = vunpack.c.l.b16 %v5713
        %v6441 = vunpack.c.l.b16 %v5714
        %v6442 = vunpack.c.l.b16 %v5715
        %v6443 = vunpack.c.l.b16 %v5716
        %v6444 = vunpack.c.l.b16 %v5717
        %v6445 = vunpack.c.l.b16 %v5718
        %v6446 = vunpack.c.l.b16 %v5719
        %v6447 = vunpack.c.l.b16 %v5720
        %v6448 = vunpack.c.l.b16 %v5721
        %v6449 = vunpack.c.l.b16 %v5722
        %v6450 = vunpack.c.l.b16 %v5723
        %v6451 = vunpack.c.l.b16 %v5724
        %v6452 = vunpack.c.l.b16 %v5725
        %v6453 = vunpack.c.l.b16 %v5726
        %v6454 = vunpack.c.l.b16 %v5727
        %v6455 = vunpack.c.l.b16 %v5728
        %v6456 = vunpack.c.l.b16 %v5729
        %v6457 = vunpack.c.l.b16 %v5730
        %v6458 = vunpack.c.l.b16 %v5731
        %v6459 = vunpack.c.l.b16 %v5732
        %v6460 = vpack.c.b16 %v6429, %v6428
        %v6461 = vpack.c.b16 %v6431, %v6430
        %v6462 = vpack.c.b16 %v6433, %v6432
        %v6463 = vpack.c.b16 %v6435, %v6434
        %v6464 = vpack.c.b16 %v6437, %v6436
        %v6465 = vpack.c.b16 %v6439, %v6438
        %v6466 = vpack.c.b16 %v6441, %v6440
        %v6467 = vpack.c.b16 %v6443, %v6442
        %v6468 = vpack.c.b16 %v6445, %v6444
        %v6469 = vpack.c.b16 %v6447, %v6446
        %v6470 = vpack.c.b16 %v6449, %v6448
        %v6471 = vpack.c.b16 %v6451, %v6450
        %v6472 = vpack.c.b16 %v6453, %v6452
        %v6473 = vpack.c.b16 %v6455, %v6454
        %v6474 = vpack.c.b16 %v6457, %v6456
        %v6475 = vpack.c.b16 %v6459, %v6458
        %v6477 = vsel %vm863, %v6460, 0
        %v6480 = vsel %vm863, %v6461, 0
        %v6483 = vsel %vm863, %v6462, 0
        %v6486 = vsel %vm863, %v6463, 0
        %v6489 = vsel %vm863, %v6464, 0
        %v6492 = vsel %vm863, %v6465, 0
        %v6495 = vsel %vm863, %v6466, 0
        %v6498 = vsel %vm863, %v6467, 0
        %v6501 = vsel %vm863, %v6468, 0
        %v6504 = vsel %vm863, %v6469, 0
        %v6507 = vsel %vm863, %v6470, 0
        %v6510 = vsel %vm863, %v6471, 0
        %v6513 = vsel %vm863, %v6472, 0
        %v6516 = vsel %vm863, %v6473, 0
        %v6519 = vsel %vm863, %v6474, 0
        %v6522 = vsel %vm863, %v6475, 0
        %v6525 = vsel %vm912, %v5733, 0
        %6527 = vmatprep.subr.bf16.mxu0 0
        %6528 = vmatpush1.bf16.msra.mxu0 %v6525
        %6529 = vmatprep.subr.bf16.mxu0 0
        %6530 = vmatpush1.bf16.msra.mxu0 0
        %6531 = vmatprep.subr.bf16.mxu0 0
        %6532 = vmatpush1.bf16.msra.mxu0 0
        %6533 = vmatprep.subr.bf16.mxu0 0
        %6534 = vmatpush1.bf16.msra.mxu0 0
        %6535 = vmatprep.subr.bf16.mxu0 0
        %6536 = vmatpush1.bf16.msra.mxu0 0
        %6537 = vmatprep.subr.bf16.mxu0 0
        %6538 = vmatpush1.bf16.msra.mxu0 0
        %6539 = vmatprep.subr.bf16.mxu0 0
        %6540 = vmatpush1.bf16.msra.mxu0 0
        %6541 = vmatprep.subr.bf16.mxu0 0
        %6542 = vmatpush1.bf16.msra.mxu0 0
        %6543 = vmatprep.subr.bf16.mxu0 0
        %6544 = vmatpush1.bf16.msra.mxu0 0
        %6545 = vmatprep.subr.bf16.mxu0 0
        %6546 = vmatpush1.bf16.msra.mxu0 0
        %6547 = vmatprep.subr.bf16.mxu0 0
        %6548 = vmatpush1.bf16.msra.mxu0 0
        %6549 = vmatprep.subr.bf16.mxu0 0
        %6550 = vmatpush1.bf16.msra.mxu0 0
        %6551 = vmatprep.subr.bf16.mxu0 0
        %6552 = vmatpush1.bf16.msra.mxu0 0
        %6553 = vmatprep.subr.bf16.mxu0 0
        %6554 = vmatpush1.bf16.msra.mxu0 0
        %6555 = vmatprep.subr.bf16.mxu0 0
        %6556 = vmatpush1.bf16.msra.mxu0 0
        %6557 = vmatprep.subr.bf16.mxu0 0
        %6558 = vmatpush1.bf16.msra.mxu0 0
        %6559 = vmatprep.mubr.bf16.mxu0 0
        %6560 = vmatmul.mubr.bf16.gmra.mrb[0].mxu0 %v6477
        %v6561 = vpop.f32.mrb[0].mxu0
        %v6562 = vadd.f32 %v6270, %v6561
        %v6563 = vpop.f32.mrb[0].mxu0
        %v6564 = vpop.f32.mrb[0].mxu0
        %v6565 = vadd.f32 %v6273, %v6564
        %v6566 = vpop.f32.mrb[0].mxu0
        %6567 = vmatprep.mubr.bf16.mxu0 0
        %6568 = vmatmul.mubr.bf16.gmra.mrb[0].mxu0 %v6480
        %v6569 = vpop.f32.mrb[0].mxu0
        %v6570 = vadd.f32 %v6278, %v6569
        %v6571 = vpop.f32.mrb[0].mxu0
        %v6572 = vpop.f32.mrb[0].mxu0
        %v6573 = vadd.f32 %v6281, %v6572
        %v6574 = vpop.f32.mrb[0].mxu0
        %6575 = vmatprep.mubr.bf16.mxu0 0
        %6576 = vmatmul.mubr.bf16.gmra.mrb[0].mxu0 %v6483
        %v6577 = vpop.f32.mrb[0].mxu0
        %v6578 = vadd.f32 %v6286, %v6577
        %v6579 = vpop.f32.mrb[0].mxu0
        %v6580 = vpop.f32.mrb[0].mxu0
        %v6581 = vadd.f32 %v6289, %v6580
        %v6582 = vpop.f32.mrb[0].mxu0
        %6583 = vmatprep.mubr.bf16.mxu0 0
        %6584 = vmatmul.mubr.bf16.gmra.mrb[0].mxu0 %v6486
        %v6585 = vpop.f32.mrb[0].mxu0
        %v6586 = vadd.f32 %v6294, %v6585
        %v6587 = vpop.f32.mrb[0].mxu0
        %v6588 = vpop.f32.mrb[0].mxu0
        %v6589 = vadd.f32 %v6297, %v6588
        %v6590 = vpop.f32.mrb[0].mxu0
        %6591 = vmatprep.mubr.bf16.mxu0 0
        %6592 = vmatmul.mubr.bf16.gmra.mrb[0].mxu0 %v6489
        %v6593 = vpop.f32.mrb[0].mxu0
        %v6594 = vadd.f32 %v6302, %v6593
        %v6595 = vpop.f32.mrb[0].mxu0
        %v6596 = vpop.f32.mrb[0].mxu0
        %v6597 = vadd.f32 %v6305, %v6596
        %v6598 = vpop.f32.mrb[0].mxu0
        %6599 = vmatprep.mubr.bf16.mxu0 0
        %6600 = vmatmul.mubr.bf16.gmra.mrb[0].mxu0 %v6492
        %v6601 = vpop.f32.mrb[0].mxu0
        %v6602 = vadd.f32 %v6310, %v6601
        %v6603 = vpop.f32.mrb[0].mxu0
        %v6604 = vpop.f32.mrb[0].mxu0
        %v6605 = vadd.f32 %v6313, %v6604
        %v6606 = vpop.f32.mrb[0].mxu0
        %6607 = vmatprep.mubr.bf16.mxu0 0
        %6608 = vmatmul.mubr.bf16.gmra.mrb[0].mxu0 %v6495
        %v6609 = vpop.f32.mrb[0].mxu0
        %v6610 = vadd.f32 %v6318, %v6609
        %v6611 = vpop.f32.mrb[0].mxu0
        %v6612 = vpop.f32.mrb[0].mxu0
        %v6613 = vadd.f32 %v6321, %v6612
        %v6614 = vpop.f32.mrb[0].mxu0
        %6615 = vmatprep.mubr.bf16.mxu0 0
        %6616 = vmatmul.mubr.bf16.gmra.mrb[0].mxu0 %v6498
        %v6617 = vpop.f32.mrb[0].mxu0
        %v6618 = vadd.f32 %v6326, %v6617
        %v6619 = vpop.f32.mrb[0].mxu0
        %v6620 = vpop.f32.mrb[0].mxu0
        %v6621 = vadd.f32 %v6329, %v6620
        %v6622 = vpop.f32.mrb[0].mxu0
        %6623 = vmatprep.mubr.bf16.mxu0 0
        %6624 = vmatmul.mubr.bf16.gmra.mrb[0].mxu0 %v6501
        %v6625 = vpop.f32.mrb[0].mxu0
        %v6626 = vadd.f32 %v6334, %v6625
        %v6627 = vpop.f32.mrb[0].mxu0
        %v6628 = vpop.f32.mrb[0].mxu0
        %v6629 = vadd.f32 %v6337, %v6628
        %v6630 = vpop.f32.mrb[0].mxu0
        %6631 = vmatprep.mubr.bf16.mxu0 0
        %6632 = vmatmul.mubr.bf16.gmra.mrb[0].mxu0 %v6504
        %v6633 = vpop.f32.mrb[0].mxu0
        %v6634 = vadd.f32 %v6342, %v6633
        %v6635 = vpop.f32.mrb[0].mxu0
        %v6636 = vpop.f32.mrb[0].mxu0
        %v6637 = vadd.f32 %v6345, %v6636
        %v6638 = vpop.f32.mrb[0].mxu0
        %6639 = vmatprep.mubr.bf16.mxu0 0
        %6640 = vmatmul.mubr.bf16.gmra.mrb[0].mxu0 %v6507
        %v6641 = vpop.f32.mrb[0].mxu0
        %v6642 = vadd.f32 %v6350, %v6641
        %v6643 = vpop.f32.mrb[0].mxu0
        %v6644 = vpop.f32.mrb[0].mxu0
        %v6645 = vadd.f32 %v6353, %v6644
        %v6646 = vpop.f32.mrb[0].mxu0
        %6647 = vmatprep.mubr.bf16.mxu0 0
        %6648 = vmatmul.mubr.bf16.gmra.mrb[0].mxu0 %v6510
        %v6649 = vpop.f32.mrb[0].mxu0
        %v6650 = vadd.f32 %v6358, %v6649
        %v6651 = vpop.f32.mrb[0].mxu0
        %v6652 = vpop.f32.mrb[0].mxu0
        %v6653 = vadd.f32 %v6361, %v6652
        %v6654 = vpop.f32.mrb[0].mxu0
        %6655 = vmatprep.mubr.bf16.mxu0 0
        %6656 = vmatmul.mubr.bf16.gmra.mrb[0].mxu0 %v6513
        %v6657 = vpop.f32.mrb[0].mxu0
        %v6658 = vadd.f32 %v6366, %v6657
        %v6659 = vpop.f32.mrb[0].mxu0
        %v6660 = vpop.f32.mrb[0].mxu0
        %v6661 = vadd.f32 %v6369, %v6660
        %v6662 = vpop.f32.mrb[0].mxu0
        %6663 = vmatprep.mubr.bf16.mxu0 0
        %6664 = vmatmul.mubr.bf16.gmra.mrb[0].mxu0 %v6516
        %v6665 = vpop.f32.mrb[0].mxu0
        %v6666 = vadd.f32 %v6374, %v6665
        %v6667 = vpop.f32.mrb[0].mxu0
        %v6668 = vpop.f32.mrb[0].mxu0
        %v6669 = vadd.f32 %v6377, %v6668
        %v6670 = vpop.f32.mrb[0].mxu0
        %6671 = vmatprep.mubr.bf16.mxu0 0
        %6672 = vmatmul.mubr.bf16.gmra.mrb[0].mxu0 %v6519
        %v6673 = vpop.f32.mrb[0].mxu0
        %v6674 = vadd.f32 %v6382, %v6673
        %v6675 = vpop.f32.mrb[0].mxu0
        %v6676 = vpop.f32.mrb[0].mxu0
        %v6677 = vadd.f32 %v6385, %v6676
        %v6678 = vpop.f32.mrb[0].mxu0
        %6679 = vmatprep.mubr.bf16.mxu0 0
        %6680 = vmatmul.mubr.bf16.gmra.mrb[0].mxu0 %v6522
        %v6681 = vpop.f32.mrb[0].mxu0
        %v6682 = vadd.f32 %v6390, %v6681
        %v6683 = vpop.f32.mrb[0].mxu0
        %v6684 = vpop.f32.mrb[0].mxu0
        %v6685 = vadd.f32 %v6393, %v6684
        %v6686 = vpop.f32.mrb[0].mxu0
        %6687 = vdwg.mxu0
        %v6688 = vld [vmem:[#allocation2] sm:$0xe]
        %v6689 = vld [vmem:[#allocation2 + $0xc] sm:$0xe]
        %v6690 = vld [vmem:[#allocation2 + $0x18] sm:$0xe]
        %v6691 = vld [vmem:[#allocation2 + $0x24] sm:$0xe]
        %v6692 = vld [vmem:[#allocation2 + $0x30] sm:$0xe]
        %v6693 = vld [vmem:[#allocation2 + $0x3c] sm:$0xe]
        %v6694 = vld [vmem:[#allocation2 + $0x48] sm:$0xe]
        %v6695 = vld [vmem:[#allocation2 + $0x54] sm:$0xe]
        %v6696 = vld [vmem:[#allocation2 + $0x60] sm:$0xe]
        %v6697 = vld [vmem:[#allocation2 + $0x6c] sm:$0xe]
        %v6698 = vld [vmem:[#allocation2 + $0x78] sm:$0xe]
        %v6699 = vld [vmem:[#allocation2 + $0x84] sm:$0xe]
        %v6700 = vld [vmem:[#allocation2 + $0x90] sm:$0xe]
        %v6701 = vld [vmem:[#allocation2 + $0x9c] sm:$0xe]
        %v6702 = vld [vmem:[#allocation2 + $0xa8] sm:$0xe]
        %v6703 = vld [vmem:[#allocation2 + $0xb4] sm:$0xe]
        %v6736 = vrot.slane %v6688, 5
        %v6737 = vrot.slane %v6736, 4
        %v6738 = vrot.slane %v5702, 5
        %v6739 = vsel %vm1419, %v6737, %v6738
        %v6740 = vrot.slane %v6738, 4
        %v6741 = vrot.slane %v5734, 5
        %v6742 = vsel %vm1419, %v6740, %v6741
        %v6743 = vrot.slane %v6689, 5
        %v6744 = vrot.slane %v6743, 4
        %v6745 = vrot.slane %v5704, 5
        %v6746 = vsel %vm1419, %v6744, %v6745
        %v6747 = vrot.slane %v6745, 4
        %v6748 = vrot.slane %v5735, 5
        %v6749 = vsel %vm1419, %v6747, %v6748
        %v6750 = vrot.slane %v6690, 5
        %v6751 = vrot.slane %v6750, 4
        %v6752 = vrot.slane %v5706, 5
        %v6753 = vsel %vm1419, %v6751, %v6752
        %v6754 = vrot.slane %v6752, 4
        %v6755 = vrot.slane %v5736, 5
        %v6756 = vsel %vm1419, %v6754, %v6755
        %v6757 = vrot.slane %v6691, 5
        %v6758 = vrot.slane %v6757, 4
        %v6759 = vrot.slane %v5708, 5
        %v6760 = vsel %vm1419, %v6758, %v6759
        %v6761 = vrot.slane %v6759, 4
        %v6762 = vrot.slane %v5737, 5
        %v6763 = vsel %vm1419, %v6761, %v6762
        %v6764 = vrot.slane %v6692, 5
        %v6765 = vrot.slane %v6764, 4
        %v6766 = vrot.slane %v5710, 5
        %v6767 = vsel %vm1419, %v6765, %v6766
        %v6768 = vrot.slane %v6766, 4
        %v6769 = vrot.slane %v5738, 5
        %v6770 = vsel %vm1419, %v6768, %v6769
        %v6771 = vrot.slane %v6693, 5
        %v6772 = vrot.slane %v6771, 4
        %v6773 = vrot.slane %v5712, 5
        %v6774 = vsel %vm1419, %v6772, %v6773
        %v6775 = vrot.slane %v6773, 4
        %v6776 = vrot.slane %v5739, 5
        %v6777 = vsel %vm1419, %v6775, %v6776
        %v6778 = vrot.slane %v6694, 5
        %v6779 = vrot.slane %v6778, 4
        %v6780 = vrot.slane %v5714, 5
        %v6781 = vsel %vm1419, %v6779, %v6780
        %v6782 = vrot.slane %v6780, 4
        %v6783 = vrot.slane %v5740, 5
        %v6784 = vsel %vm1419, %v6782, %v6783
        %v6785 = vrot.slane %v6695, 5
        %v6786 = vrot.slane %v6785, 4
        %v6787 = vrot.slane %v5716, 5
        %v6788 = vsel %vm1419, %v6786, %v6787
        %v6789 = vrot.slane %v6787, 4
        %v6790 = vrot.slane %v5741, 5
        %v6791 = vsel %vm1419, %v6789, %v6790
        %v6792 = vrot.slane %v6696, 5
        %v6793 = vrot.slane %v6792, 4
        %v6794 = vrot.slane %v5718, 5
        %v6795 = vsel %vm1419, %v6793, %v6794
        %v6796 = vrot.slane %v6794, 4
        %v6797 = vrot.slane %v5742, 5
        %v6798 = vsel %vm1419, %v6796, %v6797
        %v6799 = vrot.slane %v6697, 5
        %v6800 = vrot.slane %v6799, 4
        %v6801 = vrot.slane %v5720, 5
        %v6802 = vsel %vm1419, %v6800, %v6801
        %v6803 = vrot.slane %v6801, 4
        %v6804 = vrot.slane %v5743, 5
        %v6805 = vsel %vm1419, %v6803, %v6804
        %v6806 = vrot.slane %v6698, 5
        %v6807 = vrot.slane %v6806, 4
        %v6808 = vrot.slane %v5722, 5
        %v6809 = vsel %vm1419, %v6807, %v6808
        %v6810 = vrot.slane %v6808, 4
        %v6811 = vrot.slane %v5744, 5
        %v6812 = vsel %vm1419, %v6810, %v6811
        %v6813 = vrot.slane %v6699, 5
        %v6814 = vrot.slane %v6813, 4
        %v6815 = vrot.slane %v5724, 5
        %v6816 = vsel %vm1419, %v6814, %v6815
        %v6817 = vrot.slane %v6815, 4
        %v6818 = vrot.slane %v5745, 5
        %v6819 = vsel %vm1419, %v6817, %v6818
        %v6820 = vrot.slane %v6700, 5
        %v6821 = vrot.slane %v6820, 4
        %v6822 = vrot.slane %v5726, 5
        %v6823 = vsel %vm1419, %v6821, %v6822
        %v6824 = vrot.slane %v6822, 4
        %v6825 = vrot.slane %v5746, 5
        %v6826 = vsel %vm1419, %v6824, %v6825
        %v6827 = vrot.slane %v6701, 5
        %v6828 = vrot.slane %v6827, 4
        %v6829 = vrot.slane %v5728, 5
        %v6830 = vsel %vm1419, %v6828, %v6829
        %v6831 = vrot.slane %v6829, 4
        %v6832 = vrot.slane %v5747, 5
        %v6833 = vsel %vm1419, %v6831, %v6832
        %v6834 = vrot.slane %v6702, 5
        %v6835 = vrot.slane %v6834, 4
        %v6836 = vrot.slane %v5730, 5
        %v6837 = vsel %vm1419, %v6835, %v6836
        %v6838 = vrot.slane %v6836, 4
        %v6839 = vrot.slane %v5748, 5
        %v6840 = vsel %vm1419, %v6838, %v6839
        %v6841 = vrot.slane %v6703, 5
        %v6842 = vrot.slane %v6841, 4
        %v6843 = vrot.slane %v5732, 5
        %v6844 = vsel %vm1419, %v6842, %v6843
        %v6845 = vrot.slane %v6843, 4
        %v6846 = vrot.slane %v5749, 5
        %v6847 = vsel %vm1419, %v6845, %v6846
        %s6848 = scalar_lea.vmem [#allocation11], 4
        %v6849 = vld [vmem:[%s6848] sm:$0x3]
        %v6850 = vunpack.c.l.b16 %v6739
        %v6851 = vunpack.c.l.b16 %v6742
        %v6852 = vunpack.c.l.b16 %v6746
        %v6853 = vunpack.c.l.b16 %v6749
        %v6854 = vunpack.c.l.b16 %v6753
        %v6855 = vunpack.c.l.b16 %v6756
        %v6856 = vunpack.c.l.b16 %v6760
        %v6857 = vunpack.c.l.b16 %v6763
        %v6858 = vunpack.c.l.b16 %v6767
        %v6859 = vunpack.c.l.b16 %v6770
        %v6860 = vunpack.c.l.b16 %v6774
        %v6861 = vunpack.c.l.b16 %v6777
        %v6862 = vunpack.c.l.b16 %v6781
        %v6863 = vunpack.c.l.b16 %v6784
        %v6864 = vunpack.c.l.b16 %v6788
        %v6865 = vunpack.c.l.b16 %v6791
        %v6866 = vunpack.c.l.b16 %v6795
        %v6867 = vunpack.c.l.b16 %v6798
        %v6868 = vunpack.c.l.b16 %v6802
        %v6869 = vunpack.c.l.b16 %v6805
        %v6870 = vunpack.c.l.b16 %v6809
        %v6871 = vunpack.c.l.b16 %v6812
        %v6872 = vunpack.c.l.b16 %v6816
        %v6873 = vunpack.c.l.b16 %v6819
        %v6874 = vunpack.c.l.b16 %v6823
        %v6875 = vunpack.c.l.b16 %v6826
        %v6876 = vunpack.c.l.b16 %v6830
        %v6877 = vunpack.c.l.b16 %v6833
        %v6878 = vunpack.c.l.b16 %v6837
        %v6879 = vunpack.c.l.b16 %v6840
        %v6880 = vunpack.c.l.b16 %v6844
        %v6881 = vunpack.c.l.b16 %v6847
        %v6882 = vpack.c.b16 %v6851, %v6850
        %v6883 = vpack.c.b16 %v6853, %v6852
        %v6884 = vpack.c.b16 %v6855, %v6854
        %v6885 = vpack.c.b16 %v6857, %v6856
        %v6886 = vpack.c.b16 %v6859, %v6858
        %v6887 = vpack.c.b16 %v6861, %v6860
        %v6888 = vpack.c.b16 %v6863, %v6862
        %v6889 = vpack.c.b16 %v6865, %v6864
        %v6890 = vpack.c.b16 %v6867, %v6866
        %v6891 = vpack.c.b16 %v6869, %v6868
        %v6892 = vpack.c.b16 %v6871, %v6870
        %v6893 = vpack.c.b16 %v6873, %v6872
        %v6894 = vpack.c.b16 %v6875, %v6874
        %v6895 = vpack.c.b16 %v6877, %v6876
        %v6896 = vpack.c.b16 %v6879, %v6878
        %v6897 = vpack.c.b16 %v6881, %v6880
        %v6899 = vsel %vm863, %v6882, 0
        %v6902 = vsel %vm863, %v6883, 0
        %v6905 = vsel %vm863, %v6884, 0
        %v6908 = vsel %vm863, %v6885, 0
        %v6911 = vsel %vm863, %v6886, 0
        %v6914 = vsel %vm863, %v6887, 0
        %v6917 = vsel %vm863, %v6888, 0
        %v6920 = vsel %vm863, %v6889, 0
        %v6923 = vsel %vm863, %v6890, 0
        %v6926 = vsel %vm863, %v6891, 0
        %v6929 = vsel %vm863, %v6892, 0
        %v6932 = vsel %vm863, %v6893, 0
        %v6935 = vsel %vm863, %v6894, 0
        %v6938 = vsel %vm863, %v6895, 0
        %v6941 = vsel %vm863, %v6896, 0
        %v6944 = vsel %vm863, %v6897, 0
        %v6947 = vsel %vm912, %v6849, 0
        %6949 = vmatprep.subr.bf16.mxu0 0
        %6950 = vmatpush1.bf16.msra.mxu0 %v6947
        %6951 = vmatprep.subr.bf16.mxu0 0
        %6952 = vmatpush1.bf16.msra.mxu0 0
        %6953 = vmatprep.subr.bf16.mxu0 0
        %6954 = vmatpush1.bf16.msra.mxu0 0
        %6955 = vmatprep.subr.bf16.mxu0 0
        %6956 = vmatpush1.bf16.msra.mxu0 0
        %6957 = vmatprep.subr.bf16.mxu0 0
        %6958 = vmatpush1.bf16.msra.mxu0 0
        %6959 = vmatprep.subr.bf16.mxu0 0
        %6960 = vmatpush1.bf16.msra.mxu0 0
        %6961 = vmatprep.subr.bf16.mxu0 0
        %6962 = vmatpush1.bf16.msra.mxu0 0
        %6963 = vmatprep.subr.bf16.mxu0 0
        %6964 = vmatpush1.bf16.msra.mxu0 0
        %6965 = vmatprep.subr.bf16.mxu0 0
        %6966 = vmatpush1.bf16.msra.mxu0 0
        %6967 = vmatprep.subr.bf16.mxu0 0
        %6968 = vmatpush1.bf16.msra.mxu0 0
        %6969 = vmatprep.subr.bf16.mxu0 0
        %6970 = vmatpush1.bf16.msra.mxu0 0
        %6971 = vmatprep.subr.bf16.mxu0 0
        %6972 = vmatpush1.bf16.msra.mxu0 0
        %6973 = vmatprep.subr.bf16.mxu0 0
        %6974 = vmatpush1.bf16.msra.mxu0 0
        %6975 = vmatprep.subr.bf16.mxu0 0
        %6976 = vmatpush1.bf16.msra.mxu0 0
        %6977 = vmatprep.subr.bf16.mxu0 0
        %6978 = vmatpush1.bf16.msra.mxu0 0
        %6979 = vmatprep.subr.bf16.mxu0 0
        %6980 = vmatpush1.bf16.msra.mxu0 0
        %6981 = vmatprep.mubr.bf16.mxu0 0
        %6982 = vmatmul.mubr.bf16.gmra.mrb[0].mxu0 %v6899
        %v6983 = vpop.f32.mrb[0].mxu0
        %v6984 = vadd.f32 0.0, %v6983
        %v6985 = vpop.f32.mrb[0].mxu0
        %v6986 = vpop.f32.mrb[0].mxu0
        %v6987 = vadd.f32 0.0, %v6986
        %v6988 = vpop.f32.mrb[0].mxu0
        %6989 = vmatprep.mubr.bf16.mxu0 0
        %6990 = vmatmul.mubr.bf16.gmra.mrb[0].mxu0 %v6902
        %v6991 = vpop.f32.mrb[0].mxu0
        %v6992 = vadd.f32 0.0, %v6991
        %v6993 = vpop.f32.mrb[0].mxu0
        %v6994 = vpop.f32.mrb[0].mxu0
        %v6995 = vadd.f32 0.0, %v6994
        %v6996 = vpop.f32.mrb[0].mxu0
        %6997 = vmatprep.mubr.bf16.mxu0 0
        %6998 = vmatmul.mubr.bf16.gmra.mrb[0].mxu0 %v6905
        %v6999 = vpop.f32.mrb[0].mxu0
        %v7000 = vadd.f32 0.0, %v6999
        %v7001 = vpop.f32.mrb[0].mxu0
        %v7002 = vpop.f32.mrb[0].mxu0
        %v7003 = vadd.f32 0.0, %v7002
        %v7004 = vpop.f32.mrb[0].mxu0
        %7005 = vmatprep.mubr.bf16.mxu0 0
        %7006 = vmatmul.mubr.bf16.gmra.mrb[0].mxu0 %v6908
        %v7007 = vpop.f32.mrb[0].mxu0
        %v7008 = vadd.f32 0.0, %v7007
        %v7009 = vpop.f32.mrb[0].mxu0
        %v7010 = vpop.f32.mrb[0].mxu0
        %v7011 = vadd.f32 0.0, %v7010
        %v7012 = vpop.f32.mrb[0].mxu0
        %7013 = vmatprep.mubr.bf16.mxu0 0
        %7014 = vmatmul.mubr.bf16.gmra.mrb[0].mxu0 %v6911
        %v7015 = vpop.f32.mrb[0].mxu0
        %v7016 = vadd.f32 0.0, %v7015
        %v7017 = vpop.f32.mrb[0].mxu0
        %v7018 = vpop.f32.mrb[0].mxu0
        %v7019 = vadd.f32 0.0, %v7018
        %v7020 = vpop.f32.mrb[0].mxu0
        %7021 = vmatprep.mubr.bf16.mxu0 0
        %7022 = vmatmul.mubr.bf16.gmra.mrb[0].mxu0 %v6914
        %v7023 = vpop.f32.mrb[0].mxu0
        %v7024 = vadd.f32 0.0, %v7023
        %v7025 = vpop.f32.mrb[0].mxu0
        %v7026 = vpop.f32.mrb[0].mxu0
        %v7027 = vadd.f32 0.0, %v7026
        %v7028 = vpop.f32.mrb[0].mxu0
        %7029 = vmatprep.mubr.bf16.mxu0 0
        %7030 = vmatmul.mubr.bf16.gmra.mrb[0].mxu0 %v6917
        %v7031 = vpop.f32.mrb[0].mxu0
        %v7032 = vadd.f32 0.0, %v7031
        %v7033 = vpop.f32.mrb[0].mxu0
        %v7034 = vpop.f32.mrb[0].mxu0
        %v7035 = vadd.f32 0.0, %v7034
        %v7036 = vpop.f32.mrb[0].mxu0
        %7037 = vmatprep.mubr.bf16.mxu0 0
        %7038 = vmatmul.mubr.bf16.gmra.mrb[0].mxu0 %v6920
        %v7039 = vpop.f32.mrb[0].mxu0
        %v7040 = vadd.f32 0.0, %v7039
        %v7041 = vpop.f32.mrb[0].mxu0
        %v7042 = vpop.f32.mrb[0].mxu0
        %v7043 = vadd.f32 0.0, %v7042
        %v7044 = vpop.f32.mrb[0].mxu0
        %7045 = vmatprep.mubr.bf16.mxu0 0
        %7046 = vmatmul.mubr.bf16.gmra.mrb[0].mxu0 %v6923
        %v7047 = vpop.f32.mrb[0].mxu0
        %v7048 = vadd.f32 0.0, %v7047
        %v7049 = vpop.f32.mrb[0].mxu0
        %v7050 = vpop.f32.mrb[0].mxu0
        %v7051 = vadd.f32 0.0, %v7050
        %v7052 = vpop.f32.mrb[0].mxu0
        %7053 = vmatprep.mubr.bf16.mxu0 0
        %7054 = vmatmul.mubr.bf16.gmra.mrb[0].mxu0 %v6926
        %v7055 = vpop.f32.mrb[0].mxu0
        %v7056 = vadd.f32 0.0, %v7055
        %v7057 = vpop.f32.mrb[0].mxu0
        %v7058 = vpop.f32.mrb[0].mxu0
        %v7059 = vadd.f32 0.0, %v7058
        %v7060 = vpop.f32.mrb[0].mxu0
        %7061 = vmatprep.mubr.bf16.mxu0 0
        %7062 = vmatmul.mubr.bf16.gmra.mrb[0].mxu0 %v6929
        %v7063 = vpop.f32.mrb[0].mxu0
        %v7064 = vadd.f32 0.0, %v7063
        %v7065 = vpop.f32.mrb[0].mxu0
        %v7066 = vpop.f32.mrb[0].mxu0
        %v7067 = vadd.f32 0.0, %v7066
        %v7068 = vpop.f32.mrb[0].mxu0
        %7069 = vmatprep.mubr.bf16.mxu0 0
        %7070 = vmatmul.mubr.bf16.gmra.mrb[0].mxu0 %v6932
        %v7071 = vpop.f32.mrb[0].mxu0
        %v7072 = vadd.f32 0.0, %v7071
        %v7073 = vpop.f32.mrb[0].mxu0
        %v7074 = vpop.f32.mrb[0].mxu0
        %v7075 = vadd.f32 0.0, %v7074
        %v7076 = vpop.f32.mrb[0].mxu0
        %7077 = vmatprep.mubr.bf16.mxu0 0
        %7078 = vmatmul.mubr.bf16.gmra.mrb[0].mxu0 %v6935
        %v7079 = vpop.f32.mrb[0].mxu0
        %v7080 = vadd.f32 0.0, %v7079
        %v7081 = vpop.f32.mrb[0].mxu0
        %v7082 = vpop.f32.mrb[0].mxu0
        %v7083 = vadd.f32 0.0, %v7082
        %v7084 = vpop.f32.mrb[0].mxu0
        %7085 = vmatprep.mubr.bf16.mxu0 0
        %7086 = vmatmul.mubr.bf16.gmra.mrb[0].mxu0 %v6938
        %v7087 = vpop.f32.mrb[0].mxu0
        %v7088 = vadd.f32 0.0, %v7087
        %v7089 = vpop.f32.mrb[0].mxu0
        %v7090 = vpop.f32.mrb[0].mxu0
        %v7091 = vadd.f32 0.0, %v7090
        %v7092 = vpop.f32.mrb[0].mxu0
        %7093 = vmatprep.mubr.bf16.mxu0 0
        %7094 = vmatmul.mubr.bf16.gmra.mrb[0].mxu0 %v6941
        %v7095 = vpop.f32.mrb[0].mxu0
        %v7096 = vadd.f32 0.0, %v7095
        %v7097 = vpop.f32.mrb[0].mxu0
        %v7098 = vpop.f32.mrb[0].mxu0
        %v7099 = vadd.f32 0.0, %v7098
        %v7100 = vpop.f32.mrb[0].mxu0
        %7101 = vmatprep.mubr.bf16.mxu0 0
        %7102 = vmatmul.mubr.bf16.gmra.mrb[0].mxu0 %v6944
        %v7103 = vpop.f32.mrb[0].mxu0
        %v7104 = vadd.f32 0.0, %v7103
        %v7105 = vpop.f32.mrb[0].mxu0
        %v7106 = vpop.f32.mrb[0].mxu0
        %v7107 = vadd.f32 0.0, %v7106
        %v7108 = vpop.f32.mrb[0].mxu0
        %7109 = vdwg.mxu0
        %v7110 = vadd.f32 %v6562, %v6984
        %v7111 = vadd.f32 %v6565, %v6987
        %v7112 = vadd.f32 %v6570, %v6992
        %v7113 = vadd.f32 %v6573, %v6995
        %v7114 = vadd.f32 %v6578, %v7000
        %v7115 = vadd.f32 %v6581, %v7003
        %v7116 = vadd.f32 %v6586, %v7008
        %v7117 = vadd.f32 %v6589, %v7011
        %v7118 = vadd.f32 %v6594, %v7016
        %v7119 = vadd.f32 %v6597, %v7019
        %v7120 = vadd.f32 %v6602, %v7024
        %v7121 = vadd.f32 %v6605, %v7027
        %v7122 = vadd.f32 %v6610, %v7032
        %v7123 = vadd.f32 %v6613, %v7035
        %v7124 = vadd.f32 %v6618, %v7040
        %v7125 = vadd.f32 %v6621, %v7043
        %v7126 = vadd.f32 %v6626, %v7048
        %v7127 = vadd.f32 %v6629, %v7051
        %v7128 = vadd.f32 %v6634, %v7056
        %v7129 = vadd.f32 %v6637, %v7059
        %v7130 = vadd.f32 %v6642, %v7064
        %v7131 = vadd.f32 %v6645, %v7067
        %v7132 = vadd.f32 %v6650, %v7072
        %v7133 = vadd.f32 %v6653, %v7075
        %v7134 = vadd.f32 %v6658, %v7080
        %v7135 = vadd.f32 %v6661, %v7083
        %v7136 = vadd.f32 %v6666, %v7088
        %v7137 = vadd.f32 %v6669, %v7091
        %v7138 = vadd.f32 %v6674, %v7096
        %v7139 = vadd.f32 %v6677, %v7099
        %v7140 = vadd.f32 %v6682, %v7104
        %v7141 = vadd.f32 %v6685, %v7107
        %v7142 = vld [vmem:[%s5586] sm:$0xf]
        %v7143 = vld [vmem:[%s5586 + $0x4] sm:$0xf]
        %v7144 = vld [vmem:[%s5586 + $0xc] sm:$0xf]
        %v7145 = vld [vmem:[%s5586 + $0x10] sm:$0xf]
        %v7146 = vld [vmem:[%s5586 + $0x18] sm:$0xf]
        %v7147 = vld [vmem:[%s5586 + $0x1c] sm:$0xf]
        %v7148 = vld [vmem:[%s5586 + $0x24] sm:$0xf]
        %v7149 = vld [vmem:[%s5586 + $0x28] sm:$0xf]
        %v7150 = vld [vmem:[%s5586 + $0x30] sm:$0xf]
        %v7151 = vld [vmem:[%s5586 + $0x34] sm:$0xf]
        %v7152 = vld [vmem:[%s5586 + $0x3c] sm:$0xf]
        %v7153 = vld [vmem:[%s5586 + $0x40] sm:$0xf]
        %v7154 = vld [vmem:[%s5586 + $0x48] sm:$0xf]
        %v7155 = vld [vmem:[%s5586 + $0x4c] sm:$0xf]
        %v7156 = vld [vmem:[%s5586 + $0x54] sm:$0xf]
        %v7157 = vld [vmem:[%s5586 + $0x58] sm:$0xf]
        %v7158 = vld [vmem:[%s5586 + $0x60] sm:$0xf]
        %v7159 = vld [vmem:[%s5586 + $0x64] sm:$0xf]
        %v7160 = vld [vmem:[%s5586 + $0x6c] sm:$0xf]
        %v7161 = vld [vmem:[%s5586 + $0x70] sm:$0xf]
        %v7162 = vld [vmem:[%s5586 + $0x78] sm:$0xf]
        %v7163 = vld [vmem:[%s5586 + $0x7c] sm:$0xf]
        %v7164 = vld [vmem:[%s5586 + $0x84] sm:$0xf]
        %v7165 = vld [vmem:[%s5586 + $0x88] sm:$0xf]
        %v7166 = vld [vmem:[%s5586 + $0x90] sm:$0xf]
        %v7167 = vld [vmem:[%s5586 + $0x94] sm:$0xf]
        %v7168 = vld [vmem:[%s5586 + $0x9c] sm:$0xf]
        %v7169 = vld [vmem:[%s5586 + $0xa0] sm:$0xf]
        %v7170 = vld [vmem:[%s5586 + $0xa8] sm:$0xf]
        %v7171 = vld [vmem:[%s5586 + $0xac] sm:$0xf]
        %v7172 = vld [vmem:[%s5586 + $0xb4] sm:$0xf]
        %v7173 = vld [vmem:[%s5586 + $0xb8] sm:$0xf]
        %s7174 = scalar_lea.vmem [#allocation11], 6
        %v7175 = vld [vmem:[%s7174] sm:$0x3]
        %v7208 = vunpack.c.l.b16 %v7142
        %v7209 = vunpack.c.l.b16 %v7143
        %v7210 = vunpack.c.l.b16 %v7144
        %v7211 = vunpack.c.l.b16 %v7145
        %v7212 = vunpack.c.l.b16 %v7146
        %v7213 = vunpack.c.l.b16 %v7147
        %v7214 = vunpack.c.l.b16 %v7148
        %v7215 = vunpack.c.l.b16 %v7149
        %v7216 = vunpack.c.l.b16 %v7150
        %v7217 = vunpack.c.l.b16 %v7151
        %v7218 = vunpack.c.l.b16 %v7152
        %v7219 = vunpack.c.l.b16 %v7153
        %v7220 = vunpack.c.l.b16 %v7154
        %v7221 = vunpack.c.l.b16 %v7155
        %v7222 = vunpack.c.l.b16 %v7156
        %v7223 = vunpack.c.l.b16 %v7157
        %v7224 = vunpack.c.l.b16 %v7158
        %v7225 = vunpack.c.l.b16 %v7159
        %v7226 = vunpack.c.l.b16 %v7160
        %v7227 = vunpack.c.l.b16 %v7161
        %v7228 = vunpack.c.l.b16 %v7162
        %v7229 = vunpack.c.l.b16 %v7163
        %v7230 = vunpack.c.l.b16 %v7164
        %v7231 = vunpack.c.l.b16 %v7165
        %v7232 = vunpack.c.l.b16 %v7166
        %v7233 = vunpack.c.l.b16 %v7167
        %v7234 = vunpack.c.l.b16 %v7168
        %v7235 = vunpack.c.l.b16 %v7169
        %v7236 = vunpack.c.l.b16 %v7170
        %v7237 = vunpack.c.l.b16 %v7171
        %v7238 = vunpack.c.l.b16 %v7172
        %v7239 = vunpack.c.l.b16 %v7173
        %v7240 = vpack.c.b16 %v7209, %v7208
        %v7241 = vpack.c.b16 %v7211, %v7210
        %v7242 = vpack.c.b16 %v7213, %v7212
        %v7243 = vpack.c.b16 %v7215, %v7214
        %v7244 = vpack.c.b16 %v7217, %v7216
        %v7245 = vpack.c.b16 %v7219, %v7218
        %v7246 = vpack.c.b16 %v7221, %v7220
        %v7247 = vpack.c.b16 %v7223, %v7222
        %v7248 = vpack.c.b16 %v7225, %v7224
        %v7249 = vpack.c.b16 %v7227, %v7226
        %v7250 = vpack.c.b16 %v7229, %v7228
        %v7251 = vpack.c.b16 %v7231, %v7230
        %v7252 = vpack.c.b16 %v7233, %v7232
        %v7253 = vpack.c.b16 %v7235, %v7234
        %v7254 = vpack.c.b16 %v7237, %v7236
        %v7255 = vpack.c.b16 %v7239, %v7238
        %v7257 = vsel %vm863, %v7240, 0
        %v7260 = vsel %vm863, %v7241, 0
        %v7263 = vsel %vm863, %v7242, 0
        %v7266 = vsel %vm863, %v7243, 0
        %v7269 = vsel %vm863, %v7244, 0
        %v7272 = vsel %vm863, %v7245, 0
        %v7275 = vsel %vm863, %v7246, 0
        %v7278 = vsel %vm863, %v7247, 0
        %v7281 = vsel %vm863, %v7248, 0
        %v7284 = vsel %vm863, %v7249, 0
        %v7287 = vsel %vm863, %v7250, 0
        %v7290 = vsel %vm863, %v7251, 0
        %v7293 = vsel %vm863, %v7252, 0
        %v7296 = vsel %vm863, %v7253, 0
        %v7299 = vsel %vm863, %v7254, 0
        %v7302 = vsel %vm863, %v7255, 0
        %v7305 = vsel %vm912, %v7175, 0
        %7307 = vmatprep.subr.bf16.mxu0 0
        %7308 = vmatpush1.bf16.msra.mxu0 %v7305
        %7309 = vmatprep.subr.bf16.mxu0 0
        %7310 = vmatpush1.bf16.msra.mxu0 0
        %7311 = vmatprep.subr.bf16.mxu0 0
        %7312 = vmatpush1.bf16.msra.mxu0 0
        %7313 = vmatprep.subr.bf16.mxu0 0
        %7314 = vmatpush1.bf16.msra.mxu0 0
        %7315 = vmatprep.subr.bf16.mxu0 0
        %7316 = vmatpush1.bf16.msra.mxu0 0
        %7317 = vmatprep.subr.bf16.mxu0 0
        %7318 = vmatpush1.bf16.msra.mxu0 0
        %7319 = vmatprep.subr.bf16.mxu0 0
        %7320 = vmatpush1.bf16.msra.mxu0 0
        %7321 = vmatprep.subr.bf16.mxu0 0
        %7322 = vmatpush1.bf16.msra.mxu0 0
        %7323 = vmatprep.subr.bf16.mxu0 0
        %7324 = vmatpush1.bf16.msra.mxu0 0
        %7325 = vmatprep.subr.bf16.mxu0 0
        %7326 = vmatpush1.bf16.msra.mxu0 0
        %7327 = vmatprep.subr.bf16.mxu0 0
        %7328 = vmatpush1.bf16.msra.mxu0 0
        %7329 = vmatprep.subr.bf16.mxu0 0
        %7330 = vmatpush1.bf16.msra.mxu0 0
        %7331 = vmatprep.subr.bf16.mxu0 0
        %7332 = vmatpush1.bf16.msra.mxu0 0
        %7333 = vmatprep.subr.bf16.mxu0 0
        %7334 = vmatpush1.bf16.msra.mxu0 0
        %7335 = vmatprep.subr.bf16.mxu0 0
        %7336 = vmatpush1.bf16.msra.mxu0 0
        %7337 = vmatprep.subr.bf16.mxu0 0
        %7338 = vmatpush1.bf16.msra.mxu0 0
        %7339 = vmatprep.mubr.bf16.mxu0 0
        %7340 = vmatmul.mubr.bf16.gmra.mrb[0].mxu0 %v7257
        %v7341 = vpop.f32.mrb[0].mxu0
        %v7342 = vadd.f32 0.0, %v7341
        %v7343 = vpop.f32.mrb[0].mxu0
        %v7344 = vpop.f32.mrb[0].mxu0
        %v7345 = vadd.f32 0.0, %v7344
        %v7346 = vpop.f32.mrb[0].mxu0
        %7347 = vmatprep.mubr.bf16.mxu0 0
        %7348 = vmatmul.mubr.bf16.gmra.mrb[0].mxu0 %v7260
        %v7349 = vpop.f32.mrb[0].mxu0
        %v7350 = vadd.f32 0.0, %v7349
        %v7351 = vpop.f32.mrb[0].mxu0
        %v7352 = vpop.f32.mrb[0].mxu0
        %v7353 = vadd.f32 0.0, %v7352
        %v7354 = vpop.f32.mrb[0].mxu0
        %7355 = vmatprep.mubr.bf16.mxu0 0
        %7356 = vmatmul.mubr.bf16.gmra.mrb[0].mxu0 %v7263
        %v7357 = vpop.f32.mrb[0].mxu0
        %v7358 = vadd.f32 0.0, %v7357
        %v7359 = vpop.f32.mrb[0].mxu0
        %v7360 = vpop.f32.mrb[0].mxu0
        %v7361 = vadd.f32 0.0, %v7360
        %v7362 = vpop.f32.mrb[0].mxu0
        %7363 = vmatprep.mubr.bf16.mxu0 0
        %7364 = vmatmul.mubr.bf16.gmra.mrb[0].mxu0 %v7266
        %v7365 = vpop.f32.mrb[0].mxu0
        %v7366 = vadd.f32 0.0, %v7365
        %v7367 = vpop.f32.mrb[0].mxu0
        %v7368 = vpop.f32.mrb[0].mxu0
        %v7369 = vadd.f32 0.0, %v7368
        %v7370 = vpop.f32.mrb[0].mxu0
        %7371 = vmatprep.mubr.bf16.mxu0 0
        %7372 = vmatmul.mubr.bf16.gmra.mrb[0].mxu0 %v7269
        %v7373 = vpop.f32.mrb[0].mxu0
        %v7374 = vadd.f32 0.0, %v7373
        %v7375 = vpop.f32.mrb[0].mxu0
        %v7376 = vpop.f32.mrb[0].mxu0
        %v7377 = vadd.f32 0.0, %v7376
        %v7378 = vpop.f32.mrb[0].mxu0
        %7379 = vmatprep.mubr.bf16.mxu0 0
        %7380 = vmatmul.mubr.bf16.gmra.mrb[0].mxu0 %v7272
        %v7381 = vpop.f32.mrb[0].mxu0
        %v7382 = vadd.f32 0.0, %v7381
        %v7383 = vpop.f32.mrb[0].mxu0
        %v7384 = vpop.f32.mrb[0].mxu0
        %v7385 = vadd.f32 0.0, %v7384
        %v7386 = vpop.f32.mrb[0].mxu0
        %7387 = vmatprep.mubr.bf16.mxu0 0
        %7388 = vmatmul.mubr.bf16.gmra.mrb[0].mxu0 %v7275
        %v7389 = vpop.f32.mrb[0].mxu0
        %v7390 = vadd.f32 0.0, %v7389
        %v7391 = vpop.f32.mrb[0].mxu0
        %v7392 = vpop.f32.mrb[0].mxu0
        %v7393 = vadd.f32 0.0, %v7392
        %v7394 = vpop.f32.mrb[0].mxu0
        %7395 = vmatprep.mubr.bf16.mxu0 0
        %7396 = vmatmul.mubr.bf16.gmra.mrb[0].mxu0 %v7278
        %v7397 = vpop.f32.mrb[0].mxu0
        %v7398 = vadd.f32 0.0, %v7397
        %v7399 = vpop.f32.mrb[0].mxu0
        %v7400 = vpop.f32.mrb[0].mxu0
        %v7401 = vadd.f32 0.0, %v7400
        %v7402 = vpop.f32.mrb[0].mxu0
        %7403 = vmatprep.mubr.bf16.mxu0 0
        %7404 = vmatmul.mubr.bf16.gmra.mrb[0].mxu0 %v7281
        %v7405 = vpop.f32.mrb[0].mxu0
        %v7406 = vadd.f32 0.0, %v7405
        %v7407 = vpop.f32.mrb[0].mxu0
        %v7408 = vpop.f32.mrb[0].mxu0
        %v7409 = vadd.f32 0.0, %v7408
        %v7410 = vpop.f32.mrb[0].mxu0
        %7411 = vmatprep.mubr.bf16.mxu0 0
        %7412 = vmatmul.mubr.bf16.gmra.mrb[0].mxu0 %v7284
        %v7413 = vpop.f32.mrb[0].mxu0
        %v7414 = vadd.f32 0.0, %v7413
        %v7415 = vpop.f32.mrb[0].mxu0
        %v7416 = vpop.f32.mrb[0].mxu0
        %v7417 = vadd.f32 0.0, %v7416
        %v7418 = vpop.f32.mrb[0].mxu0
        %7419 = vmatprep.mubr.bf16.mxu0 0
        %7420 = vmatmul.mubr.bf16.gmra.mrb[0].mxu0 %v7287
        %v7421 = vpop.f32.mrb[0].mxu0
        %v7422 = vadd.f32 0.0, %v7421
        %v7423 = vpop.f32.mrb[0].mxu0
        %v7424 = vpop.f32.mrb[0].mxu0
        %v7425 = vadd.f32 0.0, %v7424
        %v7426 = vpop.f32.mrb[0].mxu0
        %7427 = vmatprep.mubr.bf16.mxu0 0
        %7428 = vmatmul.mubr.bf16.gmra.mrb[0].mxu0 %v7290
        %v7429 = vpop.f32.mrb[0].mxu0
        %v7430 = vadd.f32 0.0, %v7429
        %v7431 = vpop.f32.mrb[0].mxu0
        %v7432 = vpop.f32.mrb[0].mxu0
        %v7433 = vadd.f32 0.0, %v7432
        %v7434 = vpop.f32.mrb[0].mxu0
        %7435 = vmatprep.mubr.bf16.mxu0 0
        %7436 = vmatmul.mubr.bf16.gmra.mrb[0].mxu0 %v7293
        %v7437 = vpop.f32.mrb[0].mxu0
        %v7438 = vadd.f32 0.0, %v7437
        %v7439 = vpop.f32.mrb[0].mxu0
        %v7440 = vpop.f32.mrb[0].mxu0
        %v7441 = vadd.f32 0.0, %v7440
        %v7442 = vpop.f32.mrb[0].mxu0
        %7443 = vmatprep.mubr.bf16.mxu0 0
        %7444 = vmatmul.mubr.bf16.gmra.mrb[0].mxu0 %v7296
        %v7445 = vpop.f32.mrb[0].mxu0
        %v7446 = vadd.f32 0.0, %v7445
        %v7447 = vpop.f32.mrb[0].mxu0
        %v7448 = vpop.f32.mrb[0].mxu0
        %v7449 = vadd.f32 0.0, %v7448
        %v7450 = vpop.f32.mrb[0].mxu0
        %7451 = vmatprep.mubr.bf16.mxu0 0
        %7452 = vmatmul.mubr.bf16.gmra.mrb[0].mxu0 %v7299
        %v7453 = vpop.f32.mrb[0].mxu0
        %v7454 = vadd.f32 0.0, %v7453
        %v7455 = vpop.f32.mrb[0].mxu0
        %v7456 = vpop.f32.mrb[0].mxu0
        %v7457 = vadd.f32 0.0, %v7456
        %v7458 = vpop.f32.mrb[0].mxu0
        %7459 = vmatprep.mubr.bf16.mxu0 0
        %7460 = vmatmul.mubr.bf16.gmra.mrb[0].mxu0 %v7302
        %v7461 = vpop.f32.mrb[0].mxu0
        %v7462 = vadd.f32 0.0, %v7461
        %v7463 = vpop.f32.mrb[0].mxu0
        %v7464 = vpop.f32.mrb[0].mxu0
        %v7465 = vadd.f32 0.0, %v7464
        %v7466 = vpop.f32.mrb[0].mxu0
        %7467 = vdwg.mxu0
        %v7468 = vadd.f32 %v7110, %v7342
        %v7469 = vadd.f32 %v7111, %v7345
        %v7470 = vadd.f32 %v7112, %v7350
        %v7471 = vadd.f32 %v7113, %v7353
        %v7472 = vadd.f32 %v7114, %v7358
        %v7473 = vadd.f32 %v7115, %v7361
        %v7474 = vadd.f32 %v7116, %v7366
        %v7475 = vadd.f32 %v7117, %v7369
        %v7476 = vadd.f32 %v7118, %v7374
        %v7477 = vadd.f32 %v7119, %v7377
        %v7478 = vadd.f32 %v7120, %v7382
        %v7479 = vadd.f32 %v7121, %v7385
        %v7480 = vadd.f32 %v7122, %v7390
        %v7481 = vadd.f32 %v7123, %v7393
        %v7482 = vadd.f32 %v7124, %v7398
        %v7483 = vadd.f32 %v7125, %v7401
        %v7484 = vadd.f32 %v7126, %v7406
        %v7485 = vadd.f32 %v7127, %v7409
        %v7486 = vadd.f32 %v7128, %v7414
        %v7487 = vadd.f32 %v7129, %v7417
        %v7488 = vadd.f32 %v7130, %v7422
        %v7489 = vadd.f32 %v7131, %v7425
        %v7490 = vadd.f32 %v7132, %v7430
        %v7491 = vadd.f32 %v7133, %v7433
        %v7492 = vadd.f32 %v7134, %v7438
        %v7493 = vadd.f32 %v7135, %v7441
        %v7494 = vadd.f32 %v7136, %v7446
        %v7495 = vadd.f32 %v7137, %v7449
        %v7496 = vadd.f32 %v7138, %v7454
        %v7497 = vadd.f32 %v7139, %v7457
        %v7498 = vadd.f32 %v7140, %v7462
        %v7499 = vadd.f32 %v7141, %v7465
        %v7500 = vld [vmem:[%s5586] sm:$0xf]
        %v7501 = vld [vmem:[%s5586 + $0x4] sm:$0xf]
        %v7502 = vld [vmem:[%s5586 + $0x8] sm:$0x1]
        %v7503 = vld [vmem:[%s5586 + $0xc] sm:$0xf]
        %v7504 = vld [vmem:[%s5586 + $0x10] sm:$0xf]
        %v7505 = vld [vmem:[%s5586 + $0x14] sm:$0x1]
        %v7506 = vld [vmem:[%s5586 + $0x18] sm:$0xf]
        %v7507 = vld [vmem:[%s5586 + $0x1c] sm:$0xf]
        %v7508 = vld [vmem:[%s5586 + $0x20] sm:$0x1]
        %v7509 = vld [vmem:[%s5586 + $0x24] sm:$0xf]
        %v7510 = vld [vmem:[%s5586 + $0x28] sm:$0xf]
        %v7511 = vld [vmem:[%s5586 + $0x2c] sm:$0x1]
        %v7512 = vld [vmem:[%s5586 + $0x30] sm:$0xf]
        %v7513 = vld [vmem:[%s5586 + $0x34] sm:$0xf]
        %v7514 = vld [vmem:[%s5586 + $0x38] sm:$0x1]
        %v7515 = vld [vmem:[%s5586 + $0x3c] sm:$0xf]
        %v7516 = vld [vmem:[%s5586 + $0x40] sm:$0xf]
        %v7517 = vld [vmem:[%s5586 + $0x44] sm:$0x1]
        %v7518 = vld [vmem:[%s5586 + $0x48] sm:$0xf]
        %v7519 = vld [vmem:[%s5586 + $0x4c] sm:$0xf]
        %v7520 = vld [vmem:[%s5586 + $0x50] sm:$0x1]
        %v7521 = vld [vmem:[%s5586 + $0x54] sm:$0xf]
        %v7522 = vld [vmem:[%s5586 + $0x58] sm:$0xf]
        %v7523 = vld [vmem:[%s5586 + $0x5c] sm:$0x1]
        %v7524 = vld [vmem:[%s5586 + $0x60] sm:$0xf]
        %v7525 = vld [vmem:[%s5586 + $0x64] sm:$0xf]
        %v7526 = vld [vmem:[%s5586 + $0x68] sm:$0x1]
        %v7527 = vld [vmem:[%s5586 + $0x6c] sm:$0xf]
        %v7528 = vld [vmem:[%s5586 + $0x70] sm:$0xf]
        %v7529 = vld [vmem:[%s5586 + $0x74] sm:$0x1]
        %v7530 = vld [vmem:[%s5586 + $0x78] sm:$0xf]
        %v7531 = vld [vmem:[%s5586 + $0x7c] sm:$0xf]
        %v7532 = vld [vmem:[%s5586 + $0x80] sm:$0x1]
        %v7533 = vld [vmem:[%s5586 + $0x84] sm:$0xf]
        %v7534 = vld [vmem:[%s5586 + $0x88] sm:$0xf]
        %v7535 = vld [vmem:[%s5586 + $0x8c] sm:$0x1]
        %v7536 = vld [vmem:[%s5586 + $0x90] sm:$0xf]
        %v7537 = vld [vmem:[%s5586 + $0x94] sm:$0xf]
        %v7538 = vld [vmem:[%s5586 + $0x98] sm:$0x1]
        %v7539 = vld [vmem:[%s5586 + $0x9c] sm:$0xf]
        %v7540 = vld [vmem:[%s5586 + $0xa0] sm:$0xf]
        %v7541 = vld [vmem:[%s5586 + $0xa4] sm:$0x1]
        %v7542 = vld [vmem:[%s5586 + $0xa8] sm:$0xf]
        %v7543 = vld [vmem:[%s5586 + $0xac] sm:$0xf]
        %v7544 = vld [vmem:[%s5586 + $0xb0] sm:$0x1]
        %v7545 = vld [vmem:[%s5586 + $0xb4] sm:$0xf]
        %v7546 = vld [vmem:[%s5586 + $0xb8] sm:$0xf]
        %v7547 = vld [vmem:[%s5586 + $0xbc] sm:$0x1]
        %v7549 = vshrl.u32 %v7500, 16
        %v7551 = vrot.slane %v7549, 4
        %v7552 = vshll.u32 %v7500, 16
        %v7554 = vrot.slane %v7552, 5
        %v7555 = vor.u32 %v7551, %v7554
        %v7556 = vrot.slane %v7555, 4
        %v7558 = vshll.u32 %v7501, 16
        %v7560 = vrot.slane %v7558, 5
        %v7561 = vsel %vm428, %v7556, %v7560
        %v7562 = vshrl.u32 %v7501, 16
        %v7564 = vrot.slane %v7562, 4
        %v7565 = vor.u32 %v7564, %v7560
        %v7566 = vrot.slane %v7565, 4
        %v7568 = vshll.u32 %v7502, 16
        %v7570 = vrot.slane %v7568, 5
        %v7571 = vsel %vm428, %v7566, %v7570
        %v7573 = vshrl.u32 %v7503, 16
        %v7575 = vrot.slane %v7573, 4
        %v7576 = vshll.u32 %v7503, 16
        %v7578 = vrot.slane %v7576, 5
        %v7579 = vor.u32 %v7575, %v7578
        %v7580 = vrot.slane %v7579, 4
        %v7582 = vshll.u32 %v7504, 16
        %v7584 = vrot.slane %v7582, 5
        %v7585 = vsel %vm428, %v7580, %v7584
        %v7586 = vshrl.u32 %v7504, 16
        %v7588 = vrot.slane %v7586, 4
        %v7589 = vor.u32 %v7588, %v7584
        %v7590 = vrot.slane %v7589, 4
        %v7592 = vshll.u32 %v7505, 16
        %v7594 = vrot.slane %v7592, 5
        %v7595 = vsel %vm428, %v7590, %v7594
        %v7597 = vshrl.u32 %v7506, 16
        %v7599 = vrot.slane %v7597, 4
        %v7600 = vshll.u32 %v7506, 16
        %v7602 = vrot.slane %v7600, 5
        %v7603 = vor.u32 %v7599, %v7602
        %v7604 = vrot.slane %v7603, 4
        %v7606 = vshll.u32 %v7507, 16
        %v7608 = vrot.slane %v7606, 5
        %v7609 = vsel %vm428, %v7604, %v7608
        %v7610 = vshrl.u32 %v7507, 16
        %v7612 = vrot.slane %v7610, 4
        %v7613 = vor.u32 %v7612, %v7608
        %v7614 = vrot.slane %v7613, 4
        %v7616 = vshll.u32 %v7508, 16
        %v7618 = vrot.slane %v7616, 5
        %v7619 = vsel %vm428, %v7614, %v7618
        %v7621 = vshrl.u32 %v7509, 16
        %v7623 = vrot.slane %v7621, 4
        %v7624 = vshll.u32 %v7509, 16
        %v7626 = vrot.slane %v7624, 5
        %v7627 = vor.u32 %v7623, %v7626
        %v7628 = vrot.slane %v7627, 4
        %v7630 = vshll.u32 %v7510, 16
        %v7632 = vrot.slane %v7630, 5
        %v7633 = vsel %vm428, %v7628, %v7632
        %v7634 = vshrl.u32 %v7510, 16
        %v7636 = vrot.slane %v7634, 4
        %v7637 = vor.u32 %v7636, %v7632
        %v7638 = vrot.slane %v7637, 4
        %v7640 = vshll.u32 %v7511, 16
        %v7642 = vrot.slane %v7640, 5
        %v7643 = vsel %vm428, %v7638, %v7642
        %v7645 = vshrl.u32 %v7512, 16
        %v7647 = vrot.slane %v7645, 4
        %v7648 = vshll.u32 %v7512, 16
        %v7650 = vrot.slane %v7648, 5
        %v7651 = vor.u32 %v7647, %v7650
        %v7652 = vrot.slane %v7651, 4
        %v7654 = vshll.u32 %v7513, 16
        %v7656 = vrot.slane %v7654, 5
        %v7657 = vsel %vm428, %v7652, %v7656
        %v7658 = vshrl.u32 %v7513, 16
        %v7660 = vrot.slane %v7658, 4
        %v7661 = vor.u32 %v7660, %v7656
        %v7662 = vrot.slane %v7661, 4
        %v7664 = vshll.u32 %v7514, 16
        %v7666 = vrot.slane %v7664, 5
        %v7667 = vsel %vm428, %v7662, %v7666
        %v7669 = vshrl.u32 %v7515, 16
        %v7671 = vrot.slane %v7669, 4
        %v7672 = vshll.u32 %v7515, 16
        %v7674 = vrot.slane %v7672, 5
        %v7675 = vor.u32 %v7671, %v7674
        %v7676 = vrot.slane %v7675, 4
        %v7678 = vshll.u32 %v7516, 16
        %v7680 = vrot.slane %v7678, 5
        %v7681 = vsel %vm428, %v7676, %v7680
        %v7682 = vshrl.u32 %v7516, 16
        %v7684 = vrot.slane %v7682, 4
        %v7685 = vor.u32 %v7684, %v7680
        %v7686 = vrot.slane %v7685, 4
        %v7688 = vshll.u32 %v7517, 16
        %v7690 = vrot.slane %v7688, 5
        %v7691 = vsel %vm428, %v7686, %v7690
        %v7693 = vshrl.u32 %v7518, 16
        %v7695 = vrot.slane %v7693, 4
        %v7696 = vshll.u32 %v7518, 16
        %v7698 = vrot.slane %v7696, 5
        %v7699 = vor.u32 %v7695, %v7698
        %v7700 = vrot.slane %v7699, 4
        %v7702 = vshll.u32 %v7519, 16
        %v7704 = vrot.slane %v7702, 5
        %v7705 = vsel %vm428, %v7700, %v7704
        %v7706 = vshrl.u32 %v7519, 16
        %v7708 = vrot.slane %v7706, 4
        %v7709 = vor.u32 %v7708, %v7704
        %v7710 = vrot.slane %v7709, 4
        %v7712 = vshll.u32 %v7520, 16
        %v7714 = vrot.slane %v7712, 5
        %v7715 = vsel %vm428, %v7710, %v7714
        %v7717 = vshrl.u32 %v7521, 16
        %v7719 = vrot.slane %v7717, 4
        %v7720 = vshll.u32 %v7521, 16
        %v7722 = vrot.slane %v7720, 5
        %v7723 = vor.u32 %v7719, %v7722
        %v7724 = vrot.slane %v7723, 4
        %v7726 = vshll.u32 %v7522, 16
        %v7728 = vrot.slane %v7726, 5
        %v7729 = vsel %vm428, %v7724, %v7728
        %v7730 = vshrl.u32 %v7522, 16
        %v7732 = vrot.slane %v7730, 4
        %v7733 = vor.u32 %v7732, %v7728
        %v7734 = vrot.slane %v7733, 4
        %v7736 = vshll.u32 %v7523, 16
        %v7738 = vrot.slane %v7736, 5
        %v7739 = vsel %vm428, %v7734, %v7738
        %v7741 = vshrl.u32 %v7524, 16
        %v7743 = vrot.slane %v7741, 4
        %v7744 = vshll.u32 %v7524, 16
        %v7746 = vrot.slane %v7744, 5
        %v7747 = vor.u32 %v7743, %v7746
        %v7748 = vrot.slane %v7747, 4
        %v7750 = vshll.u32 %v7525, 16
        %v7752 = vrot.slane %v7750, 5
        %v7753 = vsel %vm428, %v7748, %v7752
        %v7754 = vshrl.u32 %v7525, 16
        %v7756 = vrot.slane %v7754, 4
        %v7757 = vor.u32 %v7756, %v7752
        %v7758 = vrot.slane %v7757, 4
        %v7760 = vshll.u32 %v7526, 16
        %v7762 = vrot.slane %v7760, 5
        %v7763 = vsel %vm428, %v7758, %v7762
        %v7765 = vshrl.u32 %v7527, 16
        %v7767 = vrot.slane %v7765, 4
        %v7768 = vshll.u32 %v7527, 16
        %v7770 = vrot.slane %v7768, 5
        %v7771 = vor.u32 %v7767, %v7770
        %v7772 = vrot.slane %v7771, 4
        %v7774 = vshll.u32 %v7528, 16
        %v7776 = vrot.slane %v7774, 5
        %v7777 = vsel %vm428, %v7772, %v7776
        %v7778 = vshrl.u32 %v7528, 16
        %v7780 = vrot.slane %v7778, 4
        %v7781 = vor.u32 %v7780, %v7776
        %v7782 = vrot.slane %v7781, 4
        %v7784 = vshll.u32 %v7529, 16
        %v7786 = vrot.slane %v7784, 5
        %v7787 = vsel %vm428, %v7782, %v7786
        %v7789 = vshrl.u32 %v7530, 16
        %v7791 = vrot.slane %v7789, 4
        %v7792 = vshll.u32 %v7530, 16
        %v7794 = vrot.slane %v7792, 5
        %v7795 = vor.u32 %v7791, %v7794
        %v7796 = vrot.slane %v7795, 4
        %v7798 = vshll.u32 %v7531, 16
        %v7800 = vrot.slane %v7798, 5
        %v7801 = vsel %vm428, %v7796, %v7800
        %v7802 = vshrl.u32 %v7531, 16
        %v7804 = vrot.slane %v7802, 4
        %v7805 = vor.u32 %v7804, %v7800
        %v7806 = vrot.slane %v7805, 4
        %v7808 = vshll.u32 %v7532, 16
        %v7810 = vrot.slane %v7808, 5
        %v7811 = vsel %vm428, %v7806, %v7810
        %v7813 = vshrl.u32 %v7533, 16
        %v7815 = vrot.slane %v7813, 4
        %v7816 = vshll.u32 %v7533, 16
        %v7818 = vrot.slane %v7816, 5
        %v7819 = vor.u32 %v7815, %v7818
        %v7820 = vrot.slane %v7819, 4
        %v7822 = vshll.u32 %v7534, 16
        %v7824 = vrot.slane %v7822, 5
        %v7825 = vsel %vm428, %v7820, %v7824
        %v7826 = vshrl.u32 %v7534, 16
        %v7828 = vrot.slane %v7826, 4
        %v7829 = vor.u32 %v7828, %v7824
        %v7830 = vrot.slane %v7829, 4
        %v7832 = vshll.u32 %v7535, 16
        %v7834 = vrot.slane %v7832, 5
        %v7835 = vsel %vm428, %v7830, %v7834
        %v7837 = vshrl.u32 %v7536, 16
        %v7839 = vrot.slane %v7837, 4
        %v7840 = vshll.u32 %v7536, 16
        %v7842 = vrot.slane %v7840, 5
        %v7843 = vor.u32 %v7839, %v7842
        %v7844 = vrot.slane %v7843, 4
        %v7846 = vshll.u32 %v7537, 16
        %v7848 = vrot.slane %v7846, 5
        %v7849 = vsel %vm428, %v7844, %v7848
        %v7850 = vshrl.u32 %v7537, 16
        %v7852 = vrot.slane %v7850, 4
        %v7853 = vor.u32 %v7852, %v7848
        %v7854 = vrot.slane %v7853, 4
        %v7856 = vshll.u32 %v7538, 16
        %v7858 = vrot.slane %v7856, 5
        %v7859 = vsel %vm428, %v7854, %v7858
        %v7861 = vshrl.u32 %v7539, 16
        %v7863 = vrot.slane %v7861, 4
        %v7864 = vshll.u32 %v7539, 16
        %v7866 = vrot.slane %v7864, 5
        %v7867 = vor.u32 %v7863, %v7866
        %v7868 = vrot.slane %v7867, 4
        %v7870 = vshll.u32 %v7540, 16
        %v7872 = vrot.slane %v7870, 5
        %v7873 = vsel %vm428, %v7868, %v7872
        %v7874 = vshrl.u32 %v7540, 16
        %v7876 = vrot.slane %v7874, 4
        %v7877 = vor.u32 %v7876, %v7872
        %v7878 = vrot.slane %v7877, 4
        %v7880 = vshll.u32 %v7541, 16
        %v7882 = vrot.slane %v7880, 5
        %v7883 = vsel %vm428, %v7878, %v7882
        %v7885 = vshrl.u32 %v7542, 16
        %v7887 = vrot.slane %v7885, 4
        %v7888 = vshll.u32 %v7542, 16
        %v7890 = vrot.slane %v7888, 5
        %v7891 = vor.u32 %v7887, %v7890
        %v7892 = vrot.slane %v7891, 4
        %v7894 = vshll.u32 %v7543, 16
        %v7896 = vrot.slane %v7894, 5
        %v7897 = vsel %vm428, %v7892, %v7896
        %v7898 = vshrl.u32 %v7543, 16
        %v7900 = vrot.slane %v7898, 4
        %v7901 = vor.u32 %v7900, %v7896
        %v7902 = vrot.slane %v7901, 4
        %v7904 = vshll.u32 %v7544, 16
        %v7906 = vrot.slane %v7904, 5
        %v7907 = vsel %vm428, %v7902, %v7906
        %v7909 = vshrl.u32 %v7545, 16
        %v7911 = vrot.slane %v7909, 4
        %v7912 = vshll.u32 %v7545, 16
        %v7914 = vrot.slane %v7912, 5
        %v7915 = vor.u32 %v7911, %v7914
        %v7916 = vrot.slane %v7915, 4
        %v7918 = vshll.u32 %v7546, 16
        %v7920 = vrot.slane %v7918, 5
        %v7921 = vsel %vm428, %v7916, %v7920
        %v7922 = vshrl.u32 %v7546, 16
        %v7924 = vrot.slane %v7922, 4
        %v7925 = vor.u32 %v7924, %v7920
        %v7926 = vrot.slane %v7925, 4
        %v7928 = vshll.u32 %v7547, 16
        %v7930 = vrot.slane %v7928, 5
        %v7931 = vsel %vm428, %v7926, %v7930
        %s7932 = scalar_lea.vmem [#allocation11], 8
        %v7933 = vld [vmem:[%s7932] sm:$0x3]
        %v7934 = vunpack.c.l.b16 %v7561
        %v7935 = vunpack.c.l.b16 %v7571
        %v7936 = vunpack.c.l.b16 %v7585
        %v7937 = vunpack.c.l.b16 %v7595
        %v7938 = vunpack.c.l.b16 %v7609
        %v7939 = vunpack.c.l.b16 %v7619
        %v7940 = vunpack.c.l.b16 %v7633
        %v7941 = vunpack.c.l.b16 %v7643
        %v7942 = vunpack.c.l.b16 %v7657
        %v7943 = vunpack.c.l.b16 %v7667
        %v7944 = vunpack.c.l.b16 %v7681
        %v7945 = vunpack.c.l.b16 %v7691
        %v7946 = vunpack.c.l.b16 %v7705
        %v7947 = vunpack.c.l.b16 %v7715
        %v7948 = vunpack.c.l.b16 %v7729
        %v7949 = vunpack.c.l.b16 %v7739
        %v7950 = vunpack.c.l.b16 %v7753
        %v7951 = vunpack.c.l.b16 %v7763
        %v7952 = vunpack.c.l.b16 %v7777
        %v7953 = vunpack.c.l.b16 %v7787
        %v7954 = vunpack.c.l.b16 %v7801
        %v7955 = vunpack.c.l.b16 %v7811
        %v7956 = vunpack.c.l.b16 %v7825
        %v7957 = vunpack.c.l.b16 %v7835
        %v7958 = vunpack.c.l.b16 %v7849
        %v7959 = vunpack.c.l.b16 %v7859
        %v7960 = vunpack.c.l.b16 %v7873
        %v7961 = vunpack.c.l.b16 %v7883
        %v7962 = vunpack.c.l.b16 %v7897
        %v7963 = vunpack.c.l.b16 %v7907
        %v7964 = vunpack.c.l.b16 %v7921
        %v7965 = vunpack.c.l.b16 %v7931
        %v7966 = vpack.c.b16 %v7935, %v7934
        %v7967 = vpack.c.b16 %v7937, %v7936
        %v7968 = vpack.c.b16 %v7939, %v7938
        %v7969 = vpack.c.b16 %v7941, %v7940
        %v7970 = vpack.c.b16 %v7943, %v7942
        %v7971 = vpack.c.b16 %v7945, %v7944
        %v7972 = vpack.c.b16 %v7947, %v7946
        %v7973 = vpack.c.b16 %v7949, %v7948
        %v7974 = vpack.c.b16 %v7951, %v7950
        %v7975 = vpack.c.b16 %v7953, %v7952
        %v7976 = vpack.c.b16 %v7955, %v7954
        %v7977 = vpack.c.b16 %v7957, %v7956
        %v7978 = vpack.c.b16 %v7959, %v7958
        %v7979 = vpack.c.b16 %v7961, %v7960
        %v7980 = vpack.c.b16 %v7963, %v7962
        %v7981 = vpack.c.b16 %v7965, %v7964
        %v7983 = vsel %vm863, %v7966, 0
        %v7986 = vsel %vm863, %v7967, 0
        %v7989 = vsel %vm863, %v7968, 0
        %v7992 = vsel %vm863, %v7969, 0
        %v7995 = vsel %vm863, %v7970, 0
        %v7998 = vsel %vm863, %v7971, 0
        %v8001 = vsel %vm863, %v7972, 0
        %v8004 = vsel %vm863, %v7973, 0
        %v8007 = vsel %vm863, %v7974, 0
        %v8010 = vsel %vm863, %v7975, 0
        %v8013 = vsel %vm863, %v7976, 0
        %v8016 = vsel %vm863, %v7977, 0
        %v8019 = vsel %vm863, %v7978, 0
        %v8022 = vsel %vm863, %v7979, 0
        %v8025 = vsel %vm863, %v7980, 0
        %v8028 = vsel %vm863, %v7981, 0
        %v8031 = vsel %vm912, %v7933, 0
        %8033 = vmatprep.subr.bf16.mxu0 0
        %8034 = vmatpush1.bf16.msra.mxu0 %v8031
        %8035 = vmatprep.subr.bf16.mxu0 0
        %8036 = vmatpush1.bf16.msra.mxu0 0
        %8037 = vmatprep.subr.bf16.mxu0 0
        %8038 = vmatpush1.bf16.msra.mxu0 0
        %8039 = vmatprep.subr.bf16.mxu0 0
        %8040 = vmatpush1.bf16.msra.mxu0 0
        %8041 = vmatprep.subr.bf16.mxu0 0
        %8042 = vmatpush1.bf16.msra.mxu0 0
        %8043 = vmatprep.subr.bf16.mxu0 0
        %8044 = vmatpush1.bf16.msra.mxu0 0
        %8045 = vmatprep.subr.bf16.mxu0 0
        %8046 = vmatpush1.bf16.msra.mxu0 0
        %8047 = vmatprep.subr.bf16.mxu0 0
        %8048 = vmatpush1.bf16.msra.mxu0 0
        %8049 = vmatprep.subr.bf16.mxu0 0
        %8050 = vmatpush1.bf16.msra.mxu0 0
        %8051 = vmatprep.subr.bf16.mxu0 0
        %8052 = vmatpush1.bf16.msra.mxu0 0
        %8053 = vmatprep.subr.bf16.mxu0 0
        %8054 = vmatpush1.bf16.msra.mxu0 0
        %8055 = vmatprep.subr.bf16.mxu0 0
        %8056 = vmatpush1.bf16.msra.mxu0 0
        %8057 = vmatprep.subr.bf16.mxu0 0
        %8058 = vmatpush1.bf16.msra.mxu0 0
        %8059 = vmatprep.subr.bf16.mxu0 0
        %8060 = vmatpush1.bf16.msra.mxu0 0
        %8061 = vmatprep.subr.bf16.mxu0 0
        %8062 = vmatpush1.bf16.msra.mxu0 0
        %8063 = vmatprep.subr.bf16.mxu0 0
        %8064 = vmatpush1.bf16.msra.mxu0 0
        %8065 = vmatprep.mubr.bf16.mxu0 0
        %8066 = vmatmul.mubr.bf16.gmra.mrb[0].mxu0 %v7983
        %v8067 = vpop.f32.mrb[0].mxu0
        %v8068 = vadd.f32 0.0, %v8067
        %v8069 = vpop.f32.mrb[0].mxu0
        %v8070 = vpop.f32.mrb[0].mxu0
        %v8071 = vadd.f32 0.0, %v8070
        %v8072 = vpop.f32.mrb[0].mxu0
        %8073 = vmatprep.mubr.bf16.mxu0 0
        %8074 = vmatmul.mubr.bf16.gmra.mrb[0].mxu0 %v7986
        %v8075 = vpop.f32.mrb[0].mxu0
        %v8076 = vadd.f32 0.0, %v8075
        %v8077 = vpop.f32.mrb[0].mxu0
        %v8078 = vpop.f32.mrb[0].mxu0
        %v8079 = vadd.f32 0.0, %v8078
        %v8080 = vpop.f32.mrb[0].mxu0
        %8081 = vmatprep.mubr.bf16.mxu0 0
        %8082 = vmatmul.mubr.bf16.gmra.mrb[0].mxu0 %v7989
        %v8083 = vpop.f32.mrb[0].mxu0
        %v8084 = vadd.f32 0.0, %v8083
        %v8085 = vpop.f32.mrb[0].mxu0
        %v8086 = vpop.f32.mrb[0].mxu0
        %v8087 = vadd.f32 0.0, %v8086
        %v8088 = vpop.f32.mrb[0].mxu0
        %8089 = vmatprep.mubr.bf16.mxu0 0
        %8090 = vmatmul.mubr.bf16.gmra.mrb[0].mxu0 %v7992
        %v8091 = vpop.f32.mrb[0].mxu0
        %v8092 = vadd.f32 0.0, %v8091
        %v8093 = vpop.f32.mrb[0].mxu0
        %v8094 = vpop.f32.mrb[0].mxu0
        %v8095 = vadd.f32 0.0, %v8094
        %v8096 = vpop.f32.mrb[0].mxu0
        %8097 = vmatprep.mubr.bf16.mxu0 0
        %8098 = vmatmul.mubr.bf16.gmra.mrb[0].mxu0 %v7995
        %v8099 = vpop.f32.mrb[0].mxu0
        %v8100 = vadd.f32 0.0, %v8099
        %v8101 = vpop.f32.mrb[0].mxu0
        %v8102 = vpop.f32.mrb[0].mxu0
        %v8103 = vadd.f32 0.0, %v8102
        %v8104 = vpop.f32.mrb[0].mxu0
        %8105 = vmatprep.mubr.bf16.mxu0 0
        %8106 = vmatmul.mubr.bf16.gmra.mrb[0].mxu0 %v7998
        %v8107 = vpop.f32.mrb[0].mxu0
        %v8108 = vadd.f32 0.0, %v8107
        %v8109 = vpop.f32.mrb[0].mxu0
        %v8110 = vpop.f32.mrb[0].mxu0
        %v8111 = vadd.f32 0.0, %v8110
        %v8112 = vpop.f32.mrb[0].mxu0
        %8113 = vmatprep.mubr.bf16.mxu0 0
        %8114 = vmatmul.mubr.bf16.gmra.mrb[0].mxu0 %v8001
        %v8115 = vpop.f32.mrb[0].mxu0
        %v8116 = vadd.f32 0.0, %v8115
        %v8117 = vpop.f32.mrb[0].mxu0
        %v8118 = vpop.f32.mrb[0].mxu0
        %v8119 = vadd.f32 0.0, %v8118
        %v8120 = vpop.f32.mrb[0].mxu0
        %8121 = vmatprep.mubr.bf16.mxu0 0
        %8122 = vmatmul.mubr.bf16.gmra.mrb[0].mxu0 %v8004
        %v8123 = vpop.f32.mrb[0].mxu0
        %v8124 = vadd.f32 0.0, %v8123
        %v8125 = vpop.f32.mrb[0].mxu0
        %v8126 = vpop.f32.mrb[0].mxu0
        %v8127 = vadd.f32 0.0, %v8126
        %v8128 = vpop.f32.mrb[0].mxu0
        %8129 = vmatprep.mubr.bf16.mxu0 0
        %8130 = vmatmul.mubr.bf16.gmra.mrb[0].mxu0 %v8007
        %v8131 = vpop.f32.mrb[0].mxu0
        %v8132 = vadd.f32 0.0, %v8131
        %v8133 = vpop.f32.mrb[0].mxu0
        %v8134 = vpop.f32.mrb[0].mxu0
        %v8135 = vadd.f32 0.0, %v8134
        %v8136 = vpop.f32.mrb[0].mxu0
        %8137 = vmatprep.mubr.bf16.mxu0 0
        %8138 = vmatmul.mubr.bf16.gmra.mrb[0].mxu0 %v8010
        %v8139 = vpop.f32.mrb[0].mxu0
        %v8140 = vadd.f32 0.0, %v8139
        %v8141 = vpop.f32.mrb[0].mxu0
        %v8142 = vpop.f32.mrb[0].mxu0
        %v8143 = vadd.f32 0.0, %v8142
        %v8144 = vpop.f32.mrb[0].mxu0
        %8145 = vmatprep.mubr.bf16.mxu0 0
        %8146 = vmatmul.mubr.bf16.gmra.mrb[0].mxu0 %v8013
        %v8147 = vpop.f32.mrb[0].mxu0
        %v8148 = vadd.f32 0.0, %v8147
        %v8149 = vpop.f32.mrb[0].mxu0
        %v8150 = vpop.f32.mrb[0].mxu0
        %v8151 = vadd.f32 0.0, %v8150
        %v8152 = vpop.f32.mrb[0].mxu0
        %8153 = vmatprep.mubr.bf16.mxu0 0
        %8154 = vmatmul.mubr.bf16.gmra.mrb[0].mxu0 %v8016
        %v8155 = vpop.f32.mrb[0].mxu0
        %v8156 = vadd.f32 0.0, %v8155
        %v8157 = vpop.f32.mrb[0].mxu0
        %v8158 = vpop.f32.mrb[0].mxu0
        %v8159 = vadd.f32 0.0, %v8158
        %v8160 = vpop.f32.mrb[0].mxu0
        %8161 = vmatprep.mubr.bf16.mxu0 0
        %8162 = vmatmul.mubr.bf16.gmra.mrb[0].mxu0 %v8019
        %v8163 = vpop.f32.mrb[0].mxu0
        %v8164 = vadd.f32 0.0, %v8163
        %v8165 = vpop.f32.mrb[0].mxu0
        %v8166 = vpop.f32.mrb[0].mxu0
        %v8167 = vadd.f32 0.0, %v8166
        %v8168 = vpop.f32.mrb[0].mxu0
        %8169 = vmatprep.mubr.bf16.mxu0 0
        %8170 = vmatmul.mubr.bf16.gmra.mrb[0].mxu0 %v8022
        %v8171 = vpop.f32.mrb[0].mxu0
        %v8172 = vadd.f32 0.0, %v8171
        %v8173 = vpop.f32.mrb[0].mxu0
        %v8174 = vpop.f32.mrb[0].mxu0
        %v8175 = vadd.f32 0.0, %v8174
        %v8176 = vpop.f32.mrb[0].mxu0
        %8177 = vmatprep.mubr.bf16.mxu0 0
        %8178 = vmatmul.mubr.bf16.gmra.mrb[0].mxu0 %v8025
        %v8179 = vpop.f32.mrb[0].mxu0
        %v8180 = vadd.f32 0.0, %v8179
        %v8181 = vpop.f32.mrb[0].mxu0
        %v8182 = vpop.f32.mrb[0].mxu0
        %v8183 = vadd.f32 0.0, %v8182
        %v8184 = vpop.f32.mrb[0].mxu0
        %8185 = vmatprep.mubr.bf16.mxu0 0
        %8186 = vmatmul.mubr.bf16.gmra.mrb[0].mxu0 %v8028
        %v8187 = vpop.f32.mrb[0].mxu0
        %v8188 = vadd.f32 0.0, %v8187
        %v8189 = vpop.f32.mrb[0].mxu0
        %v8190 = vpop.f32.mrb[0].mxu0
        %v8191 = vadd.f32 0.0, %v8190
        %v8192 = vpop.f32.mrb[0].mxu0
        %8193 = vdwg.mxu0
        %v8194 = vadd.f32 %v7468, %v8068
        %v8195 = vadd.f32 %v7469, %v8071
        %v8196 = vadd.f32 %v7470, %v8076
        %v8197 = vadd.f32 %v7471, %v8079
        %v8198 = vadd.f32 %v7472, %v8084
        %v8199 = vadd.f32 %v7473, %v8087
        %v8200 = vadd.f32 %v7474, %v8092
        %v8201 = vadd.f32 %v7475, %v8095
        %v8202 = vadd.f32 %v7476, %v8100
        %v8203 = vadd.f32 %v7477, %v8103
        %v8204 = vadd.f32 %v7478, %v8108
        %v8205 = vadd.f32 %v7479, %v8111
        %v8206 = vadd.f32 %v7480, %v8116
        %v8207 = vadd.f32 %v7481, %v8119
        %v8208 = vadd.f32 %v7482, %v8124
        %v8209 = vadd.f32 %v7483, %v8127
        %v8210 = vadd.f32 %v7484, %v8132
        %v8211 = vadd.f32 %v7485, %v8135
        %v8212 = vadd.f32 %v7486, %v8140
        %v8213 = vadd.f32 %v7487, %v8143
        %v8214 = vadd.f32 %v7488, %v8148
        %v8215 = vadd.f32 %v7489, %v8151
        %v8216 = vadd.f32 %v7490, %v8156
        %v8217 = vadd.f32 %v7491, %v8159
        %v8218 = vadd.f32 %v7492, %v8164
        %v8219 = vadd.f32 %v7493, %v8167
        %v8220 = vadd.f32 %v7494, %v8172
        %v8221 = vadd.f32 %v7495, %v8175
        %v8222 = vadd.f32 %v7496, %v8180
        %v8223 = vadd.f32 %v7497, %v8183
        %v8224 = vadd.f32 %v7498, %v8188
        %v8225 = vadd.f32 %v7499, %v8191
        %v8226 = vld [vmem:[%s5586] sm:$0xe]
        %v8227 = vld [vmem:[%s5586 + $0xc] sm:$0xe]
        %v8228 = vld [vmem:[%s5586 + $0x18] sm:$0xe]
        %v8229 = vld [vmem:[%s5586 + $0x24] sm:$0xe]
        %v8230 = vld [vmem:[%s5586 + $0x30] sm:$0xe]
        %v8231 = vld [vmem:[%s5586 + $0x3c] sm:$0xe]
        %v8232 = vld [vmem:[%s5586 + $0x48] sm:$0xe]
        %v8233 = vld [vmem:[%s5586 + $0x54] sm:$0xe]
        %v8234 = vld [vmem:[%s5586 + $0x60] sm:$0xe]
        %v8235 = vld [vmem:[%s5586 + $0x6c] sm:$0xe]
        %v8236 = vld [vmem:[%s5586 + $0x78] sm:$0xe]
        %v8237 = vld [vmem:[%s5586 + $0x84] sm:$0xe]
        %v8238 = vld [vmem:[%s5586 + $0x90] sm:$0xe]
        %v8239 = vld [vmem:[%s5586 + $0x9c] sm:$0xe]
        %v8240 = vld [vmem:[%s5586 + $0xa8] sm:$0xe]
        %v8241 = vld [vmem:[%s5586 + $0xb4] sm:$0xe]
        %v8290 = vrot.slane %v8226, 5
        %v8291 = vrot.slane %v8290, 4
        %v8292 = vrot.slane %v7501, 5
        %v8293 = vsel %vm1419, %v8291, %v8292
        %v8294 = vrot.slane %v8292, 4
        %v8295 = vrot.slane %v7502, 5
        %v8296 = vsel %vm1419, %v8294, %v8295
        %v8297 = vrot.slane %v8227, 5
        %v8298 = vrot.slane %v8297, 4
        %v8299 = vrot.slane %v7504, 5
        %v8300 = vsel %vm1419, %v8298, %v8299
        %v8301 = vrot.slane %v8299, 4
        %v8302 = vrot.slane %v7505, 5
        %v8303 = vsel %vm1419, %v8301, %v8302
        %v8304 = vrot.slane %v8228, 5
        %v8305 = vrot.slane %v8304, 4
        %v8306 = vrot.slane %v7507, 5
        %v8307 = vsel %vm1419, %v8305, %v8306
        %v8308 = vrot.slane %v8306, 4
        %v8309 = vrot.slane %v7508, 5
        %v8310 = vsel %vm1419, %v8308, %v8309
        %v8311 = vrot.slane %v8229, 5
        %v8312 = vrot.slane %v8311, 4
        %v8313 = vrot.slane %v7510, 5
        %v8314 = vsel %vm1419, %v8312, %v8313
        %v8315 = vrot.slane %v8313, 4
        %v8316 = vrot.slane %v7511, 5
        %v8317 = vsel %vm1419, %v8315, %v8316
        %v8318 = vrot.slane %v8230, 5
        %v8319 = vrot.slane %v8318, 4
        %v8320 = vrot.slane %v7513, 5
        %v8321 = vsel %vm1419, %v8319, %v8320
        %v8322 = vrot.slane %v8320, 4
        %v8323 = vrot.slane %v7514, 5
        %v8324 = vsel %vm1419, %v8322, %v8323
        %v8325 = vrot.slane %v8231, 5
        %v8326 = vrot.slane %v8325, 4
        %v8327 = vrot.slane %v7516, 5
        %v8328 = vsel %vm1419, %v8326, %v8327
        %v8329 = vrot.slane %v8327, 4
        %v8330 = vrot.slane %v7517, 5
        %v8331 = vsel %vm1419, %v8329, %v8330
        %v8332 = vrot.slane %v8232, 5
        %v8333 = vrot.slane %v8332, 4
        %v8334 = vrot.slane %v7519, 5
        %v8335 = vsel %vm1419, %v8333, %v8334
        %v8336 = vrot.slane %v8334, 4
        %v8337 = vrot.slane %v7520, 5
        %v8338 = vsel %vm1419, %v8336, %v8337
        %v8339 = vrot.slane %v8233, 5
        %v8340 = vrot.slane %v8339, 4
        %v8341 = vrot.slane %v7522, 5
        %v8342 = vsel %vm1419, %v8340, %v8341
        %v8343 = vrot.slane %v8341, 4
        %v8344 = vrot.slane %v7523, 5
        %v8345 = vsel %vm1419, %v8343, %v8344
        %v8346 = vrot.slane %v8234, 5
        %v8347 = vrot.slane %v8346, 4
        %v8348 = vrot.slane %v7525, 5
        %v8349 = vsel %vm1419, %v8347, %v8348
        %v8350 = vrot.slane %v8348, 4
        %v8351 = vrot.slane %v7526, 5
        %v8352 = vsel %vm1419, %v8350, %v8351
        %v8353 = vrot.slane %v8235, 5
        %v8354 = vrot.slane %v8353, 4
        %v8355 = vrot.slane %v7528, 5
        %v8356 = vsel %vm1419, %v8354, %v8355
        %v8357 = vrot.slane %v8355, 4
        %v8358 = vrot.slane %v7529, 5
        %v8359 = vsel %vm1419, %v8357, %v8358
        %v8360 = vrot.slane %v8236, 5
        %v8361 = vrot.slane %v8360, 4
        %v8362 = vrot.slane %v7531, 5
        %v8363 = vsel %vm1419, %v8361, %v8362
        %v8364 = vrot.slane %v8362, 4
        %v8365 = vrot.slane %v7532, 5
        %v8366 = vsel %vm1419, %v8364, %v8365
        %v8367 = vrot.slane %v8237, 5
        %v8368 = vrot.slane %v8367, 4
        %v8369 = vrot.slane %v7534, 5
        %v8370 = vsel %vm1419, %v8368, %v8369
        %v8371 = vrot.slane %v8369, 4
        %v8372 = vrot.slane %v7535, 5
        %v8373 = vsel %vm1419, %v8371, %v8372
        %v8374 = vrot.slane %v8238, 5
        %v8375 = vrot.slane %v8374, 4
        %v8376 = vrot.slane %v7537, 5
        %v8377 = vsel %vm1419, %v8375, %v8376
        %v8378 = vrot.slane %v8376, 4
        %v8379 = vrot.slane %v7538, 5
        %v8380 = vsel %vm1419, %v8378, %v8379
        %v8381 = vrot.slane %v8239, 5
        %v8382 = vrot.slane %v8381, 4
        %v8383 = vrot.slane %v7540, 5
        %v8384 = vsel %vm1419, %v8382, %v8383
        %v8385 = vrot.slane %v8383, 4
        %v8386 = vrot.slane %v7541, 5
        %v8387 = vsel %vm1419, %v8385, %v8386
        %v8388 = vrot.slane %v8240, 5
        %v8389 = vrot.slane %v8388, 4
        %v8390 = vrot.slane %v7543, 5
        %v8391 = vsel %vm1419, %v8389, %v8390
        %v8392 = vrot.slane %v8390, 4
        %v8393 = vrot.slane %v7544, 5
        %v8394 = vsel %vm1419, %v8392, %v8393
        %v8395 = vrot.slane %v8241, 5
        %v8396 = vrot.slane %v8395, 4
        %v8397 = vrot.slane %v7546, 5
        %v8398 = vsel %vm1419, %v8396, %v8397
        %v8399 = vrot.slane %v8397, 4
        %v8400 = vrot.slane %v7547, 5
        %v8401 = vsel %vm1419, %v8399, %v8400
        %s8402 = scalar_lea.vmem [#allocation11], 10
        %v8403 = vld [vmem:[%s8402] sm:$0x3]
        %v8404 = vunpack.c.l.b16 %v8293
        %v8405 = vunpack.c.l.b16 %v8296
        %v8406 = vunpack.c.l.b16 %v8300
        %v8407 = vunpack.c.l.b16 %v8303
        %v8408 = vunpack.c.l.b16 %v8307
        %v8409 = vunpack.c.l.b16 %v8310
        %v8410 = vunpack.c.l.b16 %v8314
        %v8411 = vunpack.c.l.b16 %v8317
        %v8412 = vunpack.c.l.b16 %v8321
        %v8413 = vunpack.c.l.b16 %v8324
        %v8414 = vunpack.c.l.b16 %v8328
        %v8415 = vunpack.c.l.b16 %v8331
        %v8416 = vunpack.c.l.b16 %v8335
        %v8417 = vunpack.c.l.b16 %v8338
        %v8418 = vunpack.c.l.b16 %v8342
        %v8419 = vunpack.c.l.b16 %v8345
        %v8420 = vunpack.c.l.b16 %v8349
        %v8421 = vunpack.c.l.b16 %v8352
        %v8422 = vunpack.c.l.b16 %v8356
        %v8423 = vunpack.c.l.b16 %v8359
        %v8424 = vunpack.c.l.b16 %v8363
        %v8425 = vunpack.c.l.b16 %v8366
        %v8426 = vunpack.c.l.b16 %v8370
        %v8427 = vunpack.c.l.b16 %v8373
        %v8428 = vunpack.c.l.b16 %v8377
        %v8429 = vunpack.c.l.b16 %v8380
        %v8430 = vunpack.c.l.b16 %v8384
        %v8431 = vunpack.c.l.b16 %v8387
        %v8432 = vunpack.c.l.b16 %v8391
        %v8433 = vunpack.c.l.b16 %v8394
        %v8434 = vunpack.c.l.b16 %v8398
        %v8435 = vunpack.c.l.b16 %v8401
        %v8436 = vpack.c.b16 %v8405, %v8404
        %v8437 = vpack.c.b16 %v8407, %v8406
        %v8438 = vpack.c.b16 %v8409, %v8408
        %v8439 = vpack.c.b16 %v8411, %v8410
        %v8440 = vpack.c.b16 %v8413, %v8412
        %v8441 = vpack.c.b16 %v8415, %v8414
        %v8442 = vpack.c.b16 %v8417, %v8416
        %v8443 = vpack.c.b16 %v8419, %v8418
        %v8444 = vpack.c.b16 %v8421, %v8420
        %v8445 = vpack.c.b16 %v8423, %v8422
        %v8446 = vpack.c.b16 %v8425, %v8424
        %v8447 = vpack.c.b16 %v8427, %v8426
        %v8448 = vpack.c.b16 %v8429, %v8428
        %v8449 = vpack.c.b16 %v8431, %v8430
        %v8450 = vpack.c.b16 %v8433, %v8432
        %v8451 = vpack.c.b16 %v8435, %v8434
        %v8453 = vsel %vm863, %v8436, 0
        %v8456 = vsel %vm863, %v8437, 0
        %v8459 = vsel %vm863, %v8438, 0
        %v8462 = vsel %vm863, %v8439, 0
        %v8465 = vsel %vm863, %v8440, 0
        %v8468 = vsel %vm863, %v8441, 0
        %v8471 = vsel %vm863, %v8442, 0
        %v8474 = vsel %vm863, %v8443, 0
        %v8477 = vsel %vm863, %v8444, 0
        %v8480 = vsel %vm863, %v8445, 0
        %v8483 = vsel %vm863, %v8446, 0
        %v8486 = vsel %vm863, %v8447, 0
        %v8489 = vsel %vm863, %v8448, 0
        %v8492 = vsel %vm863, %v8449, 0
        %v8495 = vsel %vm863, %v8450, 0
        %v8498 = vsel %vm863, %v8451, 0
        %v8501 = vsel %vm912, %v8403, 0
        %8503 = vmatprep.subr.bf16.mxu0 0
        %8504 = vmatpush1.bf16.msra.mxu0 %v8501
        %8505 = vmatprep.subr.bf16.mxu0 0
        %8506 = vmatpush1.bf16.msra.mxu0 0
        %8507 = vmatprep.subr.bf16.mxu0 0
        %8508 = vmatpush1.bf16.msra.mxu0 0
        %8509 = vmatprep.subr.bf16.mxu0 0
        %8510 = vmatpush1.bf16.msra.mxu0 0
        %8511 = vmatprep.subr.bf16.mxu0 0
        %8512 = vmatpush1.bf16.msra.mxu0 0
        %8513 = vmatprep.subr.bf16.mxu0 0
        %8514 = vmatpush1.bf16.msra.mxu0 0
        %8515 = vmatprep.subr.bf16.mxu0 0
        %8516 = vmatpush1.bf16.msra.mxu0 0
        %8517 = vmatprep.subr.bf16.mxu0 0
        %8518 = vmatpush1.bf16.msra.mxu0 0
        %8519 = vmatprep.subr.bf16.mxu0 0
        %8520 = vmatpush1.bf16.msra.mxu0 0
        %8521 = vmatprep.subr.bf16.mxu0 0
        %8522 = vmatpush1.bf16.msra.mxu0 0
        %8523 = vmatprep.subr.bf16.mxu0 0
        %8524 = vmatpush1.bf16.msra.mxu0 0
        %8525 = vmatprep.subr.bf16.mxu0 0
        %8526 = vmatpush1.bf16.msra.mxu0 0
        %8527 = vmatprep.subr.bf16.mxu0 0
        %8528 = vmatpush1.bf16.msra.mxu0 0
        %8529 = vmatprep.subr.bf16.mxu0 0
        %8530 = vmatpush1.bf16.msra.mxu0 0
        %8531 = vmatprep.subr.bf16.mxu0 0
        %8532 = vmatpush1.bf16.msra.mxu0 0
        %8533 = vmatprep.subr.bf16.mxu0 0
        %8534 = vmatpush1.bf16.msra.mxu0 0
        %8535 = vmatprep.mubr.bf16.mxu0 0
        %8536 = vmatmul.mubr.bf16.gmra.mrb[0].mxu0 %v8453
        %v8537 = vpop.f32.mrb[0].mxu0
        %v8538 = vadd.f32 0.0, %v8537
        %v8539 = vpop.f32.mrb[0].mxu0
        %v8540 = vpop.f32.mrb[0].mxu0
        %v8541 = vadd.f32 0.0, %v8540
        %v8542 = vpop.f32.mrb[0].mxu0
        %8543 = vmatprep.mubr.bf16.mxu0 0
        %8544 = vmatmul.mubr.bf16.gmra.mrb[0].mxu0 %v8456
        %v8545 = vpop.f32.mrb[0].mxu0
        %v8546 = vadd.f32 0.0, %v8545
        %v8547 = vpop.f32.mrb[0].mxu0
        %v8548 = vpop.f32.mrb[0].mxu0
        %v8549 = vadd.f32 0.0, %v8548
        %v8550 = vpop.f32.mrb[0].mxu0
        %8551 = vmatprep.mubr.bf16.mxu0 0
        %8552 = vmatmul.mubr.bf16.gmra.mrb[0].mxu0 %v8459
        %v8553 = vpop.f32.mrb[0].mxu0
        %v8554 = vadd.f32 0.0, %v8553
        %v8555 = vpop.f32.mrb[0].mxu0
        %v8556 = vpop.f32.mrb[0].mxu0
        %v8557 = vadd.f32 0.0, %v8556
        %v8558 = vpop.f32.mrb[0].mxu0
        %8559 = vmatprep.mubr.bf16.mxu0 0
        %8560 = vmatmul.mubr.bf16.gmra.mrb[0].mxu0 %v8462
        %v8561 = vpop.f32.mrb[0].mxu0
        %v8562 = vadd.f32 0.0, %v8561
        %v8563 = vpop.f32.mrb[0].mxu0
        %v8564 = vpop.f32.mrb[0].mxu0
        %v8565 = vadd.f32 0.0, %v8564
        %v8566 = vpop.f32.mrb[0].mxu0
        %8567 = vmatprep.mubr.bf16.mxu0 0
        %8568 = vmatmul.mubr.bf16.gmra.mrb[0].mxu0 %v8465
        %v8569 = vpop.f32.mrb[0].mxu0
        %v8570 = vadd.f32 0.0, %v8569
        %v8571 = vpop.f32.mrb[0].mxu0
        %v8572 = vpop.f32.mrb[0].mxu0
        %v8573 = vadd.f32 0.0, %v8572
        %v8574 = vpop.f32.mrb[0].mxu0
        %8575 = vmatprep.mubr.bf16.mxu0 0
        %8576 = vmatmul.mubr.bf16.gmra.mrb[0].mxu0 %v8468
        %v8577 = vpop.f32.mrb[0].mxu0
        %v8578 = vadd.f32 0.0, %v8577
        %v8579 = vpop.f32.mrb[0].mxu0
        %v8580 = vpop.f32.mrb[0].mxu0
        %v8581 = vadd.f32 0.0, %v8580
        %v8582 = vpop.f32.mrb[0].mxu0
        %8583 = vmatprep.mubr.bf16.mxu0 0
        %8584 = vmatmul.mubr.bf16.gmra.mrb[0].mxu0 %v8471
        %v8585 = vpop.f32.mrb[0].mxu0
        %v8586 = vadd.f32 0.0, %v8585
        %v8587 = vpop.f32.mrb[0].mxu0
        %v8588 = vpop.f32.mrb[0].mxu0
        %v8589 = vadd.f32 0.0, %v8588
        %v8590 = vpop.f32.mrb[0].mxu0
        %8591 = vmatprep.mubr.bf16.mxu0 0
        %8592 = vmatmul.mubr.bf16.gmra.mrb[0].mxu0 %v8474
        %v8593 = vpop.f32.mrb[0].mxu0
        %v8594 = vadd.f32 0.0, %v8593
        %v8595 = vpop.f32.mrb[0].mxu0
        %v8596 = vpop.f32.mrb[0].mxu0
        %v8597 = vadd.f32 0.0, %v8596
        %v8598 = vpop.f32.mrb[0].mxu0
        %8599 = vmatprep.mubr.bf16.mxu0 0
        %8600 = vmatmul.mubr.bf16.gmra.mrb[0].mxu0 %v8477
        %v8601 = vpop.f32.mrb[0].mxu0
        %v8602 = vadd.f32 0.0, %v8601
        %v8603 = vpop.f32.mrb[0].mxu0
        %v8604 = vpop.f32.mrb[0].mxu0
        %v8605 = vadd.f32 0.0, %v8604
        %v8606 = vpop.f32.mrb[0].mxu0
        %8607 = vmatprep.mubr.bf16.mxu0 0
        %8608 = vmatmul.mubr.bf16.gmra.mrb[0].mxu0 %v8480
        %v8609 = vpop.f32.mrb[0].mxu0
        %v8610 = vadd.f32 0.0, %v8609
        %v8611 = vpop.f32.mrb[0].mxu0
        %v8612 = vpop.f32.mrb[0].mxu0
        %v8613 = vadd.f32 0.0, %v8612
        %v8614 = vpop.f32.mrb[0].mxu0
        %8615 = vmatprep.mubr.bf16.mxu0 0
        %8616 = vmatmul.mubr.bf16.gmra.mrb[0].mxu0 %v8483
        %v8617 = vpop.f32.mrb[0].mxu0
        %v8618 = vadd.f32 0.0, %v8617
        %v8619 = vpop.f32.mrb[0].mxu0
        %v8620 = vpop.f32.mrb[0].mxu0
        %v8621 = vadd.f32 0.0, %v8620
        %v8622 = vpop.f32.mrb[0].mxu0
        %8623 = vmatprep.mubr.bf16.mxu0 0
        %8624 = vmatmul.mubr.bf16.gmra.mrb[0].mxu0 %v8486
        %v8625 = vpop.f32.mrb[0].mxu0
        %v8626 = vadd.f32 0.0, %v8625
        %v8627 = vpop.f32.mrb[0].mxu0
        %v8628 = vpop.f32.mrb[0].mxu0
        %v8629 = vadd.f32 0.0, %v8628
        %v8630 = vpop.f32.mrb[0].mxu0
        %8631 = vmatprep.mubr.bf16.mxu0 0
        %8632 = vmatmul.mubr.bf16.gmra.mrb[0].mxu0 %v8489
        %v8633 = vpop.f32.mrb[0].mxu0
        %v8634 = vadd.f32 0.0, %v8633
        %v8635 = vpop.f32.mrb[0].mxu0
        %v8636 = vpop.f32.mrb[0].mxu0
        %v8637 = vadd.f32 0.0, %v8636
        %v8638 = vpop.f32.mrb[0].mxu0
        %8639 = vmatprep.mubr.bf16.mxu0 0
        %8640 = vmatmul.mubr.bf16.gmra.mrb[0].mxu0 %v8492
        %v8641 = vpop.f32.mrb[0].mxu0
        %v8642 = vadd.f32 0.0, %v8641
        %v8643 = vpop.f32.mrb[0].mxu0
        %v8644 = vpop.f32.mrb[0].mxu0
        %v8645 = vadd.f32 0.0, %v8644
        %v8646 = vpop.f32.mrb[0].mxu0
        %8647 = vmatprep.mubr.bf16.mxu0 0
        %8648 = vmatmul.mubr.bf16.gmra.mrb[0].mxu0 %v8495
        %v8649 = vpop.f32.mrb[0].mxu0
        %v8650 = vadd.f32 0.0, %v8649
        %v8651 = vpop.f32.mrb[0].mxu0
        %v8652 = vpop.f32.mrb[0].mxu0
        %v8653 = vadd.f32 0.0, %v8652
        %v8654 = vpop.f32.mrb[0].mxu0
        %8655 = vmatprep.mubr.bf16.mxu0 0
        %8656 = vmatmul.mubr.bf16.gmra.mrb[0].mxu0 %v8498
        %v8657 = vpop.f32.mrb[0].mxu0
        %v8658 = vadd.f32 0.0, %v8657
        %v8659 = vpop.f32.mrb[0].mxu0
        %v8660 = vpop.f32.mrb[0].mxu0
        %v8661 = vadd.f32 0.0, %v8660
        %v8662 = vpop.f32.mrb[0].mxu0
        %8663 = vdwg.mxu0
        %v8664 = vadd.f32 %v8194, %v8538
        %v8665 = vadd.f32 %v8195, %v8541
        %v8666 = vadd.f32 %v8196, %v8546
        %v8667 = vadd.f32 %v8197, %v8549
        %v8668 = vadd.f32 %v8198, %v8554
        %v8669 = vadd.f32 %v8199, %v8557
        %v8670 = vadd.f32 %v8200, %v8562
        %v8671 = vadd.f32 %v8201, %v8565
        %v8672 = vadd.f32 %v8202, %v8570
        %v8673 = vadd.f32 %v8203, %v8573
        %v8674 = vadd.f32 %v8204, %v8578
        %v8675 = vadd.f32 %v8205, %v8581
        %v8676 = vadd.f32 %v8206, %v8586
        %v8677 = vadd.f32 %v8207, %v8589
        %v8678 = vadd.f32 %v8208, %v8594
        %v8679 = vadd.f32 %v8209, %v8597
        %v8680 = vadd.f32 %v8210, %v8602
        %v8681 = vadd.f32 %v8211, %v8605
        %v8682 = vadd.f32 %v8212, %v8610
        %v8683 = vadd.f32 %v8213, %v8613
        %v8684 = vadd.f32 %v8214, %v8618
        %v8685 = vadd.f32 %v8215, %v8621
        %v8686 = vadd.f32 %v8216, %v8626
        %v8687 = vadd.f32 %v8217, %v8629
        %v8688 = vadd.f32 %v8218, %v8634
        %v8689 = vadd.f32 %v8219, %v8637
        %v8690 = vadd.f32 %v8220, %v8642
        %v8691 = vadd.f32 %v8221, %v8645
        %v8692 = vadd.f32 %v8222, %v8650
        %v8693 = vadd.f32 %v8223, %v8653
        %v8694 = vadd.f32 %v8224, %v8658
        %v8695 = vadd.f32 %v8225, %v8661
        %s8696 = scalar_lea.vmem [#allocation2], 24
        %v8697 = vld [vmem:[%s8696] sm:$0xf]
        %v8698 = vld [vmem:[%s8696 + $0x4] sm:$0xf]
        %v8699 = vld [vmem:[%s8696 + $0xc] sm:$0xf]
        %v8700 = vld [vmem:[%s8696 + $0x10] sm:$0xf]
        %v8701 = vld [vmem:[%s8696 + $0x18] sm:$0xf]
        %v8702 = vld [vmem:[%s8696 + $0x1c] sm:$0xf]
        %v8703 = vld [vmem:[%s8696 + $0x24] sm:$0xf]
        %v8704 = vld [vmem:[%s8696 + $0x28] sm:$0xf]
        %v8705 = vld [vmem:[%s8696 + $0x30] sm:$0xf]
        %v8706 = vld [vmem:[%s8696 + $0x34] sm:$0xf]
        %v8707 = vld [vmem:[%s8696 + $0x3c] sm:$0xf]
        %v8708 = vld [vmem:[%s8696 + $0x40] sm:$0xf]
        %v8709 = vld [vmem:[%s8696 + $0x48] sm:$0xf]
        %v8710 = vld [vmem:[%s8696 + $0x4c] sm:$0xf]
        %v8711 = vld [vmem:[%s8696 + $0x54] sm:$0xf]
        %v8712 = vld [vmem:[%s8696 + $0x58] sm:$0xf]
        %v8713 = vld [vmem:[%s8696 + $0x60] sm:$0xf]
        %v8714 = vld [vmem:[%s8696 + $0x64] sm:$0xf]
        %v8715 = vld [vmem:[%s8696 + $0x6c] sm:$0xf]
        %v8716 = vld [vmem:[%s8696 + $0x70] sm:$0xf]
        %v8717 = vld [vmem:[%s8696 + $0x78] sm:$0xf]
        %v8718 = vld [vmem:[%s8696 + $0x7c] sm:$0xf]
        %v8719 = vld [vmem:[%s8696 + $0x84] sm:$0xf]
        %v8720 = vld [vmem:[%s8696 + $0x88] sm:$0xf]
        %v8721 = vld [vmem:[%s8696 + $0x90] sm:$0xf]
        %v8722 = vld [vmem:[%s8696 + $0x94] sm:$0xf]
        %v8723 = vld [vmem:[%s8696 + $0x9c] sm:$0xf]
        %v8724 = vld [vmem:[%s8696 + $0xa0] sm:$0xf]
        %v8725 = vld [vmem:[%s8696 + $0xa8] sm:$0xf]
        %v8726 = vld [vmem:[%s8696 + $0xac] sm:$0xf]
        %v8727 = vld [vmem:[%s8696 + $0xb4] sm:$0xf]
        %v8728 = vld [vmem:[%s8696 + $0xb8] sm:$0xf]
        %s8729 = scalar_lea.vmem [#allocation11], 12
        %v8730 = vld [vmem:[%s8729] sm:$0x3]
        %v8763 = vunpack.c.l.b16 %v8697
        %v8764 = vunpack.c.l.b16 %v8698
        %v8765 = vunpack.c.l.b16 %v8699
        %v8766 = vunpack.c.l.b16 %v8700
        %v8767 = vunpack.c.l.b16 %v8701
        %v8768 = vunpack.c.l.b16 %v8702
        %v8769 = vunpack.c.l.b16 %v8703
        %v8770 = vunpack.c.l.b16 %v8704
        %v8771 = vunpack.c.l.b16 %v8705
        %v8772 = vunpack.c.l.b16 %v8706
        %v8773 = vunpack.c.l.b16 %v8707
        %v8774 = vunpack.c.l.b16 %v8708
        %v8775 = vunpack.c.l.b16 %v8709
        %v8776 = vunpack.c.l.b16 %v8710
        %v8777 = vunpack.c.l.b16 %v8711
        %v8778 = vunpack.c.l.b16 %v8712
        %v8779 = vunpack.c.l.b16 %v8713
        %v8780 = vunpack.c.l.b16 %v8714
        %v8781 = vunpack.c.l.b16 %v8715
        %v8782 = vunpack.c.l.b16 %v8716
        %v8783 = vunpack.c.l.b16 %v8717
        %v8784 = vunpack.c.l.b16 %v8718
        %v8785 = vunpack.c.l.b16 %v8719
        %v8786 = vunpack.c.l.b16 %v8720
        %v8787 = vunpack.c.l.b16 %v8721
        %v8788 = vunpack.c.l.b16 %v8722
        %v8789 = vunpack.c.l.b16 %v8723
        %v8790 = vunpack.c.l.b16 %v8724
        %v8791 = vunpack.c.l.b16 %v8725
        %v8792 = vunpack.c.l.b16 %v8726
        %v8793 = vunpack.c.l.b16 %v8727
        %v8794 = vunpack.c.l.b16 %v8728
        %v8795 = vpack.c.b16 %v8764, %v8763
        %v8796 = vpack.c.b16 %v8766, %v8765
        %v8797 = vpack.c.b16 %v8768, %v8767
        %v8798 = vpack.c.b16 %v8770, %v8769
        %v8799 = vpack.c.b16 %v8772, %v8771
        %v8800 = vpack.c.b16 %v8774, %v8773
        %v8801 = vpack.c.b16 %v8776, %v8775
        %v8802 = vpack.c.b16 %v8778, %v8777
        %v8803 = vpack.c.b16 %v8780, %v8779
        %v8804 = vpack.c.b16 %v8782, %v8781
        %v8805 = vpack.c.b16 %v8784, %v8783
        %v8806 = vpack.c.b16 %v8786, %v8785
        %v8807 = vpack.c.b16 %v8788, %v8787
        %v8808 = vpack.c.b16 %v8790, %v8789
        %v8809 = vpack.c.b16 %v8792, %v8791
        %v8810 = vpack.c.b16 %v8794, %v8793
        %v8812 = vsel %vm863, %v8795, 0
        %v8815 = vsel %vm863, %v8796, 0
        %v8818 = vsel %vm863, %v8797, 0
        %v8821 = vsel %vm863, %v8798, 0
        %v8824 = vsel %vm863, %v8799, 0
        %v8827 = vsel %vm863, %v8800, 0
        %v8830 = vsel %vm863, %v8801, 0
        %v8833 = vsel %vm863, %v8802, 0
        %v8836 = vsel %vm863, %v8803, 0
        %v8839 = vsel %vm863, %v8804, 0
        %v8842 = vsel %vm863, %v8805, 0
        %v8845 = vsel %vm863, %v8806, 0
        %v8848 = vsel %vm863, %v8807, 0
        %v8851 = vsel %vm863, %v8808, 0
        %v8854 = vsel %vm863, %v8809, 0
        %v8857 = vsel %vm863, %v8810, 0
        %v8860 = vsel %vm912, %v8730, 0
        %8862 = vmatprep.subr.bf16.mxu0 0
        %8863 = vmatpush1.bf16.msra.mxu0 %v8860
        %8864 = vmatprep.subr.bf16.mxu0 0
        %8865 = vmatpush1.bf16.msra.mxu0 0
        %8866 = vmatprep.subr.bf16.mxu0 0
        %8867 = vmatpush1.bf16.msra.mxu0 0
        %8868 = vmatprep.subr.bf16.mxu0 0
        %8869 = vmatpush1.bf16.msra.mxu0 0
        %8870 = vmatprep.subr.bf16.mxu0 0
        %8871 = vmatpush1.bf16.msra.mxu0 0
        %8872 = vmatprep.subr.bf16.mxu0 0
        %8873 = vmatpush1.bf16.msra.mxu0 0
        %8874 = vmatprep.subr.bf16.mxu0 0
        %8875 = vmatpush1.bf16.msra.mxu0 0
        %8876 = vmatprep.subr.bf16.mxu0 0
        %8877 = vmatpush1.bf16.msra.mxu0 0
        %8878 = vmatprep.subr.bf16.mxu0 0
        %8879 = vmatpush1.bf16.msra.mxu0 0
        %8880 = vmatprep.subr.bf16.mxu0 0
        %8881 = vmatpush1.bf16.msra.mxu0 0
        %8882 = vmatprep.subr.bf16.mxu0 0
        %8883 = vmatpush1.bf16.msra.mxu0 0
        %8884 = vmatprep.subr.bf16.mxu0 0
        %8885 = vmatpush1.bf16.msra.mxu0 0
        %8886 = vmatprep.subr.bf16.mxu0 0
        %8887 = vmatpush1.bf16.msra.mxu0 0
        %8888 = vmatprep.subr.bf16.mxu0 0
        %8889 = vmatpush1.bf16.msra.mxu0 0
        %8890 = vmatprep.subr.bf16.mxu0 0
        %8891 = vmatpush1.bf16.msra.mxu0 0
        %8892 = vmatprep.subr.bf16.mxu0 0
        %8893 = vmatpush1.bf16.msra.mxu0 0
        %8894 = vmatprep.mubr.bf16.mxu0 0
        %8895 = vmatmul.mubr.bf16.gmra.mrb[0].mxu0 %v8812
        %v8896 = vpop.f32.mrb[0].mxu0
        %v8897 = vadd.f32 0.0, %v8896
        %v8898 = vpop.f32.mrb[0].mxu0
        %v8899 = vpop.f32.mrb[0].mxu0
        %v8900 = vadd.f32 0.0, %v8899
        %v8901 = vpop.f32.mrb[0].mxu0
        %8902 = vmatprep.mubr.bf16.mxu0 0
        %8903 = vmatmul.mubr.bf16.gmra.mrb[0].mxu0 %v8815
        %v8904 = vpop.f32.mrb[0].mxu0
        %v8905 = vadd.f32 0.0, %v8904
        %v8906 = vpop.f32.mrb[0].mxu0
        %v8907 = vpop.f32.mrb[0].mxu0
        %v8908 = vadd.f32 0.0, %v8907
        %v8909 = vpop.f32.mrb[0].mxu0
        %8910 = vmatprep.mubr.bf16.mxu0 0
        %8911 = vmatmul.mubr.bf16.gmra.mrb[0].mxu0 %v8818
        %v8912 = vpop.f32.mrb[0].mxu0
        %v8913 = vadd.f32 0.0, %v8912
        %v8914 = vpop.f32.mrb[0].mxu0
        %v8915 = vpop.f32.mrb[0].mxu0
        %v8916 = vadd.f32 0.0, %v8915
        %v8917 = vpop.f32.mrb[0].mxu0
        %8918 = vmatprep.mubr.bf16.mxu0 0
        %8919 = vmatmul.mubr.bf16.gmra.mrb[0].mxu0 %v8821
        %v8920 = vpop.f32.mrb[0].mxu0
        %v8921 = vadd.f32 0.0, %v8920
        %v8922 = vpop.f32.mrb[0].mxu0
        %v8923 = vpop.f32.mrb[0].mxu0
        %v8924 = vadd.f32 0.0, %v8923
        %v8925 = vpop.f32.mrb[0].mxu0
        %8926 = vmatprep.mubr.bf16.mxu0 0
        %8927 = vmatmul.mubr.bf16.gmra.mrb[0].mxu0 %v8824
        %v8928 = vpop.f32.mrb[0].mxu0
        %v8929 = vadd.f32 0.0, %v8928
        %v8930 = vpop.f32.mrb[0].mxu0
        %v8931 = vpop.f32.mrb[0].mxu0
        %v8932 = vadd.f32 0.0, %v8931
        %v8933 = vpop.f32.mrb[0].mxu0
        %8934 = vmatprep.mubr.bf16.mxu0 0
        %8935 = vmatmul.mubr.bf16.gmra.mrb[0].mxu0 %v8827
        %v8936 = vpop.f32.mrb[0].mxu0
        %v8937 = vadd.f32 0.0, %v8936
        %v8938 = vpop.f32.mrb[0].mxu0
        %v8939 = vpop.f32.mrb[0].mxu0
        %v8940 = vadd.f32 0.0, %v8939
        %v8941 = vpop.f32.mrb[0].mxu0
        %8942 = vmatprep.mubr.bf16.mxu0 0
        %8943 = vmatmul.mubr.bf16.gmra.mrb[0].mxu0 %v8830
        %v8944 = vpop.f32.mrb[0].mxu0
        %v8945 = vadd.f32 0.0, %v8944
        %v8946 = vpop.f32.mrb[0].mxu0
        %v8947 = vpop.f32.mrb[0].mxu0
        %v8948 = vadd.f32 0.0, %v8947
        %v8949 = vpop.f32.mrb[0].mxu0
        %8950 = vmatprep.mubr.bf16.mxu0 0
        %8951 = vmatmul.mubr.bf16.gmra.mrb[0].mxu0 %v8833
        %v8952 = vpop.f32.mrb[0].mxu0
        %v8953 = vadd.f32 0.0, %v8952
        %v8954 = vpop.f32.mrb[0].mxu0
        %v8955 = vpop.f32.mrb[0].mxu0
        %v8956 = vadd.f32 0.0, %v8955
        %v8957 = vpop.f32.mrb[0].mxu0
        %8958 = vmatprep.mubr.bf16.mxu0 0
        %8959 = vmatmul.mubr.bf16.gmra.mrb[0].mxu0 %v8836
        %v8960 = vpop.f32.mrb[0].mxu0
        %v8961 = vadd.f32 0.0, %v8960
        %v8962 = vpop.f32.mrb[0].mxu0
        %v8963 = vpop.f32.mrb[0].mxu0
        %v8964 = vadd.f32 0.0, %v8963
        %v8965 = vpop.f32.mrb[0].mxu0
        %8966 = vmatprep.mubr.bf16.mxu0 0
        %8967 = vmatmul.mubr.bf16.gmra.mrb[0].mxu0 %v8839
        %v8968 = vpop.f32.mrb[0].mxu0
        %v8969 = vadd.f32 0.0, %v8968
        %v8970 = vpop.f32.mrb[0].mxu0
        %v8971 = vpop.f32.mrb[0].mxu0
        %v8972 = vadd.f32 0.0, %v8971
        %v8973 = vpop.f32.mrb[0].mxu0
        %8974 = vmatprep.mubr.bf16.mxu0 0
        %8975 = vmatmul.mubr.bf16.gmra.mrb[0].mxu0 %v8842
        %v8976 = vpop.f32.mrb[0].mxu0
        %v8977 = vadd.f32 0.0, %v8976
        %v8978 = vpop.f32.mrb[0].mxu0
        %v8979 = vpop.f32.mrb[0].mxu0
        %v8980 = vadd.f32 0.0, %v8979
        %v8981 = vpop.f32.mrb[0].mxu0
        %8982 = vmatprep.mubr.bf16.mxu0 0
        %8983 = vmatmul.mubr.bf16.gmra.mrb[0].mxu0 %v8845
        %v8984 = vpop.f32.mrb[0].mxu0
        %v8985 = vadd.f32 0.0, %v8984
        %v8986 = vpop.f32.mrb[0].mxu0
        %v8987 = vpop.f32.mrb[0].mxu0
        %v8988 = vadd.f32 0.0, %v8987
        %v8989 = vpop.f32.mrb[0].mxu0
        %8990 = vmatprep.mubr.bf16.mxu0 0
        %8991 = vmatmul.mubr.bf16.gmra.mrb[0].mxu0 %v8848
        %v8992 = vpop.f32.mrb[0].mxu0
        %v8993 = vadd.f32 0.0, %v8992
        %v8994 = vpop.f32.mrb[0].mxu0
        %v8995 = vpop.f32.mrb[0].mxu0
        %v8996 = vadd.f32 0.0, %v8995
        %v8997 = vpop.f32.mrb[0].mxu0
        %8998 = vmatprep.mubr.bf16.mxu0 0
        %8999 = vmatmul.mubr.bf16.gmra.mrb[0].mxu0 %v8851
        %v9000 = vpop.f32.mrb[0].mxu0
        %v9001 = vadd.f32 0.0, %v9000
        %v9002 = vpop.f32.mrb[0].mxu0
        %v9003 = vpop.f32.mrb[0].mxu0
        %v9004 = vadd.f32 0.0, %v9003
        %v9005 = vpop.f32.mrb[0].mxu0
        %9006 = vmatprep.mubr.bf16.mxu0 0
        %9007 = vmatmul.mubr.bf16.gmra.mrb[0].mxu0 %v8854
        %v9008 = vpop.f32.mrb[0].mxu0
        %v9009 = vadd.f32 0.0, %v9008
        %v9010 = vpop.f32.mrb[0].mxu0
        %v9011 = vpop.f32.mrb[0].mxu0
        %v9012 = vadd.f32 0.0, %v9011
        %v9013 = vpop.f32.mrb[0].mxu0
        %9014 = vmatprep.mubr.bf16.mxu0 0
        %9015 = vmatmul.mubr.bf16.gmra.mrb[0].mxu0 %v8857
        %v9016 = vpop.f32.mrb[0].mxu0
        %v9017 = vadd.f32 0.0, %v9016
        %v9018 = vpop.f32.mrb[0].mxu0
        %v9019 = vpop.f32.mrb[0].mxu0
        %v9020 = vadd.f32 0.0, %v9019
        %v9021 = vpop.f32.mrb[0].mxu0
        %9022 = vdwg.mxu0
        %v9023 = vadd.f32 %v8664, %v8897
        %v9024 = vadd.f32 %v8665, %v8900
        %v9025 = vadd.f32 %v8666, %v8905
        %v9026 = vadd.f32 %v8667, %v8908
        %v9027 = vadd.f32 %v8668, %v8913
        %v9028 = vadd.f32 %v8669, %v8916
        %v9029 = vadd.f32 %v8670, %v8921
        %v9030 = vadd.f32 %v8671, %v8924
        %v9031 = vadd.f32 %v8672, %v8929
        %v9032 = vadd.f32 %v8673, %v8932
        %v9033 = vadd.f32 %v8674, %v8937
        %v9034 = vadd.f32 %v8675, %v8940
        %v9035 = vadd.f32 %v8676, %v8945
        %v9036 = vadd.f32 %v8677, %v8948
        %v9037 = vadd.f32 %v8678, %v8953
        %v9038 = vadd.f32 %v8679, %v8956
        %v9039 = vadd.f32 %v8680, %v8961
        %v9040 = vadd.f32 %v8681, %v8964
        %v9041 = vadd.f32 %v8682, %v8969
        %v9042 = vadd.f32 %v8683, %v8972
        %v9043 = vadd.f32 %v8684, %v8977
        %v9044 = vadd.f32 %v8685, %v8980
        %v9045 = vadd.f32 %v8686, %v8985
        %v9046 = vadd.f32 %v8687, %v8988
        %v9047 = vadd.f32 %v8688, %v8993
        %v9048 = vadd.f32 %v8689, %v8996
        %v9049 = vadd.f32 %v8690, %v9001
        %v9050 = vadd.f32 %v8691, %v9004
        %v9051 = vadd.f32 %v8692, %v9009
        %v9052 = vadd.f32 %v8693, %v9012
        %v9053 = vadd.f32 %v8694, %v9017
        %v9054 = vadd.f32 %v8695, %v9020
        %v9055 = vld [vmem:[%s8696] sm:$0xf]
        %v9056 = vld [vmem:[%s8696 + $0x4] sm:$0xf]
        %v9057 = vld [vmem:[%s8696 + $0x8] sm:$0x1]
        %v9058 = vld [vmem:[%s8696 + $0xc] sm:$0xf]
        %v9059 = vld [vmem:[%s8696 + $0x10] sm:$0xf]
        %v9060 = vld [vmem:[%s8696 + $0x14] sm:$0x1]
        %v9061 = vld [vmem:[%s8696 + $0x18] sm:$0xf]
        %v9062 = vld [vmem:[%s8696 + $0x1c] sm:$0xf]
        %v9063 = vld [vmem:[%s8696 + $0x20] sm:$0x1]
        %v9064 = vld [vmem:[%s8696 + $0x24] sm:$0xf]
        %v9065 = vld [vmem:[%s8696 + $0x28] sm:$0xf]
        %v9066 = vld [vmem:[%s8696 + $0x2c] sm:$0x1]
        %v9067 = vld [vmem:[%s8696 + $0x30] sm:$0xf]
        %v9068 = vld [vmem:[%s8696 + $0x34] sm:$0xf]
        %v9069 = vld [vmem:[%s8696 + $0x38] sm:$0x1]
        %v9070 = vld [vmem:[%s8696 + $0x3c] sm:$0xf]
        %v9071 = vld [vmem:[%s8696 + $0x40] sm:$0xf]
        %v9072 = vld [vmem:[%s8696 + $0x44] sm:$0x1]
        %v9073 = vld [vmem:[%s8696 + $0x48] sm:$0xf]
        %v9074 = vld [vmem:[%s8696 + $0x4c] sm:$0xf]
        %v9075 = vld [vmem:[%s8696 + $0x50] sm:$0x1]
        %v9076 = vld [vmem:[%s8696 + $0x54] sm:$0xf]
        %v9077 = vld [vmem:[%s8696 + $0x58] sm:$0xf]
        %v9078 = vld [vmem:[%s8696 + $0x5c] sm:$0x1]
        %v9079 = vld [vmem:[%s8696 + $0x60] sm:$0xf]
        %v9080 = vld [vmem:[%s8696 + $0x64] sm:$0xf]
        %v9081 = vld [vmem:[%s8696 + $0x68] sm:$0x1]
        %v9082 = vld [vmem:[%s8696 + $0x6c] sm:$0xf]
        %v9083 = vld [vmem:[%s8696 + $0x70] sm:$0xf]
        %v9084 = vld [vmem:[%s8696 + $0x74] sm:$0x1]
        %v9085 = vld [vmem:[%s8696 + $0x78] sm:$0xf]
        %v9086 = vld [vmem:[%s8696 + $0x7c] sm:$0xf]
        %v9087 = vld [vmem:[%s8696 + $0x80] sm:$0x1]
        %v9088 = vld [vmem:[%s8696 + $0x84] sm:$0xf]
        %v9089 = vld [vmem:[%s8696 + $0x88] sm:$0xf]
        %v9090 = vld [vmem:[%s8696 + $0x8c] sm:$0x1]
        %v9091 = vld [vmem:[%s8696 + $0x90] sm:$0xf]
        %v9092 = vld [vmem:[%s8696 + $0x94] sm:$0xf]
        %v9093 = vld [vmem:[%s8696 + $0x98] sm:$0x1]
        %v9094 = vld [vmem:[%s8696 + $0x9c] sm:$0xf]
        %v9095 = vld [vmem:[%s8696 + $0xa0] sm:$0xf]
        %v9096 = vld [vmem:[%s8696 + $0xa4] sm:$0x1]
        %v9097 = vld [vmem:[%s8696 + $0xa8] sm:$0xf]
        %v9098 = vld [vmem:[%s8696 + $0xac] sm:$0xf]
        %v9099 = vld [vmem:[%s8696 + $0xb0] sm:$0x1]
        %v9100 = vld [vmem:[%s8696 + $0xb4] sm:$0xf]
        %v9101 = vld [vmem:[%s8696 + $0xb8] sm:$0xf]
        %v9102 = vld [vmem:[%s8696 + $0xbc] sm:$0x1]
        %v9104 = vshrl.u32 %v9055, 16
        %v9106 = vrot.slane %v9104, 4
        %v9107 = vshll.u32 %v9055, 16
        %v9109 = vrot.slane %v9107, 5
        %v9110 = vor.u32 %v9106, %v9109
        %v9111 = vrot.slane %v9110, 4
        %v9113 = vshll.u32 %v9056, 16
        %v9115 = vrot.slane %v9113, 5
        %v9116 = vsel %vm428, %v9111, %v9115
        %v9117 = vshrl.u32 %v9056, 16
        %v9119 = vrot.slane %v9117, 4
        %v9120 = vor.u32 %v9119, %v9115
        %v9121 = vrot.slane %v9120, 4
        %v9123 = vshll.u32 %v9057, 16
        %v9125 = vrot.slane %v9123, 5
        %v9126 = vsel %vm428, %v9121, %v9125
        %v9128 = vshrl.u32 %v9058, 16
        %v9130 = vrot.slane %v9128, 4
        %v9131 = vshll.u32 %v9058, 16
        %v9133 = vrot.slane %v9131, 5
        %v9134 = vor.u32 %v9130, %v9133
        %v9135 = vrot.slane %v9134, 4
        %v9137 = vshll.u32 %v9059, 16
        %v9139 = vrot.slane %v9137, 5
        %v9140 = vsel %vm428, %v9135, %v9139
        %v9141 = vshrl.u32 %v9059, 16
        %v9143 = vrot.slane %v9141, 4
        %v9144 = vor.u32 %v9143, %v9139
        %v9145 = vrot.slane %v9144, 4
        %v9147 = vshll.u32 %v9060, 16
        %v9149 = vrot.slane %v9147, 5
        %v9150 = vsel %vm428, %v9145, %v9149
        %v9152 = vshrl.u32 %v9061, 16
        %v9154 = vrot.slane %v9152, 4
        %v9155 = vshll.u32 %v9061, 16
        %v9157 = vrot.slane %v9155, 5
        %v9158 = vor.u32 %v9154, %v9157
        %v9159 = vrot.slane %v9158, 4
        %v9161 = vshll.u32 %v9062, 16
        %v9163 = vrot.slane %v9161, 5
        %v9164 = vsel %vm428, %v9159, %v9163
        %v9165 = vshrl.u32 %v9062, 16
        %v9167 = vrot.slane %v9165, 4
        %v9168 = vor.u32 %v9167, %v9163
        %v9169 = vrot.slane %v9168, 4
        %v9171 = vshll.u32 %v9063, 16
        %v9173 = vrot.slane %v9171, 5
        %v9174 = vsel %vm428, %v9169, %v9173
        %v9176 = vshrl.u32 %v9064, 16
        %v9178 = vrot.slane %v9176, 4
        %v9179 = vshll.u32 %v9064, 16
        %v9181 = vrot.slane %v9179, 5
        %v9182 = vor.u32 %v9178, %v9181
        %v9183 = vrot.slane %v9182, 4
        %v9185 = vshll.u32 %v9065, 16
        %v9187 = vrot.slane %v9185, 5
        %v9188 = vsel %vm428, %v9183, %v9187
        %v9189 = vshrl.u32 %v9065, 16
        %v9191 = vrot.slane %v9189, 4
        %v9192 = vor.u32 %v9191, %v9187
        %v9193 = vrot.slane %v9192, 4
        %v9195 = vshll.u32 %v9066, 16
        %v9197 = vrot.slane %v9195, 5
        %v9198 = vsel %vm428, %v9193, %v9197
        %v9200 = vshrl.u32 %v9067, 16
        %v9202 = vrot.slane %v9200, 4
        %v9203 = vshll.u32 %v9067, 16
        %v9205 = vrot.slane %v9203, 5
        %v9206 = vor.u32 %v9202, %v9205
        %v9207 = vrot.slane %v9206, 4
        %v9209 = vshll.u32 %v9068, 16
        %v9211 = vrot.slane %v9209, 5
        %v9212 = vsel %vm428, %v9207, %v9211
        %v9213 = vshrl.u32 %v9068, 16
        %v9215 = vrot.slane %v9213, 4
        %v9216 = vor.u32 %v9215, %v9211
        %v9217 = vrot.slane %v9216, 4
        %v9219 = vshll.u32 %v9069, 16
        %v9221 = vrot.slane %v9219, 5
        %v9222 = vsel %vm428, %v9217, %v9221
        %v9224 = vshrl.u32 %v9070, 16
        %v9226 = vrot.slane %v9224, 4
        %v9227 = vshll.u32 %v9070, 16
        %v9229 = vrot.slane %v9227, 5
        %v9230 = vor.u32 %v9226, %v9229
        %v9231 = vrot.slane %v9230, 4
        %v9233 = vshll.u32 %v9071, 16
        %v9235 = vrot.slane %v9233, 5
        %v9236 = vsel %vm428, %v9231, %v9235
        %v9237 = vshrl.u32 %v9071, 16
        %v9239 = vrot.slane %v9237, 4
        %v9240 = vor.u32 %v9239, %v9235
        %v9241 = vrot.slane %v9240, 4
        %v9243 = vshll.u32 %v9072, 16
        %v9245 = vrot.slane %v9243, 5
        %v9246 = vsel %vm428, %v9241, %v9245
        %v9248 = vshrl.u32 %v9073, 16
        %v9250 = vrot.slane %v9248, 4
        %v9251 = vshll.u32 %v9073, 16
        %v9253 = vrot.slane %v9251, 5
        %v9254 = vor.u32 %v9250, %v9253
        %v9255 = vrot.slane %v9254, 4
        %v9257 = vshll.u32 %v9074, 16
        %v9259 = vrot.slane %v9257, 5
        %v9260 = vsel %vm428, %v9255, %v9259
        %v9261 = vshrl.u32 %v9074, 16
        %v9263 = vrot.slane %v9261, 4
        %v9264 = vor.u32 %v9263, %v9259
        %v9265 = vrot.slane %v9264, 4
        %v9267 = vshll.u32 %v9075, 16
        %v9269 = vrot.slane %v9267, 5
        %v9270 = vsel %vm428, %v9265, %v9269
        %v9272 = vshrl.u32 %v9076, 16
        %v9274 = vrot.slane %v9272, 4
        %v9275 = vshll.u32 %v9076, 16
        %v9277 = vrot.slane %v9275, 5
        %v9278 = vor.u32 %v9274, %v9277
        %v9279 = vrot.slane %v9278, 4
        %v9281 = vshll.u32 %v9077, 16
        %v9283 = vrot.slane %v9281, 5
        %v9284 = vsel %vm428, %v9279, %v9283
        %v9285 = vshrl.u32 %v9077, 16
        %v9287 = vrot.slane %v9285, 4
        %v9288 = vor.u32 %v9287, %v9283
        %v9289 = vrot.slane %v9288, 4
        %v9291 = vshll.u32 %v9078, 16
        %v9293 = vrot.slane %v9291, 5
        %v9294 = vsel %vm428, %v9289, %v9293
        %v9296 = vshrl.u32 %v9079, 16
        %v9298 = vrot.slane %v9296, 4
        %v9299 = vshll.u32 %v9079, 16
        %v9301 = vrot.slane %v9299, 5
        %v9302 = vor.u32 %v9298, %v9301
        %v9303 = vrot.slane %v9302, 4
        %v9305 = vshll.u32 %v9080, 16
        %v9307 = vrot.slane %v9305, 5
        %v9308 = vsel %vm428, %v9303, %v9307
        %v9309 = vshrl.u32 %v9080, 16
        %v9311 = vrot.slane %v9309, 4
        %v9312 = vor.u32 %v9311, %v9307
        %v9313 = vrot.slane %v9312, 4
        %v9315 = vshll.u32 %v9081, 16
        %v9317 = vrot.slane %v9315, 5
        %v9318 = vsel %vm428, %v9313, %v9317
        %v9320 = vshrl.u32 %v9082, 16
        %v9322 = vrot.slane %v9320, 4
        %v9323 = vshll.u32 %v9082, 16
        %v9325 = vrot.slane %v9323, 5
        %v9326 = vor.u32 %v9322, %v9325
        %v9327 = vrot.slane %v9326, 4
        %v9329 = vshll.u32 %v9083, 16
        %v9331 = vrot.slane %v9329, 5
        %v9332 = vsel %vm428, %v9327, %v9331
        %v9333 = vshrl.u32 %v9083, 16
        %v9335 = vrot.slane %v9333, 4
        %v9336 = vor.u32 %v9335, %v9331
        %v9337 = vrot.slane %v9336, 4
        %v9339 = vshll.u32 %v9084, 16
        %v9341 = vrot.slane %v9339, 5
        %v9342 = vsel %vm428, %v9337, %v9341
        %v9344 = vshrl.u32 %v9085, 16
        %v9346 = vrot.slane %v9344, 4
        %v9347 = vshll.u32 %v9085, 16
        %v9349 = vrot.slane %v9347, 5
        %v9350 = vor.u32 %v9346, %v9349
        %v9351 = vrot.slane %v9350, 4
        %v9353 = vshll.u32 %v9086, 16
        %v9355 = vrot.slane %v9353, 5
        %v9356 = vsel %vm428, %v9351, %v9355
        %v9357 = vshrl.u32 %v9086, 16
        %v9359 = vrot.slane %v9357, 4
        %v9360 = vor.u32 %v9359, %v9355
        %v9361 = vrot.slane %v9360, 4
        %v9363 = vshll.u32 %v9087, 16
        %v9365 = vrot.slane %v9363, 5
        %v9366 = vsel %vm428, %v9361, %v9365
        %v9368 = vshrl.u32 %v9088, 16
        %v9370 = vrot.slane %v9368, 4
        %v9371 = vshll.u32 %v9088, 16
        %v9373 = vrot.slane %v9371, 5
        %v9374 = vor.u32 %v9370, %v9373
        %v9375 = vrot.slane %v9374, 4
        %v9377 = vshll.u32 %v9089, 16
        %v9379 = vrot.slane %v9377, 5
        %v9380 = vsel %vm428, %v9375, %v9379
        %v9381 = vshrl.u32 %v9089, 16
        %v9383 = vrot.slane %v9381, 4
        %v9384 = vor.u32 %v9383, %v9379
        %v9385 = vrot.slane %v9384, 4
        %v9387 = vshll.u32 %v9090, 16
        %v9389 = vrot.slane %v9387, 5
        %v9390 = vsel %vm428, %v9385, %v9389
        %v9392 = vshrl.u32 %v9091, 16
        %v9394 = vrot.slane %v9392, 4
        %v9395 = vshll.u32 %v9091, 16
        %v9397 = vrot.slane %v9395, 5
        %v9398 = vor.u32 %v9394, %v9397
        %v9399 = vrot.slane %v9398, 4
        %v9401 = vshll.u32 %v9092, 16
        %v9403 = vrot.slane %v9401, 5
        %v9404 = vsel %vm428, %v9399, %v9403
        %v9405 = vshrl.u32 %v9092, 16
        %v9407 = vrot.slane %v9405, 4
        %v9408 = vor.u32 %v9407, %v9403
        %v9409 = vrot.slane %v9408, 4
        %v9411 = vshll.u32 %v9093, 16
        %v9413 = vrot.slane %v9411, 5
        %v9414 = vsel %vm428, %v9409, %v9413
        %v9416 = vshrl.u32 %v9094, 16
        %v9418 = vrot.slane %v9416, 4
        %v9419 = vshll.u32 %v9094, 16
        %v9421 = vrot.slane %v9419, 5
        %v9422 = vor.u32 %v9418, %v9421
        %v9423 = vrot.slane %v9422, 4
        %v9425 = vshll.u32 %v9095, 16
        %v9427 = vrot.slane %v9425, 5
        %v9428 = vsel %vm428, %v9423, %v9427
        %v9429 = vshrl.u32 %v9095, 16
        %v9431 = vrot.slane %v9429, 4
        %v9432 = vor.u32 %v9431, %v9427
        %v9433 = vrot.slane %v9432, 4
        %v9435 = vshll.u32 %v9096, 16
        %v9437 = vrot.slane %v9435, 5
        %v9438 = vsel %vm428, %v9433, %v9437
        %v9440 = vshrl.u32 %v9097, 16
        %v9442 = vrot.slane %v9440, 4
        %v9443 = vshll.u32 %v9097, 16
        %v9445 = vrot.slane %v9443, 5
        %v9446 = vor.u32 %v9442, %v9445
        %v9447 = vrot.slane %v9446, 4
        %v9449 = vshll.u32 %v9098, 16
        %v9451 = vrot.slane %v9449, 5
        %v9452 = vsel %vm428, %v9447, %v9451
        %v9453 = vshrl.u32 %v9098, 16
        %v9455 = vrot.slane %v9453, 4
        %v9456 = vor.u32 %v9455, %v9451
        %v9457 = vrot.slane %v9456, 4
        %v9459 = vshll.u32 %v9099, 16
        %v9461 = vrot.slane %v9459, 5
        %v9462 = vsel %vm428, %v9457, %v9461
        %v9464 = vshrl.u32 %v9100, 16
        %v9466 = vrot.slane %v9464, 4
        %v9467 = vshll.u32 %v9100, 16
        %v9469 = vrot.slane %v9467, 5
        %v9470 = vor.u32 %v9466, %v9469
        %v9471 = vrot.slane %v9470, 4
        %v9473 = vshll.u32 %v9101, 16
        %v9475 = vrot.slane %v9473, 5
        %v9476 = vsel %vm428, %v9471, %v9475
        %v9477 = vshrl.u32 %v9101, 16
        %v9479 = vrot.slane %v9477, 4
        %v9480 = vor.u32 %v9479, %v9475
        %v9481 = vrot.slane %v9480, 4
        %v9483 = vshll.u32 %v9102, 16
        %v9485 = vrot.slane %v9483, 5
        %v9486 = vsel %vm428, %v9481, %v9485
        %s9487 = scalar_lea.vmem [#allocation11], 14
        %v9488 = vld [vmem:[%s9487] sm:$0x3]
        %v9489 = vunpack.c.l.b16 %v9116
        %v9490 = vunpack.c.l.b16 %v9126
        %v9491 = vunpack.c.l.b16 %v9140
        %v9492 = vunpack.c.l.b16 %v9150
        %v9493 = vunpack.c.l.b16 %v9164
        %v9494 = vunpack.c.l.b16 %v9174
        %v9495 = vunpack.c.l.b16 %v9188
        %v9496 = vunpack.c.l.b16 %v9198
        %v9497 = vunpack.c.l.b16 %v9212
        %v9498 = vunpack.c.l.b16 %v9222
        %v9499 = vunpack.c.l.b16 %v9236
        %v9500 = vunpack.c.l.b16 %v9246
        %v9501 = vunpack.c.l.b16 %v9260
        %v9502 = vunpack.c.l.b16 %v9270
        %v9503 = vunpack.c.l.b16 %v9284
        %v9504 = vunpack.c.l.b16 %v9294
        %v9505 = vunpack.c.l.b16 %v9308
        %v9506 = vunpack.c.l.b16 %v9318
        %v9507 = vunpack.c.l.b16 %v9332
        %v9508 = vunpack.c.l.b16 %v9342
        %v9509 = vunpack.c.l.b16 %v9356
        %v9510 = vunpack.c.l.b16 %v9366
        %v9511 = vunpack.c.l.b16 %v9380
        %v9512 = vunpack.c.l.b16 %v9390
        %v9513 = vunpack.c.l.b16 %v9404
        %v9514 = vunpack.c.l.b16 %v9414
        %v9515 = vunpack.c.l.b16 %v9428
        %v9516 = vunpack.c.l.b16 %v9438
        %v9517 = vunpack.c.l.b16 %v9452
        %v9518 = vunpack.c.l.b16 %v9462
        %v9519 = vunpack.c.l.b16 %v9476
        %v9520 = vunpack.c.l.b16 %v9486
        %v9521 = vpack.c.b16 %v9490, %v9489
        %v9522 = vpack.c.b16 %v9492, %v9491
        %v9523 = vpack.c.b16 %v9494, %v9493
        %v9524 = vpack.c.b16 %v9496, %v9495
        %v9525 = vpack.c.b16 %v9498, %v9497
        %v9526 = vpack.c.b16 %v9500, %v9499
        %v9527 = vpack.c.b16 %v9502, %v9501
        %v9528 = vpack.c.b16 %v9504, %v9503
        %v9529 = vpack.c.b16 %v9506, %v9505
        %v9530 = vpack.c.b16 %v9508, %v9507
        %v9531 = vpack.c.b16 %v9510, %v9509
        %v9532 = vpack.c.b16 %v9512, %v9511
        %v9533 = vpack.c.b16 %v9514, %v9513
        %v9534 = vpack.c.b16 %v9516, %v9515
        %v9535 = vpack.c.b16 %v9518, %v9517
        %v9536 = vpack.c.b16 %v9520, %v9519
        %v9538 = vsel %vm863, %v9521, 0
        %v9541 = vsel %vm863, %v9522, 0
        %v9544 = vsel %vm863, %v9523, 0
        %v9547 = vsel %vm863, %v9524, 0
        %v9550 = vsel %vm863, %v9525, 0
        %v9553 = vsel %vm863, %v9526, 0
        %v9556 = vsel %vm863, %v9527, 0
        %v9559 = vsel %vm863, %v9528, 0
        %v9562 = vsel %vm863, %v9529, 0
        %v9565 = vsel %vm863, %v9530, 0
        %v9568 = vsel %vm863, %v9531, 0
        %v9571 = vsel %vm863, %v9532, 0
        %v9574 = vsel %vm863, %v9533, 0
        %v9577 = vsel %vm863, %v9534, 0
        %v9580 = vsel %vm863, %v9535, 0
        %v9583 = vsel %vm863, %v9536, 0
        %v9586 = vsel %vm912, %v9488, 0
        %9588 = vmatprep.subr.bf16.mxu0 0
        %9589 = vmatpush1.bf16.msra.mxu0 %v9586
        %9590 = vmatprep.subr.bf16.mxu0 0
        %9591 = vmatpush1.bf16.msra.mxu0 0
        %9592 = vmatprep.subr.bf16.mxu0 0
        %9593 = vmatpush1.bf16.msra.mxu0 0
        %9594 = vmatprep.subr.bf16.mxu0 0
        %9595 = vmatpush1.bf16.msra.mxu0 0
        %9596 = vmatprep.subr.bf16.mxu0 0
        %9597 = vmatpush1.bf16.msra.mxu0 0
        %9598 = vmatprep.subr.bf16.mxu0 0
        %9599 = vmatpush1.bf16.msra.mxu0 0
        %9600 = vmatprep.subr.bf16.mxu0 0
        %9601 = vmatpush1.bf16.msra.mxu0 0
        %9602 = vmatprep.subr.bf16.mxu0 0
        %9603 = vmatpush1.bf16.msra.mxu0 0
        %9604 = vmatprep.subr.bf16.mxu0 0
        %9605 = vmatpush1.bf16.msra.mxu0 0
        %9606 = vmatprep.subr.bf16.mxu0 0
        %9607 = vmatpush1.bf16.msra.mxu0 0
        %9608 = vmatprep.subr.bf16.mxu0 0
        %9609 = vmatpush1.bf16.msra.mxu0 0
        %9610 = vmatprep.subr.bf16.mxu0 0
        %9611 = vmatpush1.bf16.msra.mxu0 0
        %9612 = vmatprep.subr.bf16.mxu0 0
        %9613 = vmatpush1.bf16.msra.mxu0 0
        %9614 = vmatprep.subr.bf16.mxu0 0
        %9615 = vmatpush1.bf16.msra.mxu0 0
        %9616 = vmatprep.subr.bf16.mxu0 0
        %9617 = vmatpush1.bf16.msra.mxu0 0
        %9618 = vmatprep.subr.bf16.mxu0 0
        %9619 = vmatpush1.bf16.msra.mxu0 0
        %9620 = vmatprep.mubr.bf16.mxu0 0
        %9621 = vmatmul.mubr.bf16.gmra.mrb[0].mxu0 %v9538
        %v9622 = vpop.f32.mrb[0].mxu0
        %v9623 = vadd.f32 0.0, %v9622
        %v9624 = vpop.f32.mrb[0].mxu0
        %v9625 = vpop.f32.mrb[0].mxu0
        %v9626 = vadd.f32 0.0, %v9625
        %v9627 = vpop.f32.mrb[0].mxu0
        %9628 = vmatprep.mubr.bf16.mxu0 0
        %9629 = vmatmul.mubr.bf16.gmra.mrb[0].mxu0 %v9541
        %v9630 = vpop.f32.mrb[0].mxu0
        %v9631 = vadd.f32 0.0, %v9630
        %v9632 = vpop.f32.mrb[0].mxu0
        %v9633 = vpop.f32.mrb[0].mxu0
        %v9634 = vadd.f32 0.0, %v9633
        %v9635 = vpop.f32.mrb[0].mxu0
        %9636 = vmatprep.mubr.bf16.mxu0 0
        %9637 = vmatmul.mubr.bf16.gmra.mrb[0].mxu0 %v9544
        %v9638 = vpop.f32.mrb[0].mxu0
        %v9639 = vadd.f32 0.0, %v9638
        %v9640 = vpop.f32.mrb[0].mxu0
        %v9641 = vpop.f32.mrb[0].mxu0
        %v9642 = vadd.f32 0.0, %v9641
        %v9643 = vpop.f32.mrb[0].mxu0
        %9644 = vmatprep.mubr.bf16.mxu0 0
        %9645 = vmatmul.mubr.bf16.gmra.mrb[0].mxu0 %v9547
        %v9646 = vpop.f32.mrb[0].mxu0
        %v9647 = vadd.f32 0.0, %v9646
        %v9648 = vpop.f32.mrb[0].mxu0
        %v9649 = vpop.f32.mrb[0].mxu0
        %v9650 = vadd.f32 0.0, %v9649
        %v9651 = vpop.f32.mrb[0].mxu0
        %9652 = vmatprep.mubr.bf16.mxu0 0
        %9653 = vmatmul.mubr.bf16.gmra.mrb[0].mxu0 %v9550
        %v9654 = vpop.f32.mrb[0].mxu0
        %v9655 = vadd.f32 0.0, %v9654
        %v9656 = vpop.f32.mrb[0].mxu0
        %v9657 = vpop.f32.mrb[0].mxu0
        %v9658 = vadd.f32 0.0, %v9657
        %v9659 = vpop.f32.mrb[0].mxu0
        %9660 = vmatprep.mubr.bf16.mxu0 0
        %9661 = vmatmul.mubr.bf16.gmra.mrb[0].mxu0 %v9553
        %v9662 = vpop.f32.mrb[0].mxu0
        %v9663 = vadd.f32 0.0, %v9662
        %v9664 = vpop.f32.mrb[0].mxu0
        %v9665 = vpop.f32.mrb[0].mxu0
        %v9666 = vadd.f32 0.0, %v9665
        %v9667 = vpop.f32.mrb[0].mxu0
        %9668 = vmatprep.mubr.bf16.mxu0 0
        %9669 = vmatmul.mubr.bf16.gmra.mrb[0].mxu0 %v9556
        %v9670 = vpop.f32.mrb[0].mxu0
        %v9671 = vadd.f32 0.0, %v9670
        %v9672 = vpop.f32.mrb[0].mxu0
        %v9673 = vpop.f32.mrb[0].mxu0
        %v9674 = vadd.f32 0.0, %v9673
        %v9675 = vpop.f32.mrb[0].mxu0
        %9676 = vmatprep.mubr.bf16.mxu0 0
        %9677 = vmatmul.mubr.bf16.gmra.mrb[0].mxu0 %v9559
        %v9678 = vpop.f32.mrb[0].mxu0
        %v9679 = vadd.f32 0.0, %v9678
        %v9680 = vpop.f32.mrb[0].mxu0
        %v9681 = vpop.f32.mrb[0].mxu0
        %v9682 = vadd.f32 0.0, %v9681
        %v9683 = vpop.f32.mrb[0].mxu0
        %9684 = vmatprep.mubr.bf16.mxu0 0
        %9685 = vmatmul.mubr.bf16.gmra.mrb[0].mxu0 %v9562
        %v9686 = vpop.f32.mrb[0].mxu0
        %v9687 = vadd.f32 0.0, %v9686
        %v9688 = vpop.f32.mrb[0].mxu0
        %v9689 = vpop.f32.mrb[0].mxu0
        %v9690 = vadd.f32 0.0, %v9689
        %v9691 = vpop.f32.mrb[0].mxu0
        %9692 = vmatprep.mubr.bf16.mxu0 0
        %9693 = vmatmul.mubr.bf16.gmra.mrb[0].mxu0 %v9565
        %v9694 = vpop.f32.mrb[0].mxu0
        %v9695 = vadd.f32 0.0, %v9694
        %v9696 = vpop.f32.mrb[0].mxu0
        %v9697 = vpop.f32.mrb[0].mxu0
        %v9698 = vadd.f32 0.0, %v9697
        %v9699 = vpop.f32.mrb[0].mxu0
        %9700 = vmatprep.mubr.bf16.mxu0 0
        %9701 = vmatmul.mubr.bf16.gmra.mrb[0].mxu0 %v9568
        %v9702 = vpop.f32.mrb[0].mxu0
        %v9703 = vadd.f32 0.0, %v9702
        %v9704 = vpop.f32.mrb[0].mxu0
        %v9705 = vpop.f32.mrb[0].mxu0
        %v9706 = vadd.f32 0.0, %v9705
        %v9707 = vpop.f32.mrb[0].mxu0
        %9708 = vmatprep.mubr.bf16.mxu0 0
        %9709 = vmatmul.mubr.bf16.gmra.mrb[0].mxu0 %v9571
        %v9710 = vpop.f32.mrb[0].mxu0
        %v9711 = vadd.f32 0.0, %v9710
        %v9712 = vpop.f32.mrb[0].mxu0
        %v9713 = vpop.f32.mrb[0].mxu0
        %v9714 = vadd.f32 0.0, %v9713
        %v9715 = vpop.f32.mrb[0].mxu0
        %9716 = vmatprep.mubr.bf16.mxu0 0
        %9717 = vmatmul.mubr.bf16.gmra.mrb[0].mxu0 %v9574
        %v9718 = vpop.f32.mrb[0].mxu0
        %v9719 = vadd.f32 0.0, %v9718
        %v9720 = vpop.f32.mrb[0].mxu0
        %v9721 = vpop.f32.mrb[0].mxu0
        %v9722 = vadd.f32 0.0, %v9721
        %v9723 = vpop.f32.mrb[0].mxu0
        %9724 = vmatprep.mubr.bf16.mxu0 0
        %9725 = vmatmul.mubr.bf16.gmra.mrb[0].mxu0 %v9577
        %v9726 = vpop.f32.mrb[0].mxu0
        %v9727 = vadd.f32 0.0, %v9726
        %v9728 = vpop.f32.mrb[0].mxu0
        %v9729 = vpop.f32.mrb[0].mxu0
        %v9730 = vadd.f32 0.0, %v9729
        %v9731 = vpop.f32.mrb[0].mxu0
        %9732 = vmatprep.mubr.bf16.mxu0 0
        %9733 = vmatmul.mubr.bf16.gmra.mrb[0].mxu0 %v9580
        %v9734 = vpop.f32.mrb[0].mxu0
        %v9735 = vadd.f32 0.0, %v9734
        %v9736 = vpop.f32.mrb[0].mxu0
        %v9737 = vpop.f32.mrb[0].mxu0
        %v9738 = vadd.f32 0.0, %v9737
        %v9739 = vpop.f32.mrb[0].mxu0
        %9740 = vmatprep.mubr.bf16.mxu0 0
        %9741 = vmatmul.mubr.bf16.gmra.mrb[0].mxu0 %v9583
        %v9742 = vpop.f32.mrb[0].mxu0
        %v9743 = vadd.f32 0.0, %v9742
        %v9744 = vpop.f32.mrb[0].mxu0
        %v9745 = vpop.f32.mrb[0].mxu0
        %v9746 = vadd.f32 0.0, %v9745
        %v9747 = vpop.f32.mrb[0].mxu0
        %9748 = vdwg.mxu0
        %v9749 = vadd.f32 %v9023, %v9623
        %v9750 = vadd.f32 %v9024, %v9626
        %v9751 = vadd.f32 %v9025, %v9631
        %v9752 = vadd.f32 %v9026, %v9634
        %v9753 = vadd.f32 %v9027, %v9639
        %v9754 = vadd.f32 %v9028, %v9642
        %v9755 = vadd.f32 %v9029, %v9647
        %v9756 = vadd.f32 %v9030, %v9650
        %v9757 = vadd.f32 %v9031, %v9655
        %v9758 = vadd.f32 %v9032, %v9658
        %v9759 = vadd.f32 %v9033, %v9663
        %v9760 = vadd.f32 %v9034, %v9666
        %v9761 = vadd.f32 %v9035, %v9671
        %v9762 = vadd.f32 %v9036, %v9674
        %v9763 = vadd.f32 %v9037, %v9679
        %v9764 = vadd.f32 %v9038, %v9682
        %v9765 = vadd.f32 %v9039, %v9687
        %v9766 = vadd.f32 %v9040, %v9690
        %v9767 = vadd.f32 %v9041, %v9695
        %v9768 = vadd.f32 %v9042, %v9698
        %v9769 = vadd.f32 %v9043, %v9703
        %v9770 = vadd.f32 %v9044, %v9706
        %v9771 = vadd.f32 %v9045, %v9711
        %v9772 = vadd.f32 %v9046, %v9714
        %v9773 = vadd.f32 %v9047, %v9719
        %v9774 = vadd.f32 %v9048, %v9722
        %v9775 = vadd.f32 %v9049, %v9727
        %v9776 = vadd.f32 %v9050, %v9730
        %v9777 = vadd.f32 %v9051, %v9735
        %v9778 = vadd.f32 %v9052, %v9738
        %v9779 = vadd.f32 %v9053, %v9743
        %v9780 = vadd.f32 %v9054, %v9746
        %v9781 = vld [vmem:[%s8696] sm:$0xe]
        %v9782 = vld [vmem:[%s8696 + $0xc] sm:$0xe]
        %v9783 = vld [vmem:[%s8696 + $0x18] sm:$0xe]
        %v9784 = vld [vmem:[%s8696 + $0x24] sm:$0xe]
        %v9785 = vld [vmem:[%s8696 + $0x30] sm:$0xe]
        %v9786 = vld [vmem:[%s8696 + $0x3c] sm:$0xe]
        %v9787 = vld [vmem:[%s8696 + $0x48] sm:$0xe]
        %v9788 = vld [vmem:[%s8696 + $0x54] sm:$0xe]
        %v9789 = vld [vmem:[%s8696 + $0x60] sm:$0xe]
        %v9790 = vld [vmem:[%s8696 + $0x6c] sm:$0xe]
        %v9791 = vld [vmem:[%s8696 + $0x78] sm:$0xe]
        %v9792 = vld [vmem:[%s8696 + $0x84] sm:$0xe]
        %v9793 = vld [vmem:[%s8696 + $0x90] sm:$0xe]
        %v9794 = vld [vmem:[%s8696 + $0x9c] sm:$0xe]
        %v9795 = vld [vmem:[%s8696 + $0xa8] sm:$0xe]
        %v9796 = vld [vmem:[%s8696 + $0xb4] sm:$0xe]
        %v9845 = vrot.slane %v9781, 5
        %v9846 = vrot.slane %v9845, 4
        %v9847 = vrot.slane %v9056, 5
        %v9848 = vsel %vm1419, %v9846, %v9847
        %v9849 = vrot.slane %v9847, 4
        %v9850 = vrot.slane %v9057, 5
        %v9851 = vsel %vm1419, %v9849, %v9850
        %v9852 = vrot.slane %v9782, 5
        %v9853 = vrot.slane %v9852, 4
        %v9854 = vrot.slane %v9059, 5
        %v9855 = vsel %vm1419, %v9853, %v9854
        %v9856 = vrot.slane %v9854, 4
        %v9857 = vrot.slane %v9060, 5
        %v9858 = vsel %vm1419, %v9856, %v9857
        %v9859 = vrot.slane %v9783, 5
        %v9860 = vrot.slane %v9859, 4
        %v9861 = vrot.slane %v9062, 5
        %v9862 = vsel %vm1419, %v9860, %v9861
        %v9863 = vrot.slane %v9861, 4
        %v9864 = vrot.slane %v9063, 5
        %v9865 = vsel %vm1419, %v9863, %v9864
        %v9866 = vrot.slane %v9784, 5
        %v9867 = vrot.slane %v9866, 4
        %v9868 = vrot.slane %v9065, 5
        %v9869 = vsel %vm1419, %v9867, %v9868
        %v9870 = vrot.slane %v9868, 4
        %v9871 = vrot.slane %v9066, 5
        %v9872 = vsel %vm1419, %v9870, %v9871
        %v9873 = vrot.slane %v9785, 5
        %v9874 = vrot.slane %v9873, 4
        %v9875 = vrot.slane %v9068, 5
        %v9876 = vsel %vm1419, %v9874, %v9875
        %v9877 = vrot.slane %v9875, 4
        %v9878 = vrot.slane %v9069, 5
        %v9879 = vsel %vm1419, %v9877, %v9878
        %v9880 = vrot.slane %v9786, 5
        %v9881 = vrot.slane %v9880, 4
        %v9882 = vrot.slane %v9071, 5
        %v9883 = vsel %vm1419, %v9881, %v9882
        %v9884 = vrot.slane %v9882, 4
        %v9885 = vrot.slane %v9072, 5
        %v9886 = vsel %vm1419, %v9884, %v9885
        %v9887 = vrot.slane %v9787, 5
        %v9888 = vrot.slane %v9887, 4
        %v9889 = vrot.slane %v9074, 5
        %v9890 = vsel %vm1419, %v9888, %v9889
        %v9891 = vrot.slane %v9889, 4
        %v9892 = vrot.slane %v9075, 5
        %v9893 = vsel %vm1419, %v9891, %v9892
        %v9894 = vrot.slane %v9788, 5
        %v9895 = vrot.slane %v9894, 4
        %v9896 = vrot.slane %v9077, 5
        %v9897 = vsel %vm1419, %v9895, %v9896
        %v9898 = vrot.slane %v9896, 4
        %v9899 = vrot.slane %v9078, 5
        %v9900 = vsel %vm1419, %v9898, %v9899
        %v9901 = vrot.slane %v9789, 5
        %v9902 = vrot.slane %v9901, 4
        %v9903 = vrot.slane %v9080, 5
        %v9904 = vsel %vm1419, %v9902, %v9903
        %v9905 = vrot.slane %v9903, 4
        %v9906 = vrot.slane %v9081, 5
        %v9907 = vsel %vm1419, %v9905, %v9906
        %v9908 = vrot.slane %v9790, 5
        %v9909 = vrot.slane %v9908, 4
        %v9910 = vrot.slane %v9083, 5
        %v9911 = vsel %vm1419, %v9909, %v9910
        %v9912 = vrot.slane %v9910, 4
        %v9913 = vrot.slane %v9084, 5
        %v9914 = vsel %vm1419, %v9912, %v9913
        %v9915 = vrot.slane %v9791, 5
        %v9916 = vrot.slane %v9915, 4
        %v9917 = vrot.slane %v9086, 5
        %v9918 = vsel %vm1419, %v9916, %v9917
        %v9919 = vrot.slane %v9917, 4
        %v9920 = vrot.slane %v9087, 5
        %v9921 = vsel %vm1419, %v9919, %v9920
        %v9922 = vrot.slane %v9792, 5
        %v9923 = vrot.slane %v9922, 4
        %v9924 = vrot.slane %v9089, 5
        %v9925 = vsel %vm1419, %v9923, %v9924
        %v9926 = vrot.slane %v9924, 4
        %v9927 = vrot.slane %v9090, 5
        %v9928 = vsel %vm1419, %v9926, %v9927
        %v9929 = vrot.slane %v9793, 5
        %v9930 = vrot.slane %v9929, 4
        %v9931 = vrot.slane %v9092, 5
        %v9932 = vsel %vm1419, %v9930, %v9931
        %v9933 = vrot.slane %v9931, 4
        %v9934 = vrot.slane %v9093, 5
        %v9935 = vsel %vm1419, %v9933, %v9934
        %v9936 = vrot.slane %v9794, 5
        %v9937 = vrot.slane %v9936, 4
        %v9938 = vrot.slane %v9095, 5
        %v9939 = vsel %vm1419, %v9937, %v9938
        %v9940 = vrot.slane %v9938, 4
        %v9941 = vrot.slane %v9096, 5
        %v9942 = vsel %vm1419, %v9940, %v9941
        %v9943 = vrot.slane %v9795, 5
        %v9944 = vrot.slane %v9943, 4
        %v9945 = vrot.slane %v9098, 5
        %v9946 = vsel %vm1419, %v9944, %v9945
        %v9947 = vrot.slane %v9945, 4
        %v9948 = vrot.slane %v9099, 5
        %v9949 = vsel %vm1419, %v9947, %v9948
        %v9950 = vrot.slane %v9796, 5
        %v9951 = vrot.slane %v9950, 4
        %v9952 = vrot.slane %v9101, 5
        %v9953 = vsel %vm1419, %v9951, %v9952
        %v9954 = vrot.slane %v9952, 4
        %v9955 = vrot.slane %v9102, 5
        %v9956 = vsel %vm1419, %v9954, %v9955
        %s9957 = scalar_lea.vmem [#allocation11], 16
        %v9958 = vld [vmem:[%s9957] sm:$0x3]
        %v9959 = vunpack.c.l.b16 %v9848
        %v9960 = vunpack.c.l.b16 %v9851
        %v9961 = vunpack.c.l.b16 %v9855
        %v9962 = vunpack.c.l.b16 %v9858
        %v9963 = vunpack.c.l.b16 %v9862
        %v9964 = vunpack.c.l.b16 %v9865
        %v9965 = vunpack.c.l.b16 %v9869
        %v9966 = vunpack.c.l.b16 %v9872
        %v9967 = vunpack.c.l.b16 %v9876
        %v9968 = vunpack.c.l.b16 %v9879
        %v9969 = vunpack.c.l.b16 %v9883
        %v9970 = vunpack.c.l.b16 %v9886
        %v9971 = vunpack.c.l.b16 %v9890
        %v9972 = vunpack.c.l.b16 %v9893
        %v9973 = vunpack.c.l.b16 %v9897
        %v9974 = vunpack.c.l.b16 %v9900
        %v9975 = vunpack.c.l.b16 %v9904
        %v9976 = vunpack.c.l.b16 %v9907
        %v9977 = vunpack.c.l.b16 %v9911
        %v9978 = vunpack.c.l.b16 %v9914
        %v9979 = vunpack.c.l.b16 %v9918
        %v9980 = vunpack.c.l.b16 %v9921
        %v9981 = vunpack.c.l.b16 %v9925
        %v9982 = vunpack.c.l.b16 %v9928
        %v9983 = vunpack.c.l.b16 %v9932
        %v9984 = vunpack.c.l.b16 %v9935
        %v9985 = vunpack.c.l.b16 %v9939
        %v9986 = vunpack.c.l.b16 %v9942
        %v9987 = vunpack.c.l.b16 %v9946
        %v9988 = vunpack.c.l.b16 %v9949
        %v9989 = vunpack.c.l.b16 %v9953
        %v9990 = vunpack.c.l.b16 %v9956
        %v9991 = vpack.c.b16 %v9960, %v9959
        %v9992 = vpack.c.b16 %v9962, %v9961
        %v9993 = vpack.c.b16 %v9964, %v9963
        %v9994 = vpack.c.b16 %v9966, %v9965
        %v9995 = vpack.c.b16 %v9968, %v9967
        %v9996 = vpack.c.b16 %v9970, %v9969
        %v9997 = vpack.c.b16 %v9972, %v9971
        %v9998 = vpack.c.b16 %v9974, %v9973
        %v9999 = vpack.c.b16 %v9976, %v9975
        %v10000 = vpack.c.b16 %v9978, %v9977
        %v10001 = vpack.c.b16 %v9980, %v9979
        %v10002 = vpack.c.b16 %v9982, %v9981
        %v10003 = vpack.c.b16 %v9984, %v9983
        %v10004 = vpack.c.b16 %v9986, %v9985
        %v10005 = vpack.c.b16 %v9988, %v9987
        %v10006 = vpack.c.b16 %v9990, %v9989
        %v10008 = vsel %vm863, %v9991, 0
        %v10011 = vsel %vm863, %v9992, 0
        %v10014 = vsel %vm863, %v9993, 0
        %v10017 = vsel %vm863, %v9994, 0
        %v10020 = vsel %vm863, %v9995, 0
        %v10023 = vsel %vm863, %v9996, 0
        %v10026 = vsel %vm863, %v9997, 0
        %v10029 = vsel %vm863, %v9998, 0
        %v10032 = vsel %vm863, %v9999, 0
        %v10035 = vsel %vm863, %v10000, 0
        %v10038 = vsel %vm863, %v10001, 0
        %v10041 = vsel %vm863, %v10002, 0
        %v10044 = vsel %vm863, %v10003, 0
        %v10047 = vsel %vm863, %v10004, 0
        %v10050 = vsel %vm863, %v10005, 0
        %v10053 = vsel %vm863, %v10006, 0
        %v10056 = vsel %vm912, %v9958, 0
        %10058 = vmatprep.subr.bf16.mxu0 0
        %10059 = vmatpush1.bf16.msra.mxu0 %v10056
        %10060 = vmatprep.subr.bf16.mxu0 0
        %10061 = vmatpush1.bf16.msra.mxu0 0
        %10062 = vmatprep.subr.bf16.mxu0 0
        %10063 = vmatpush1.bf16.msra.mxu0 0
        %10064 = vmatprep.subr.bf16.mxu0 0
        %10065 = vmatpush1.bf16.msra.mxu0 0
        %10066 = vmatprep.subr.bf16.mxu0 0
        %10067 = vmatpush1.bf16.msra.mxu0 0
        %10068 = vmatprep.subr.bf16.mxu0 0
        %10069 = vmatpush1.bf16.msra.mxu0 0
        %10070 = vmatprep.subr.bf16.mxu0 0
        %10071 = vmatpush1.bf16.msra.mxu0 0
        %10072 = vmatprep.subr.bf16.mxu0 0
        %10073 = vmatpush1.bf16.msra.mxu0 0
        %10074 = vmatprep.subr.bf16.mxu0 0
        %10075 = vmatpush1.bf16.msra.mxu0 0
        %10076 = vmatprep.subr.bf16.mxu0 0
        %10077 = vmatpush1.bf16.msra.mxu0 0
        %10078 = vmatprep.subr.bf16.mxu0 0
        %10079 = vmatpush1.bf16.msra.mxu0 0
        %10080 = vmatprep.subr.bf16.mxu0 0
        %10081 = vmatpush1.bf16.msra.mxu0 0
        %10082 = vmatprep.subr.bf16.mxu0 0
        %10083 = vmatpush1.bf16.msra.mxu0 0
        %10084 = vmatprep.subr.bf16.mxu0 0
        %10085 = vmatpush1.bf16.msra.mxu0 0
        %10086 = vmatprep.subr.bf16.mxu0 0
        %10087 = vmatpush1.bf16.msra.mxu0 0
        %10088 = vmatprep.subr.bf16.mxu0 0
        %10089 = vmatpush1.bf16.msra.mxu0 0
        %10090 = vmatprep.mubr.bf16.mxu0 0
        %10091 = vmatmul.mubr.bf16.gmra.mrb[0].mxu0 %v10008
        %v10092 = vpop.f32.mrb[0].mxu0
        %v10093 = vadd.f32 0.0, %v10092
        %v10094 = vpop.f32.mrb[0].mxu0
        %v10095 = vpop.f32.mrb[0].mxu0
        %v10096 = vadd.f32 0.0, %v10095
        %v10097 = vpop.f32.mrb[0].mxu0
        %10098 = vmatprep.mubr.bf16.mxu0 0
        %10099 = vmatmul.mubr.bf16.gmra.mrb[0].mxu0 %v10011
        %v10100 = vpop.f32.mrb[0].mxu0
        %v10101 = vadd.f32 0.0, %v10100
        %v10102 = vpop.f32.mrb[0].mxu0
        %v10103 = vpop.f32.mrb[0].mxu0
        %v10104 = vadd.f32 0.0, %v10103
        %v10105 = vpop.f32.mrb[0].mxu0
        %10106 = vmatprep.mubr.bf16.mxu0 0
        %10107 = vmatmul.mubr.bf16.gmra.mrb[0].mxu0 %v10014
        %v10108 = vpop.f32.mrb[0].mxu0
        %v10109 = vadd.f32 0.0, %v10108
        %v10110 = vpop.f32.mrb[0].mxu0
        %v10111 = vpop.f32.mrb[0].mxu0
        %v10112 = vadd.f32 0.0, %v10111
        %v10113 = vpop.f32.mrb[0].mxu0
        %10114 = vmatprep.mubr.bf16.mxu0 0
        %10115 = vmatmul.mubr.bf16.gmra.mrb[0].mxu0 %v10017
        %v10116 = vpop.f32.mrb[0].mxu0
        %v10117 = vadd.f32 0.0, %v10116
        %v10118 = vpop.f32.mrb[0].mxu0
        %v10119 = vpop.f32.mrb[0].mxu0
        %v10120 = vadd.f32 0.0, %v10119
        %v10121 = vpop.f32.mrb[0].mxu0
        %10122 = vmatprep.mubr.bf16.mxu0 0
        %10123 = vmatmul.mubr.bf16.gmra.mrb[0].mxu0 %v10020
        %v10124 = vpop.f32.mrb[0].mxu0
        %v10125 = vadd.f32 0.0, %v10124
        %v10126 = vpop.f32.mrb[0].mxu0
        %v10127 = vpop.f32.mrb[0].mxu0
        %v10128 = vadd.f32 0.0, %v10127
        %v10129 = vpop.f32.mrb[0].mxu0
        %10130 = vmatprep.mubr.bf16.mxu0 0
        %10131 = vmatmul.mubr.bf16.gmra.mrb[0].mxu0 %v10023
        %v10132 = vpop.f32.mrb[0].mxu0
        %v10133 = vadd.f32 0.0, %v10132
        %v10134 = vpop.f32.mrb[0].mxu0
        %v10135 = vpop.f32.mrb[0].mxu0
        %v10136 = vadd.f32 0.0, %v10135
        %v10137 = vpop.f32.mrb[0].mxu0
        %10138 = vmatprep.mubr.bf16.mxu0 0
        %10139 = vmatmul.mubr.bf16.gmra.mrb[0].mxu0 %v10026
        %v10140 = vpop.f32.mrb[0].mxu0
        %v10141 = vadd.f32 0.0, %v10140
        %v10142 = vpop.f32.mrb[0].mxu0
        %v10143 = vpop.f32.mrb[0].mxu0
        %v10144 = vadd.f32 0.0, %v10143
        %v10145 = vpop.f32.mrb[0].mxu0
        %10146 = vmatprep.mubr.bf16.mxu0 0
        %10147 = vmatmul.mubr.bf16.gmra.mrb[0].mxu0 %v10029
        %v10148 = vpop.f32.mrb[0].mxu0
        %v10149 = vadd.f32 0.0, %v10148
        %v10150 = vpop.f32.mrb[0].mxu0
        %v10151 = vpop.f32.mrb[0].mxu0
        %v10152 = vadd.f32 0.0, %v10151
        %v10153 = vpop.f32.mrb[0].mxu0
        %10154 = vmatprep.mubr.bf16.mxu0 0
        %10155 = vmatmul.mubr.bf16.gmra.mrb[0].mxu0 %v10032
        %v10156 = vpop.f32.mrb[0].mxu0
        %v10157 = vadd.f32 0.0, %v10156
        %v10158 = vpop.f32.mrb[0].mxu0
        %v10159 = vpop.f32.mrb[0].mxu0
        %v10160 = vadd.f32 0.0, %v10159
        %v10161 = vpop.f32.mrb[0].mxu0
        %10162 = vmatprep.mubr.bf16.mxu0 0
        %10163 = vmatmul.mubr.bf16.gmra.mrb[0].mxu0 %v10035
        %v10164 = vpop.f32.mrb[0].mxu0
        %v10165 = vadd.f32 0.0, %v10164
        %v10166 = vpop.f32.mrb[0].mxu0
        %v10167 = vpop.f32.mrb[0].mxu0
        %v10168 = vadd.f32 0.0, %v10167
        %v10169 = vpop.f32.mrb[0].mxu0
        %10170 = vmatprep.mubr.bf16.mxu0 0
        %10171 = vmatmul.mubr.bf16.gmra.mrb[0].mxu0 %v10038
        %v10172 = vpop.f32.mrb[0].mxu0
        %v10173 = vadd.f32 0.0, %v10172
        %v10174 = vpop.f32.mrb[0].mxu0
        %v10175 = vpop.f32.mrb[0].mxu0
        %v10176 = vadd.f32 0.0, %v10175
        %v10177 = vpop.f32.mrb[0].mxu0
        %10178 = vmatprep.mubr.bf16.mxu0 0
        %10179 = vmatmul.mubr.bf16.gmra.mrb[0].mxu0 %v10041
        %v10180 = vpop.f32.mrb[0].mxu0
        %v10181 = vadd.f32 0.0, %v10180
        %v10182 = vpop.f32.mrb[0].mxu0
        %v10183 = vpop.f32.mrb[0].mxu0
        %v10184 = vadd.f32 0.0, %v10183
        %v10185 = vpop.f32.mrb[0].mxu0
        %10186 = vmatprep.mubr.bf16.mxu0 0
        %10187 = vmatmul.mubr.bf16.gmra.mrb[0].mxu0 %v10044
        %v10188 = vpop.f32.mrb[0].mxu0
        %v10189 = vadd.f32 0.0, %v10188
        %v10190 = vpop.f32.mrb[0].mxu0
        %v10191 = vpop.f32.mrb[0].mxu0
        %v10192 = vadd.f32 0.0, %v10191
        %v10193 = vpop.f32.mrb[0].mxu0
        %10194 = vmatprep.mubr.bf16.mxu0 0
        %10195 = vmatmul.mubr.bf16.gmra.mrb[0].mxu0 %v10047
        %v10196 = vpop.f32.mrb[0].mxu0
        %v10197 = vadd.f32 0.0, %v10196
        %v10198 = vpop.f32.mrb[0].mxu0
        %v10199 = vpop.f32.mrb[0].mxu0
        %v10200 = vadd.f32 0.0, %v10199
        %v10201 = vpop.f32.mrb[0].mxu0
        %10202 = vmatprep.mubr.bf16.mxu0 0
        %10203 = vmatmul.mubr.bf16.gmra.mrb[0].mxu0 %v10050
        %v10204 = vpop.f32.mrb[0].mxu0
        %v10205 = vadd.f32 0.0, %v10204
        %v10206 = vpop.f32.mrb[0].mxu0
        %v10207 = vpop.f32.mrb[0].mxu0
        %v10208 = vadd.f32 0.0, %v10207
        %v10209 = vpop.f32.mrb[0].mxu0
        %10210 = vmatprep.mubr.bf16.mxu0 0
        %10211 = vmatmul.mubr.bf16.gmra.mrb[0].mxu0 %v10053
        %v10212 = vpop.f32.mrb[0].mxu0
        %v10213 = vadd.f32 0.0, %v10212
        %v10214 = vpop.f32.mrb[0].mxu0
        %v10215 = vpop.f32.mrb[0].mxu0
        %v10216 = vadd.f32 0.0, %v10215
        %v10217 = vpop.f32.mrb[0].mxu0
        %10218 = vdwg.mxu0
        %v10219 = vadd.f32 %v9749, %v10093
        %v10220 = vadd.f32 %v9750, %v10096
        %v10221 = vadd.f32 %v9751, %v10101
        %v10222 = vadd.f32 %v9752, %v10104
        %v10223 = vadd.f32 %v9753, %v10109
        %v10224 = vadd.f32 %v9754, %v10112
        %v10225 = vadd.f32 %v9755, %v10117
        %v10226 = vadd.f32 %v9756, %v10120
        %v10227 = vadd.f32 %v9757, %v10125
        %v10228 = vadd.f32 %v9758, %v10128
        %v10229 = vadd.f32 %v9759, %v10133
        %v10230 = vadd.f32 %v9760, %v10136
        %v10231 = vadd.f32 %v9761, %v10141
        %v10232 = vadd.f32 %v9762, %v10144
        %v10233 = vadd.f32 %v9763, %v10149
        %v10234 = vadd.f32 %v9764, %v10152
        %v10235 = vadd.f32 %v9765, %v10157
        %v10236 = vadd.f32 %v9766, %v10160
        %v10237 = vadd.f32 %v9767, %v10165
        %v10238 = vadd.f32 %v9768, %v10168
        %v10239 = vadd.f32 %v9769, %v10173
        %v10240 = vadd.f32 %v9770, %v10176
        %v10241 = vadd.f32 %v9771, %v10181
        %v10242 = vadd.f32 %v9772, %v10184
        %v10243 = vadd.f32 %v9773, %v10189
        %v10244 = vadd.f32 %v9774, %v10192
        %v10245 = vadd.f32 %v9775, %v10197
        %v10246 = vadd.f32 %v9776, %v10200
        %v10247 = vadd.f32 %v9777, %v10205
        %v10248 = vadd.f32 %v9778, %v10208
        %v10249 = vadd.f32 %v9779, %v10213
        %v10250 = vadd.f32 %v9780, %v10216
        %v10251 = vld [vmem:[#allocation12] sm:$0x1]
        %v10253 = vlaneseq
        %v10254 = vshrl.u32 %v10253, 7
        %v10255 = vsub.s32 0, %v10254
        %v10256 = vrot.slane %v10251, %v10255
        %v10258 = vmul.f32 %v10219, %v10256
        %v10259 = vmul.f32 %v10220, %v10256
        %v10260 = vmul.f32 %v10221, %v10256
        %v10261 = vmul.f32 %v10222, %v10256
        %v10262 = vmul.f32 %v10223, %v10256
        %v10263 = vmul.f32 %v10224, %v10256
        %v10264 = vmul.f32 %v10225, %v10256
        %v10265 = vmul.f32 %v10226, %v10256
        %v10266 = vmul.f32 %v10227, %v10256
        %v10267 = vmul.f32 %v10228, %v10256
        %v10268 = vmul.f32 %v10229, %v10256
        %v10269 = vmul.f32 %v10230, %v10256
        %v10270 = vmul.f32 %v10231, %v10256
        %v10271 = vmul.f32 %v10232, %v10256
        %v10272 = vmul.f32 %v10233, %v10256
        %v10273 = vmul.f32 %v10234, %v10256
        %v10274 = vmul.f32 %v10235, %v10256
        %v10275 = vmul.f32 %v10236, %v10256
        %v10276 = vmul.f32 %v10237, %v10256
        %v10277 = vmul.f32 %v10238, %v10256
        %v10278 = vmul.f32 %v10239, %v10256
        %v10279 = vmul.f32 %v10240, %v10256
        %v10280 = vmul.f32 %v10241, %v10256
        %v10281 = vmul.f32 %v10242, %v10256
        %v10282 = vmul.f32 %v10243, %v10256
        %v10283 = vmul.f32 %v10244, %v10256
        %v10284 = vmul.f32 %v10245, %v10256
        %v10285 = vmul.f32 %v10246, %v10256
        %v10286 = vmul.f32 %v10247, %v10256
        %v10287 = vmul.f32 %v10248, %v10256
        %v10288 = vmul.f32 %v10249, %v10256
        %v10289 = vmul.f32 %v10250, %v10256
        %v10290 = vld [vmem:[#allocation14] sm:$0x1]
        %v10292 = vlaneseq
        %v10293 = vshrl.u32 %v10292, 7
        %v10294 = vsub.s32 0, %v10293
        %v10295 = vrot.slane %v10290, %v10294
        %v10297 = vadd.f32 %v10258, %v10295
        %v10298 = vadd.f32 %v10259, %v10295
        %v10299 = vadd.f32 %v10260, %v10295
        %v10300 = vadd.f32 %v10261, %v10295
        %v10301 = vadd.f32 %v10262, %v10295
        %v10302 = vadd.f32 %v10263, %v10295
        %v10303 = vadd.f32 %v10264, %v10295
        %v10304 = vadd.f32 %v10265, %v10295
        %v10305 = vadd.f32 %v10266, %v10295
        %v10306 = vadd.f32 %v10267, %v10295
        %v10307 = vadd.f32 %v10268, %v10295
        %v10308 = vadd.f32 %v10269, %v10295
        %v10309 = vadd.f32 %v10270, %v10295
        %v10310 = vadd.f32 %v10271, %v10295
        %v10311 = vadd.f32 %v10272, %v10295
        %v10312 = vadd.f32 %v10273, %v10295
        %v10313 = vadd.f32 %v10274, %v10295
        %v10314 = vadd.f32 %v10275, %v10295
        %v10315 = vadd.f32 %v10276, %v10295
        %v10316 = vadd.f32 %v10277, %v10295
        %v10317 = vadd.f32 %v10278, %v10295
        %v10318 = vadd.f32 %v10279, %v10295
        %v10319 = vadd.f32 %v10280, %v10295
        %v10320 = vadd.f32 %v10281, %v10295
        %v10321 = vadd.f32 %v10282, %v10295
        %v10322 = vadd.f32 %v10283, %v10295
        %v10323 = vadd.f32 %v10284, %v10295
        %v10324 = vadd.f32 %v10285, %v10295
        %v10325 = vadd.f32 %v10286, %v10295
        %v10326 = vadd.f32 %v10287, %v10295
        %v10327 = vadd.f32 %v10288, %v10295
        %v10328 = vadd.f32 %v10289, %v10295
        %v10329 = vld [vmem:[%s1826] sm:$0xf]
        %v10330 = vld [vmem:[%s1826 + $0x4] sm:$0xf]
        %v10331 = vld [vmem:[%s1826 + $0x8] sm:$0x1]
        %v10332 = vld [vmem:[%s1826 + $0xc] sm:$0xf]
        %v10333 = vld [vmem:[%s1826 + $0x10] sm:$0xf]
        %v10334 = vld [vmem:[%s1826 + $0x14] sm:$0x1]
        %v10335 = vld [vmem:[%s1826 + $0x18] sm:$0xf]
        %v10336 = vld [vmem:[%s1826 + $0x1c] sm:$0xf]
        %v10337 = vld [vmem:[%s1826 + $0x20] sm:$0x1]
        %v10338 = vld [vmem:[%s1826 + $0x24] sm:$0xf]
        %v10339 = vld [vmem:[%s1826 + $0x28] sm:$0xf]
        %v10340 = vld [vmem:[%s1826 + $0x2c] sm:$0x1]
        %v10341 = vld [vmem:[%s1826 + $0x30] sm:$0xf]
        %v10342 = vld [vmem:[%s1826 + $0x34] sm:$0xf]
        %v10343 = vld [vmem:[%s1826 + $0x38] sm:$0x1]
        %v10344 = vld [vmem:[%s1826 + $0x3c] sm:$0xf]
        %v10345 = vld [vmem:[%s1826 + $0x40] sm:$0xf]
        %v10346 = vld [vmem:[%s1826 + $0x44] sm:$0x1]
        %v10347 = vld [vmem:[%s1826 + $0x48] sm:$0xf]
        %v10348 = vld [vmem:[%s1826 + $0x4c] sm:$0xf]
        %v10349 = vld [vmem:[%s1826 + $0x50] sm:$0x1]
        %v10350 = vld [vmem:[%s1826 + $0x54] sm:$0xf]
        %v10351 = vld [vmem:[%s1826 + $0x58] sm:$0xf]
        %v10352 = vld [vmem:[%s1826 + $0x5c] sm:$0x1]
        %v10353 = vld [vmem:[%s1826 + $0x60] sm:$0xf]
        %v10354 = vld [vmem:[%s1826 + $0x64] sm:$0xf]
        %v10355 = vld [vmem:[%s1826 + $0x68] sm:$0x1]
        %v10356 = vld [vmem:[%s1826 + $0x6c] sm:$0xf]
        %v10357 = vld [vmem:[%s1826 + $0x70] sm:$0xf]
        %v10358 = vld [vmem:[%s1826 + $0x74] sm:$0x1]
        %v10359 = vld [vmem:[%s1826 + $0x78] sm:$0xf]
        %v10360 = vld [vmem:[%s1826 + $0x7c] sm:$0xf]
        %v10361 = vld [vmem:[%s1826 + $0x80] sm:$0x1]
        %v10362 = vld [vmem:[%s1826 + $0x84] sm:$0xf]
        %v10363 = vld [vmem:[%s1826 + $0x88] sm:$0xf]
        %v10364 = vld [vmem:[%s1826 + $0x8c] sm:$0x1]
        %v10365 = vld [vmem:[%s1826 + $0x90] sm:$0xf]
        %v10366 = vld [vmem:[%s1826 + $0x94] sm:$0xf]
        %v10367 = vld [vmem:[%s1826 + $0x98] sm:$0x1]
        %v10368 = vld [vmem:[%s1826 + $0x9c] sm:$0xf]
        %v10369 = vld [vmem:[%s1826 + $0xa0] sm:$0xf]
        %v10370 = vld [vmem:[%s1826 + $0xa4] sm:$0x1]
        %v10371 = vld [vmem:[%s1826 + $0xa8] sm:$0xf]
        %v10372 = vld [vmem:[%s1826 + $0xac] sm:$0xf]
        %v10373 = vld [vmem:[%s1826 + $0xb0] sm:$0x1]
        %v10374 = vld [vmem:[%s1826 + $0xb4] sm:$0xf]
        %v10375 = vld [vmem:[%s1826 + $0xb8] sm:$0xf]
        %v10376 = vld [vmem:[%s1826 + $0xbc] sm:$0x1]
        %v10378 = vshrl.u32 %v10329, 16
        %v10380 = vrot.slane %v10378, 4
        %v10381 = vshll.u32 %v10329, 16
        %v10383 = vrot.slane %v10381, 5
        %v10384 = vor.u32 %v10380, %v10383
        %v10385 = vrot.slane %v10384, 4
        %v10387 = vshll.u32 %v10330, 16
        %v10389 = vrot.slane %v10387, 5
        %v10390 = vsel %vm428, %v10385, %v10389
        %v10391 = vshrl.u32 %v10330, 16
        %v10393 = vrot.slane %v10391, 4
        %v10394 = vor.u32 %v10393, %v10389
        %v10395 = vrot.slane %v10394, 4
        %v10397 = vshll.u32 %v10331, 16
        %v10399 = vrot.slane %v10397, 5
        %v10400 = vsel %vm428, %v10395, %v10399
        %v10402 = vshrl.u32 %v10332, 16
        %v10404 = vrot.slane %v10402, 4
        %v10405 = vshll.u32 %v10332, 16
        %v10407 = vrot.slane %v10405, 5
        %v10408 = vor.u32 %v10404, %v10407
        %v10409 = vrot.slane %v10408, 4
        %v10411 = vshll.u32 %v10333, 16
        %v10413 = vrot.slane %v10411, 5
        %v10414 = vsel %vm428, %v10409, %v10413
        %v10415 = vshrl.u32 %v10333, 16
        %v10417 = vrot.slane %v10415, 4
        %v10418 = vor.u32 %v10417, %v10413
        %v10419 = vrot.slane %v10418, 4
        %v10421 = vshll.u32 %v10334, 16
        %v10423 = vrot.slane %v10421, 5
        %v10424 = vsel %vm428, %v10419, %v10423
        %v10426 = vshrl.u32 %v10335, 16
        %v10428 = vrot.slane %v10426, 4
        %v10429 = vshll.u32 %v10335, 16
        %v10431 = vrot.slane %v10429, 5
        %v10432 = vor.u32 %v10428, %v10431
        %v10433 = vrot.slane %v10432, 4
        %v10435 = vshll.u32 %v10336, 16
        %v10437 = vrot.slane %v10435, 5
        %v10438 = vsel %vm428, %v10433, %v10437
        %v10439 = vshrl.u32 %v10336, 16
        %v10441 = vrot.slane %v10439, 4
        %v10442 = vor.u32 %v10441, %v10437
        %v10443 = vrot.slane %v10442, 4
        %v10445 = vshll.u32 %v10337, 16
        %v10447 = vrot.slane %v10445, 5
        %v10448 = vsel %vm428, %v10443, %v10447
        %v10450 = vshrl.u32 %v10338, 16
        %v10452 = vrot.slane %v10450, 4
        %v10453 = vshll.u32 %v10338, 16
        %v10455 = vrot.slane %v10453, 5
        %v10456 = vor.u32 %v10452, %v10455
        %v10457 = vrot.slane %v10456, 4
        %v10459 = vshll.u32 %v10339, 16
        %v10461 = vrot.slane %v10459, 5
        %v10462 = vsel %vm428, %v10457, %v10461
        %v10463 = vshrl.u32 %v10339, 16
        %v10465 = vrot.slane %v10463, 4
        %v10466 = vor.u32 %v10465, %v10461
        %v10467 = vrot.slane %v10466, 4
        %v10469 = vshll.u32 %v10340, 16
        %v10471 = vrot.slane %v10469, 5
        %v10472 = vsel %vm428, %v10467, %v10471
        %v10474 = vshrl.u32 %v10341, 16
        %v10476 = vrot.slane %v10474, 4
        %v10477 = vshll.u32 %v10341, 16
        %v10479 = vrot.slane %v10477, 5
        %v10480 = vor.u32 %v10476, %v10479
        %v10481 = vrot.slane %v10480, 4
        %v10483 = vshll.u32 %v10342, 16
        %v10485 = vrot.slane %v10483, 5
        %v10486 = vsel %vm428, %v10481, %v10485
        %v10487 = vshrl.u32 %v10342, 16
        %v10489 = vrot.slane %v10487, 4
        %v10490 = vor.u32 %v10489, %v10485
        %v10491 = vrot.slane %v10490, 4
        %v10493 = vshll.u32 %v10343, 16
        %v10495 = vrot.slane %v10493, 5
        %v10496 = vsel %vm428, %v10491, %v10495
        %v10498 = vshrl.u32 %v10344, 16
        %v10500 = vrot.slane %v10498, 4
        %v10501 = vshll.u32 %v10344, 16
        %v10503 = vrot.slane %v10501, 5
        %v10504 = vor.u32 %v10500, %v10503
        %v10505 = vrot.slane %v10504, 4
        %v10507 = vshll.u32 %v10345, 16
        %v10509 = vrot.slane %v10507, 5
        %v10510 = vsel %vm428, %v10505, %v10509
        %v10511 = vshrl.u32 %v10345, 16
        %v10513 = vrot.slane %v10511, 4
        %v10514 = vor.u32 %v10513, %v10509
        %v10515 = vrot.slane %v10514, 4
        %v10517 = vshll.u32 %v10346, 16
        %v10519 = vrot.slane %v10517, 5
        %v10520 = vsel %vm428, %v10515, %v10519
        %v10522 = vshrl.u32 %v10347, 16
        %v10524 = vrot.slane %v10522, 4
        %v10525 = vshll.u32 %v10347, 16
        %v10527 = vrot.slane %v10525, 5
        %v10528 = vor.u32 %v10524, %v10527
        %v10529 = vrot.slane %v10528, 4
        %v10531 = vshll.u32 %v10348, 16
        %v10533 = vrot.slane %v10531, 5
        %v10534 = vsel %vm428, %v10529, %v10533
        %v10535 = vshrl.u32 %v10348, 16
        %v10537 = vrot.slane %v10535, 4
        %v10538 = vor.u32 %v10537, %v10533
        %v10539 = vrot.slane %v10538, 4
        %v10541 = vshll.u32 %v10349, 16
        %v10543 = vrot.slane %v10541, 5
        %v10544 = vsel %vm428, %v10539, %v10543
        %v10546 = vshrl.u32 %v10350, 16
        %v10548 = vrot.slane %v10546, 4
        %v10549 = vshll.u32 %v10350, 16
        %v10551 = vrot.slane %v10549, 5
        %v10552 = vor.u32 %v10548, %v10551
        %v10553 = vrot.slane %v10552, 4
        %v10555 = vshll.u32 %v10351, 16
        %v10557 = vrot.slane %v10555, 5
        %v10558 = vsel %vm428, %v10553, %v10557
        %v10559 = vshrl.u32 %v10351, 16
        %v10561 = vrot.slane %v10559, 4
        %v10562 = vor.u32 %v10561, %v10557
        %v10563 = vrot.slane %v10562, 4
        %v10565 = vshll.u32 %v10352, 16
        %v10567 = vrot.slane %v10565, 5
        %v10568 = vsel %vm428, %v10563, %v10567
        %v10570 = vshrl.u32 %v10353, 16
        %v10572 = vrot.slane %v10570, 4
        %v10573 = vshll.u32 %v10353, 16
        %v10575 = vrot.slane %v10573, 5
        %v10576 = vor.u32 %v10572, %v10575
        %v10577 = vrot.slane %v10576, 4
        %v10579 = vshll.u32 %v10354, 16
        %v10581 = vrot.slane %v10579, 5
        %v10582 = vsel %vm428, %v10577, %v10581
        %v10583 = vshrl.u32 %v10354, 16
        %v10585 = vrot.slane %v10583, 4
        %v10586 = vor.u32 %v10585, %v10581
        %v10587 = vrot.slane %v10586, 4
        %v10589 = vshll.u32 %v10355, 16
        %v10591 = vrot.slane %v10589, 5
        %v10592 = vsel %vm428, %v10587, %v10591
        %v10594 = vshrl.u32 %v10356, 16
        %v10596 = vrot.slane %v10594, 4
        %v10597 = vshll.u32 %v10356, 16
        %v10599 = vrot.slane %v10597, 5
        %v10600 = vor.u32 %v10596, %v10599
        %v10601 = vrot.slane %v10600, 4
        %v10603 = vshll.u32 %v10357, 16
        %v10605 = vrot.slane %v10603, 5
        %v10606 = vsel %vm428, %v10601, %v10605
        %v10607 = vshrl.u32 %v10357, 16
        %v10609 = vrot.slane %v10607, 4
        %v10610 = vor.u32 %v10609, %v10605
        %v10611 = vrot.slane %v10610, 4
        %v10613 = vshll.u32 %v10358, 16
        %v10615 = vrot.slane %v10613, 5
        %v10616 = vsel %vm428, %v10611, %v10615
        %v10618 = vshrl.u32 %v10359, 16
        %v10620 = vrot.slane %v10618, 4
        %v10621 = vshll.u32 %v10359, 16
        %v10623 = vrot.slane %v10621, 5
        %v10624 = vor.u32 %v10620, %v10623
        %v10625 = vrot.slane %v10624, 4
        %v10627 = vshll.u32 %v10360, 16
        %v10629 = vrot.slane %v10627, 5
        %v10630 = vsel %vm428, %v10625, %v10629
        %v10631 = vshrl.u32 %v10360, 16
        %v10633 = vrot.slane %v10631, 4
        %v10634 = vor.u32 %v10633, %v10629
        %v10635 = vrot.slane %v10634, 4
        %v10637 = vshll.u32 %v10361, 16
        %v10639 = vrot.slane %v10637, 5
        %v10640 = vsel %vm428, %v10635, %v10639
        %v10642 = vshrl.u32 %v10362, 16
        %v10644 = vrot.slane %v10642, 4
        %v10645 = vshll.u32 %v10362, 16
        %v10647 = vrot.slane %v10645, 5
        %v10648 = vor.u32 %v10644, %v10647
        %v10649 = vrot.slane %v10648, 4
        %v10651 = vshll.u32 %v10363, 16
        %v10653 = vrot.slane %v10651, 5
        %v10654 = vsel %vm428, %v10649, %v10653
        %v10655 = vshrl.u32 %v10363, 16
        %v10657 = vrot.slane %v10655, 4
        %v10658 = vor.u32 %v10657, %v10653
        %v10659 = vrot.slane %v10658, 4
        %v10661 = vshll.u32 %v10364, 16
        %v10663 = vrot.slane %v10661, 5
        %v10664 = vsel %vm428, %v10659, %v10663
        %v10666 = vshrl.u32 %v10365, 16
        %v10668 = vrot.slane %v10666, 4
        %v10669 = vshll.u32 %v10365, 16
        %v10671 = vrot.slane %v10669, 5
        %v10672 = vor.u32 %v10668, %v10671
        %v10673 = vrot.slane %v10672, 4
        %v10675 = vshll.u32 %v10366, 16
        %v10677 = vrot.slane %v10675, 5
        %v10678 = vsel %vm428, %v10673, %v10677
        %v10679 = vshrl.u32 %v10366, 16
        %v10681 = vrot.slane %v10679, 4
        %v10682 = vor.u32 %v10681, %v10677
        %v10683 = vrot.slane %v10682, 4
        %v10685 = vshll.u32 %v10367, 16
        %v10687 = vrot.slane %v10685, 5
        %v10688 = vsel %vm428, %v10683, %v10687
        %v10690 = vshrl.u32 %v10368, 16
        %v10692 = vrot.slane %v10690, 4
        %v10693 = vshll.u32 %v10368, 16
        %v10695 = vrot.slane %v10693, 5
        %v10696 = vor.u32 %v10692, %v10695
        %v10697 = vrot.slane %v10696, 4
        %v10699 = vshll.u32 %v10369, 16
        %v10701 = vrot.slane %v10699, 5
        %v10702 = vsel %vm428, %v10697, %v10701
        %v10703 = vshrl.u32 %v10369, 16
        %v10705 = vrot.slane %v10703, 4
        %v10706 = vor.u32 %v10705, %v10701
        %v10707 = vrot.slane %v10706, 4
        %v10709 = vshll.u32 %v10370, 16
        %v10711 = vrot.slane %v10709, 5
        %v10712 = vsel %vm428, %v10707, %v10711
        %v10714 = vshrl.u32 %v10371, 16
        %v10716 = vrot.slane %v10714, 4
        %v10717 = vshll.u32 %v10371, 16
        %v10719 = vrot.slane %v10717, 5
        %v10720 = vor.u32 %v10716, %v10719
        %v10721 = vrot.slane %v10720, 4
        %v10723 = vshll.u32 %v10372, 16
        %v10725 = vrot.slane %v10723, 5
        %v10726 = vsel %vm428, %v10721, %v10725
        %v10727 = vshrl.u32 %v10372, 16
        %v10729 = vrot.slane %v10727, 4
        %v10730 = vor.u32 %v10729, %v10725
        %v10731 = vrot.slane %v10730, 4
        %v10733 = vshll.u32 %v10373, 16
        %v10735 = vrot.slane %v10733, 5
        %v10736 = vsel %vm428, %v10731, %v10735
        %v10738 = vshrl.u32 %v10374, 16
        %v10740 = vrot.slane %v10738, 4
        %v10741 = vshll.u32 %v10374, 16
        %v10743 = vrot.slane %v10741, 5
        %v10744 = vor.u32 %v10740, %v10743
        %v10745 = vrot.slane %v10744, 4
        %v10747 = vshll.u32 %v10375, 16
        %v10749 = vrot.slane %v10747, 5
        %v10750 = vsel %vm428, %v10745, %v10749
        %v10751 = vshrl.u32 %v10375, 16
        %v10753 = vrot.slane %v10751, 4
        %v10754 = vor.u32 %v10753, %v10749
        %v10755 = vrot.slane %v10754, 4
        %v10757 = vshll.u32 %v10376, 16
        %v10759 = vrot.slane %v10757, 5
        %v10760 = vsel %vm428, %v10755, %v10759
        %v10793 = vunpack.c.l.bf16 %v10390
        %v10794 = vunpack.c.l.bf16 %v10400
        %v10795 = vunpack.c.l.bf16 %v10414
        %v10796 = vunpack.c.l.bf16 %v10424
        %v10797 = vunpack.c.l.bf16 %v10438
        %v10798 = vunpack.c.l.bf16 %v10448
        %v10799 = vunpack.c.l.bf16 %v10462
        %v10800 = vunpack.c.l.bf16 %v10472
        %v10801 = vunpack.c.l.bf16 %v10486
        %v10802 = vunpack.c.l.bf16 %v10496
        %v10803 = vunpack.c.l.bf16 %v10510
        %v10804 = vunpack.c.l.bf16 %v10520
        %v10805 = vunpack.c.l.bf16 %v10534
        %v10806 = vunpack.c.l.bf16 %v10544
        %v10807 = vunpack.c.l.bf16 %v10558
        %v10808 = vunpack.c.l.bf16 %v10568
        %v10809 = vunpack.c.l.bf16 %v10582
        %v10810 = vunpack.c.l.bf16 %v10592
        %v10811 = vunpack.c.l.bf16 %v10606
        %v10812 = vunpack.c.l.bf16 %v10616
        %v10813 = vunpack.c.l.bf16 %v10630
        %v10814 = vunpack.c.l.bf16 %v10640
        %v10815 = vunpack.c.l.bf16 %v10654
        %v10816 = vunpack.c.l.bf16 %v10664
        %v10817 = vunpack.c.l.bf16 %v10678
        %v10818 = vunpack.c.l.bf16 %v10688
        %v10819 = vunpack.c.l.bf16 %v10702
        %v10820 = vunpack.c.l.bf16 %v10712
        %v10821 = vunpack.c.l.bf16 %v10726
        %v10822 = vunpack.c.l.bf16 %v10736
        %v10823 = vunpack.c.l.bf16 %v10750
        %v10824 = vunpack.c.l.bf16 %v10760
        %v10825 = vadd.f32 %v10297, %v10793
        %v10826 = vadd.f32 %v10298, %v10794
        %v10827 = vadd.f32 %v10299, %v10795
        %v10828 = vadd.f32 %v10300, %v10796
        %v10829 = vadd.f32 %v10301, %v10797
        %v10830 = vadd.f32 %v10302, %v10798
        %v10831 = vadd.f32 %v10303, %v10799
        %v10832 = vadd.f32 %v10304, %v10800
        %v10833 = vadd.f32 %v10305, %v10801
        %v10834 = vadd.f32 %v10306, %v10802
        %v10835 = vadd.f32 %v10307, %v10803
        %v10836 = vadd.f32 %v10308, %v10804
        %v10837 = vadd.f32 %v10309, %v10805
        %v10838 = vadd.f32 %v10310, %v10806
        %v10839 = vadd.f32 %v10311, %v10807
        %v10840 = vadd.f32 %v10312, %v10808
        %v10841 = vadd.f32 %v10313, %v10809
        %v10842 = vadd.f32 %v10314, %v10810
        %v10843 = vadd.f32 %v10315, %v10811
        %v10844 = vadd.f32 %v10316, %v10812
        %v10845 = vadd.f32 %v10317, %v10813
        %v10846 = vadd.f32 %v10318, %v10814
        %v10847 = vadd.f32 %v10319, %v10815
        %v10848 = vadd.f32 %v10320, %v10816
        %v10849 = vadd.f32 %v10321, %v10817
        %v10850 = vadd.f32 %v10322, %v10818
        %v10851 = vadd.f32 %v10323, %v10819
        %v10852 = vadd.f32 %v10324, %v10820
        %v10853 = vadd.f32 %v10325, %v10821
        %v10854 = vadd.f32 %v10326, %v10822
        %v10855 = vadd.f32 %v10327, %v10823
        %v10856 = vadd.f32 %v10328, %v10824
        %v10857 = vmax.f32 %v10825, 0.0
        %v10858 = vmax.f32 %v10826, 0.0
        %v10859 = vmax.f32 %v10827, 0.0
        %v10860 = vmax.f32 %v10828, 0.0
        %v10861 = vmax.f32 %v10829, 0.0
        %v10862 = vmax.f32 %v10830, 0.0
        %v10863 = vmax.f32 %v10831, 0.0
        %v10864 = vmax.f32 %v10832, 0.0
        %v10865 = vmax.f32 %v10833, 0.0
        %v10866 = vmax.f32 %v10834, 0.0
        %v10867 = vmax.f32 %v10835, 0.0
        %v10868 = vmax.f32 %v10836, 0.0
        %v10869 = vmax.f32 %v10837, 0.0
        %v10870 = vmax.f32 %v10838, 0.0
        %v10871 = vmax.f32 %v10839, 0.0
        %v10872 = vmax.f32 %v10840, 0.0
        %v10873 = vmax.f32 %v10841, 0.0
        %v10874 = vmax.f32 %v10842, 0.0
        %v10875 = vmax.f32 %v10843, 0.0
        %v10876 = vmax.f32 %v10844, 0.0
        %v10877 = vmax.f32 %v10845, 0.0
        %v10878 = vmax.f32 %v10846, 0.0
        %v10879 = vmax.f32 %v10847, 0.0
        %v10880 = vmax.f32 %v10848, 0.0
        %v10881 = vmax.f32 %v10849, 0.0
        %v10882 = vmax.f32 %v10850, 0.0
        %v10883 = vmax.f32 %v10851, 0.0
        %v10884 = vmax.f32 %v10852, 0.0
        %v10885 = vmax.f32 %v10853, 0.0
        %v10886 = vmax.f32 %v10854, 0.0
        %v10887 = vmax.f32 %v10855, 0.0
        %v10888 = vmax.f32 %v10856, 0.0
        %v10889 = vpack.c.bf16 %v10858, %v10857
        %v10890 = vpack.c.bf16 %v10860, %v10859
        %v10891 = vpack.c.bf16 %v10862, %v10861
        %v10892 = vpack.c.bf16 %v10864, %v10863
        %v10893 = vpack.c.bf16 %v10866, %v10865
        %v10894 = vpack.c.bf16 %v10868, %v10867
        %v10895 = vpack.c.bf16 %v10870, %v10869
        %v10896 = vpack.c.bf16 %v10872, %v10871
        %v10897 = vpack.c.bf16 %v10874, %v10873
        %v10898 = vpack.c.bf16 %v10876, %v10875
        %v10899 = vpack.c.bf16 %v10878, %v10877
        %v10900 = vpack.c.bf16 %v10880, %v10879
        %v10901 = vpack.c.bf16 %v10882, %v10881
        %v10902 = vpack.c.bf16 %v10884, %v10883
        %v10903 = vpack.c.bf16 %v10886, %v10885
        %v10904 = vpack.c.bf16 %v10888, %v10887
        %v10921 = vunpack.c.l.b16 %v10889
        %v10922 = vunpack.c.h.b16 %v10889
        %v10923 = vunpack.c.l.b16 %v10890
        %v10924 = vunpack.c.h.b16 %v10890
        %v10925 = vunpack.c.l.b16 %v10891
        %v10926 = vunpack.c.h.b16 %v10891
        %v10927 = vunpack.c.l.b16 %v10892
        %v10928 = vunpack.c.h.b16 %v10892
        %v10929 = vunpack.c.l.b16 %v10893
        %v10930 = vunpack.c.h.b16 %v10893
        %v10931 = vunpack.c.l.b16 %v10894
        %v10932 = vunpack.c.h.b16 %v10894
        %v10933 = vunpack.c.l.b16 %v10895
        %v10934 = vunpack.c.h.b16 %v10895
        %v10935 = vunpack.c.l.b16 %v10896
        %v10936 = vunpack.c.h.b16 %v10896
        %v10937 = vunpack.c.l.b16 %v10897
        %v10938 = vunpack.c.h.b16 %v10897
        %v10939 = vunpack.c.l.b16 %v10898
        %v10940 = vunpack.c.h.b16 %v10898
        %v10941 = vunpack.c.l.b16 %v10899
        %v10942 = vunpack.c.h.b16 %v10899
        %v10943 = vunpack.c.l.b16 %v10900
        %v10944 = vunpack.c.h.b16 %v10900
        %v10945 = vunpack.c.l.b16 %v10901
        %v10946 = vunpack.c.h.b16 %v10901
        %v10947 = vunpack.c.l.b16 %v10902
        %v10948 = vunpack.c.h.b16 %v10902
        %v10949 = vunpack.c.l.b16 %v10903
        %v10950 = vunpack.c.h.b16 %v10903
        %v10951 = vunpack.c.l.b16 %v10904
        %v10952 = vunpack.c.h.b16 %v10904
        %v10953 = vpack.c.b16 %v10921, %v10921
        %v10954 = vpack.c.b16 %v10922, %v10922
        %v10955 = vpack.c.b16 %v10923, %v10923
        %v10956 = vpack.c.b16 %v10924, %v10924
        %v10957 = vpack.c.b16 %v10925, %v10925
        %v10958 = vpack.c.b16 %v10926, %v10926
        %v10959 = vpack.c.b16 %v10927, %v10927
        %v10960 = vpack.c.b16 %v10928, %v10928
        %v10961 = vpack.c.b16 %v10929, %v10929
        %v10962 = vpack.c.b16 %v10930, %v10930
        %v10963 = vpack.c.b16 %v10931, %v10931
        %v10964 = vpack.c.b16 %v10932, %v10932
        %v10965 = vpack.c.b16 %v10933, %v10933
        %v10966 = vpack.c.b16 %v10934, %v10934
        %v10967 = vpack.c.b16 %v10935, %v10935
        %v10968 = vpack.c.b16 %v10936, %v10936
        %v10969 = vpack.c.b16 %v10937, %v10937
        %v10970 = vpack.c.b16 %v10938, %v10938
        %v10971 = vpack.c.b16 %v10939, %v10939
        %v10972 = vpack.c.b16 %v10940, %v10940
        %v10973 = vpack.c.b16 %v10941, %v10941
        %v10974 = vpack.c.b16 %v10942, %v10942
        %v10975 = vpack.c.b16 %v10943, %v10943
        %v10976 = vpack.c.b16 %v10944, %v10944
        %v10977 = vpack.c.b16 %v10945, %v10945
        %v10978 = vpack.c.b16 %v10946, %v10946
        %v10979 = vpack.c.b16 %v10947, %v10947
        %v10980 = vpack.c.b16 %v10948, %v10948
        %v10981 = vpack.c.b16 %v10949, %v10949
        %v10982 = vpack.c.b16 %v10950, %v10950
        %v10983 = vpack.c.b16 %v10951, %v10951
        %v10984 = vpack.c.b16 %v10952, %v10952
        %11017 = vst.msk [vmem:[%s375] sm:$0xf] %vm5046, %v10953
        %11018 = vst.msk [vmem:[%s375 + $0x4] sm:$0xf] %vm5046, %v10954
        %11019 = vst.msk [vmem:[%s375 + $0x8] sm:$0xf] %vm5046, %v10955
        %11020 = vst.msk [vmem:[%s375 + $0xc] sm:$0xf] %vm5046, %v10956
        %11021 = vst.msk [vmem:[%s375 + $0x10] sm:$0xf] %vm5046, %v10957
        %11022 = vst.msk [vmem:[%s375 + $0x14] sm:$0xf] %vm5046, %v10958
        %11023 = vst.msk [vmem:[%s375 + $0x18] sm:$0xf] %vm5046, %v10959
        %11024 = vst.msk [vmem:[%s375 + $0x1c] sm:$0xf] %vm5046, %v10960
        %11025 = vst.msk [vmem:[%s375 + $0x20] sm:$0xf] %vm5046, %v10961
        %11026 = vst.msk [vmem:[%s375 + $0x24] sm:$0xf] %vm5046, %v10962
        %11027 = vst.msk [vmem:[%s375 + $0x28] sm:$0xf] %vm5046, %v10963
        %11028 = vst.msk [vmem:[%s375 + $0x2c] sm:$0xf] %vm5046, %v10964
        %11029 = vst.msk [vmem:[%s375 + $0x30] sm:$0xf] %vm5046, %v10965
        %11030 = vst.msk [vmem:[%s375 + $0x34] sm:$0xf] %vm5046, %v10966
        %11031 = vst.msk [vmem:[%s375 + $0x38] sm:$0xf] %vm5046, %v10967
        %11032 = vst.msk [vmem:[%s375 + $0x3c] sm:$0xf] %vm5046, %v10968
        %11033 = vst.msk [vmem:[%s375 + $0x40] sm:$0xf] %vm5046, %v10969
        %11034 = vst.msk [vmem:[%s375 + $0x44] sm:$0xf] %vm5046, %v10970
        %11035 = vst.msk [vmem:[%s375 + $0x48] sm:$0xf] %vm5046, %v10971
        %11036 = vst.msk [vmem:[%s375 + $0x4c] sm:$0xf] %vm5046, %v10972
        %11037 = vst.msk [vmem:[%s375 + $0x50] sm:$0xf] %vm5046, %v10973
        %11038 = vst.msk [vmem:[%s375 + $0x54] sm:$0xf] %vm5046, %v10974
        %11039 = vst.msk [vmem:[%s375 + $0x58] sm:$0xf] %vm5046, %v10975
        %11040 = vst.msk [vmem:[%s375 + $0x5c] sm:$0xf] %vm5046, %v10976
        %11041 = vst.msk [vmem:[%s375 + $0x60] sm:$0xf] %vm5046, %v10977
        %11042 = vst.msk [vmem:[%s375 + $0x64] sm:$0xf] %vm5046, %v10978
        %11043 = vst.msk [vmem:[%s375 + $0x68] sm:$0xf] %vm5046, %v10979
        %11044 = vst.msk [vmem:[%s375 + $0x6c] sm:$0xf] %vm5046, %v10980
        %11045 = vst.msk [vmem:[%s375 + $0x70] sm:$0xf] %vm5046, %v10981
        %11046 = vst.msk [vmem:[%s375 + $0x74] sm:$0xf] %vm5046, %v10982
        %11047 = vst.msk [vmem:[%s375 + $0x78] sm:$0xf] %vm5046, %v10983
        %11048 = vst.msk [vmem:[%s375 + $0x7c] sm:$0xf] %vm5046, %v10984
        %s11049 = sand.u32 %s187, 1
        %s11050 = scalar_lea.sflag [#allocation5], %s11049
        %s11051 = sand.u32 %s187, 1
        %s11052 = smul.addr %s11051, 128
        %s11053 = scalar_lea.vmem [#allocation15], %s11052
        // Predicated region
        $region77: #{basic_block_forward.1} parent=47 // pred_check
          %p11054 = pneg %p197
        $region78: #{basic_block_forward.1} parent=47 // pred_check_branch
          %11056 = sbr.rel (%p11054) target = $region80
        $region79: #{basic_block_forward.1} parent=47 // pred_region
          %s11058 = ssub.s32 2048, 2048
          %11059 = vsyncadd %s11050, %s11058
          %s11060 = smul.addr %s27, 32
          %s11061 = smul.addr %s11060, 64
          %s11062 = scalar_lea.hbm %s7, %s11061
          %s11063 = sshll.u32 %s11053, 4
          %s11064 = int_to_ptr.vmem [resolvable:$true] %s11063
          %11069 = dma.vmem_to_hbm [thread:$0]  %s11064, 2048, %s11062, %s11050, 64, 64, 4
        $region80: #{basic_block_forward.1} parent=47 // pred_fallthru
          _
      $region48: #{basic_block_forward.1} parent=5 // pred_fallthru
        _
      %p11070 = scmp.le.s32.totalorder 2, %s22
      // Predicated region
      $region81: #{basic_block_forward.1} parent=5 // pred_check
        %p11071 = pneg %p11070
      $region82: #{basic_block_forward.1} parent=5 // pred_check_branch
        %11073 = sbr.rel (%p11071) target = $region84
      $region83: #{basic_block_forward.1} parent=5 // pred_region
        %s11074 = ssub.s32 %s22, 2
        // Predicated region
        $region85: #{basic_block_forward.1} parent=83 // pred_check
          %p11075 = pneg %p203
        $region86: #{basic_block_forward.1} parent=83 // pred_check_branch
          %11077 = sbr.rel (%p11075) target = $region88
        $region87: #{basic_block_forward.1} parent=83 // pred_region
          %s11078 = sand.u32 %s188, 1
          %s11079 = scalar_lea.sflag [#allocation5], %s11078
          %s11080 = sand.u32 %s188, 1
          %s11081 = smul.addr %s11080, 128
          %s11082 = scalar_lea.vmem [#allocation15], %s11081
          %11083 = dma.done %s11079, 2048
        $region88: #{basic_block_forward.1} parent=83 // pred_fallthru
          _
      $region84: #{basic_block_forward.1} parent=5 // pred_fallthru
        _
    $region6: #{basic_block_forward.1} parent=1 // loop_footer
      %s26 = sadd.s32 1, %s22
    $region7: #{basic_block_forward.1} parent=1 // loop_footer_branch
      %21 = sbr.rel target = $region3
    $region8: #{basic_block_forward.1} parent=1 // loop_exit
      _
    %11084 = vsyncpa [#allocation4], 1
    %s11085 = scalar_lea.sflag [#allocation4], 1
    %11086 = vsyncpa %s11085, 1
    %11087 = vsyncpa [#allocation7], 1
    %11088 = vsyncpa [#allocation10], 1
    %11089 = vsyncpa [#allocation13], 1
    %11090 = vsyncpa [#allocation5], 1
    %s11091 = scalar_lea.sflag [#allocation5], 1
    %11092 = vsyncpa %s11091, 1

</llo_original>
